<compile_context>
chip_gen: v5e
topology: v5e:2x2
jax: 0.10.0
libtpu: 0.0.40
codegen_flags: <defaults>
</compile_context>

<pallas_src>
import functools

import jax
import jax.numpy as jnp
from jax.experimental import pallas as pl
from jax.experimental.pallas import tpu as pltpu


FRAMES_PER_BLOCK = 128  # frames per grid step; must be a multiple of 128 so
                        # every per-pixel frame column is one aligned vreg.


# -------------------------------------------------------------------------
# fused kernel: in-kernel im2col -> conv matmul -> ReLU -> mean pool ->
#               Linear -> Linear, for one block of FB frames
# -------------------------------------------------------------------------
def _cnn_block_kernel(x_ref, wct_ref, bc_ref, w1_ref, b1_ref, wr_ref, br_ref,
                      o_ref, patches_ref, *, C, H, W, FB):
    """x_ref block: (1, C, P2*FB) with lane index = padded_pixel * FB + frame."""
    Wp = W + 2
    P2 = (H + 2) * Wp            # pixels per zero-padded frame
    OFF = Wp + 1                 # first padded pixel whose 3x3 window is in-bounds
    NI = P2 - 2 * OFF            # conv-output pixel positions kept per frame
    LI = NI * FB                 # lanes of the conv activation

    # One up-convert pass (input ships as bf16 to halve HBM traffic).
    xb = x_ref[0].astype(jnp.float32)                     # (C, P2*FB)

    # In-kernel im2col: each 3x3 tap is a whole-vreg-aligned lane slice of the
    # padded block (shift is a multiple of FB=128 lanes), written to one row
    # group of the patches scratch.  Tap-major / channel-minor row order
    # matches the weight layout built in the wrapper.
    k = 0
    for di in (-1, 0, 1):
        for dj in (-1, 0, 1):
            s = (OFF + di * Wp + dj) * FB                 # 128-lane aligned
            patches_ref[k * C:(k + 1) * C, :] = xb[:, s:s + LI]
            k += 1

    # 3x3 conv as one lane-dense MXU matmul: (Cc, 9C) @ (9C, NI*FB).
    conv = jnp.dot(wct_ref[...], patches_ref[...],
                   preferred_element_type=jnp.float32)    # (Cc, LI)
    act = jnp.maximum(conv + bc_ref[...], 0.0)            # bias + ReLU

    # Global spatial mean: each interior pixel is one aligned FB-wide vreg
    # column, so pooling is H + W aligned slice-adds (VPU only, no relayout,
    # no quadratic pool matmul).
    wlanes = W * FB
    row_sum = act[:, 0:wlanes]
    for i in range(1, H):
        s = i * Wp * FB
        row_sum = row_sum + act[:, s:s + wlanes]          # (Cc, W*FB)
    pooled = row_sum[:, 0:FB]
    for j in range(1, W):
        pooled = pooled + row_sum[:, j * FB:(j + 1) * FB]  # (Cc, FB)
    pooled = pooled * (1.0 / float(H * W))

    # CNNLayer output Linear (frames on lanes): (Do, Cc) @ (Cc, FB) -> (Do, FB)
    feat = jnp.dot(w1_ref[...], pooled,
                   preferred_element_type=jnp.float32) + b1_ref[...]

    # `res` head Linear: (Cls, Do) @ (Do, FB) -> (Cls, FB), lane-dense store.
    out_t = jnp.dot(wr_ref[...], feat,
                    preferred_element_type=jnp.float32) + br_ref[...]
    o_ref[0] = out_t


# -------------------------------------------------------------------------
# wrapper
# -------------------------------------------------------------------------
@functools.partial(jax.jit, static_argnames=("frames_per_block", "io_dtype"))
def cnn_forward(params, spectrograms, *, frames_per_block=FRAMES_PER_BLOCK,
                io_dtype=jnp.bfloat16):
    """CNN.forward: spectrograms (N, C, H, W) -> (logits (N, n_classes), log)."""
    FB = frames_per_block
    assert FB % 128 == 0, "frames_per_block must be a multiple of 128"

    x = spectrograms.astype(jnp.float32)
    N, C, H, W = x.shape
    Wp, Hp = W + 2, H + 2
    P2 = Hp * Wp
    G = (N + FB - 1) // FB
    Np = G * FB

    # Pad the batch to whole frame blocks and apply the SAME spatial padding,
    # then (layout plumbing, XLA side) put frames minor on the lane axis:
    # lane index = padded_pixel * FB + frame.
    xp = jnp.pad(x, ((0, Np - N), (0, 0), (1, 1), (1, 1))).astype(io_dtype)
    xr = (xp.reshape(G, FB, C, P2)
            .transpose(0, 2, 3, 1)
            .reshape(G, C, P2 * FB))                       # (G, C, P2*FB)

    # Parameters in the orientation the kernel consumes.
    conv_w = params["conv_w"]                              # (Cc, C, 3, 3)
    Cc = conv_w.shape[0]
    # tap-major / channel-minor, matching the in-kernel patch row order
    wct = conv_w.transpose(0, 2, 3, 1).reshape(Cc, 9 * C).astype(jnp.float32)
    bc = params["conv_b"].reshape(Cc, 1).astype(jnp.float32)
    w1 = params["lin1_w"].astype(jnp.float32)              # (Do, Cc)
    Do = w1.shape[0]
    b1 = params["lin1_b"].reshape(Do, 1).astype(jnp.float32)
    wr = params["res_w"].astype(jnp.float32)               # (Cls, Do)
    Cls = wr.shape[0]
    br = params["res_b"].reshape(Cls, 1).astype(jnp.float32)

    OFF = Wp + 1
    NI = P2 - 2 * OFF
    LI = NI * FB
    KC = 9 * C

    kernel = functools.partial(_cnn_block_kernel, C=C, H=H, W=W, FB=FB)

    def full(shape):
        return pl.BlockSpec(shape, lambda g: (0,) * len(shape))

    out_t = pl.pallas_call(
        kernel,
        out_shape=jax.ShapeDtypeStruct((G, Cls, FB), jnp.float32),
        grid=(G,),
        in_specs=[
            pl.BlockSpec((1, C, P2 * FB), lambda g: (g, 0, 0)),  # frame block
            full((Cc, KC)),
            full((Cc, 1)),
            full((Do, Cc)),
            full((Do, 1)),
            full((Cls, Do)),
            full((Cls, 1)),
        ],
        out_specs=pl.BlockSpec((1, Cls, FB), lambda g: (g, 0, 0)),
        scratch_shapes=[pltpu.VMEM((KC, LI), jnp.float32)],   # im2col patches
        compiler_params=pltpu.CompilerParams(
            dimension_semantics=("parallel",),                # blocks independent
        ),
    )(xr, wct, bc, w1, b1, wr, br)

    # (G, Cls, FB) -> (N, Cls); tiny XLA-side untranspose of the logits.
    out = jnp.transpose(out_t, (0, 2, 1)).reshape(Np, Cls)[:N]
    return out, {}


# -------------------------------------------------------------------------
# parameters & pure-JAX reference (correctness check)
# -------------------------------------------------------------------------
def init_params(key, *, in_ch=1, conv_ch=8, out_size=32, n_classes=4):
    ks = jax.random.split(key, 6)
    s = 0.1
    return {
        # CNNLayer: Conv2d(in_ch, conv_ch, 3, padding=1) + Linear(conv_ch, out_size)
        "conv_w": s * jax.random.normal(ks[0], (conv_ch, in_ch, 3, 3), jnp.float32),
        "conv_b": s * jax.random.normal(ks[1], (conv_ch,), jnp.float32),
        "lin1_w": s * jax.random.normal(ks[2], (out_size, conv_ch), jnp.float32),
        "lin1_b": s * jax.random.normal(ks[3], (out_size,), jnp.float32),
        # CNN.res: Linear(out_size, n_classes)
        "res_w": s * jax.random.normal(ks[4], (n_classes, out_size), jnp.float32),
        "res_b": s * jax.random.normal(ks[5], (n_classes,), jnp.float32),
    }


def reference_forward(params, x):
    """Plain-JAX reference matching the PyTorch module semantics."""
    with jax.default_matmul_precision("highest"):
        conv = jax.lax.conv_general_dilated(
            x, params["conv_w"], window_strides=(1, 1), padding="SAME",
            dimension_numbers=("NCHW", "OIHW", "NCHW"))
        act = jnp.maximum(conv + params["conv_b"][None, :, None, None], 0.0)
        pooled = act.mean(axis=(2, 3))                     # (N, Cc)
        feat = pooled @ params["lin1_w"].T + params["lin1_b"]
        out = feat @ params["res_w"].T + params["res_b"]
    return out


# -------------------------------------------------------------------------
if __name__ == "__main__":
    key = jax.random.PRNGKey(0)
    k_x, k_p = jax.random.split(key)

    # Small shapes; N=200 -> 2 frame blocks of 128 (exercises batch padding
    # and gives the "parallel" grid axis two blocks for megacore).
    N, in_ch, image_size, n_classes = 200, 1, 16, 4
    spectrograms = jax.random.normal(
        k_x, (N, in_ch, image_size, image_size), jnp.float32)
    params = init_params(k_p, in_ch=in_ch, conv_ch=8, out_size=32,
                         n_classes=n_classes)

    out, _log = cnn_forward(params, spectrograms)
    out = jax.block_until_ready(out)

    assert out.shape == (N, n_classes)
    assert bool(jnp.all(jnp.isfinite(out)))

    ref = reference_forward(params, spectrograms)
    max_err = float(jnp.max(jnp.abs(out - ref)))
    assert max_err < 3e-3, f"mismatch vs reference: {max_err}"

    print("KERNEL_OK")
</pallas_src>

<mosaic_0001>
module attributes {stable_mosaic.version = 11 : i64} {
  func.func @_cnn_block_kernel(%arg0: i32, %arg1: memref<1x1x41472xbf16, #tpu.memory_space<vmem>>, %arg2: memref<8x9xf32, #tpu.memory_space<vmem>>, %arg3: memref<8x1xf32, #tpu.memory_space<vmem>>, %arg4: memref<32x8xf32, #tpu.memory_space<vmem>>, %arg5: memref<32x1xf32, #tpu.memory_space<vmem>>, %arg6: memref<4x32xf32, #tpu.memory_space<vmem>>, %arg7: memref<4x1xf32, #tpu.memory_space<vmem>>, %arg8: memref<1x4x128xf32, #tpu.memory_space<vmem>>, %arg9: memref<9x36608xf32, #tpu.memory_space<vmem>>) attributes {dimension_semantics = [#tpu.dimension_semantics<parallel>], iteration_bounds = array<i64: 2>, scalar_prefetch = 0 : i64, scratch_operands = 1 : i64, tpu.core_type = #tpu.core_type<tc>, window_params = [{transform_indices = @transform_0, window_bounds = array<i64: 1, 1, 41472>}, {pipeline_mode = #tpu.pipeline_mode<synchronous>, transform_indices = @transform_1, window_bounds = array<i64: 8, 9>}, {pipeline_mode = #tpu.pipeline_mode<synchronous>, transform_indices = @transform_2, window_bounds = array<i64: 8, 1>}, {pipeline_mode = #tpu.pipeline_mode<synchronous>, transform_indices = @transform_3, window_bounds = array<i64: 32, 8>}, {pipeline_mode = #tpu.pipeline_mode<synchronous>, transform_indices = @transform_4, window_bounds = array<i64: 32, 1>}, {pipeline_mode = #tpu.pipeline_mode<synchronous>, transform_indices = @transform_5, window_bounds = array<i64: 4, 32>}, {pipeline_mode = #tpu.pipeline_mode<synchronous>, transform_indices = @transform_6, window_bounds = array<i64: 4, 1>}, {transform_indices = @transform_7, window_bounds = array<i64: 1, 4, 128>}]} {
    %c0 = arith.constant 0 : index
    %c0_0 = arith.constant 0 : index
    %c0_1 = arith.constant 0 : index
    %0 = vector.load %arg1[%c0, %c0_0, %c0_1] : memref<1x1x41472xbf16, #tpu.memory_space<vmem>>, vector<1x1x41472xbf16>
    %1 = vector.shape_cast %0 : vector<1x1x41472xbf16> to vector<1x41472xbf16>
    %2 = arith.extf %1 : vector<1x41472xbf16> to vector<1x41472xf32>
    %3 = vector.extract_strided_slice %2 {offsets = [0, 0], sizes = [1, 36608], strides = [1, 1]} : vector<1x41472xf32> to vector<1x36608xf32>
    %c0_2 = arith.constant 0 : index
    %c0_3 = arith.constant 0 : index
    %4 = vector.load %arg9[%c0_2, %c0_3] : memref<9x36608xf32, #tpu.memory_space<vmem>>, vector<1x36608xf32>
    tpu.vector_store %arg9[%c0_2, %c0_3], %3 {strides = array<i32>} : memref<9x36608xf32, #tpu.memory_space<vmem>>, vector<1x36608xf32>,
    %5 = vector.extract_strided_slice %2 {offsets = [0, 128], sizes = [1, 36608], strides = [1, 1]} : vector<1x41472xf32> to vector<1x36608xf32>
    %c1 = arith.constant 1 : index
    %c0_4 = arith.constant 0 : index
    %6 = vector.load %arg9[%c1, %c0_4] : memref<9x36608xf32, #tpu.memory_space<vmem>>, vector<1x36608xf32>
    tpu.vector_store %arg9[%c1, %c0_4], %5 {strides = array<i32>} : memref<9x36608xf32, #tpu.memory_space<vmem>>, vector<1x36608xf32>,
    %7 = vector.extract_strided_slice %2 {offsets = [0, 256], sizes = [1, 36608], strides = [1, 1]} : vector<1x41472xf32> to vector<1x36608xf32>
    %c2 = arith.constant 2 : index
    %c0_5 = arith.constant 0 : index
    %8 = vector.load %arg9[%c2, %c0_5] : memref<9x36608xf32, #tpu.memory_space<vmem>>, vector<1x36608xf32>
    tpu.vector_store %arg9[%c2, %c0_5], %7 {strides = array<i32>} : memref<9x36608xf32, #tpu.memory_space<vmem>>, vector<1x36608xf32>,
    %9 = vector.extract_strided_slice %2 {offsets = [0, 2304], sizes = [1, 36608], strides = [1, 1]} : vector<1x41472xf32> to vector<1x36608xf32>
    %c3 = arith.constant 3 : index
    %c0_6 = arith.constant 0 : index
    %10 = vector.load %arg9[%c3, %c0_6] : memref<9x36608xf32, #tpu.memory_space<vmem>>, vector<1x36608xf32>
    tpu.vector_store %arg9[%c3, %c0_6], %9 {strides = array<i32>} : memref<9x36608xf32, #tpu.memory_space<vmem>>, vector<1x36608xf32>,
    %11 = vector.extract_strided_slice %2 {offsets = [0, 2432], sizes = [1, 36608], strides = [1, 1]} : vector<1x41472xf32> to vector<1x36608xf32>
    %c4 = arith.constant 4 : index
    %c0_7 = arith.constant 0 : index
    %12 = vector.load %arg9[%c4, %c0_7] : memref<9x36608xf32, #tpu.memory_space<vmem>>, vector<1x36608xf32>
    tpu.vector_store %arg9[%c4, %c0_7], %11 {strides = array<i32>} : memref<9x36608xf32, #tpu.memory_space<vmem>>, vector<1x36608xf32>,
    %13 = vector.extract_strided_slice %2 {offsets = [0, 2560], sizes = [1, 36608], strides = [1, 1]} : vector<1x41472xf32> to vector<1x36608xf32>
    %c5 = arith.constant 5 : index
    %c0_8 = arith.constant 0 : index
    %14 = vector.load %arg9[%c5, %c0_8] : memref<9x36608xf32, #tpu.memory_space<vmem>>, vector<1x36608xf32>
    tpu.vector_store %arg9[%c5, %c0_8], %13 {strides = array<i32>} : memref<9x36608xf32, #tpu.memory_space<vmem>>, vector<1x36608xf32>,
    %15 = vector.extract_strided_slice %2 {offsets = [0, 4608], sizes = [1, 36608], strides = [1, 1]} : vector<1x41472xf32> to vector<1x36608xf32>
    %c6 = arith.constant 6 : index
    %c0_9 = arith.constant 0 : index
    %16 = vector.load %arg9[%c6, %c0_9] : memref<9x36608xf32, #tpu.memory_space<vmem>>, vector<1x36608xf32>
    tpu.vector_store %arg9[%c6, %c0_9], %15 {strides = array<i32>} : memref<9x36608xf32, #tpu.memory_space<vmem>>, vector<1x36608xf32>,
    %17 = vector.extract_strided_slice %2 {offsets = [0, 4736], sizes = [1, 36608], strides = [1, 1]} : vector<1x41472xf32> to vector<1x36608xf32>
    %c7 = arith.constant 7 : index
    %c0_10 = arith.constant 0 : index
    %18 = vector.load %arg9[%c7, %c0_10] : memref<9x36608xf32, #tpu.memory_space<vmem>>, vector<1x36608xf32>
    tpu.vector_store %arg9[%c7, %c0_10], %17 {strides = array<i32>} : memref<9x36608xf32, #tpu.memory_space<vmem>>, vector<1x36608xf32>,
    %19 = vector.extract_strided_slice %2 {offsets = [0, 4864], sizes = [1, 36608], strides = [1, 1]} : vector<1x41472xf32> to vector<1x36608xf32>
    %c8 = arith.constant 8 : index
    %c0_11 = arith.constant 0 : index
    %20 = vector.load %arg9[%c8, %c0_11] : memref<9x36608xf32, #tpu.memory_space<vmem>>, vector<1x36608xf32>
    tpu.vector_store %arg9[%c8, %c0_11], %19 {strides = array<i32>} : memref<9x36608xf32, #tpu.memory_space<vmem>>, vector<1x36608xf32>,
    %c0_12 = arith.constant 0 : index
    %c0_13 = arith.constant 0 : index
    %21 = vector.load %arg2[%c0_12, %c0_13] : memref<8x9xf32, #tpu.memory_space<vmem>>, vector<8x9xf32>
    %c0_14 = arith.constant 0 : index
    %c0_15 = arith.constant 0 : index
    %22 = vector.load %arg9[%c0_14, %c0_15] : memref<9x36608xf32, #tpu.memory_space<vmem>>, vector<9x36608xf32>
    %cst = arith.constant dense<0.000000e+00> : vector<8x36608xf32>
    %23 = tpu.matmul %21, %22, %cst {dimension_numbers = #tpu.dot_dimension_numbers<[1], [0], [0], [1], [0, 0, 1, 1], [], []>} : vector<8x9xf32>, vector<9x36608xf32>, vector<8x36608xf32> -> vector<8x36608xf32>
    %c0_16 = arith.constant 0 : index
    %c0_17 = arith.constant 0 : index
    %24 = vector.load %arg3[%c0_16, %c0_17] : memref<8x1xf32, #tpu.memory_space<vmem>>, vector<8x1xf32>
    %25 = vector.broadcast %24 : vector<8x1xf32> to vector<8x36608xf32>
    %26 = arith.addf %23, %25 : vector<8x36608xf32>
    %cst_18 = arith.constant 0.000000e+00 : f32
    %27 = vector.broadcast %cst_18 : f32 to vector<8x36608xf32>
    %28 = arith.maximumf %26, %27 : vector<8x36608xf32>
    %29 = vector.extract_strided_slice %28 {offsets = [0, 0], sizes = [8, 2048], strides = [1, 1]} : vector<8x36608xf32> to vector<8x2048xf32>
    %30 = vector.extract_strided_slice %28 {offsets = [0, 2304], sizes = [8, 2048], strides = [1, 1]} : vector<8x36608xf32> to vector<8x2048xf32>
    %31 = arith.addf %29, %30 : vector<8x2048xf32>
    %32 = vector.extract_strided_slice %28 {offsets = [0, 4608], sizes = [8, 2048], strides = [1, 1]} : vector<8x36608xf32> to vector<8x2048xf32>
    %33 = arith.addf %31, %32 : vector<8x2048xf32>
    %34 = vector.extract_strided_slice %28 {offsets = [0, 6912], sizes = [8, 2048], strides = [1, 1]} : vector<8x36608xf32> to vector<8x2048xf32>
    %35 = arith.addf %33, %34 : vector<8x2048xf32>
    %36 = vector.extract_strided_slice %28 {offsets = [0, 9216], sizes = [8, 2048], strides = [1, 1]} : vector<8x36608xf32> to vector<8x2048xf32>
    %37 = arith.addf %35, %36 : vector<8x2048xf32>
    %38 = vector.extract_strided_slice %28 {offsets = [0, 11520], sizes = [8, 2048], strides = [1, 1]} : vector<8x36608xf32> to vector<8x2048xf32>
    %39 = arith.addf %37, %38 : vector<8x2048xf32>
    %40 = vector.extract_strided_slice %28 {offsets = [0, 13824], sizes = [8, 2048], strides = [1, 1]} : vector<8x36608xf32> to vector<8x2048xf32>
    %41 = arith.addf %39, %40 : vector<8x2048xf32>
    %42 = vector.extract_strided_slice %28 {offsets = [0, 16128], sizes = [8, 2048], strides = [1, 1]} : vector<8x36608xf32> to vector<8x2048xf32>
    %43 = arith.addf %41, %42 : vector<8x2048xf32>
    %44 = vector.extract_strided_slice %28 {offsets = [0, 18432], sizes = [8, 2048], strides = [1, 1]} : vector<8x36608xf32> to vector<8x2048xf32>
    %45 = arith.addf %43, %44 : vector<8x2048xf32>
    %46 = vector.extract_strided_slice %28 {offsets = [0, 20736], sizes = [8, 2048], strides = [1, 1]} : vector<8x36608xf32> to vector<8x2048xf32>
    %47 = arith.addf %45, %46 : vector<8x2048xf32>
    %48 = vector.extract_strided_slice %28 {offsets = [0, 23040], sizes = [8, 2048], strides = [1, 1]} : vector<8x36608xf32> to vector<8x2048xf32>
    %49 = arith.addf %47, %48 : vector<8x2048xf32>
    %50 = vector.extract_strided_slice %28 {offsets = [0, 25344], sizes = [8, 2048], strides = [1, 1]} : vector<8x36608xf32> to vector<8x2048xf32>
    %51 = arith.addf %49, %50 : vector<8x2048xf32>
    %52 = vector.extract_strided_slice %28 {offsets = [0, 27648], sizes = [8, 2048], strides = [1, 1]} : vector<8x36608xf32> to vector<8x2048xf32>
    %53 = arith.addf %51, %52 : vector<8x2048xf32>
    %54 = vector.extract_strided_slice %28 {offsets = [0, 29952], sizes = [8, 2048], strides = [1, 1]} : vector<8x36608xf32> to vector<8x2048xf32>
    %55 = arith.addf %53, %54 : vector<8x2048xf32>
    %56 = vector.extract_strided_slice %28 {offsets = [0, 32256], sizes = [8, 2048], strides = [1, 1]} : vector<8x36608xf32> to vector<8x2048xf32>
    %57 = arith.addf %55, %56 : vector<8x2048xf32>
    %58 = vector.extract_strided_slice %28 {offsets = [0, 34560], sizes = [8, 2048], strides = [1, 1]} : vector<8x36608xf32> to vector<8x2048xf32>
    %59 = arith.addf %57, %58 : vector<8x2048xf32>
    %60 = vector.extract_strided_slice %59 {offsets = [0, 0], sizes = [8, 128], strides = [1, 1]} : vector<8x2048xf32> to vector<8x128xf32>
    %61 = vector.extract_strided_slice %59 {offsets = [0, 128], sizes = [8, 128], strides = [1, 1]} : vector<8x2048xf32> to vector<8x128xf32>
    %62 = arith.addf %60, %61 : vector<8x128xf32>
    %63 = vector.extract_strided_slice %59 {offsets = [0, 256], sizes = [8, 128], strides = [1, 1]} : vector<8x2048xf32> to vector<8x128xf32>
    %64 = arith.addf %62, %63 : vector<8x128xf32>
    %65 = vector.extract_strided_slice %59 {offsets = [0, 384], sizes = [8, 128], strides = [1, 1]} : vector<8x2048xf32> to vector<8x128xf32>
    %66 = arith.addf %64, %65 : vector<8x128xf32>
    %67 = vector.extract_strided_slice %59 {offsets = [0, 512], sizes = [8, 128], strides = [1, 1]} : vector<8x2048xf32> to vector<8x128xf32>
    %68 = arith.addf %66, %67 : vector<8x128xf32>
    %69 = vector.extract_strided_slice %59 {offsets = [0, 640], sizes = [8, 128], strides = [1, 1]} : vector<8x2048xf32> to vector<8x128xf32>
    %70 = arith.addf %68, %69 : vector<8x128xf32>
    %71 = vector.extract_strided_slice %59 {offsets = [0, 768], sizes = [8, 128], strides = [1, 1]} : vector<8x2048xf32> to vector<8x128xf32>
    %72 = arith.addf %70, %71 : vector<8x128xf32>
    %73 = vector.extract_strided_slice %59 {offsets = [0, 896], sizes = [8, 128], strides = [1, 1]} : vector<8x2048xf32> to vector<8x128xf32>
    %74 = arith.addf %72, %73 : vector<8x128xf32>
    %75 = vector.extract_strided_slice %59 {offsets = [0, 1024], sizes = [8, 128], strides = [1, 1]} : vector<8x2048xf32> to vector<8x128xf32>
    %76 = arith.addf %74, %75 : vector<8x128xf32>
    %77 = vector.extract_strided_slice %59 {offsets = [0, 1152], sizes = [8, 128], strides = [1, 1]} : vector<8x2048xf32> to vector<8x128xf32>
    %78 = arith.addf %76, %77 : vector<8x128xf32>
    %79 = vector.extract_strided_slice %59 {offsets = [0, 1280], sizes = [8, 128], strides = [1, 1]} : vector<8x2048xf32> to vector<8x128xf32>
    %80 = arith.addf %78, %79 : vector<8x128xf32>
    %81 = vector.extract_strided_slice %59 {offsets = [0, 1408], sizes = [8, 128], strides = [1, 1]} : vector<8x2048xf32> to vector<8x128xf32>
    %82 = arith.addf %80, %81 : vector<8x128xf32>
    %83 = vector.extract_strided_slice %59 {offsets = [0, 1536], sizes = [8, 128], strides = [1, 1]} : vector<8x2048xf32> to vector<8x128xf32>
    %84 = arith.addf %82, %83 : vector<8x128xf32>
    %85 = vector.extract_strided_slice %59 {offsets = [0, 1664], sizes = [8, 128], strides = [1, 1]} : vector<8x2048xf32> to vector<8x128xf32>
    %86 = arith.addf %84, %85 : vector<8x128xf32>
    %87 = vector.extract_strided_slice %59 {offsets = [0, 1792], sizes = [8, 128], strides = [1, 1]} : vector<8x2048xf32> to vector<8x128xf32>
    %88 = arith.addf %86, %87 : vector<8x128xf32>
    %89 = vector.extract_strided_slice %59 {offsets = [0, 1920], sizes = [8, 128], strides = [1, 1]} : vector<8x2048xf32> to vector<8x128xf32>
    %90 = arith.addf %88, %89 : vector<8x128xf32>
    %cst_19 = arith.constant 3.906250e-03 : f32
    %91 = vector.broadcast %cst_19 : f32 to vector<8x128xf32>
    %92 = arith.mulf %90, %91 : vector<8x128xf32>
    %c0_20 = arith.constant 0 : index
    %c0_21 = arith.constant 0 : index
    %93 = vector.load %arg4[%c0_20, %c0_21] : memref<32x8xf32, #tpu.memory_space<vmem>>, vector<32x8xf32>
    %cst_22 = arith.constant dense<0.000000e+00> : vector<32x128xf32>
    %94 = tpu.matmul %93, %92, %cst_22 {dimension_numbers = #tpu.dot_dimension_numbers<[1], [0], [0], [1], [0, 0, 1, 1], [], []>} : vector<32x8xf32>, vector<8x128xf32>, vector<32x128xf32> -> vector<32x128xf32>
    %c0_23 = arith.constant 0 : index
    %c0_24 = arith.constant 0 : index
    %95 = vector.load %arg5[%c0_23, %c0_24] : memref<32x1xf32, #tpu.memory_space<vmem>>, vector<32x1xf32>
    %96 = vector.broadcast %95 : vector<32x1xf32> to vector<32x128xf32>
    %97 = arith.addf %94, %96 : vector<32x128xf32>
    %c0_25 = arith.constant 0 : index
    %c0_26 = arith.constant 0 : index
    %98 = vector.load %arg6[%c0_25, %c0_26] : memref<4x32xf32, #tpu.memory_space<vmem>>, vector<4x32xf32>
    %cst_27 = arith.constant dense<0.000000e+00> : vector<4x128xf32>
    %99 = tpu.matmul %98, %97, %cst_27 {dimension_numbers = #tpu.dot_dimension_numbers<[1], [0], [0], [1], [0, 0, 1, 1], [], []>} : vector<4x32xf32>, vector<32x128xf32>, vector<4x128xf32> -> vector<4x128xf32>
    %c0_28 = arith.constant 0 : index
    %c0_29 = arith.constant 0 : index
    %100 = vector.load %arg7[%c0_28, %c0_29] : memref<4x1xf32, #tpu.memory_space<vmem>>, vector<4x1xf32>
    %101 = vector.broadcast %100 : vector<4x1xf32> to vector<4x128xf32>
    %102 = arith.addf %99, %101 : vector<4x128xf32>
    %c0_30 = arith.constant 0 : index
    %c0_31 = arith.constant 0 : index
    %c0_32 = arith.constant 0 : index
    %103 = vector.load %arg8[%c0_30, %c0_31, %c0_32] : memref<1x4x128xf32, #tpu.memory_space<vmem>>, vector<1x4x128xf32>
    %104 = vector.shape_cast %103 : vector<1x4x128xf32> to vector<4x128xf32>
    %105 = vector.shape_cast %102 : vector<4x128xf32> to vector<1x4x128xf32>
    tpu.vector_store %arg8[%c0_30, %c0_31, %c0_32], %105 {strides = array<i32>} : memref<1x4x128xf32, #tpu.memory_space<vmem>>, vector<1x4x128xf32>,
    return
  }
  func.func @transform_0(%arg0: i32) -> (i32, i32, i32) {
    %c0_i32 = arith.constant 0 : i32
    %c0_i32_0 = arith.constant 0 : i32
    %c0_i32_1 = arith.constant 0 : i32
    return %arg0, %c0_i32, %c0_i32_0 : i32, i32, i32
  }
  func.func @transform_1(%arg0: i32) -> (i32, i32) {
    %c0_i32 = arith.constant 0 : i32
    %c0_i32_0 = arith.constant 0 : i32
    %c0_i32_1 = arith.constant 0 : i32
    return %c0_i32, %c0_i32_0 : i32, i32
  }
  func.func @transform_2(%arg0: i32) -> (i32, i32) {
    %c0_i32 = arith.constant 0 : i32
    %c0_i32_0 = arith.constant 0 : i32
    %c0_i32_1 = arith.constant 0 : i32
    return %c0_i32, %c0_i32_0 : i32, i32
  }
  func.func @transform_3(%arg0: i32) -> (i32, i32) {
    %c0_i32 = arith.constant 0 : i32
    %c0_i32_0 = arith.constant 0 : i32
    %c0_i32_1 = arith.constant 0 : i32
    return %c0_i32, %c0_i32_0 : i32, i32
  }
  func.func @transform_4(%arg0: i32) -> (i32, i32) {
    %c0_i32 = arith.constant 0 : i32
    %c0_i32_0 = arith.constant 0 : i32
    %c0_i32_1 = arith.constant 0 : i32
    return %c0_i32, %c0_i32_0 : i32, i32
  }
  func.func @transform_5(%arg0: i32) -> (i32, i32) {
    %c0_i32 = arith.constant 0 : i32
    %c0_i32_0 = arith.constant 0 : i32
    %c0_i32_1 = arith.constant 0 : i32
    return %c0_i32, %c0_i32_0 : i32, i32
  }
  func.func @transform_6(%arg0: i32) -> (i32, i32) {
    %c0_i32 = arith.constant 0 : i32
    %c0_i32_0 = arith.constant 0 : i32
    %c0_i32_1 = arith.constant 0 : i32
    return %c0_i32, %c0_i32_0 : i32, i32
  }
  func.func @transform_7(%arg0: i32) -> (i32, i32, i32) {
    %c0_i32 = arith.constant 0 : i32
    %c0_i32_0 = arith.constant 0 : i32
    %c0_i32_1 = arith.constant 0 : i32
    return %arg0, %c0_i32, %c0_i32_0 : i32, i32, i32
  }
}

</mosaic_0001>

<llo_original>
// kernel: cnn_forward.1
$region0: #{cnn_forward.1}
  #allocation0 [shape = 'u32[]', space=smem, size = 0x4, offset = 0x4, fixed_abs, tag = 'smem constant byte address 0x4 - core index']
  #allocation1 [shape = 'u32[72,128]{1,0:T(1,128)}', space=vmem, size = 0x9000, scoped, tag = 'internal scratch']
  #allocation2 [shape = 'f32[9,36608]{1,0:T(8,128)}', space=vmem, size = 0x23c000, scoped, tag = 'scratch operand']
  %s0 = inlined_call_operand.vmem [shape: bf16[2,1,41472], index: 0, kind: input, shape index: {}]
  %s1 = inlined_call_operand.vmem [shape: f32[8,9], index: 1, kind: input, shape index: {}]
  %s2 = inlined_call_operand.vmem [shape: f32[8,1], index: 2, kind: input, shape index: {}]
  %s3 = inlined_call_operand.vmem [shape: f32[32,8], index: 3, kind: input, shape index: {}]
  %s4 = inlined_call_operand.vmem [shape: f32[32,1], index: 4, kind: input, shape index: {}]
  %s5 = inlined_call_operand.vmem [shape: f32[4,32], index: 5, kind: input, shape index: {}]
  %s6 = inlined_call_operand.vmem [shape: f32[4,1], index: 6, kind: input, shape index: {}]
  %s7 = inlined_call_operand.hbm [shape: f32[2,4,128], index: 7, kind: output, shape index: {}]
  %s8 = sld [smem:[#allocation0]]
  $region61: #{cnn_forward.1} parent=0
    _
  %s10 = ssub.s32 1, %s8
  %s11 = scalar_select 0, %s10, %s8
  $region1: #{cnn_forward.1} parent=0
    #allocation3 [shape = 'u8[4096]{0}', space=vmem, size = 0x1000, scoped, tag = 'output window, operand 0']
    #allocation4 [shape = 's32[2]{0}', space=sflag, size = 0x8, scoped, tag = 'scoped memory for cnn_forward.1']
    %12 = vsyncpa [#allocation4], 0
    %s13 = scalar_lea.sflag [#allocation4], 1
    %14 = vsyncpa %s13, 0
    loop: start=0, step=1, limit=4
    $region2: #{cnn_forward.1} parent=1 // loop_pre_header
      _
    $region3: #{cnn_forward.1} parent=1 // loop_header
      %s16 = sphi 0, %s20
      %p17 = scmp.ge.s32.totalorder %s16, 4
      %s26 = sphi 0, %s28
      %s29 = sphi 0, %s26
      %s30 = sphi 0, %s29
      %s46 = sphi 0, %s30
      %s50 = sphi 0, %s50
      %s52 = sphi 0, %s50
      %s53 = sphi 0, %s52
      %s67 = sphi 0, %s53
      %s71 = sphi 0, %s71
      %s73 = sphi 0, %s71
      %s74 = sphi 0, %s73
      %s88 = sphi 0, %s74
      %s92 = sphi 0, %s92
      %s94 = sphi 0, %s92
      %s95 = sphi 0, %s94
      %s109 = sphi 0, %s95
      %s113 = sphi 0, %s113
      %s115 = sphi 0, %s113
      %s116 = sphi 0, %s115
      %s130 = sphi 0, %s116
      %s134 = sphi 0, %s134
      %s136 = sphi 0, %s134
      %s137 = sphi 0, %s136
      %s151 = sphi 0, %s137
      %s155 = sphi 0, %s155
      %s157 = sphi 0, %s155
      %s158 = sphi 0, %s157
      %s172 = sphi 0, %s158
      %s178 = sphi 0, %s180
      %s181 = sphi 0, %s178
      %s182 = sphi 0, %s181
      %s198 = sphi 0, %s182
    $region4: #{cnn_forward.1} parent=1 // loop_header_branch
      %19 = sbr.rel (%p17) target = $region8
    $region5: #{cnn_forward.1} parent=1 // loop_body
      %s21 = ssub.s32 %s16, 1
      %s22 = ssub.s32 %s16, 2
      %s23 = sadd.s32 %s16, 1
      %s24 = ssub.s32 %s16, %s23
      %p25 = scmp.eq.s32.totalorder %s24, 0
      %s27 = sadd.s32 %s26, 1
      %s28 = scalar_select %p25, %s26, %s27
      %p31 = pneg %p25
      %p32 = scmp.eq.s32.totalorder %s16, 1
      %p33 = por %p31, %p32
      %p34 = scmp.ne.s32.totalorder %s26, %s29
      %p35 = scmp.eq.s32.totalorder %s16, 0
      %p36 = por %p34, %p35
      %p37 = scmp.ne.s32.totalorder %s26, %s29
      %p38 = scmp.eq.s32.totalorder %s21, 1
      %p39 = por %p37, %p38
      %p40 = scmp.ne.s32.totalorder %s29, %s30
      %p41 = scmp.eq.s32.totalorder %s21, 0
      %p42 = por %p40, %p41
      %p43 = scmp.ne.s32.totalorder %s29, %s30
      %p44 = scmp.eq.s32.totalorder %s22, 1
      %p45 = por %p43, %p44
      %p47 = scmp.ne.s32.totalorder %s30, %s46
      %p48 = scmp.eq.s32.totalorder %s22, 0
      %p49 = por %p47, %p48
      %s51 = sadd.s32 %s50, 1
      %p54 = scmp.eq.s32.totalorder %s16, 1
      %p55 = scmp.ne.s32.totalorder %s50, %s52
      %p56 = scmp.eq.s32.totalorder %s16, 0
      %p57 = por %p55, %p56
      %p58 = scmp.ne.s32.totalorder %s50, %s52
      %p59 = scmp.eq.s32.totalorder %s21, 1
      %p60 = por %p58, %p59
      %p61 = scmp.ne.s32.totalorder %s52, %s53
      %p62 = scmp.eq.s32.totalorder %s21, 0
      %p63 = por %p61, %p62
      %p64 = scmp.ne.s32.totalorder %s52, %s53
      %p65 = scmp.eq.s32.totalorder %s22, 1
      %p66 = por %p64, %p65
      %p68 = scmp.ne.s32.totalorder %s53, %s67
      %p69 = scmp.eq.s32.totalorder %s22, 0
      %p70 = por %p68, %p69
      %s72 = sadd.s32 %s71, 1
      %p75 = scmp.eq.s32.totalorder %s16, 1
      %p76 = scmp.ne.s32.totalorder %s71, %s73
      %p77 = scmp.eq.s32.totalorder %s16, 0
      %p78 = por %p76, %p77
      %p79 = scmp.ne.s32.totalorder %s71, %s73
      %p80 = scmp.eq.s32.totalorder %s21, 1
      %p81 = por %p79, %p80
      %p82 = scmp.ne.s32.totalorder %s73, %s74
      %p83 = scmp.eq.s32.totalorder %s21, 0
      %p84 = por %p82, %p83
      %p85 = scmp.ne.s32.totalorder %s73, %s74
      %p86 = scmp.eq.s32.totalorder %s22, 1
      %p87 = por %p85, %p86
      %p89 = scmp.ne.s32.totalorder %s74, %s88
      %p90 = scmp.eq.s32.totalorder %s22, 0
      %p91 = por %p89, %p90
      %s93 = sadd.s32 %s92, 1
      %p96 = scmp.eq.s32.totalorder %s16, 1
      %p97 = scmp.ne.s32.totalorder %s92, %s94
      %p98 = scmp.eq.s32.totalorder %s16, 0
      %p99 = por %p97, %p98
      %p100 = scmp.ne.s32.totalorder %s92, %s94
      %p101 = scmp.eq.s32.totalorder %s21, 1
      %p102 = por %p100, %p101
      %p103 = scmp.ne.s32.totalorder %s94, %s95
      %p104 = scmp.eq.s32.totalorder %s21, 0
      %p105 = por %p103, %p104
      %p106 = scmp.ne.s32.totalorder %s94, %s95
      %p107 = scmp.eq.s32.totalorder %s22, 1
      %p108 = por %p106, %p107
      %p110 = scmp.ne.s32.totalorder %s95, %s109
      %p111 = scmp.eq.s32.totalorder %s22, 0
      %p112 = por %p110, %p111
      %s114 = sadd.s32 %s113, 1
      %p117 = scmp.eq.s32.totalorder %s16, 1
      %p118 = scmp.ne.s32.totalorder %s113, %s115
      %p119 = scmp.eq.s32.totalorder %s16, 0
      %p120 = por %p118, %p119
      %p121 = scmp.ne.s32.totalorder %s113, %s115
      %p122 = scmp.eq.s32.totalorder %s21, 1
      %p123 = por %p121, %p122
      %p124 = scmp.ne.s32.totalorder %s115, %s116
      %p125 = scmp.eq.s32.totalorder %s21, 0
      %p126 = por %p124, %p125
      %p127 = scmp.ne.s32.totalorder %s115, %s116
      %p128 = scmp.eq.s32.totalorder %s22, 1
      %p129 = por %p127, %p128
      %p131 = scmp.ne.s32.totalorder %s116, %s130
      %p132 = scmp.eq.s32.totalorder %s22, 0
      %p133 = por %p131, %p132
      %s135 = sadd.s32 %s134, 1
      %p138 = scmp.eq.s32.totalorder %s16, 1
      %p139 = scmp.ne.s32.totalorder %s134, %s136
      %p140 = scmp.eq.s32.totalorder %s16, 0
      %p141 = por %p139, %p140
      %p142 = scmp.ne.s32.totalorder %s134, %s136
      %p143 = scmp.eq.s32.totalorder %s21, 1
      %p144 = por %p142, %p143
      %p145 = scmp.ne.s32.totalorder %s136, %s137
      %p146 = scmp.eq.s32.totalorder %s21, 0
      %p147 = por %p145, %p146
      %p148 = scmp.ne.s32.totalorder %s136, %s137
      %p149 = scmp.eq.s32.totalorder %s22, 1
      %p150 = por %p148, %p149
      %p152 = scmp.ne.s32.totalorder %s137, %s151
      %p153 = scmp.eq.s32.totalorder %s22, 0
      %p154 = por %p152, %p153
      %s156 = sadd.s32 %s155, 1
      %p159 = scmp.eq.s32.totalorder %s16, 1
      %p160 = scmp.ne.s32.totalorder %s155, %s157
      %p161 = scmp.eq.s32.totalorder %s16, 0
      %p162 = por %p160, %p161
      %p163 = scmp.ne.s32.totalorder %s155, %s157
      %p164 = scmp.eq.s32.totalorder %s21, 1
      %p165 = por %p163, %p164
      %p166 = scmp.ne.s32.totalorder %s157, %s158
      %p167 = scmp.eq.s32.totalorder %s21, 0
      %p168 = por %p166, %p167
      %p169 = scmp.ne.s32.totalorder %s157, %s158
      %p170 = scmp.eq.s32.totalorder %s22, 1
      %p171 = por %p169, %p170
      %p173 = scmp.ne.s32.totalorder %s158, %s172
      %p174 = scmp.eq.s32.totalorder %s22, 0
      %p175 = por %p173, %p174
      %s176 = ssub.s32 %s16, %s23
      %p177 = scmp.eq.s32.totalorder %s176, 0
      %s179 = sadd.s32 %s178, 1
      %s180 = scalar_select %p177, %s178, %s179
      %p183 = pneg %p177
      %p184 = scmp.eq.s32.totalorder %s16, 1
      %p185 = por %p183, %p184
      %p186 = scmp.ne.s32.totalorder %s178, %s181
      %p187 = scmp.eq.s32.totalorder %s16, 0
      %p188 = por %p186, %p187
      %p189 = scmp.ne.s32.totalorder %s178, %s181
      %p190 = scmp.eq.s32.totalorder %s21, 1
      %p191 = por %p189, %p190
      %p192 = scmp.ne.s32.totalorder %s181, %s182
      %p193 = scmp.eq.s32.totalorder %s21, 0
      %p194 = por %p192, %p193
      %p195 = scmp.ne.s32.totalorder %s181, %s182
      %p196 = scmp.eq.s32.totalorder %s22, 1
      %p197 = por %p195, %p196
      %p199 = scmp.ne.s32.totalorder %s182, %s198
      %p200 = scmp.eq.s32.totalorder %s22, 0
      %p201 = por %p199, %p200
      %p202 = scmp.le.s32.totalorder 1, %s16
      %p203 = scmp.lt.s32.totalorder %s16, 3
      %p204 = pnand %p202, %p203
      %p205 = pneg %p204
      // Predicated region
      $region9: #{cnn_forward.1} parent=5 // pred_check
        _
      $region10: #{cnn_forward.1} parent=5 // pred_check_branch
        %207 = sbr.rel (%p204) target = $region12
      $region11: #{cnn_forward.1} parent=5 // pred_region
        %s208 = ssub.s32 %s16, 1
        // Predicated region
        $region13: #{cnn_forward.1} parent=11 // pred_check
          %p209 = pneg %p63
        $region14: #{cnn_forward.1} parent=11 // pred_check_branch
          %211 = sbr.rel (%p209) target = $region16
        $region15: #{cnn_forward.1} parent=11 // pred_region
          _
        $region16: #{cnn_forward.1} parent=11 // pred_fallthru
          _
        // Predicated region
        $region17: #{cnn_forward.1} parent=11 // pred_check
          %p212 = pneg %p84
        $region18: #{cnn_forward.1} parent=11 // pred_check_branch
          %214 = sbr.rel (%p212) target = $region20
        $region19: #{cnn_forward.1} parent=11 // pred_region
          _
        $region20: #{cnn_forward.1} parent=11 // pred_fallthru
          _
        // Predicated region
        $region21: #{cnn_forward.1} parent=11 // pred_check
          %p215 = pneg %p105
        $region22: #{cnn_forward.1} parent=11 // pred_check_branch
          %217 = sbr.rel (%p215) target = $region24
        $region23: #{cnn_forward.1} parent=11 // pred_region
          _
        $region24: #{cnn_forward.1} parent=11 // pred_fallthru
          _
        // Predicated region
        $region25: #{cnn_forward.1} parent=11 // pred_check
          %p218 = pneg %p126
        $region26: #{cnn_forward.1} parent=11 // pred_check_branch
          %220 = sbr.rel (%p218) target = $region28
        $region27: #{cnn_forward.1} parent=11 // pred_region
          _
        $region28: #{cnn_forward.1} parent=11 // pred_fallthru
          _
        // Predicated region
        $region29: #{cnn_forward.1} parent=11 // pred_check
          %p221 = pneg %p147
        $region30: #{cnn_forward.1} parent=11 // pred_check_branch
          %223 = sbr.rel (%p221) target = $region32
        $region31: #{cnn_forward.1} parent=11 // pred_region
          _
        $region32: #{cnn_forward.1} parent=11 // pred_fallthru
          _
        // Predicated region
        $region33: #{cnn_forward.1} parent=11 // pred_check
          %p224 = pneg %p168
        $region34: #{cnn_forward.1} parent=11 // pred_check_branch
          %226 = sbr.rel (%p224) target = $region36
        $region35: #{cnn_forward.1} parent=11 // pred_region
          _
        $region36: #{cnn_forward.1} parent=11 // pred_fallthru
          _
      $region12: #{cnn_forward.1} parent=5 // pred_fallthru
        _
      %p227 = scmp.lt.s32.totalorder %s16, 2
      // Predicated region
      $region37: #{cnn_forward.1} parent=5 // pred_check
        %p228 = pneg %p227
      $region38: #{cnn_forward.1} parent=5 // pred_check_branch
        %230 = sbr.rel (%p228) target = $region40
      $region39: #{cnn_forward.1} parent=5 // pred_region
        // Predicated region
        $region41: #{cnn_forward.1} parent=39 // pred_check
          %p231 = pneg %p36
        $region42: #{cnn_forward.1} parent=39 // pred_check_branch
          %233 = sbr.rel (%p231) target = $region44
        $region43: #{cnn_forward.1} parent=39 // pred_region
          %p234 = scmp.lt.s32.totalorder %s16, 1
          %s235 = scalar_select %p234, %s16, 1
          %s236 = smul.addr %s235, 324
          %s237 = scalar_lea.vmem %s0, %s236
        $region44: #{cnn_forward.1} parent=39 // pred_fallthru
          _
      $region40: #{cnn_forward.1} parent=5 // pred_fallthru
        _
      %p238 = scmp.le.s32.totalorder 1, %s16
      %p239 = scmp.lt.s32.totalorder %s16, 3
      %p240 = pnand %p238, %p239
      %p241 = pneg %p240
      // Predicated region
      $region45: #{cnn_forward.1} parent=5 // pred_check
        _
      $region46: #{cnn_forward.1} parent=5 // pred_check_branch
        %243 = sbr.rel (%p240) target = $region48
      $region47: #{cnn_forward.1} parent=5 // pred_region
        %s244 = ssub.s32 %s16, 1
        %p245 = scmp.lt.s32.totalorder %s21, 1
        %s246 = scalar_select %p245, %s21, 1
        %s247 = smul.addr %s246, 324
        %s248 = scalar_lea.vmem %s0, %s247
        %p249 = pneg %p42
        %p250 = pneg %p39
        %p251 = pneg %p63
        %p252 = pneg %p60
        %p253 = pneg %p84
        %p254 = pneg %p81
        %p255 = pneg %p105
        %p256 = pneg %p102
        %p257 = pneg %p126
        %p258 = pneg %p123
        %p259 = pneg %p147
        %p260 = pneg %p144
        %p261 = pneg %p168
        %p262 = pneg %p165
        %p263 = pneg %p194
        %p264 = pneg %p191
        %s265 = sand.u32 %s181, 1
        %s266 = scalar_lea.sflag [#allocation4], %s265
        %s267 = sand.u32 %s181, 1
        %s268 = smul.addr %s267, 4
        %s269 = scalar_lea.vmem [#allocation3], %s268
        %p270 = scmp.lt.s32.totalorder %s21, 1
        %s271 = scalar_select %p270, %s21, 1
        %s272 = smul.addr %s271, 324
        %s273 = scalar_lea.vmem %s0, %s272
        %v274 = vld [vmem:[%s273] sm:$0xff]
        %v275 = vld [vmem:[%s273 + $0x8] sm:$0xff]
        %v276 = vld [vmem:[%s273 + $0x10] sm:$0xff]
        %v277 = vld [vmem:[%s273 + $0x18] sm:$0xff]
        %v278 = vld [vmem:[%s273 + $0x20] sm:$0xff]
        %v279 = vld [vmem:[%s273 + $0x28] sm:$0xff]
        %v280 = vld [vmem:[%s273 + $0x30] sm:$0xff]
        %v281 = vld [vmem:[%s273 + $0x38] sm:$0xff]
        %v282 = vld [vmem:[%s273 + $0x40] sm:$0xff]
        %v283 = vld [vmem:[%s273 + $0x48] sm:$0xff]
        %v284 = vld [vmem:[%s273 + $0x50] sm:$0xff]
        %v285 = vld [vmem:[%s273 + $0x58] sm:$0xff]
        %v286 = vld [vmem:[%s273 + $0x60] sm:$0xff]
        %v287 = vld [vmem:[%s273 + $0x68] sm:$0xff]
        %v288 = vld [vmem:[%s273 + $0x70] sm:$0xff]
        %v289 = vld [vmem:[%s273 + $0x78] sm:$0xff]
        %v290 = vld [vmem:[%s273 + $0x80] sm:$0xff]
        %v291 = vld [vmem:[%s273 + $0x88] sm:$0xff]
        %v292 = vld [vmem:[%s273 + $0x90] sm:$0xff]
        %v293 = vld [vmem:[%s273 + $0x98] sm:$0xff]
        %v294 = vld [vmem:[%s273 + $0xa0] sm:$0xff]
        %v295 = vld [vmem:[%s273 + $0xa8] sm:$0xff]
        %v296 = vld [vmem:[%s273 + $0xb0] sm:$0xff]
        %v297 = vld [vmem:[%s273 + $0xb8] sm:$0xff]
        %v298 = vld [vmem:[%s273 + $0xc0] sm:$0xff]
        %v299 = vld [vmem:[%s273 + $0xc8] sm:$0xff]
        %v300 = vld [vmem:[%s273 + $0xd0] sm:$0xff]
        %v301 = vld [vmem:[%s273 + $0xd8] sm:$0xff]
        %v302 = vld [vmem:[%s273 + $0xe0] sm:$0xff]
        %v303 = vld [vmem:[%s273 + $0xe8] sm:$0xff]
        %v304 = vld [vmem:[%s273 + $0xf0] sm:$0xff]
        %v305 = vld [vmem:[%s273 + $0xf8] sm:$0xff]
        %v306 = vld [vmem:[%s273 + $0x100] sm:$0xff]
        %v307 = vld [vmem:[%s273 + $0x108] sm:$0xff]
        %v308 = vld [vmem:[%s273 + $0x110] sm:$0xff]
        %v309 = vld [vmem:[%s273 + $0x118] sm:$0xff]
        %v310 = vld [vmem:[%s273 + $0x120] sm:$0xff]
        %v311 = vld [vmem:[%s273 + $0x128] sm:$0xff]
        %v312 = vld [vmem:[%s273 + $0x130] sm:$0xff]
        %v313 = vld [vmem:[%s273 + $0x138] sm:$0xff]
        %v314 = vld [vmem:[%s273 + $0x140] sm:$0xf]
        %v315 = vunpack.c.l.bf16 %v274
        %v316 = vunpack.c.h.bf16 %v274
        %v317 = vunpack.c.l.bf16 %v275
        %v318 = vunpack.c.h.bf16 %v275
        %v319 = vunpack.c.l.bf16 %v276
        %v320 = vunpack.c.h.bf16 %v276
        %v321 = vunpack.c.l.bf16 %v277
        %v322 = vunpack.c.h.bf16 %v277
        %v323 = vunpack.c.l.bf16 %v278
        %v324 = vunpack.c.h.bf16 %v278
        %v325 = vunpack.c.l.bf16 %v279
        %v326 = vunpack.c.h.bf16 %v279
        %v327 = vunpack.c.l.bf16 %v280
        %v328 = vunpack.c.h.bf16 %v280
        %v329 = vunpack.c.l.bf16 %v281
        %v330 = vunpack.c.h.bf16 %v281
        %v331 = vunpack.c.l.bf16 %v282
        %v332 = vunpack.c.h.bf16 %v282
        %v333 = vunpack.c.l.bf16 %v283
        %v334 = vunpack.c.h.bf16 %v283
        %v335 = vunpack.c.l.bf16 %v284
        %v336 = vunpack.c.h.bf16 %v284
        %v337 = vunpack.c.l.bf16 %v285
        %v338 = vunpack.c.h.bf16 %v285
        %v339 = vunpack.c.l.bf16 %v286
        %v340 = vunpack.c.h.bf16 %v286
        %v341 = vunpack.c.l.bf16 %v287
        %v342 = vunpack.c.h.bf16 %v287
        %v343 = vunpack.c.l.bf16 %v288
        %v344 = vunpack.c.h.bf16 %v288
        %v345 = vunpack.c.l.bf16 %v289
        %v346 = vunpack.c.h.bf16 %v289
        %v347 = vunpack.c.l.bf16 %v290
        %v348 = vunpack.c.h.bf16 %v290
        %v349 = vunpack.c.l.bf16 %v291
        %v350 = vunpack.c.h.bf16 %v291
        %v351 = vunpack.c.l.bf16 %v292
        %v352 = vunpack.c.h.bf16 %v292
        %v353 = vunpack.c.l.bf16 %v293
        %v354 = vunpack.c.h.bf16 %v293
        %v355 = vunpack.c.l.bf16 %v294
        %v356 = vunpack.c.h.bf16 %v294
        %v357 = vunpack.c.l.bf16 %v295
        %v358 = vunpack.c.h.bf16 %v295
        %v359 = vunpack.c.l.bf16 %v296
        %v360 = vunpack.c.h.bf16 %v296
        %v361 = vunpack.c.l.bf16 %v297
        %v362 = vunpack.c.h.bf16 %v297
        %v363 = vunpack.c.l.bf16 %v298
        %v364 = vunpack.c.h.bf16 %v298
        %v365 = vunpack.c.l.bf16 %v299
        %v366 = vunpack.c.h.bf16 %v299
        %v367 = vunpack.c.l.bf16 %v300
        %v368 = vunpack.c.h.bf16 %v300
        %v369 = vunpack.c.l.bf16 %v301
        %v370 = vunpack.c.h.bf16 %v301
        %v371 = vunpack.c.l.bf16 %v302
        %v372 = vunpack.c.h.bf16 %v302
        %v373 = vunpack.c.l.bf16 %v303
        %v374 = vunpack.c.h.bf16 %v303
        %v375 = vunpack.c.l.bf16 %v304
        %v376 = vunpack.c.h.bf16 %v304
        %v377 = vunpack.c.l.bf16 %v305
        %v378 = vunpack.c.h.bf16 %v305
        %v379 = vunpack.c.l.bf16 %v306
        %v380 = vunpack.c.h.bf16 %v306
        %v381 = vunpack.c.l.bf16 %v307
        %v382 = vunpack.c.h.bf16 %v307
        %v383 = vunpack.c.l.bf16 %v308
        %v384 = vunpack.c.h.bf16 %v308
        %v385 = vunpack.c.l.bf16 %v309
        %v386 = vunpack.c.h.bf16 %v309
        %v387 = vunpack.c.l.bf16 %v310
        %v388 = vunpack.c.h.bf16 %v310
        %v389 = vunpack.c.l.bf16 %v311
        %v390 = vunpack.c.h.bf16 %v311
        %v391 = vunpack.c.l.bf16 %v312
        %v392 = vunpack.c.h.bf16 %v312
        %v393 = vunpack.c.l.bf16 %v313
        %v394 = vunpack.c.h.bf16 %v313
        %v395 = vunpack.c.l.bf16 %v314
        %v468 = vrot.slane %v315, 1
        %v469 = vrot.slane %v315, 2
        %v470 = vrot.slane %v315, 3
        %v471 = vrot.slane %v316, 4
        %v472 = vrot.slane %v316, 5
        %v473 = vrot.slane %v316, 6
        %v474 = vrot.slane %v316, 7
        %v475 = vrot.slane %v317, 1
        %v476 = vrot.slane %v317, 2
        %v477 = vrot.slane %v317, 3
        %v478 = vrot.slane %v318, 4
        %v479 = vrot.slane %v318, 5
        %v480 = vrot.slane %v318, 6
        %v481 = vrot.slane %v318, 7
        %v482 = vrot.slane %v319, 1
        %v483 = vrot.slane %v319, 2
        %v484 = vrot.slane %v319, 3
        %v485 = vrot.slane %v320, 4
        %v486 = vrot.slane %v320, 5
        %v487 = vrot.slane %v320, 6
        %v488 = vrot.slane %v320, 7
        %v489 = vrot.slane %v321, 1
        %v490 = vrot.slane %v321, 2
        %v491 = vrot.slane %v321, 3
        %v492 = vrot.slane %v322, 4
        %v493 = vrot.slane %v322, 5
        %v494 = vrot.slane %v322, 6
        %v495 = vrot.slane %v322, 7
        %v496 = vrot.slane %v323, 1
        %v497 = vrot.slane %v323, 2
        %v498 = vrot.slane %v323, 3
        %v499 = vrot.slane %v324, 4
        %v500 = vrot.slane %v324, 5
        %v501 = vrot.slane %v324, 6
        %v502 = vrot.slane %v324, 7
        %v503 = vrot.slane %v325, 1
        %v504 = vrot.slane %v325, 2
        %v505 = vrot.slane %v325, 3
        %v506 = vrot.slane %v326, 4
        %v507 = vrot.slane %v326, 5
        %v508 = vrot.slane %v326, 6
        %v509 = vrot.slane %v326, 7
        %v510 = vrot.slane %v327, 1
        %v511 = vrot.slane %v327, 2
        %v512 = vrot.slane %v327, 3
        %v513 = vrot.slane %v328, 4
        %v514 = vrot.slane %v328, 5
        %v515 = vrot.slane %v328, 6
        %v516 = vrot.slane %v328, 7
        %v517 = vrot.slane %v329, 1
        %v518 = vrot.slane %v329, 2
        %v519 = vrot.slane %v329, 3
        %v520 = vrot.slane %v330, 4
        %v521 = vrot.slane %v330, 5
        %v522 = vrot.slane %v330, 6
        %v523 = vrot.slane %v330, 7
        %v524 = vrot.slane %v331, 1
        %v525 = vrot.slane %v331, 2
        %v526 = vrot.slane %v331, 3
        %v527 = vrot.slane %v332, 4
        %v528 = vrot.slane %v332, 5
        %v529 = vrot.slane %v332, 6
        %v530 = vrot.slane %v332, 7
        %v531 = vrot.slane %v333, 1
        %v532 = vrot.slane %v333, 2
        %v533 = vrot.slane %v333, 3
        %v534 = vrot.slane %v334, 4
        %v535 = vrot.slane %v334, 5
        %v536 = vrot.slane %v334, 6
        %v537 = vrot.slane %v334, 7
        %v538 = vrot.slane %v335, 1
        %v539 = vrot.slane %v335, 2
        %v540 = vrot.slane %v335, 3
        %v541 = vrot.slane %v336, 4
        %v542 = vrot.slane %v336, 5
        %v543 = vrot.slane %v336, 6
        %v544 = vrot.slane %v336, 7
        %v545 = vrot.slane %v337, 1
        %v546 = vrot.slane %v337, 2
        %v547 = vrot.slane %v337, 3
        %v548 = vrot.slane %v338, 4
        %v549 = vrot.slane %v338, 5
        %v550 = vrot.slane %v338, 6
        %v551 = vrot.slane %v338, 7
        %v552 = vrot.slane %v339, 1
        %v553 = vrot.slane %v339, 2
        %v554 = vrot.slane %v339, 3
        %v555 = vrot.slane %v340, 4
        %v556 = vrot.slane %v340, 5
        %v557 = vrot.slane %v340, 6
        %v558 = vrot.slane %v340, 7
        %v559 = vrot.slane %v341, 1
        %v560 = vrot.slane %v341, 2
        %v561 = vrot.slane %v341, 3
        %v562 = vrot.slane %v342, 4
        %v563 = vrot.slane %v342, 5
        %v564 = vrot.slane %v342, 6
        %v565 = vrot.slane %v342, 7
        %v566 = vrot.slane %v343, 1
        %v567 = vrot.slane %v343, 2
        %v568 = vrot.slane %v343, 3
        %v569 = vrot.slane %v344, 4
        %v570 = vrot.slane %v344, 5
        %v571 = vrot.slane %v344, 6
        %v572 = vrot.slane %v344, 7
        %v573 = vrot.slane %v345, 1
        %v574 = vrot.slane %v345, 2
        %v575 = vrot.slane %v345, 3
        %v576 = vrot.slane %v346, 4
        %v577 = vrot.slane %v346, 5
        %v578 = vrot.slane %v346, 6
        %v579 = vrot.slane %v346, 7
        %v580 = vrot.slane %v347, 1
        %v581 = vrot.slane %v347, 2
        %v582 = vrot.slane %v347, 3
        %v583 = vrot.slane %v348, 4
        %v584 = vrot.slane %v348, 5
        %v585 = vrot.slane %v348, 6
        %v586 = vrot.slane %v348, 7
        %v587 = vrot.slane %v349, 1
        %v588 = vrot.slane %v349, 2
        %v589 = vrot.slane %v349, 3
        %v590 = vrot.slane %v350, 4
        %v591 = vrot.slane %v350, 5
        %v592 = vrot.slane %v350, 6
        %v593 = vrot.slane %v350, 7
        %v594 = vrot.slane %v351, 1
        %v595 = vrot.slane %v351, 2
        %v596 = vrot.slane %v351, 3
        %v597 = vrot.slane %v352, 4
        %v598 = vrot.slane %v352, 5
        %v599 = vrot.slane %v352, 6
        %v600 = vrot.slane %v352, 7
        %v601 = vrot.slane %v353, 1
        %v602 = vrot.slane %v353, 2
        %v603 = vrot.slane %v353, 3
        %v604 = vrot.slane %v354, 4
        %v605 = vrot.slane %v354, 5
        %v606 = vrot.slane %v354, 6
        %v607 = vrot.slane %v354, 7
        %v608 = vrot.slane %v355, 1
        %v609 = vrot.slane %v355, 2
        %v610 = vrot.slane %v355, 3
        %v611 = vrot.slane %v356, 4
        %v612 = vrot.slane %v356, 5
        %v613 = vrot.slane %v356, 6
        %v614 = vrot.slane %v356, 7
        %v615 = vrot.slane %v357, 1
        %v616 = vrot.slane %v357, 2
        %v617 = vrot.slane %v357, 3
        %v618 = vrot.slane %v358, 4
        %v619 = vrot.slane %v358, 5
        %v620 = vrot.slane %v358, 6
        %v621 = vrot.slane %v358, 7
        %v622 = vrot.slane %v359, 1
        %v623 = vrot.slane %v359, 2
        %v624 = vrot.slane %v359, 3
        %v625 = vrot.slane %v360, 4
        %v626 = vrot.slane %v360, 5
        %v627 = vrot.slane %v360, 6
        %v628 = vrot.slane %v360, 7
        %v629 = vrot.slane %v361, 1
        %v630 = vrot.slane %v361, 2
        %v631 = vrot.slane %v361, 3
        %v632 = vrot.slane %v362, 4
        %v633 = vrot.slane %v362, 5
        %v634 = vrot.slane %v362, 6
        %v635 = vrot.slane %v362, 7
        %v636 = vrot.slane %v363, 1
        %v637 = vrot.slane %v363, 2
        %v638 = vrot.slane %v363, 3
        %v639 = vrot.slane %v364, 4
        %v640 = vrot.slane %v364, 5
        %v641 = vrot.slane %v364, 6
        %v642 = vrot.slane %v364, 7
        %v643 = vrot.slane %v365, 1
        %v644 = vrot.slane %v365, 2
        %v645 = vrot.slane %v365, 3
        %v646 = vrot.slane %v366, 4
        %v647 = vrot.slane %v366, 5
        %v648 = vrot.slane %v366, 6
        %v649 = vrot.slane %v366, 7
        %v650 = vrot.slane %v367, 1
        %v651 = vrot.slane %v367, 2
        %v652 = vrot.slane %v367, 3
        %v653 = vrot.slane %v368, 4
        %v654 = vrot.slane %v368, 5
        %v655 = vrot.slane %v368, 6
        %v656 = vrot.slane %v368, 7
        %v657 = vrot.slane %v369, 1
        %v658 = vrot.slane %v369, 2
        %v659 = vrot.slane %v369, 3
        %v660 = vrot.slane %v370, 4
        %v661 = vrot.slane %v370, 5
        %v662 = vrot.slane %v370, 6
        %v663 = vrot.slane %v370, 7
        %v664 = vrot.slane %v371, 1
        %v665 = vrot.slane %v371, 2
        %v666 = vrot.slane %v371, 3
        %v667 = vrot.slane %v372, 4
        %v668 = vrot.slane %v372, 5
        %v669 = vrot.slane %v372, 6
        %v670 = vrot.slane %v372, 7
        %v671 = vrot.slane %v373, 1
        %v672 = vrot.slane %v373, 2
        %v673 = vrot.slane %v373, 3
        %v674 = vrot.slane %v374, 4
        %v675 = vrot.slane %v374, 5
        %v676 = vrot.slane %v374, 6
        %v677 = vrot.slane %v374, 7
        %v678 = vrot.slane %v375, 1
        %v679 = vrot.slane %v375, 2
        %v680 = vrot.slane %v375, 3
        %v681 = vrot.slane %v376, 4
        %v682 = vrot.slane %v376, 5
        %v683 = vrot.slane %v376, 6
        %v684 = vrot.slane %v376, 7
        %v685 = vrot.slane %v377, 1
        %v686 = vrot.slane %v377, 2
        %v687 = vrot.slane %v377, 3
        %v688 = vrot.slane %v378, 4
        %v689 = vrot.slane %v378, 5
        %v690 = vrot.slane %v378, 6
        %v691 = vrot.slane %v378, 7
        %v692 = vrot.slane %v379, 1
        %v693 = vrot.slane %v379, 2
        %v694 = vrot.slane %v379, 3
        %v695 = vrot.slane %v380, 4
        %v696 = vrot.slane %v380, 5
        %v697 = vrot.slane %v380, 6
        %v698 = vrot.slane %v380, 7
        %v699 = vrot.slane %v381, 1
        %v700 = vrot.slane %v381, 2
        %v701 = vrot.slane %v381, 3
        %v702 = vrot.slane %v382, 4
        %v703 = vrot.slane %v382, 5
        %v704 = vrot.slane %v382, 6
        %v705 = vrot.slane %v382, 7
        %v706 = vrot.slane %v383, 1
        %v707 = vrot.slane %v383, 2
        %v708 = vrot.slane %v383, 3
        %v709 = vrot.slane %v384, 4
        %v710 = vrot.slane %v384, 5
        %v711 = vrot.slane %v384, 6
        %v712 = vrot.slane %v384, 7
        %v713 = vrot.slane %v385, 1
        %v714 = vrot.slane %v385, 2
        %v715 = vrot.slane %v385, 3
        %v716 = vrot.slane %v386, 4
        %v717 = vrot.slane %v386, 5
        %v718 = vrot.slane %v386, 6
        %v719 = vrot.slane %v386, 7
        %vm720 = vcmask 1040384
        %v721 = vsel %vm720, %v315, %v468
        %vm722 = vcmask 1042434
        %v723 = vsel %vm722, %v469, %v470
        %vm724 = vcmask 1041408
        %v725 = vsel %vm724, %v721, %v723
        %vm726 = vcmask 1044484
        %v727 = vsel %vm726, %v471, %v472
        %vm728 = vcmask 1046534
        %v729 = vsel %vm728, %v473, %v474
        %vm730 = vcmask 1045508
        %v731 = vsel %vm730, %v727, %v729
        %vm732 = vcmask 1043456
        %v733 = vsel %vm732, %v725, %v731
        %v734 = vsel %vm720, %v317, %v475
        %v735 = vsel %vm722, %v476, %v477
        %v736 = vsel %vm724, %v734, %v735
        %v737 = vsel %vm726, %v478, %v479
        %v738 = vsel %vm728, %v480, %v481
        %v739 = vsel %vm730, %v737, %v738
        %v740 = vsel %vm732, %v736, %v739
        %v741 = vsel %vm720, %v319, %v482
        %v742 = vsel %vm722, %v483, %v484
        %v743 = vsel %vm724, %v741, %v742
        %v744 = vsel %vm726, %v485, %v486
        %v745 = vsel %vm728, %v487, %v488
        %v746 = vsel %vm730, %v744, %v745
        %v747 = vsel %vm732, %v743, %v746
        %v748 = vsel %vm720, %v321, %v489
        %v749 = vsel %vm722, %v490, %v491
        %v750 = vsel %vm724, %v748, %v749
        %v751 = vsel %vm726, %v492, %v493
        %v752 = vsel %vm728, %v494, %v495
        %v753 = vsel %vm730, %v751, %v752
        %v754 = vsel %vm732, %v750, %v753
        %v755 = vsel %vm720, %v323, %v496
        %v756 = vsel %vm722, %v497, %v498
        %v757 = vsel %vm724, %v755, %v756
        %v758 = vsel %vm726, %v499, %v500
        %v759 = vsel %vm728, %v501, %v502
        %v760 = vsel %vm730, %v758, %v759
        %v761 = vsel %vm732, %v757, %v760
        %v762 = vsel %vm720, %v325, %v503
        %v763 = vsel %vm722, %v504, %v505
        %v764 = vsel %vm724, %v762, %v763
        %v765 = vsel %vm726, %v506, %v507
        %v766 = vsel %vm728, %v508, %v509
        %v767 = vsel %vm730, %v765, %v766
        %v768 = vsel %vm732, %v764, %v767
        %v769 = vsel %vm720, %v327, %v510
        %v770 = vsel %vm722, %v511, %v512
        %v771 = vsel %vm724, %v769, %v770
        %v772 = vsel %vm726, %v513, %v514
        %v773 = vsel %vm728, %v515, %v516
        %v774 = vsel %vm730, %v772, %v773
        %v775 = vsel %vm732, %v771, %v774
        %v776 = vsel %vm720, %v329, %v517
        %v777 = vsel %vm722, %v518, %v519
        %v778 = vsel %vm724, %v776, %v777
        %v779 = vsel %vm726, %v520, %v521
        %v780 = vsel %vm728, %v522, %v523
        %v781 = vsel %vm730, %v779, %v780
        %v782 = vsel %vm732, %v778, %v781
        %v783 = vsel %vm720, %v331, %v524
        %v784 = vsel %vm722, %v525, %v526
        %v785 = vsel %vm724, %v783, %v784
        %v786 = vsel %vm726, %v527, %v528
        %v787 = vsel %vm728, %v529, %v530
        %v788 = vsel %vm730, %v786, %v787
        %v789 = vsel %vm732, %v785, %v788
        %v790 = vsel %vm720, %v333, %v531
        %v791 = vsel %vm722, %v532, %v533
        %v792 = vsel %vm724, %v790, %v791
        %v793 = vsel %vm726, %v534, %v535
        %v794 = vsel %vm728, %v536, %v537
        %v795 = vsel %vm730, %v793, %v794
        %v796 = vsel %vm732, %v792, %v795
        %v797 = vsel %vm720, %v335, %v538
        %v798 = vsel %vm722, %v539, %v540
        %v799 = vsel %vm724, %v797, %v798
        %v800 = vsel %vm726, %v541, %v542
        %v801 = vsel %vm728, %v543, %v544
        %v802 = vsel %vm730, %v800, %v801
        %v803 = vsel %vm732, %v799, %v802
        %v804 = vsel %vm720, %v337, %v545
        %v805 = vsel %vm722, %v546, %v547
        %v806 = vsel %vm724, %v804, %v805
        %v807 = vsel %vm726, %v548, %v549
        %v808 = vsel %vm728, %v550, %v551
        %v809 = vsel %vm730, %v807, %v808
        %v810 = vsel %vm732, %v806, %v809
        %v811 = vsel %vm720, %v339, %v552
        %v812 = vsel %vm722, %v553, %v554
        %v813 = vsel %vm724, %v811, %v812
        %v814 = vsel %vm726, %v555, %v556
        %v815 = vsel %vm728, %v557, %v558
        %v816 = vsel %vm730, %v814, %v815
        %v817 = vsel %vm732, %v813, %v816
        %v818 = vsel %vm720, %v341, %v559
        %v819 = vsel %vm722, %v560, %v561
        %v820 = vsel %vm724, %v818, %v819
        %v821 = vsel %vm726, %v562, %v563
        %v822 = vsel %vm728, %v564, %v565
        %v823 = vsel %vm730, %v821, %v822
        %v824 = vsel %vm732, %v820, %v823
        %v825 = vsel %vm720, %v343, %v566
        %v826 = vsel %vm722, %v567, %v568
        %v827 = vsel %vm724, %v825, %v826
        %v828 = vsel %vm726, %v569, %v570
        %v829 = vsel %vm728, %v571, %v572
        %v830 = vsel %vm730, %v828, %v829
        %v831 = vsel %vm732, %v827, %v830
        %v832 = vsel %vm720, %v345, %v573
        %v833 = vsel %vm722, %v574, %v575
        %v834 = vsel %vm724, %v832, %v833
        %v835 = vsel %vm726, %v576, %v577
        %v836 = vsel %vm728, %v578, %v579
        %v837 = vsel %vm730, %v835, %v836
        %v838 = vsel %vm732, %v834, %v837
        %v839 = vsel %vm720, %v347, %v580
        %v840 = vsel %vm722, %v581, %v582
        %v841 = vsel %vm724, %v839, %v840
        %v842 = vsel %vm726, %v583, %v584
        %v843 = vsel %vm728, %v585, %v586
        %v844 = vsel %vm730, %v842, %v843
        %v845 = vsel %vm732, %v841, %v844
        %v846 = vsel %vm720, %v349, %v587
        %v847 = vsel %vm722, %v588, %v589
        %v848 = vsel %vm724, %v846, %v847
        %v849 = vsel %vm726, %v590, %v591
        %v850 = vsel %vm728, %v592, %v593
        %v851 = vsel %vm730, %v849, %v850
        %v852 = vsel %vm732, %v848, %v851
        %v853 = vsel %vm720, %v351, %v594
        %v854 = vsel %vm722, %v595, %v596
        %v855 = vsel %vm724, %v853, %v854
        %v856 = vsel %vm726, %v597, %v598
        %v857 = vsel %vm728, %v599, %v600
        %v858 = vsel %vm730, %v856, %v857
        %v859 = vsel %vm732, %v855, %v858
        %v860 = vsel %vm720, %v353, %v601
        %v861 = vsel %vm722, %v602, %v603
        %v862 = vsel %vm724, %v860, %v861
        %v863 = vsel %vm726, %v604, %v605
        %v864 = vsel %vm728, %v606, %v607
        %v865 = vsel %vm730, %v863, %v864
        %v866 = vsel %vm732, %v862, %v865
        %v867 = vsel %vm720, %v355, %v608
        %v868 = vsel %vm722, %v609, %v610
        %v869 = vsel %vm724, %v867, %v868
        %v870 = vsel %vm726, %v611, %v612
        %v871 = vsel %vm728, %v613, %v614
        %v872 = vsel %vm730, %v870, %v871
        %v873 = vsel %vm732, %v869, %v872
        %v874 = vsel %vm720, %v357, %v615
        %v875 = vsel %vm722, %v616, %v617
        %v876 = vsel %vm724, %v874, %v875
        %v877 = vsel %vm726, %v618, %v619
        %v878 = vsel %vm728, %v620, %v621
        %v879 = vsel %vm730, %v877, %v878
        %v880 = vsel %vm732, %v876, %v879
        %v881 = vsel %vm720, %v359, %v622
        %v882 = vsel %vm722, %v623, %v624
        %v883 = vsel %vm724, %v881, %v882
        %v884 = vsel %vm726, %v625, %v626
        %v885 = vsel %vm728, %v627, %v628
        %v886 = vsel %vm730, %v884, %v885
        %v887 = vsel %vm732, %v883, %v886
        %v888 = vsel %vm720, %v361, %v629
        %v889 = vsel %vm722, %v630, %v631
        %v890 = vsel %vm724, %v888, %v889
        %v891 = vsel %vm726, %v632, %v633
        %v892 = vsel %vm728, %v634, %v635
        %v893 = vsel %vm730, %v891, %v892
        %v894 = vsel %vm732, %v890, %v893
        %v895 = vsel %vm720, %v363, %v636
        %v896 = vsel %vm722, %v637, %v638
        %v897 = vsel %vm724, %v895, %v896
        %v898 = vsel %vm726, %v639, %v640
        %v899 = vsel %vm728, %v641, %v642
        %v900 = vsel %vm730, %v898, %v899
        %v901 = vsel %vm732, %v897, %v900
        %v902 = vsel %vm720, %v365, %v643
        %v903 = vsel %vm722, %v644, %v645
        %v904 = vsel %vm724, %v902, %v903
        %v905 = vsel %vm726, %v646, %v647
        %v906 = vsel %vm728, %v648, %v649
        %v907 = vsel %vm730, %v905, %v906
        %v908 = vsel %vm732, %v904, %v907
        %v909 = vsel %vm720, %v367, %v650
        %v910 = vsel %vm722, %v651, %v652
        %v911 = vsel %vm724, %v909, %v910
        %v912 = vsel %vm726, %v653, %v654
        %v913 = vsel %vm728, %v655, %v656
        %v914 = vsel %vm730, %v912, %v913
        %v915 = vsel %vm732, %v911, %v914
        %v916 = vsel %vm720, %v369, %v657
        %v917 = vsel %vm722, %v658, %v659
        %v918 = vsel %vm724, %v916, %v917
        %v919 = vsel %vm726, %v660, %v661
        %v920 = vsel %vm728, %v662, %v663
        %v921 = vsel %vm730, %v919, %v920
        %v922 = vsel %vm732, %v918, %v921
        %v923 = vsel %vm720, %v371, %v664
        %v924 = vsel %vm722, %v665, %v666
        %v925 = vsel %vm724, %v923, %v924
        %v926 = vsel %vm726, %v667, %v668
        %v927 = vsel %vm728, %v669, %v670
        %v928 = vsel %vm730, %v926, %v927
        %v929 = vsel %vm732, %v925, %v928
        %v930 = vsel %vm720, %v373, %v671
        %v931 = vsel %vm722, %v672, %v673
        %v932 = vsel %vm724, %v930, %v931
        %v933 = vsel %vm726, %v674, %v675
        %v934 = vsel %vm728, %v676, %v677
        %v935 = vsel %vm730, %v933, %v934
        %v936 = vsel %vm732, %v932, %v935
        %v937 = vsel %vm720, %v375, %v678
        %v938 = vsel %vm722, %v679, %v680
        %v939 = vsel %vm724, %v937, %v938
        %v940 = vsel %vm726, %v681, %v682
        %v941 = vsel %vm728, %v683, %v684
        %v942 = vsel %vm730, %v940, %v941
        %v943 = vsel %vm732, %v939, %v942
        %v944 = vsel %vm720, %v377, %v685
        %v945 = vsel %vm722, %v686, %v687
        %v946 = vsel %vm724, %v944, %v945
        %v947 = vsel %vm726, %v688, %v689
        %v948 = vsel %vm728, %v690, %v691
        %v949 = vsel %vm730, %v947, %v948
        %v950 = vsel %vm732, %v946, %v949
        %v951 = vsel %vm720, %v379, %v692
        %v952 = vsel %vm722, %v693, %v694
        %v953 = vsel %vm724, %v951, %v952
        %v954 = vsel %vm726, %v695, %v696
        %v955 = vsel %vm728, %v697, %v698
        %v956 = vsel %vm730, %v954, %v955
        %v957 = vsel %vm732, %v953, %v956
        %v958 = vsel %vm720, %v381, %v699
        %v959 = vsel %vm722, %v700, %v701
        %v960 = vsel %vm724, %v958, %v959
        %v961 = vsel %vm726, %v702, %v703
        %v962 = vsel %vm728, %v704, %v705
        %v963 = vsel %vm730, %v961, %v962
        %v964 = vsel %vm732, %v960, %v963
        %v965 = vsel %vm720, %v383, %v706
        %v966 = vsel %vm722, %v707, %v708
        %v967 = vsel %vm724, %v965, %v966
        %v968 = vsel %vm726, %v709, %v710
        %v969 = vsel %vm728, %v711, %v712
        %v970 = vsel %vm730, %v968, %v969
        %v971 = vsel %vm732, %v967, %v970
        %v972 = vsel %vm720, %v385, %v713
        %v973 = vsel %vm722, %v714, %v715
        %v974 = vsel %vm724, %v972, %v973
        %v975 = vsel %vm726, %v716, %v717
        %v976 = vsel %vm728, %v718, %v719
        %v977 = vsel %vm730, %v975, %v976
        %v978 = vsel %vm732, %v974, %v977
        %1015 = vst [vmem:[#allocation2] ss:$8 sm:$0xf] %v733
        %1016 = vst [vmem:[#allocation2] ss:$8 sm:$0xf0] %v733
        %s1017 = scalar_lea.vmem [#allocation2], 64
        %1018 = vst [vmem:[%s1017] ss:$8 sm:$0xf] %v740
        %1019 = vst [vmem:[%s1017] ss:$8 sm:$0xf0] %v740
        %s1020 = scalar_lea.vmem [#allocation2], 128
        %1021 = vst [vmem:[%s1020] ss:$8 sm:$0xf] %v747
        %1022 = vst [vmem:[%s1020] ss:$8 sm:$0xf0] %v747
        %s1023 = scalar_lea.vmem [#allocation2], 192
        %1024 = vst [vmem:[%s1023] ss:$8 sm:$0xf] %v754
        %1025 = vst [vmem:[%s1023] ss:$8 sm:$0xf0] %v754
        %s1026 = scalar_lea.vmem [#allocation2], 256
        %1027 = vst [vmem:[%s1026] ss:$8 sm:$0xf] %v761
        %1028 = vst [vmem:[%s1026] ss:$8 sm:$0xf0] %v761
        %s1029 = scalar_lea.vmem [#allocation2], 320
        %1030 = vst [vmem:[%s1029] ss:$8 sm:$0xf] %v768
        %1031 = vst [vmem:[%s1029] ss:$8 sm:$0xf0] %v768
        %s1032 = scalar_lea.vmem [#allocation2], 384
        %1033 = vst [vmem:[%s1032] ss:$8 sm:$0xf] %v775
        %1034 = vst [vmem:[%s1032] ss:$8 sm:$0xf0] %v775
        %s1035 = scalar_lea.vmem [#allocation2], 448
        %1036 = vst [vmem:[%s1035] ss:$8 sm:$0xf] %v782
        %1037 = vst [vmem:[%s1035] ss:$8 sm:$0xf0] %v782
        %s1038 = scalar_lea.vmem [#allocation2], 512
        %1039 = vst [vmem:[%s1038] ss:$8 sm:$0xf] %v789
        %1040 = vst [vmem:[%s1038] ss:$8 sm:$0xf0] %v789
        %s1041 = scalar_lea.vmem [#allocation2], 576
        %1042 = vst [vmem:[%s1041] ss:$8 sm:$0xf] %v796
        %1043 = vst [vmem:[%s1041] ss:$8 sm:$0xf0] %v796
        %s1044 = scalar_lea.vmem [#allocation2], 640
        %1045 = vst [vmem:[%s1044] ss:$8 sm:$0xf] %v803
        %1046 = vst [vmem:[%s1044] ss:$8 sm:$0xf0] %v803
        %s1047 = scalar_lea.vmem [#allocation2], 704
        %1048 = vst [vmem:[%s1047] ss:$8 sm:$0xf] %v810
        %1049 = vst [vmem:[%s1047] ss:$8 sm:$0xf0] %v810
        %s1050 = scalar_lea.vmem [#allocation2], 768
        %1051 = vst [vmem:[%s1050] ss:$8 sm:$0xf] %v817
        %1052 = vst [vmem:[%s1050] ss:$8 sm:$0xf0] %v817
        %s1053 = scalar_lea.vmem [#allocation2], 832
        %1054 = vst [vmem:[%s1053] ss:$8 sm:$0xf] %v824
        %1055 = vst [vmem:[%s1053] ss:$8 sm:$0xf0] %v824
        %s1056 = scalar_lea.vmem [#allocation2], 896
        %1057 = vst [vmem:[%s1056] ss:$8 sm:$0xf] %v831
        %1058 = vst [vmem:[%s1056] ss:$8 sm:$0xf0] %v831
        %s1059 = scalar_lea.vmem [#allocation2], 960
        %1060 = vst [vmem:[%s1059] ss:$8 sm:$0xf] %v838
        %1061 = vst [vmem:[%s1059] ss:$8 sm:$0xf0] %v838
        %s1062 = scalar_lea.vmem [#allocation2], 1024
        %1063 = vst [vmem:[%s1062] ss:$8 sm:$0xf] %v845
        %1064 = vst [vmem:[%s1062] ss:$8 sm:$0xf0] %v845
        %s1065 = scalar_lea.vmem [#allocation2], 1088
        %1066 = vst [vmem:[%s1065] ss:$8 sm:$0xf] %v852
        %1067 = vst [vmem:[%s1065] ss:$8 sm:$0xf0] %v852
        %s1068 = scalar_lea.vmem [#allocation2], 1152
        %1069 = vst [vmem:[%s1068] ss:$8 sm:$0xf] %v859
        %1070 = vst [vmem:[%s1068] ss:$8 sm:$0xf0] %v859
        %s1071 = scalar_lea.vmem [#allocation2], 1216
        %1072 = vst [vmem:[%s1071] ss:$8 sm:$0xf] %v866
        %1073 = vst [vmem:[%s1071] ss:$8 sm:$0xf0] %v866
        %s1074 = scalar_lea.vmem [#allocation2], 1280
        %1075 = vst [vmem:[%s1074] ss:$8 sm:$0xf] %v873
        %1076 = vst [vmem:[%s1074] ss:$8 sm:$0xf0] %v873
        %s1077 = scalar_lea.vmem [#allocation2], 1344
        %1078 = vst [vmem:[%s1077] ss:$8 sm:$0xf] %v880
        %1079 = vst [vmem:[%s1077] ss:$8 sm:$0xf0] %v880
        %s1080 = scalar_lea.vmem [#allocation2], 1408
        %1081 = vst [vmem:[%s1080] ss:$8 sm:$0xf] %v887
        %1082 = vst [vmem:[%s1080] ss:$8 sm:$0xf0] %v887
        %s1083 = scalar_lea.vmem [#allocation2], 1472
        %1084 = vst [vmem:[%s1083] ss:$8 sm:$0xf] %v894
        %1085 = vst [vmem:[%s1083] ss:$8 sm:$0xf0] %v894
        %s1086 = scalar_lea.vmem [#allocation2], 1536
        %1087 = vst [vmem:[%s1086] ss:$8 sm:$0xf] %v901
        %1088 = vst [vmem:[%s1086] ss:$8 sm:$0xf0] %v901
        %s1089 = scalar_lea.vmem [#allocation2], 1600
        %1090 = vst [vmem:[%s1089] ss:$8 sm:$0xf] %v908
        %1091 = vst [vmem:[%s1089] ss:$8 sm:$0xf0] %v908
        %s1092 = scalar_lea.vmem [#allocation2], 1664
        %1093 = vst [vmem:[%s1092] ss:$8 sm:$0xf] %v915
        %1094 = vst [vmem:[%s1092] ss:$8 sm:$0xf0] %v915
        %s1095 = scalar_lea.vmem [#allocation2], 1728
        %1096 = vst [vmem:[%s1095] ss:$8 sm:$0xf] %v922
        %1097 = vst [vmem:[%s1095] ss:$8 sm:$0xf0] %v922
        %s1098 = scalar_lea.vmem [#allocation2], 1792
        %1099 = vst [vmem:[%s1098] ss:$8 sm:$0xf] %v929
        %1100 = vst [vmem:[%s1098] ss:$8 sm:$0xf0] %v929
        %s1101 = scalar_lea.vmem [#allocation2], 1856
        %1102 = vst [vmem:[%s1101] ss:$8 sm:$0xf] %v936
        %1103 = vst [vmem:[%s1101] ss:$8 sm:$0xf0] %v936
        %s1104 = scalar_lea.vmem [#allocation2], 1920
        %1105 = vst [vmem:[%s1104] ss:$8 sm:$0xf] %v943
        %1106 = vst [vmem:[%s1104] ss:$8 sm:$0xf0] %v943
        %s1107 = scalar_lea.vmem [#allocation2], 1984
        %1108 = vst [vmem:[%s1107] ss:$8 sm:$0xf] %v950
        %1109 = vst [vmem:[%s1107] ss:$8 sm:$0xf0] %v950
        %s1110 = scalar_lea.vmem [#allocation2], 2048
        %1111 = vst [vmem:[%s1110] ss:$8 sm:$0xf] %v957
        %1112 = vst [vmem:[%s1110] ss:$8 sm:$0xf0] %v957
        %s1113 = scalar_lea.vmem [#allocation2], 2112
        %1114 = vst [vmem:[%s1113] ss:$8 sm:$0xf] %v964
        %1115 = vst [vmem:[%s1113] ss:$8 sm:$0xf0] %v964
        %s1116 = scalar_lea.vmem [#allocation2], 2176
        %1117 = vst [vmem:[%s1116] ss:$8 sm:$0xf] %v971
        %1118 = vst [vmem:[%s1116] ss:$8 sm:$0xf0] %v971
        %v1119 = vlaneseq
        %vm1120 = vcmp.ge.s32.totalorder %v1119, 0
        %vm1121 = vcmp.lt.s32.totalorder %v1119, 768
        %vm1122 = vmand %vm1120, %vm1121
        %s1123 = scalar_lea.vmem [#allocation2], 2240
        %1124 = vst.msk [vmem:[%s1123] ss:$8 sm:$0xf] %vm1122, %v978
        %1125 = vst.msk [vmem:[%s1123] ss:$8 sm:$0x30] %vm1122, %v978
        %v1126 = vrot.slane %v733, 1
        %v1127 = vrot.slane %v740, 1
        %v1128 = vrot.slane %v747, 1
        %v1129 = vrot.slane %v754, 1
        %v1130 = vrot.slane %v761, 1
        %v1131 = vrot.slane %v768, 1
        %v1132 = vrot.slane %v775, 1
        %v1133 = vrot.slane %v782, 1
        %v1134 = vrot.slane %v789, 1
        %v1135 = vrot.slane %v796, 1
        %v1136 = vrot.slane %v803, 1
        %v1137 = vrot.slane %v810, 1
        %v1138 = vrot.slane %v817, 1
        %v1139 = vrot.slane %v824, 1
        %v1140 = vrot.slane %v831, 1
        %v1141 = vrot.slane %v838, 1
        %v1142 = vrot.slane %v845, 1
        %v1143 = vrot.slane %v852, 1
        %v1144 = vrot.slane %v859, 1
        %v1145 = vrot.slane %v866, 1
        %v1146 = vrot.slane %v873, 1
        %v1147 = vrot.slane %v880, 1
        %v1148 = vrot.slane %v887, 1
        %v1149 = vrot.slane %v894, 1
        %v1150 = vrot.slane %v901, 1
        %v1151 = vrot.slane %v908, 1
        %v1152 = vrot.slane %v915, 1
        %v1153 = vrot.slane %v922, 1
        %v1154 = vrot.slane %v929, 1
        %v1155 = vrot.slane %v936, 1
        %v1156 = vrot.slane %v943, 1
        %v1157 = vrot.slane %v950, 1
        %v1158 = vrot.slane %v957, 1
        %v1159 = vrot.slane %v964, 1
        %v1160 = vrot.slane %v971, 1
        %v1161 = vrot.slane %v978, 1
        %vm1162 = vcmask 1046528
        %v1163 = vsel %vm1162, %v1126, %v1127
        %v1164 = vsel %vm1162, %v1127, %v1128
        %v1165 = vsel %vm1162, %v1128, %v1129
        %v1166 = vsel %vm1162, %v1129, %v1130
        %v1167 = vsel %vm1162, %v1130, %v1131
        %v1168 = vsel %vm1162, %v1131, %v1132
        %v1169 = vsel %vm1162, %v1132, %v1133
        %v1170 = vsel %vm1162, %v1133, %v1134
        %v1171 = vsel %vm1162, %v1134, %v1135
        %v1172 = vsel %vm1162, %v1135, %v1136
        %v1173 = vsel %vm1162, %v1136, %v1137
        %v1174 = vsel %vm1162, %v1137, %v1138
        %v1175 = vsel %vm1162, %v1138, %v1139
        %v1176 = vsel %vm1162, %v1139, %v1140
        %v1177 = vsel %vm1162, %v1140, %v1141
        %v1178 = vsel %vm1162, %v1141, %v1142
        %v1179 = vsel %vm1162, %v1142, %v1143
        %v1180 = vsel %vm1162, %v1143, %v1144
        %v1181 = vsel %vm1162, %v1144, %v1145
        %v1182 = vsel %vm1162, %v1145, %v1146
        %v1183 = vsel %vm1162, %v1146, %v1147
        %v1184 = vsel %vm1162, %v1147, %v1148
        %v1185 = vsel %vm1162, %v1148, %v1149
        %v1186 = vsel %vm1162, %v1149, %v1150
        %v1187 = vsel %vm1162, %v1150, %v1151
        %v1188 = vsel %vm1162, %v1151, %v1152
        %v1189 = vsel %vm1162, %v1152, %v1153
        %v1190 = vsel %vm1162, %v1153, %v1154
        %v1191 = vsel %vm1162, %v1154, %v1155
        %v1192 = vsel %vm1162, %v1155, %v1156
        %v1193 = vsel %vm1162, %v1156, %v1157
        %v1194 = vsel %vm1162, %v1157, %v1158
        %v1195 = vsel %vm1162, %v1158, %v1159
        %v1196 = vsel %vm1162, %v1159, %v1160
        %v1197 = vsel %vm1162, %v1160, %v1161
        %s1234 = scalar_lea.vmem [#allocation2], 1
        %1235 = vst [vmem:[%s1234] ss:$8 sm:$0xf] %v1163
        %1236 = vst [vmem:[%s1234] ss:$8 sm:$0xf0] %v1163
        %s1237 = scalar_lea.vmem [#allocation2], 65
        %1238 = vst [vmem:[%s1237] ss:$8 sm:$0xf] %v1164
        %1239 = vst [vmem:[%s1237] ss:$8 sm:$0xf0] %v1164
        %s1240 = scalar_lea.vmem [#allocation2], 129
        %1241 = vst [vmem:[%s1240] ss:$8 sm:$0xf] %v1165
        %1242 = vst [vmem:[%s1240] ss:$8 sm:$0xf0] %v1165
        %s1243 = scalar_lea.vmem [#allocation2], 193
        %1244 = vst [vmem:[%s1243] ss:$8 sm:$0xf] %v1166
        %1245 = vst [vmem:[%s1243] ss:$8 sm:$0xf0] %v1166
        %s1246 = scalar_lea.vmem [#allocation2], 257
        %1247 = vst [vmem:[%s1246] ss:$8 sm:$0xf] %v1167
        %1248 = vst [vmem:[%s1246] ss:$8 sm:$0xf0] %v1167
        %s1249 = scalar_lea.vmem [#allocation2], 321
        %1250 = vst [vmem:[%s1249] ss:$8 sm:$0xf] %v1168
        %1251 = vst [vmem:[%s1249] ss:$8 sm:$0xf0] %v1168
        %s1252 = scalar_lea.vmem [#allocation2], 385
        %1253 = vst [vmem:[%s1252] ss:$8 sm:$0xf] %v1169
        %1254 = vst [vmem:[%s1252] ss:$8 sm:$0xf0] %v1169
        %s1255 = scalar_lea.vmem [#allocation2], 449
        %1256 = vst [vmem:[%s1255] ss:$8 sm:$0xf] %v1170
        %1257 = vst [vmem:[%s1255] ss:$8 sm:$0xf0] %v1170
        %s1258 = scalar_lea.vmem [#allocation2], 513
        %1259 = vst [vmem:[%s1258] ss:$8 sm:$0xf] %v1171
        %1260 = vst [vmem:[%s1258] ss:$8 sm:$0xf0] %v1171
        %s1261 = scalar_lea.vmem [#allocation2], 577
        %1262 = vst [vmem:[%s1261] ss:$8 sm:$0xf] %v1172
        %1263 = vst [vmem:[%s1261] ss:$8 sm:$0xf0] %v1172
        %s1264 = scalar_lea.vmem [#allocation2], 641
        %1265 = vst [vmem:[%s1264] ss:$8 sm:$0xf] %v1173
        %1266 = vst [vmem:[%s1264] ss:$8 sm:$0xf0] %v1173
        %s1267 = scalar_lea.vmem [#allocation2], 705
        %1268 = vst [vmem:[%s1267] ss:$8 sm:$0xf] %v1174
        %1269 = vst [vmem:[%s1267] ss:$8 sm:$0xf0] %v1174
        %s1270 = scalar_lea.vmem [#allocation2], 769
        %1271 = vst [vmem:[%s1270] ss:$8 sm:$0xf] %v1175
        %1272 = vst [vmem:[%s1270] ss:$8 sm:$0xf0] %v1175
        %s1273 = scalar_lea.vmem [#allocation2], 833
        %1274 = vst [vmem:[%s1273] ss:$8 sm:$0xf] %v1176
        %1275 = vst [vmem:[%s1273] ss:$8 sm:$0xf0] %v1176
        %s1276 = scalar_lea.vmem [#allocation2], 897
        %1277 = vst [vmem:[%s1276] ss:$8 sm:$0xf] %v1177
        %1278 = vst [vmem:[%s1276] ss:$8 sm:$0xf0] %v1177
        %s1279 = scalar_lea.vmem [#allocation2], 961
        %1280 = vst [vmem:[%s1279] ss:$8 sm:$0xf] %v1178
        %1281 = vst [vmem:[%s1279] ss:$8 sm:$0xf0] %v1178
        %s1282 = scalar_lea.vmem [#allocation2], 1025
        %1283 = vst [vmem:[%s1282] ss:$8 sm:$0xf] %v1179
        %1284 = vst [vmem:[%s1282] ss:$8 sm:$0xf0] %v1179
        %s1285 = scalar_lea.vmem [#allocation2], 1089
        %1286 = vst [vmem:[%s1285] ss:$8 sm:$0xf] %v1180
        %1287 = vst [vmem:[%s1285] ss:$8 sm:$0xf0] %v1180
        %s1288 = scalar_lea.vmem [#allocation2], 1153
        %1289 = vst [vmem:[%s1288] ss:$8 sm:$0xf] %v1181
        %1290 = vst [vmem:[%s1288] ss:$8 sm:$0xf0] %v1181
        %s1291 = scalar_lea.vmem [#allocation2], 1217
        %1292 = vst [vmem:[%s1291] ss:$8 sm:$0xf] %v1182
        %1293 = vst [vmem:[%s1291] ss:$8 sm:$0xf0] %v1182
        %s1294 = scalar_lea.vmem [#allocation2], 1281
        %1295 = vst [vmem:[%s1294] ss:$8 sm:$0xf] %v1183
        %1296 = vst [vmem:[%s1294] ss:$8 sm:$0xf0] %v1183
        %s1297 = scalar_lea.vmem [#allocation2], 1345
        %1298 = vst [vmem:[%s1297] ss:$8 sm:$0xf] %v1184
        %1299 = vst [vmem:[%s1297] ss:$8 sm:$0xf0] %v1184
        %s1300 = scalar_lea.vmem [#allocation2], 1409
        %1301 = vst [vmem:[%s1300] ss:$8 sm:$0xf] %v1185
        %1302 = vst [vmem:[%s1300] ss:$8 sm:$0xf0] %v1185
        %s1303 = scalar_lea.vmem [#allocation2], 1473
        %1304 = vst [vmem:[%s1303] ss:$8 sm:$0xf] %v1186
        %1305 = vst [vmem:[%s1303] ss:$8 sm:$0xf0] %v1186
        %s1306 = scalar_lea.vmem [#allocation2], 1537
        %1307 = vst [vmem:[%s1306] ss:$8 sm:$0xf] %v1187
        %1308 = vst [vmem:[%s1306] ss:$8 sm:$0xf0] %v1187
        %s1309 = scalar_lea.vmem [#allocation2], 1601
        %1310 = vst [vmem:[%s1309] ss:$8 sm:$0xf] %v1188
        %1311 = vst [vmem:[%s1309] ss:$8 sm:$0xf0] %v1188
        %s1312 = scalar_lea.vmem [#allocation2], 1665
        %1313 = vst [vmem:[%s1312] ss:$8 sm:$0xf] %v1189
        %1314 = vst [vmem:[%s1312] ss:$8 sm:$0xf0] %v1189
        %s1315 = scalar_lea.vmem [#allocation2], 1729
        %1316 = vst [vmem:[%s1315] ss:$8 sm:$0xf] %v1190
        %1317 = vst [vmem:[%s1315] ss:$8 sm:$0xf0] %v1190
        %s1318 = scalar_lea.vmem [#allocation2], 1793
        %1319 = vst [vmem:[%s1318] ss:$8 sm:$0xf] %v1191
        %1320 = vst [vmem:[%s1318] ss:$8 sm:$0xf0] %v1191
        %s1321 = scalar_lea.vmem [#allocation2], 1857
        %1322 = vst [vmem:[%s1321] ss:$8 sm:$0xf] %v1192
        %1323 = vst [vmem:[%s1321] ss:$8 sm:$0xf0] %v1192
        %s1324 = scalar_lea.vmem [#allocation2], 1921
        %1325 = vst [vmem:[%s1324] ss:$8 sm:$0xf] %v1193
        %1326 = vst [vmem:[%s1324] ss:$8 sm:$0xf0] %v1193
        %s1327 = scalar_lea.vmem [#allocation2], 1985
        %1328 = vst [vmem:[%s1327] ss:$8 sm:$0xf] %v1194
        %1329 = vst [vmem:[%s1327] ss:$8 sm:$0xf0] %v1194
        %s1330 = scalar_lea.vmem [#allocation2], 2049
        %1331 = vst [vmem:[%s1330] ss:$8 sm:$0xf] %v1195
        %1332 = vst [vmem:[%s1330] ss:$8 sm:$0xf0] %v1195
        %s1333 = scalar_lea.vmem [#allocation2], 2113
        %1334 = vst [vmem:[%s1333] ss:$8 sm:$0xf] %v1196
        %1335 = vst [vmem:[%s1333] ss:$8 sm:$0xf0] %v1196
        %s1336 = scalar_lea.vmem [#allocation2], 2177
        %1337 = vst [vmem:[%s1336] ss:$8 sm:$0xf] %v1197
        %1338 = vst [vmem:[%s1336] ss:$8 sm:$0xf0] %v1197
        %s1339 = scalar_lea.vmem [#allocation2], 2241
        %1340 = vst.msk [vmem:[%s1339] ss:$8 sm:$0xf] %vm1122, %v1161
        %1341 = vst.msk [vmem:[%s1339] ss:$8 sm:$0x30] %vm1122, %v1161
        %v1342 = vrot.slane %v733, 2
        %v1343 = vrot.slane %v740, 2
        %v1344 = vrot.slane %v747, 2
        %v1345 = vrot.slane %v754, 2
        %v1346 = vrot.slane %v761, 2
        %v1347 = vrot.slane %v768, 2
        %v1348 = vrot.slane %v775, 2
        %v1349 = vrot.slane %v782, 2
        %v1350 = vrot.slane %v789, 2
        %v1351 = vrot.slane %v796, 2
        %v1352 = vrot.slane %v803, 2
        %v1353 = vrot.slane %v810, 2
        %v1354 = vrot.slane %v817, 2
        %v1355 = vrot.slane %v824, 2
        %v1356 = vrot.slane %v831, 2
        %v1357 = vrot.slane %v838, 2
        %v1358 = vrot.slane %v845, 2
        %v1359 = vrot.slane %v852, 2
        %v1360 = vrot.slane %v859, 2
        %v1361 = vrot.slane %v866, 2
        %v1362 = vrot.slane %v873, 2
        %v1363 = vrot.slane %v880, 2
        %v1364 = vrot.slane %v887, 2
        %v1365 = vrot.slane %v894, 2
        %v1366 = vrot.slane %v901, 2
        %v1367 = vrot.slane %v908, 2
        %v1368 = vrot.slane %v915, 2
        %v1369 = vrot.slane %v922, 2
        %v1370 = vrot.slane %v929, 2
        %v1371 = vrot.slane %v936, 2
        %v1372 = vrot.slane %v943, 2
        %v1373 = vrot.slane %v950, 2
        %v1374 = vrot.slane %v957, 2
        %v1375 = vrot.slane %v964, 2
        %v1376 = vrot.slane %v971, 2
        %v1377 = vrot.slane %v978, 2
        %vm1378 = vcmask 1045504
        %v1379 = vsel %vm1378, %v1342, %v1343
        %v1380 = vsel %vm1378, %v1343, %v1344
        %v1381 = vsel %vm1378, %v1344, %v1345
        %v1382 = vsel %vm1378, %v1345, %v1346
        %v1383 = vsel %vm1378, %v1346, %v1347
        %v1384 = vsel %vm1378, %v1347, %v1348
        %v1385 = vsel %vm1378, %v1348, %v1349
        %v1386 = vsel %vm1378, %v1349, %v1350
        %v1387 = vsel %vm1378, %v1350, %v1351
        %v1388 = vsel %vm1378, %v1351, %v1352
        %v1389 = vsel %vm1378, %v1352, %v1353
        %v1390 = vsel %vm1378, %v1353, %v1354
        %v1391 = vsel %vm1378, %v1354, %v1355
        %v1392 = vsel %vm1378, %v1355, %v1356
        %v1393 = vsel %vm1378, %v1356, %v1357
        %v1394 = vsel %vm1378, %v1357, %v1358
        %v1395 = vsel %vm1378, %v1358, %v1359
        %v1396 = vsel %vm1378, %v1359, %v1360
        %v1397 = vsel %vm1378, %v1360, %v1361
        %v1398 = vsel %vm1378, %v1361, %v1362
        %v1399 = vsel %vm1378, %v1362, %v1363
        %v1400 = vsel %vm1378, %v1363, %v1364
        %v1401 = vsel %vm1378, %v1364, %v1365
        %v1402 = vsel %vm1378, %v1365, %v1366
        %v1403 = vsel %vm1378, %v1366, %v1367
        %v1404 = vsel %vm1378, %v1367, %v1368
        %v1405 = vsel %vm1378, %v1368, %v1369
        %v1406 = vsel %vm1378, %v1369, %v1370
        %v1407 = vsel %vm1378, %v1370, %v1371
        %v1408 = vsel %vm1378, %v1371, %v1372
        %v1409 = vsel %vm1378, %v1372, %v1373
        %v1410 = vsel %vm1378, %v1373, %v1374
        %v1411 = vsel %vm1378, %v1374, %v1375
        %v1412 = vsel %vm1378, %v1375, %v1376
        %v1413 = vsel %vm1378, %v1376, %v1377
        %s1450 = scalar_lea.vmem [#allocation2], 2
        %1451 = vst [vmem:[%s1450] ss:$8 sm:$0xf] %v1379
        %1452 = vst [vmem:[%s1450] ss:$8 sm:$0xf0] %v1379
        %s1453 = scalar_lea.vmem [#allocation2], 66
        %1454 = vst [vmem:[%s1453] ss:$8 sm:$0xf] %v1380
        %1455 = vst [vmem:[%s1453] ss:$8 sm:$0xf0] %v1380
        %s1456 = scalar_lea.vmem [#allocation2], 130
        %1457 = vst [vmem:[%s1456] ss:$8 sm:$0xf] %v1381
        %1458 = vst [vmem:[%s1456] ss:$8 sm:$0xf0] %v1381
        %s1459 = scalar_lea.vmem [#allocation2], 194
        %1460 = vst [vmem:[%s1459] ss:$8 sm:$0xf] %v1382
        %1461 = vst [vmem:[%s1459] ss:$8 sm:$0xf0] %v1382
        %s1462 = scalar_lea.vmem [#allocation2], 258
        %1463 = vst [vmem:[%s1462] ss:$8 sm:$0xf] %v1383
        %1464 = vst [vmem:[%s1462] ss:$8 sm:$0xf0] %v1383
        %s1465 = scalar_lea.vmem [#allocation2], 322
        %1466 = vst [vmem:[%s1465] ss:$8 sm:$0xf] %v1384
        %1467 = vst [vmem:[%s1465] ss:$8 sm:$0xf0] %v1384
        %s1468 = scalar_lea.vmem [#allocation2], 386
        %1469 = vst [vmem:[%s1468] ss:$8 sm:$0xf] %v1385
        %1470 = vst [vmem:[%s1468] ss:$8 sm:$0xf0] %v1385
        %s1471 = scalar_lea.vmem [#allocation2], 450
        %1472 = vst [vmem:[%s1471] ss:$8 sm:$0xf] %v1386
        %1473 = vst [vmem:[%s1471] ss:$8 sm:$0xf0] %v1386
        %s1474 = scalar_lea.vmem [#allocation2], 514
        %1475 = vst [vmem:[%s1474] ss:$8 sm:$0xf] %v1387
        %1476 = vst [vmem:[%s1474] ss:$8 sm:$0xf0] %v1387
        %s1477 = scalar_lea.vmem [#allocation2], 578
        %1478 = vst [vmem:[%s1477] ss:$8 sm:$0xf] %v1388
        %1479 = vst [vmem:[%s1477] ss:$8 sm:$0xf0] %v1388
        %s1480 = scalar_lea.vmem [#allocation2], 642
        %1481 = vst [vmem:[%s1480] ss:$8 sm:$0xf] %v1389
        %1482 = vst [vmem:[%s1480] ss:$8 sm:$0xf0] %v1389
        %s1483 = scalar_lea.vmem [#allocation2], 706
        %1484 = vst [vmem:[%s1483] ss:$8 sm:$0xf] %v1390
        %1485 = vst [vmem:[%s1483] ss:$8 sm:$0xf0] %v1390
        %s1486 = scalar_lea.vmem [#allocation2], 770
        %1487 = vst [vmem:[%s1486] ss:$8 sm:$0xf] %v1391
        %1488 = vst [vmem:[%s1486] ss:$8 sm:$0xf0] %v1391
        %s1489 = scalar_lea.vmem [#allocation2], 834
        %1490 = vst [vmem:[%s1489] ss:$8 sm:$0xf] %v1392
        %1491 = vst [vmem:[%s1489] ss:$8 sm:$0xf0] %v1392
        %s1492 = scalar_lea.vmem [#allocation2], 898
        %1493 = vst [vmem:[%s1492] ss:$8 sm:$0xf] %v1393
        %1494 = vst [vmem:[%s1492] ss:$8 sm:$0xf0] %v1393
        %s1495 = scalar_lea.vmem [#allocation2], 962
        %1496 = vst [vmem:[%s1495] ss:$8 sm:$0xf] %v1394
        %1497 = vst [vmem:[%s1495] ss:$8 sm:$0xf0] %v1394
        %s1498 = scalar_lea.vmem [#allocation2], 1026
        %1499 = vst [vmem:[%s1498] ss:$8 sm:$0xf] %v1395
        %1500 = vst [vmem:[%s1498] ss:$8 sm:$0xf0] %v1395
        %s1501 = scalar_lea.vmem [#allocation2], 1090
        %1502 = vst [vmem:[%s1501] ss:$8 sm:$0xf] %v1396
        %1503 = vst [vmem:[%s1501] ss:$8 sm:$0xf0] %v1396
        %s1504 = scalar_lea.vmem [#allocation2], 1154
        %1505 = vst [vmem:[%s1504] ss:$8 sm:$0xf] %v1397
        %1506 = vst [vmem:[%s1504] ss:$8 sm:$0xf0] %v1397
        %s1507 = scalar_lea.vmem [#allocation2], 1218
        %1508 = vst [vmem:[%s1507] ss:$8 sm:$0xf] %v1398
        %1509 = vst [vmem:[%s1507] ss:$8 sm:$0xf0] %v1398
        %s1510 = scalar_lea.vmem [#allocation2], 1282
        %1511 = vst [vmem:[%s1510] ss:$8 sm:$0xf] %v1399
        %1512 = vst [vmem:[%s1510] ss:$8 sm:$0xf0] %v1399
        %s1513 = scalar_lea.vmem [#allocation2], 1346
        %1514 = vst [vmem:[%s1513] ss:$8 sm:$0xf] %v1400
        %1515 = vst [vmem:[%s1513] ss:$8 sm:$0xf0] %v1400
        %s1516 = scalar_lea.vmem [#allocation2], 1410
        %1517 = vst [vmem:[%s1516] ss:$8 sm:$0xf] %v1401
        %1518 = vst [vmem:[%s1516] ss:$8 sm:$0xf0] %v1401
        %s1519 = scalar_lea.vmem [#allocation2], 1474
        %1520 = vst [vmem:[%s1519] ss:$8 sm:$0xf] %v1402
        %1521 = vst [vmem:[%s1519] ss:$8 sm:$0xf0] %v1402
        %s1522 = scalar_lea.vmem [#allocation2], 1538
        %1523 = vst [vmem:[%s1522] ss:$8 sm:$0xf] %v1403
        %1524 = vst [vmem:[%s1522] ss:$8 sm:$0xf0] %v1403
        %s1525 = scalar_lea.vmem [#allocation2], 1602
        %1526 = vst [vmem:[%s1525] ss:$8 sm:$0xf] %v1404
        %1527 = vst [vmem:[%s1525] ss:$8 sm:$0xf0] %v1404
        %s1528 = scalar_lea.vmem [#allocation2], 1666
        %1529 = vst [vmem:[%s1528] ss:$8 sm:$0xf] %v1405
        %1530 = vst [vmem:[%s1528] ss:$8 sm:$0xf0] %v1405
        %s1531 = scalar_lea.vmem [#allocation2], 1730
        %1532 = vst [vmem:[%s1531] ss:$8 sm:$0xf] %v1406
        %1533 = vst [vmem:[%s1531] ss:$8 sm:$0xf0] %v1406
        %s1534 = scalar_lea.vmem [#allocation2], 1794
        %1535 = vst [vmem:[%s1534] ss:$8 sm:$0xf] %v1407
        %1536 = vst [vmem:[%s1534] ss:$8 sm:$0xf0] %v1407
        %s1537 = scalar_lea.vmem [#allocation2], 1858
        %1538 = vst [vmem:[%s1537] ss:$8 sm:$0xf] %v1408
        %1539 = vst [vmem:[%s1537] ss:$8 sm:$0xf0] %v1408
        %s1540 = scalar_lea.vmem [#allocation2], 1922
        %1541 = vst [vmem:[%s1540] ss:$8 sm:$0xf] %v1409
        %1542 = vst [vmem:[%s1540] ss:$8 sm:$0xf0] %v1409
        %s1543 = scalar_lea.vmem [#allocation2], 1986
        %1544 = vst [vmem:[%s1543] ss:$8 sm:$0xf] %v1410
        %1545 = vst [vmem:[%s1543] ss:$8 sm:$0xf0] %v1410
        %s1546 = scalar_lea.vmem [#allocation2], 2050
        %1547 = vst [vmem:[%s1546] ss:$8 sm:$0xf] %v1411
        %1548 = vst [vmem:[%s1546] ss:$8 sm:$0xf0] %v1411
        %s1549 = scalar_lea.vmem [#allocation2], 2114
        %1550 = vst [vmem:[%s1549] ss:$8 sm:$0xf] %v1412
        %1551 = vst [vmem:[%s1549] ss:$8 sm:$0xf0] %v1412
        %s1552 = scalar_lea.vmem [#allocation2], 2178
        %1553 = vst [vmem:[%s1552] ss:$8 sm:$0xf] %v1413
        %1554 = vst [vmem:[%s1552] ss:$8 sm:$0xf0] %v1413
        %s1555 = scalar_lea.vmem [#allocation2], 2242
        %1556 = vst.msk [vmem:[%s1555] ss:$8 sm:$0xf] %vm1122, %v1377
        %1557 = vst.msk [vmem:[%s1555] ss:$8 sm:$0x30] %vm1122, %v1377
        %v1562 = vrot.slane %v387, 1
        %v1563 = vrot.slane %v387, 2
        %v1564 = vrot.slane %v387, 3
        %v1565 = vrot.slane %v388, 4
        %v1566 = vrot.slane %v388, 5
        %v1567 = vrot.slane %v388, 6
        %v1568 = vrot.slane %v388, 7
        %v1569 = vrot.slane %v389, 1
        %v1570 = vrot.slane %v389, 2
        %v1571 = vrot.slane %v389, 3
        %v1572 = vrot.slane %v390, 4
        %v1573 = vrot.slane %v390, 5
        %v1574 = vrot.slane %v390, 6
        %v1575 = vrot.slane %v390, 7
        %v1576 = vsel %vm720, %v387, %v1562
        %v1577 = vsel %vm722, %v1563, %v1564
        %v1578 = vsel %vm724, %v1576, %v1577
        %v1579 = vsel %vm726, %v1565, %v1566
        %v1580 = vsel %vm728, %v1567, %v1568
        %v1581 = vsel %vm730, %v1579, %v1580
        %v1582 = vsel %vm732, %v1578, %v1581
        %v1583 = vsel %vm720, %v389, %v1569
        %v1584 = vsel %vm722, %v1570, %v1571
        %v1585 = vsel %vm724, %v1583, %v1584
        %v1586 = vsel %vm726, %v1572, %v1573
        %v1587 = vsel %vm728, %v1574, %v1575
        %v1588 = vsel %vm730, %v1586, %v1587
        %v1589 = vsel %vm732, %v1585, %v1588
        %v1590 = vrot.slane %v1582, 2
        %v1591 = vrot.slane %v1589, 2
        %v1592 = vsel %vm1378, %v1377, %v1590
        %v1593 = vsel %vm1378, %v1590, %v1591
        %s1597 = scalar_lea.vmem [#allocation2], 3
        %1598 = vst [vmem:[%s1597] ss:$8 sm:$0xf] %v1381
        %1599 = vst [vmem:[%s1597] ss:$8 sm:$0xf0] %v1381
        %s1600 = scalar_lea.vmem [#allocation2], 67
        %1601 = vst [vmem:[%s1600] ss:$8 sm:$0xf] %v1382
        %1602 = vst [vmem:[%s1600] ss:$8 sm:$0xf0] %v1382
        %s1603 = scalar_lea.vmem [#allocation2], 131
        %1604 = vst [vmem:[%s1603] ss:$8 sm:$0xf] %v1383
        %1605 = vst [vmem:[%s1603] ss:$8 sm:$0xf0] %v1383
        %s1606 = scalar_lea.vmem [#allocation2], 195
        %1607 = vst [vmem:[%s1606] ss:$8 sm:$0xf] %v1384
        %1608 = vst [vmem:[%s1606] ss:$8 sm:$0xf0] %v1384
        %s1609 = scalar_lea.vmem [#allocation2], 259
        %1610 = vst [vmem:[%s1609] ss:$8 sm:$0xf] %v1385
        %1611 = vst [vmem:[%s1609] ss:$8 sm:$0xf0] %v1385
        %s1612 = scalar_lea.vmem [#allocation2], 323
        %1613 = vst [vmem:[%s1612] ss:$8 sm:$0xf] %v1386
        %1614 = vst [vmem:[%s1612] ss:$8 sm:$0xf0] %v1386
        %s1615 = scalar_lea.vmem [#allocation2], 387
        %1616 = vst [vmem:[%s1615] ss:$8 sm:$0xf] %v1387
        %1617 = vst [vmem:[%s1615] ss:$8 sm:$0xf0] %v1387
        %s1618 = scalar_lea.vmem [#allocation2], 451
        %1619 = vst [vmem:[%s1618] ss:$8 sm:$0xf] %v1388
        %1620 = vst [vmem:[%s1618] ss:$8 sm:$0xf0] %v1388
        %s1621 = scalar_lea.vmem [#allocation2], 515
        %1622 = vst [vmem:[%s1621] ss:$8 sm:$0xf] %v1389
        %1623 = vst [vmem:[%s1621] ss:$8 sm:$0xf0] %v1389
        %s1624 = scalar_lea.vmem [#allocation2], 579
        %1625 = vst [vmem:[%s1624] ss:$8 sm:$0xf] %v1390
        %1626 = vst [vmem:[%s1624] ss:$8 sm:$0xf0] %v1390
        %s1627 = scalar_lea.vmem [#allocation2], 643
        %1628 = vst [vmem:[%s1627] ss:$8 sm:$0xf] %v1391
        %1629 = vst [vmem:[%s1627] ss:$8 sm:$0xf0] %v1391
        %s1630 = scalar_lea.vmem [#allocation2], 707
        %1631 = vst [vmem:[%s1630] ss:$8 sm:$0xf] %v1392
        %1632 = vst [vmem:[%s1630] ss:$8 sm:$0xf0] %v1392
        %s1633 = scalar_lea.vmem [#allocation2], 771
        %1634 = vst [vmem:[%s1633] ss:$8 sm:$0xf] %v1393
        %1635 = vst [vmem:[%s1633] ss:$8 sm:$0xf0] %v1393
        %s1636 = scalar_lea.vmem [#allocation2], 835
        %1637 = vst [vmem:[%s1636] ss:$8 sm:$0xf] %v1394
        %1638 = vst [vmem:[%s1636] ss:$8 sm:$0xf0] %v1394
        %s1639 = scalar_lea.vmem [#allocation2], 899
        %1640 = vst [vmem:[%s1639] ss:$8 sm:$0xf] %v1395
        %1641 = vst [vmem:[%s1639] ss:$8 sm:$0xf0] %v1395
        %s1642 = scalar_lea.vmem [#allocation2], 963
        %1643 = vst [vmem:[%s1642] ss:$8 sm:$0xf] %v1396
        %1644 = vst [vmem:[%s1642] ss:$8 sm:$0xf0] %v1396
        %s1645 = scalar_lea.vmem [#allocation2], 1027
        %1646 = vst [vmem:[%s1645] ss:$8 sm:$0xf] %v1397
        %1647 = vst [vmem:[%s1645] ss:$8 sm:$0xf0] %v1397
        %s1648 = scalar_lea.vmem [#allocation2], 1091
        %1649 = vst [vmem:[%s1648] ss:$8 sm:$0xf] %v1398
        %1650 = vst [vmem:[%s1648] ss:$8 sm:$0xf0] %v1398
        %s1651 = scalar_lea.vmem [#allocation2], 1155
        %1652 = vst [vmem:[%s1651] ss:$8 sm:$0xf] %v1399
        %1653 = vst [vmem:[%s1651] ss:$8 sm:$0xf0] %v1399
        %s1654 = scalar_lea.vmem [#allocation2], 1219
        %1655 = vst [vmem:[%s1654] ss:$8 sm:$0xf] %v1400
        %1656 = vst [vmem:[%s1654] ss:$8 sm:$0xf0] %v1400
        %s1657 = scalar_lea.vmem [#allocation2], 1283
        %1658 = vst [vmem:[%s1657] ss:$8 sm:$0xf] %v1401
        %1659 = vst [vmem:[%s1657] ss:$8 sm:$0xf0] %v1401
        %s1660 = scalar_lea.vmem [#allocation2], 1347
        %1661 = vst [vmem:[%s1660] ss:$8 sm:$0xf] %v1402
        %1662 = vst [vmem:[%s1660] ss:$8 sm:$0xf0] %v1402
        %s1663 = scalar_lea.vmem [#allocation2], 1411
        %1664 = vst [vmem:[%s1663] ss:$8 sm:$0xf] %v1403
        %1665 = vst [vmem:[%s1663] ss:$8 sm:$0xf0] %v1403
        %s1666 = scalar_lea.vmem [#allocation2], 1475
        %1667 = vst [vmem:[%s1666] ss:$8 sm:$0xf] %v1404
        %1668 = vst [vmem:[%s1666] ss:$8 sm:$0xf0] %v1404
        %s1669 = scalar_lea.vmem [#allocation2], 1539
        %1670 = vst [vmem:[%s1669] ss:$8 sm:$0xf] %v1405
        %1671 = vst [vmem:[%s1669] ss:$8 sm:$0xf0] %v1405
        %s1672 = scalar_lea.vmem [#allocation2], 1603
        %1673 = vst [vmem:[%s1672] ss:$8 sm:$0xf] %v1406
        %1674 = vst [vmem:[%s1672] ss:$8 sm:$0xf0] %v1406
        %s1675 = scalar_lea.vmem [#allocation2], 1667
        %1676 = vst [vmem:[%s1675] ss:$8 sm:$0xf] %v1407
        %1677 = vst [vmem:[%s1675] ss:$8 sm:$0xf0] %v1407
        %s1678 = scalar_lea.vmem [#allocation2], 1731
        %1679 = vst [vmem:[%s1678] ss:$8 sm:$0xf] %v1408
        %1680 = vst [vmem:[%s1678] ss:$8 sm:$0xf0] %v1408
        %s1681 = scalar_lea.vmem [#allocation2], 1795
        %1682 = vst [vmem:[%s1681] ss:$8 sm:$0xf] %v1409
        %1683 = vst [vmem:[%s1681] ss:$8 sm:$0xf0] %v1409
        %s1684 = scalar_lea.vmem [#allocation2], 1859
        %1685 = vst [vmem:[%s1684] ss:$8 sm:$0xf] %v1410
        %1686 = vst [vmem:[%s1684] ss:$8 sm:$0xf0] %v1410
        %s1687 = scalar_lea.vmem [#allocation2], 1923
        %1688 = vst [vmem:[%s1687] ss:$8 sm:$0xf] %v1411
        %1689 = vst [vmem:[%s1687] ss:$8 sm:$0xf0] %v1411
        %s1690 = scalar_lea.vmem [#allocation2], 1987
        %1691 = vst [vmem:[%s1690] ss:$8 sm:$0xf] %v1412
        %1692 = vst [vmem:[%s1690] ss:$8 sm:$0xf0] %v1412
        %s1693 = scalar_lea.vmem [#allocation2], 2051
        %1694 = vst [vmem:[%s1693] ss:$8 sm:$0xf] %v1413
        %1695 = vst [vmem:[%s1693] ss:$8 sm:$0xf0] %v1413
        %s1696 = scalar_lea.vmem [#allocation2], 2115
        %1697 = vst [vmem:[%s1696] ss:$8 sm:$0xf] %v1592
        %1698 = vst [vmem:[%s1696] ss:$8 sm:$0xf0] %v1592
        %s1699 = scalar_lea.vmem [#allocation2], 2179
        %1700 = vst [vmem:[%s1699] ss:$8 sm:$0xf] %v1593
        %1701 = vst [vmem:[%s1699] ss:$8 sm:$0xf0] %v1593
        %s1702 = scalar_lea.vmem [#allocation2], 2243
        %1703 = vst.msk [vmem:[%s1702] ss:$8 sm:$0xf] %vm1122, %v1591
        %1704 = vst.msk [vmem:[%s1702] ss:$8 sm:$0x30] %vm1122, %v1591
        %v1706 = vrot.slane %v391, 1
        %v1707 = vrot.slane %v391, 2
        %v1708 = vrot.slane %v391, 3
        %v1709 = vsel %vm720, %v391, %v1706
        %v1710 = vsel %vm722, %v1707, %v1708
        %v1711 = vsel %vm724, %v1709, %v1710
        %v1712 = vrot.slane %v747, 3
        %v1713 = vrot.slane %v754, 3
        %v1714 = vrot.slane %v761, 3
        %v1715 = vrot.slane %v768, 3
        %v1716 = vrot.slane %v775, 3
        %v1717 = vrot.slane %v782, 3
        %v1718 = vrot.slane %v789, 3
        %v1719 = vrot.slane %v796, 3
        %v1720 = vrot.slane %v803, 3
        %v1721 = vrot.slane %v810, 3
        %v1722 = vrot.slane %v817, 3
        %v1723 = vrot.slane %v824, 3
        %v1724 = vrot.slane %v831, 3
        %v1725 = vrot.slane %v838, 3
        %v1726 = vrot.slane %v845, 3
        %v1727 = vrot.slane %v852, 3
        %v1728 = vrot.slane %v859, 3
        %v1729 = vrot.slane %v866, 3
        %v1730 = vrot.slane %v873, 3
        %v1731 = vrot.slane %v880, 3
        %v1732 = vrot.slane %v887, 3
        %v1733 = vrot.slane %v894, 3
        %v1734 = vrot.slane %v901, 3
        %v1735 = vrot.slane %v908, 3
        %v1736 = vrot.slane %v915, 3
        %v1737 = vrot.slane %v922, 3
        %v1738 = vrot.slane %v929, 3
        %v1739 = vrot.slane %v936, 3
        %v1740 = vrot.slane %v943, 3
        %v1741 = vrot.slane %v950, 3
        %v1742 = vrot.slane %v957, 3
        %v1743 = vrot.slane %v964, 3
        %v1744 = vrot.slane %v971, 3
        %v1745 = vrot.slane %v978, 3
        %v1746 = vrot.slane %v1582, 3
        %v1747 = vrot.slane %v1589, 3
        %v1748 = vrot.slane %v1711, 3
        %vm1749 = vcmask 1044480
        %v1750 = vsel %vm1749, %v1712, %v1713
        %v1751 = vsel %vm1749, %v1713, %v1714
        %v1752 = vsel %vm1749, %v1714, %v1715
        %v1753 = vsel %vm1749, %v1715, %v1716
        %v1754 = vsel %vm1749, %v1716, %v1717
        %v1755 = vsel %vm1749, %v1717, %v1718
        %v1756 = vsel %vm1749, %v1718, %v1719
        %v1757 = vsel %vm1749, %v1719, %v1720
        %v1758 = vsel %vm1749, %v1720, %v1721
        %v1759 = vsel %vm1749, %v1721, %v1722
        %v1760 = vsel %vm1749, %v1722, %v1723
        %v1761 = vsel %vm1749, %v1723, %v1724
        %v1762 = vsel %vm1749, %v1724, %v1725
        %v1763 = vsel %vm1749, %v1725, %v1726
        %v1764 = vsel %vm1749, %v1726, %v1727
        %v1765 = vsel %vm1749, %v1727, %v1728
        %v1766 = vsel %vm1749, %v1728, %v1729
        %v1767 = vsel %vm1749, %v1729, %v1730
        %v1768 = vsel %vm1749, %v1730, %v1731
        %v1769 = vsel %vm1749, %v1731, %v1732
        %v1770 = vsel %vm1749, %v1732, %v1733
        %v1771 = vsel %vm1749, %v1733, %v1734
        %v1772 = vsel %vm1749, %v1734, %v1735
        %v1773 = vsel %vm1749, %v1735, %v1736
        %v1774 = vsel %vm1749, %v1736, %v1737
        %v1775 = vsel %vm1749, %v1737, %v1738
        %v1776 = vsel %vm1749, %v1738, %v1739
        %v1777 = vsel %vm1749, %v1739, %v1740
        %v1778 = vsel %vm1749, %v1740, %v1741
        %v1779 = vsel %vm1749, %v1741, %v1742
        %v1780 = vsel %vm1749, %v1742, %v1743
        %v1781 = vsel %vm1749, %v1743, %v1744
        %v1782 = vsel %vm1749, %v1744, %v1745
        %v1783 = vsel %vm1749, %v1745, %v1746
        %v1784 = vsel %vm1749, %v1746, %v1747
        %v1785 = vsel %vm1749, %v1747, %v1748
        %s1822 = scalar_lea.vmem [#allocation2], 4
        %1823 = vst [vmem:[%s1822] ss:$8 sm:$0xf] %v1750
        %1824 = vst [vmem:[%s1822] ss:$8 sm:$0xf0] %v1750
        %s1825 = scalar_lea.vmem [#allocation2], 68
        %1826 = vst [vmem:[%s1825] ss:$8 sm:$0xf] %v1751
        %1827 = vst [vmem:[%s1825] ss:$8 sm:$0xf0] %v1751
        %s1828 = scalar_lea.vmem [#allocation2], 132
        %1829 = vst [vmem:[%s1828] ss:$8 sm:$0xf] %v1752
        %1830 = vst [vmem:[%s1828] ss:$8 sm:$0xf0] %v1752
        %s1831 = scalar_lea.vmem [#allocation2], 196
        %1832 = vst [vmem:[%s1831] ss:$8 sm:$0xf] %v1753
        %1833 = vst [vmem:[%s1831] ss:$8 sm:$0xf0] %v1753
        %s1834 = scalar_lea.vmem [#allocation2], 260
        %1835 = vst [vmem:[%s1834] ss:$8 sm:$0xf] %v1754
        %1836 = vst [vmem:[%s1834] ss:$8 sm:$0xf0] %v1754
        %s1837 = scalar_lea.vmem [#allocation2], 324
        %1838 = vst [vmem:[%s1837] ss:$8 sm:$0xf] %v1755
        %1839 = vst [vmem:[%s1837] ss:$8 sm:$0xf0] %v1755
        %s1840 = scalar_lea.vmem [#allocation2], 388
        %1841 = vst [vmem:[%s1840] ss:$8 sm:$0xf] %v1756
        %1842 = vst [vmem:[%s1840] ss:$8 sm:$0xf0] %v1756
        %s1843 = scalar_lea.vmem [#allocation2], 452
        %1844 = vst [vmem:[%s1843] ss:$8 sm:$0xf] %v1757
        %1845 = vst [vmem:[%s1843] ss:$8 sm:$0xf0] %v1757
        %s1846 = scalar_lea.vmem [#allocation2], 516
        %1847 = vst [vmem:[%s1846] ss:$8 sm:$0xf] %v1758
        %1848 = vst [vmem:[%s1846] ss:$8 sm:$0xf0] %v1758
        %s1849 = scalar_lea.vmem [#allocation2], 580
        %1850 = vst [vmem:[%s1849] ss:$8 sm:$0xf] %v1759
        %1851 = vst [vmem:[%s1849] ss:$8 sm:$0xf0] %v1759
        %s1852 = scalar_lea.vmem [#allocation2], 644
        %1853 = vst [vmem:[%s1852] ss:$8 sm:$0xf] %v1760
        %1854 = vst [vmem:[%s1852] ss:$8 sm:$0xf0] %v1760
        %s1855 = scalar_lea.vmem [#allocation2], 708
        %1856 = vst [vmem:[%s1855] ss:$8 sm:$0xf] %v1761
        %1857 = vst [vmem:[%s1855] ss:$8 sm:$0xf0] %v1761
        %s1858 = scalar_lea.vmem [#allocation2], 772
        %1859 = vst [vmem:[%s1858] ss:$8 sm:$0xf] %v1762
        %1860 = vst [vmem:[%s1858] ss:$8 sm:$0xf0] %v1762
        %s1861 = scalar_lea.vmem [#allocation2], 836
        %1862 = vst [vmem:[%s1861] ss:$8 sm:$0xf] %v1763
        %1863 = vst [vmem:[%s1861] ss:$8 sm:$0xf0] %v1763
        %s1864 = scalar_lea.vmem [#allocation2], 900
        %1865 = vst [vmem:[%s1864] ss:$8 sm:$0xf] %v1764
        %1866 = vst [vmem:[%s1864] ss:$8 sm:$0xf0] %v1764
        %s1867 = scalar_lea.vmem [#allocation2], 964
        %1868 = vst [vmem:[%s1867] ss:$8 sm:$0xf] %v1765
        %1869 = vst [vmem:[%s1867] ss:$8 sm:$0xf0] %v1765
        %s1870 = scalar_lea.vmem [#allocation2], 1028
        %1871 = vst [vmem:[%s1870] ss:$8 sm:$0xf] %v1766
        %1872 = vst [vmem:[%s1870] ss:$8 sm:$0xf0] %v1766
        %s1873 = scalar_lea.vmem [#allocation2], 1092
        %1874 = vst [vmem:[%s1873] ss:$8 sm:$0xf] %v1767
        %1875 = vst [vmem:[%s1873] ss:$8 sm:$0xf0] %v1767
        %s1876 = scalar_lea.vmem [#allocation2], 1156
        %1877 = vst [vmem:[%s1876] ss:$8 sm:$0xf] %v1768
        %1878 = vst [vmem:[%s1876] ss:$8 sm:$0xf0] %v1768
        %s1879 = scalar_lea.vmem [#allocation2], 1220
        %1880 = vst [vmem:[%s1879] ss:$8 sm:$0xf] %v1769
        %1881 = vst [vmem:[%s1879] ss:$8 sm:$0xf0] %v1769
        %s1882 = scalar_lea.vmem [#allocation2], 1284
        %1883 = vst [vmem:[%s1882] ss:$8 sm:$0xf] %v1770
        %1884 = vst [vmem:[%s1882] ss:$8 sm:$0xf0] %v1770
        %s1885 = scalar_lea.vmem [#allocation2], 1348
        %1886 = vst [vmem:[%s1885] ss:$8 sm:$0xf] %v1771
        %1887 = vst [vmem:[%s1885] ss:$8 sm:$0xf0] %v1771
        %s1888 = scalar_lea.vmem [#allocation2], 1412
        %1889 = vst [vmem:[%s1888] ss:$8 sm:$0xf] %v1772
        %1890 = vst [vmem:[%s1888] ss:$8 sm:$0xf0] %v1772
        %s1891 = scalar_lea.vmem [#allocation2], 1476
        %1892 = vst [vmem:[%s1891] ss:$8 sm:$0xf] %v1773
        %1893 = vst [vmem:[%s1891] ss:$8 sm:$0xf0] %v1773
        %s1894 = scalar_lea.vmem [#allocation2], 1540
        %1895 = vst [vmem:[%s1894] ss:$8 sm:$0xf] %v1774
        %1896 = vst [vmem:[%s1894] ss:$8 sm:$0xf0] %v1774
        %s1897 = scalar_lea.vmem [#allocation2], 1604
        %1898 = vst [vmem:[%s1897] ss:$8 sm:$0xf] %v1775
        %1899 = vst [vmem:[%s1897] ss:$8 sm:$0xf0] %v1775
        %s1900 = scalar_lea.vmem [#allocation2], 1668
        %1901 = vst [vmem:[%s1900] ss:$8 sm:$0xf] %v1776
        %1902 = vst [vmem:[%s1900] ss:$8 sm:$0xf0] %v1776
        %s1903 = scalar_lea.vmem [#allocation2], 1732
        %1904 = vst [vmem:[%s1903] ss:$8 sm:$0xf] %v1777
        %1905 = vst [vmem:[%s1903] ss:$8 sm:$0xf0] %v1777
        %s1906 = scalar_lea.vmem [#allocation2], 1796
        %1907 = vst [vmem:[%s1906] ss:$8 sm:$0xf] %v1778
        %1908 = vst [vmem:[%s1906] ss:$8 sm:$0xf0] %v1778
        %s1909 = scalar_lea.vmem [#allocation2], 1860
        %1910 = vst [vmem:[%s1909] ss:$8 sm:$0xf] %v1779
        %1911 = vst [vmem:[%s1909] ss:$8 sm:$0xf0] %v1779
        %s1912 = scalar_lea.vmem [#allocation2], 1924
        %1913 = vst [vmem:[%s1912] ss:$8 sm:$0xf] %v1780
        %1914 = vst [vmem:[%s1912] ss:$8 sm:$0xf0] %v1780
        %s1915 = scalar_lea.vmem [#allocation2], 1988
        %1916 = vst [vmem:[%s1915] ss:$8 sm:$0xf] %v1781
        %1917 = vst [vmem:[%s1915] ss:$8 sm:$0xf0] %v1781
        %s1918 = scalar_lea.vmem [#allocation2], 2052
        %1919 = vst [vmem:[%s1918] ss:$8 sm:$0xf] %v1782
        %1920 = vst [vmem:[%s1918] ss:$8 sm:$0xf0] %v1782
        %s1921 = scalar_lea.vmem [#allocation2], 2116
        %1922 = vst [vmem:[%s1921] ss:$8 sm:$0xf] %v1783
        %1923 = vst [vmem:[%s1921] ss:$8 sm:$0xf0] %v1783
        %s1924 = scalar_lea.vmem [#allocation2], 2180
        %1925 = vst [vmem:[%s1924] ss:$8 sm:$0xf] %v1784
        %1926 = vst [vmem:[%s1924] ss:$8 sm:$0xf0] %v1784
        %s1927 = scalar_lea.vmem [#allocation2], 2244
        %1928 = vst.msk [vmem:[%s1927] ss:$8 sm:$0xf] %vm1122, %v1785
        %1929 = vst.msk [vmem:[%s1927] ss:$8 sm:$0x30] %vm1122, %v1785
        %v1930 = vrot.slane %v320, 1
        %v1931 = vrot.slane %v320, 2
        %v1932 = vrot.slane %v320, 3
        %v1933 = vrot.slane %v321, 4
        %v1934 = vrot.slane %v321, 5
        %v1935 = vrot.slane %v321, 6
        %v1936 = vrot.slane %v321, 7
        %v1937 = vrot.slane %v322, 1
        %v1938 = vrot.slane %v322, 2
        %v1939 = vrot.slane %v322, 3
        %v1940 = vrot.slane %v323, 4
        %v1941 = vrot.slane %v323, 5
        %v1942 = vrot.slane %v323, 6
        %v1943 = vrot.slane %v323, 7
        %v1944 = vrot.slane %v324, 1
        %v1945 = vrot.slane %v324, 2
        %v1946 = vrot.slane %v324, 3
        %v1947 = vrot.slane %v325, 4
        %v1948 = vrot.slane %v325, 5
        %v1949 = vrot.slane %v325, 6
        %v1950 = vrot.slane %v325, 7
        %v1951 = vrot.slane %v326, 1
        %v1952 = vrot.slane %v326, 2
        %v1953 = vrot.slane %v326, 3
        %v1954 = vrot.slane %v327, 4
        %v1955 = vrot.slane %v327, 5
        %v1956 = vrot.slane %v327, 6
        %v1957 = vrot.slane %v327, 7
        %v1958 = vrot.slane %v328, 1
        %v1959 = vrot.slane %v328, 2
        %v1960 = vrot.slane %v328, 3
        %v1961 = vrot.slane %v329, 4
        %v1962 = vrot.slane %v329, 5
        %v1963 = vrot.slane %v329, 6
        %v1964 = vrot.slane %v329, 7
        %v1965 = vrot.slane %v330, 1
        %v1966 = vrot.slane %v330, 2
        %v1967 = vrot.slane %v330, 3
        %v1968 = vrot.slane %v331, 4
        %v1969 = vrot.slane %v331, 5
        %v1970 = vrot.slane %v331, 6
        %v1971 = vrot.slane %v331, 7
        %v1972 = vrot.slane %v332, 1
        %v1973 = vrot.slane %v332, 2
        %v1974 = vrot.slane %v332, 3
        %v1975 = vrot.slane %v333, 4
        %v1976 = vrot.slane %v333, 5
        %v1977 = vrot.slane %v333, 6
        %v1978 = vrot.slane %v333, 7
        %v1979 = vrot.slane %v334, 1
        %v1980 = vrot.slane %v334, 2
        %v1981 = vrot.slane %v334, 3
        %v1982 = vrot.slane %v335, 4
        %v1983 = vrot.slane %v335, 5
        %v1984 = vrot.slane %v335, 6
        %v1985 = vrot.slane %v335, 7
        %v1986 = vrot.slane %v336, 1
        %v1987 = vrot.slane %v336, 2
        %v1988 = vrot.slane %v336, 3
        %v1989 = vrot.slane %v337, 4
        %v1990 = vrot.slane %v337, 5
        %v1991 = vrot.slane %v337, 6
        %v1992 = vrot.slane %v337, 7
        %v1993 = vrot.slane %v338, 1
        %v1994 = vrot.slane %v338, 2
        %v1995 = vrot.slane %v338, 3
        %v1996 = vrot.slane %v339, 4
        %v1997 = vrot.slane %v339, 5
        %v1998 = vrot.slane %v339, 6
        %v1999 = vrot.slane %v339, 7
        %v2000 = vrot.slane %v340, 1
        %v2001 = vrot.slane %v340, 2
        %v2002 = vrot.slane %v340, 3
        %v2003 = vrot.slane %v341, 4
        %v2004 = vrot.slane %v341, 5
        %v2005 = vrot.slane %v341, 6
        %v2006 = vrot.slane %v341, 7
        %v2007 = vrot.slane %v342, 1
        %v2008 = vrot.slane %v342, 2
        %v2009 = vrot.slane %v342, 3
        %v2010 = vrot.slane %v343, 4
        %v2011 = vrot.slane %v343, 5
        %v2012 = vrot.slane %v343, 6
        %v2013 = vrot.slane %v343, 7
        %v2014 = vrot.slane %v344, 1
        %v2015 = vrot.slane %v344, 2
        %v2016 = vrot.slane %v344, 3
        %v2017 = vrot.slane %v345, 4
        %v2018 = vrot.slane %v345, 5
        %v2019 = vrot.slane %v345, 6
        %v2020 = vrot.slane %v345, 7
        %v2021 = vrot.slane %v346, 1
        %v2022 = vrot.slane %v346, 2
        %v2023 = vrot.slane %v346, 3
        %v2024 = vrot.slane %v347, 4
        %v2025 = vrot.slane %v347, 5
        %v2026 = vrot.slane %v347, 6
        %v2027 = vrot.slane %v347, 7
        %v2028 = vrot.slane %v348, 1
        %v2029 = vrot.slane %v348, 2
        %v2030 = vrot.slane %v348, 3
        %v2031 = vrot.slane %v349, 4
        %v2032 = vrot.slane %v349, 5
        %v2033 = vrot.slane %v349, 6
        %v2034 = vrot.slane %v349, 7
        %v2035 = vrot.slane %v350, 1
        %v2036 = vrot.slane %v350, 2
        %v2037 = vrot.slane %v350, 3
        %v2038 = vrot.slane %v351, 4
        %v2039 = vrot.slane %v351, 5
        %v2040 = vrot.slane %v351, 6
        %v2041 = vrot.slane %v351, 7
        %v2042 = vrot.slane %v352, 1
        %v2043 = vrot.slane %v352, 2
        %v2044 = vrot.slane %v352, 3
        %v2045 = vrot.slane %v353, 4
        %v2046 = vrot.slane %v353, 5
        %v2047 = vrot.slane %v353, 6
        %v2048 = vrot.slane %v353, 7
        %v2049 = vrot.slane %v354, 1
        %v2050 = vrot.slane %v354, 2
        %v2051 = vrot.slane %v354, 3
        %v2052 = vrot.slane %v355, 4
        %v2053 = vrot.slane %v355, 5
        %v2054 = vrot.slane %v355, 6
        %v2055 = vrot.slane %v355, 7
        %v2056 = vrot.slane %v356, 1
        %v2057 = vrot.slane %v356, 2
        %v2058 = vrot.slane %v356, 3
        %v2059 = vrot.slane %v357, 4
        %v2060 = vrot.slane %v357, 5
        %v2061 = vrot.slane %v357, 6
        %v2062 = vrot.slane %v357, 7
        %v2063 = vrot.slane %v358, 1
        %v2064 = vrot.slane %v358, 2
        %v2065 = vrot.slane %v358, 3
        %v2066 = vrot.slane %v359, 4
        %v2067 = vrot.slane %v359, 5
        %v2068 = vrot.slane %v359, 6
        %v2069 = vrot.slane %v359, 7
        %v2070 = vrot.slane %v360, 1
        %v2071 = vrot.slane %v360, 2
        %v2072 = vrot.slane %v360, 3
        %v2073 = vrot.slane %v361, 4
        %v2074 = vrot.slane %v361, 5
        %v2075 = vrot.slane %v361, 6
        %v2076 = vrot.slane %v361, 7
        %v2077 = vrot.slane %v362, 1
        %v2078 = vrot.slane %v362, 2
        %v2079 = vrot.slane %v362, 3
        %v2080 = vrot.slane %v363, 4
        %v2081 = vrot.slane %v363, 5
        %v2082 = vrot.slane %v363, 6
        %v2083 = vrot.slane %v363, 7
        %v2084 = vrot.slane %v364, 1
        %v2085 = vrot.slane %v364, 2
        %v2086 = vrot.slane %v364, 3
        %v2087 = vrot.slane %v365, 4
        %v2088 = vrot.slane %v365, 5
        %v2089 = vrot.slane %v365, 6
        %v2090 = vrot.slane %v365, 7
        %v2091 = vrot.slane %v366, 1
        %v2092 = vrot.slane %v366, 2
        %v2093 = vrot.slane %v366, 3
        %v2094 = vrot.slane %v367, 4
        %v2095 = vrot.slane %v367, 5
        %v2096 = vrot.slane %v367, 6
        %v2097 = vrot.slane %v367, 7
        %v2098 = vrot.slane %v368, 1
        %v2099 = vrot.slane %v368, 2
        %v2100 = vrot.slane %v368, 3
        %v2101 = vrot.slane %v369, 4
        %v2102 = vrot.slane %v369, 5
        %v2103 = vrot.slane %v369, 6
        %v2104 = vrot.slane %v369, 7
        %v2105 = vrot.slane %v370, 1
        %v2106 = vrot.slane %v370, 2
        %v2107 = vrot.slane %v370, 3
        %v2108 = vrot.slane %v371, 4
        %v2109 = vrot.slane %v371, 5
        %v2110 = vrot.slane %v371, 6
        %v2111 = vrot.slane %v371, 7
        %v2112 = vrot.slane %v372, 1
        %v2113 = vrot.slane %v372, 2
        %v2114 = vrot.slane %v372, 3
        %v2115 = vrot.slane %v373, 4
        %v2116 = vrot.slane %v373, 5
        %v2117 = vrot.slane %v373, 6
        %v2118 = vrot.slane %v373, 7
        %v2119 = vrot.slane %v374, 1
        %v2120 = vrot.slane %v374, 2
        %v2121 = vrot.slane %v374, 3
        %v2122 = vrot.slane %v375, 4
        %v2123 = vrot.slane %v375, 5
        %v2124 = vrot.slane %v375, 6
        %v2125 = vrot.slane %v375, 7
        %v2126 = vrot.slane %v376, 1
        %v2127 = vrot.slane %v376, 2
        %v2128 = vrot.slane %v376, 3
        %v2129 = vrot.slane %v377, 4
        %v2130 = vrot.slane %v377, 5
        %v2131 = vrot.slane %v377, 6
        %v2132 = vrot.slane %v377, 7
        %v2133 = vrot.slane %v378, 1
        %v2134 = vrot.slane %v378, 2
        %v2135 = vrot.slane %v378, 3
        %v2136 = vrot.slane %v379, 4
        %v2137 = vrot.slane %v379, 5
        %v2138 = vrot.slane %v379, 6
        %v2139 = vrot.slane %v379, 7
        %v2140 = vrot.slane %v380, 1
        %v2141 = vrot.slane %v380, 2
        %v2142 = vrot.slane %v380, 3
        %v2143 = vrot.slane %v381, 4
        %v2144 = vrot.slane %v381, 5
        %v2145 = vrot.slane %v381, 6
        %v2146 = vrot.slane %v381, 7
        %v2147 = vrot.slane %v382, 1
        %v2148 = vrot.slane %v382, 2
        %v2149 = vrot.slane %v382, 3
        %v2150 = vrot.slane %v383, 4
        %v2151 = vrot.slane %v383, 5
        %v2152 = vrot.slane %v383, 6
        %v2153 = vrot.slane %v383, 7
        %v2154 = vrot.slane %v384, 1
        %v2155 = vrot.slane %v384, 2
        %v2156 = vrot.slane %v384, 3
        %v2157 = vrot.slane %v385, 4
        %v2158 = vrot.slane %v385, 5
        %v2159 = vrot.slane %v385, 6
        %v2160 = vrot.slane %v385, 7
        %v2161 = vrot.slane %v386, 1
        %v2162 = vrot.slane %v386, 2
        %v2163 = vrot.slane %v386, 3
        %v2164 = vrot.slane %v387, 4
        %v2165 = vrot.slane %v387, 5
        %v2166 = vrot.slane %v387, 6
        %v2167 = vrot.slane %v387, 7
        %v2168 = vrot.slane %v388, 1
        %v2169 = vrot.slane %v388, 2
        %v2170 = vrot.slane %v388, 3
        %v2171 = vrot.slane %v389, 4
        %v2172 = vrot.slane %v389, 5
        %v2173 = vrot.slane %v389, 6
        %v2174 = vrot.slane %v389, 7
        %v2175 = vrot.slane %v390, 1
        %v2176 = vrot.slane %v390, 2
        %v2177 = vrot.slane %v390, 3
        %v2178 = vrot.slane %v391, 4
        %v2179 = vrot.slane %v391, 5
        %v2180 = vrot.slane %v391, 6
        %v2181 = vrot.slane %v391, 7
        %v2182 = vsel %vm720, %v320, %v1930
        %v2183 = vsel %vm722, %v1931, %v1932
        %v2184 = vsel %vm724, %v2182, %v2183
        %v2185 = vsel %vm726, %v1933, %v1934
        %v2186 = vsel %vm728, %v1935, %v1936
        %v2187 = vsel %vm730, %v2185, %v2186
        %v2188 = vsel %vm732, %v2184, %v2187
        %v2189 = vsel %vm720, %v322, %v1937
        %v2190 = vsel %vm722, %v1938, %v1939
        %v2191 = vsel %vm724, %v2189, %v2190
        %v2192 = vsel %vm726, %v1940, %v1941
        %v2193 = vsel %vm728, %v1942, %v1943
        %v2194 = vsel %vm730, %v2192, %v2193
        %v2195 = vsel %vm732, %v2191, %v2194
        %v2196 = vsel %vm720, %v324, %v1944
        %v2197 = vsel %vm722, %v1945, %v1946
        %v2198 = vsel %vm724, %v2196, %v2197
        %v2199 = vsel %vm726, %v1947, %v1948
        %v2200 = vsel %vm728, %v1949, %v1950
        %v2201 = vsel %vm730, %v2199, %v2200
        %v2202 = vsel %vm732, %v2198, %v2201
        %v2203 = vsel %vm720, %v326, %v1951
        %v2204 = vsel %vm722, %v1952, %v1953
        %v2205 = vsel %vm724, %v2203, %v2204
        %v2206 = vsel %vm726, %v1954, %v1955
        %v2207 = vsel %vm728, %v1956, %v1957
        %v2208 = vsel %vm730, %v2206, %v2207
        %v2209 = vsel %vm732, %v2205, %v2208
        %v2210 = vsel %vm720, %v328, %v1958
        %v2211 = vsel %vm722, %v1959, %v1960
        %v2212 = vsel %vm724, %v2210, %v2211
        %v2213 = vsel %vm726, %v1961, %v1962
        %v2214 = vsel %vm728, %v1963, %v1964
        %v2215 = vsel %vm730, %v2213, %v2214
        %v2216 = vsel %vm732, %v2212, %v2215
        %v2217 = vsel %vm720, %v330, %v1965
        %v2218 = vsel %vm722, %v1966, %v1967
        %v2219 = vsel %vm724, %v2217, %v2218
        %v2220 = vsel %vm726, %v1968, %v1969
        %v2221 = vsel %vm728, %v1970, %v1971
        %v2222 = vsel %vm730, %v2220, %v2221
        %v2223 = vsel %vm732, %v2219, %v2222
        %v2224 = vsel %vm720, %v332, %v1972
        %v2225 = vsel %vm722, %v1973, %v1974
        %v2226 = vsel %vm724, %v2224, %v2225
        %v2227 = vsel %vm726, %v1975, %v1976
        %v2228 = vsel %vm728, %v1977, %v1978
        %v2229 = vsel %vm730, %v2227, %v2228
        %v2230 = vsel %vm732, %v2226, %v2229
        %v2231 = vsel %vm720, %v334, %v1979
        %v2232 = vsel %vm722, %v1980, %v1981
        %v2233 = vsel %vm724, %v2231, %v2232
        %v2234 = vsel %vm726, %v1982, %v1983
        %v2235 = vsel %vm728, %v1984, %v1985
        %v2236 = vsel %vm730, %v2234, %v2235
        %v2237 = vsel %vm732, %v2233, %v2236
        %v2238 = vsel %vm720, %v336, %v1986
        %v2239 = vsel %vm722, %v1987, %v1988
        %v2240 = vsel %vm724, %v2238, %v2239
        %v2241 = vsel %vm726, %v1989, %v1990
        %v2242 = vsel %vm728, %v1991, %v1992
        %v2243 = vsel %vm730, %v2241, %v2242
        %v2244 = vsel %vm732, %v2240, %v2243
        %v2245 = vsel %vm720, %v338, %v1993
        %v2246 = vsel %vm722, %v1994, %v1995
        %v2247 = vsel %vm724, %v2245, %v2246
        %v2248 = vsel %vm726, %v1996, %v1997
        %v2249 = vsel %vm728, %v1998, %v1999
        %v2250 = vsel %vm730, %v2248, %v2249
        %v2251 = vsel %vm732, %v2247, %v2250
        %v2252 = vsel %vm720, %v340, %v2000
        %v2253 = vsel %vm722, %v2001, %v2002
        %v2254 = vsel %vm724, %v2252, %v2253
        %v2255 = vsel %vm726, %v2003, %v2004
        %v2256 = vsel %vm728, %v2005, %v2006
        %v2257 = vsel %vm730, %v2255, %v2256
        %v2258 = vsel %vm732, %v2254, %v2257
        %v2259 = vsel %vm720, %v342, %v2007
        %v2260 = vsel %vm722, %v2008, %v2009
        %v2261 = vsel %vm724, %v2259, %v2260
        %v2262 = vsel %vm726, %v2010, %v2011
        %v2263 = vsel %vm728, %v2012, %v2013
        %v2264 = vsel %vm730, %v2262, %v2263
        %v2265 = vsel %vm732, %v2261, %v2264
        %v2266 = vsel %vm720, %v344, %v2014
        %v2267 = vsel %vm722, %v2015, %v2016
        %v2268 = vsel %vm724, %v2266, %v2267
        %v2269 = vsel %vm726, %v2017, %v2018
        %v2270 = vsel %vm728, %v2019, %v2020
        %v2271 = vsel %vm730, %v2269, %v2270
        %v2272 = vsel %vm732, %v2268, %v2271
        %v2273 = vsel %vm720, %v346, %v2021
        %v2274 = vsel %vm722, %v2022, %v2023
        %v2275 = vsel %vm724, %v2273, %v2274
        %v2276 = vsel %vm726, %v2024, %v2025
        %v2277 = vsel %vm728, %v2026, %v2027
        %v2278 = vsel %vm730, %v2276, %v2277
        %v2279 = vsel %vm732, %v2275, %v2278
        %v2280 = vsel %vm720, %v348, %v2028
        %v2281 = vsel %vm722, %v2029, %v2030
        %v2282 = vsel %vm724, %v2280, %v2281
        %v2283 = vsel %vm726, %v2031, %v2032
        %v2284 = vsel %vm728, %v2033, %v2034
        %v2285 = vsel %vm730, %v2283, %v2284
        %v2286 = vsel %vm732, %v2282, %v2285
        %v2287 = vsel %vm720, %v350, %v2035
        %v2288 = vsel %vm722, %v2036, %v2037
        %v2289 = vsel %vm724, %v2287, %v2288
        %v2290 = vsel %vm726, %v2038, %v2039
        %v2291 = vsel %vm728, %v2040, %v2041
        %v2292 = vsel %vm730, %v2290, %v2291
        %v2293 = vsel %vm732, %v2289, %v2292
        %v2294 = vsel %vm720, %v352, %v2042
        %v2295 = vsel %vm722, %v2043, %v2044
        %v2296 = vsel %vm724, %v2294, %v2295
        %v2297 = vsel %vm726, %v2045, %v2046
        %v2298 = vsel %vm728, %v2047, %v2048
        %v2299 = vsel %vm730, %v2297, %v2298
        %v2300 = vsel %vm732, %v2296, %v2299
        %v2301 = vsel %vm720, %v354, %v2049
        %v2302 = vsel %vm722, %v2050, %v2051
        %v2303 = vsel %vm724, %v2301, %v2302
        %v2304 = vsel %vm726, %v2052, %v2053
        %v2305 = vsel %vm728, %v2054, %v2055
        %v2306 = vsel %vm730, %v2304, %v2305
        %v2307 = vsel %vm732, %v2303, %v2306
        %v2308 = vsel %vm720, %v356, %v2056
        %v2309 = vsel %vm722, %v2057, %v2058
        %v2310 = vsel %vm724, %v2308, %v2309
        %v2311 = vsel %vm726, %v2059, %v2060
        %v2312 = vsel %vm728, %v2061, %v2062
        %v2313 = vsel %vm730, %v2311, %v2312
        %v2314 = vsel %vm732, %v2310, %v2313
        %v2315 = vsel %vm720, %v358, %v2063
        %v2316 = vsel %vm722, %v2064, %v2065
        %v2317 = vsel %vm724, %v2315, %v2316
        %v2318 = vsel %vm726, %v2066, %v2067
        %v2319 = vsel %vm728, %v2068, %v2069
        %v2320 = vsel %vm730, %v2318, %v2319
        %v2321 = vsel %vm732, %v2317, %v2320
        %v2322 = vsel %vm720, %v360, %v2070
        %v2323 = vsel %vm722, %v2071, %v2072
        %v2324 = vsel %vm724, %v2322, %v2323
        %v2325 = vsel %vm726, %v2073, %v2074
        %v2326 = vsel %vm728, %v2075, %v2076
        %v2327 = vsel %vm730, %v2325, %v2326
        %v2328 = vsel %vm732, %v2324, %v2327
        %v2329 = vsel %vm720, %v362, %v2077
        %v2330 = vsel %vm722, %v2078, %v2079
        %v2331 = vsel %vm724, %v2329, %v2330
        %v2332 = vsel %vm726, %v2080, %v2081
        %v2333 = vsel %vm728, %v2082, %v2083
        %v2334 = vsel %vm730, %v2332, %v2333
        %v2335 = vsel %vm732, %v2331, %v2334
        %v2336 = vsel %vm720, %v364, %v2084
        %v2337 = vsel %vm722, %v2085, %v2086
        %v2338 = vsel %vm724, %v2336, %v2337
        %v2339 = vsel %vm726, %v2087, %v2088
        %v2340 = vsel %vm728, %v2089, %v2090
        %v2341 = vsel %vm730, %v2339, %v2340
        %v2342 = vsel %vm732, %v2338, %v2341
        %v2343 = vsel %vm720, %v366, %v2091
        %v2344 = vsel %vm722, %v2092, %v2093
        %v2345 = vsel %vm724, %v2343, %v2344
        %v2346 = vsel %vm726, %v2094, %v2095
        %v2347 = vsel %vm728, %v2096, %v2097
        %v2348 = vsel %vm730, %v2346, %v2347
        %v2349 = vsel %vm732, %v2345, %v2348
        %v2350 = vsel %vm720, %v368, %v2098
        %v2351 = vsel %vm722, %v2099, %v2100
        %v2352 = vsel %vm724, %v2350, %v2351
        %v2353 = vsel %vm726, %v2101, %v2102
        %v2354 = vsel %vm728, %v2103, %v2104
        %v2355 = vsel %vm730, %v2353, %v2354
        %v2356 = vsel %vm732, %v2352, %v2355
        %v2357 = vsel %vm720, %v370, %v2105
        %v2358 = vsel %vm722, %v2106, %v2107
        %v2359 = vsel %vm724, %v2357, %v2358
        %v2360 = vsel %vm726, %v2108, %v2109
        %v2361 = vsel %vm728, %v2110, %v2111
        %v2362 = vsel %vm730, %v2360, %v2361
        %v2363 = vsel %vm732, %v2359, %v2362
        %v2364 = vsel %vm720, %v372, %v2112
        %v2365 = vsel %vm722, %v2113, %v2114
        %v2366 = vsel %vm724, %v2364, %v2365
        %v2367 = vsel %vm726, %v2115, %v2116
        %v2368 = vsel %vm728, %v2117, %v2118
        %v2369 = vsel %vm730, %v2367, %v2368
        %v2370 = vsel %vm732, %v2366, %v2369
        %v2371 = vsel %vm720, %v374, %v2119
        %v2372 = vsel %vm722, %v2120, %v2121
        %v2373 = vsel %vm724, %v2371, %v2372
        %v2374 = vsel %vm726, %v2122, %v2123
        %v2375 = vsel %vm728, %v2124, %v2125
        %v2376 = vsel %vm730, %v2374, %v2375
        %v2377 = vsel %vm732, %v2373, %v2376
        %v2378 = vsel %vm720, %v376, %v2126
        %v2379 = vsel %vm722, %v2127, %v2128
        %v2380 = vsel %vm724, %v2378, %v2379
        %v2381 = vsel %vm726, %v2129, %v2130
        %v2382 = vsel %vm728, %v2131, %v2132
        %v2383 = vsel %vm730, %v2381, %v2382
        %v2384 = vsel %vm732, %v2380, %v2383
        %v2385 = vsel %vm720, %v378, %v2133
        %v2386 = vsel %vm722, %v2134, %v2135
        %v2387 = vsel %vm724, %v2385, %v2386
        %v2388 = vsel %vm726, %v2136, %v2137
        %v2389 = vsel %vm728, %v2138, %v2139
        %v2390 = vsel %vm730, %v2388, %v2389
        %v2391 = vsel %vm732, %v2387, %v2390
        %v2392 = vsel %vm720, %v380, %v2140
        %v2393 = vsel %vm722, %v2141, %v2142
        %v2394 = vsel %vm724, %v2392, %v2393
        %v2395 = vsel %vm726, %v2143, %v2144
        %v2396 = vsel %vm728, %v2145, %v2146
        %v2397 = vsel %vm730, %v2395, %v2396
        %v2398 = vsel %vm732, %v2394, %v2397
        %v2399 = vsel %vm720, %v382, %v2147
        %v2400 = vsel %vm722, %v2148, %v2149
        %v2401 = vsel %vm724, %v2399, %v2400
        %v2402 = vsel %vm726, %v2150, %v2151
        %v2403 = vsel %vm728, %v2152, %v2153
        %v2404 = vsel %vm730, %v2402, %v2403
        %v2405 = vsel %vm732, %v2401, %v2404
        %v2406 = vsel %vm720, %v384, %v2154
        %v2407 = vsel %vm722, %v2155, %v2156
        %v2408 = vsel %vm724, %v2406, %v2407
        %v2409 = vsel %vm726, %v2157, %v2158
        %v2410 = vsel %vm728, %v2159, %v2160
        %v2411 = vsel %vm730, %v2409, %v2410
        %v2412 = vsel %vm732, %v2408, %v2411
        %v2413 = vsel %vm720, %v386, %v2161
        %v2414 = vsel %vm722, %v2162, %v2163
        %v2415 = vsel %vm724, %v2413, %v2414
        %v2416 = vsel %vm726, %v2164, %v2165
        %v2417 = vsel %vm728, %v2166, %v2167
        %v2418 = vsel %vm730, %v2416, %v2417
        %v2419 = vsel %vm732, %v2415, %v2418
        %v2420 = vsel %vm720, %v388, %v2168
        %v2421 = vsel %vm722, %v2169, %v2170
        %v2422 = vsel %vm724, %v2420, %v2421
        %v2423 = vsel %vm726, %v2171, %v2172
        %v2424 = vsel %vm728, %v2173, %v2174
        %v2425 = vsel %vm730, %v2423, %v2424
        %v2426 = vsel %vm732, %v2422, %v2425
        %v2427 = vsel %vm720, %v390, %v2175
        %v2428 = vsel %vm722, %v2176, %v2177
        %v2429 = vsel %vm724, %v2427, %v2428
        %v2430 = vsel %vm726, %v2178, %v2179
        %v2431 = vsel %vm728, %v2180, %v2181
        %v2432 = vsel %vm730, %v2430, %v2431
        %v2433 = vsel %vm732, %v2429, %v2432
        %s2470 = scalar_lea.vmem [#allocation2], 5
        %2471 = vst [vmem:[%s2470] ss:$8 sm:$0xf] %v2188
        %2472 = vst [vmem:[%s2470] ss:$8 sm:$0xf0] %v2188
        %s2473 = scalar_lea.vmem [#allocation2], 69
        %2474 = vst [vmem:[%s2473] ss:$8 sm:$0xf] %v2195
        %2475 = vst [vmem:[%s2473] ss:$8 sm:$0xf0] %v2195
        %s2476 = scalar_lea.vmem [#allocation2], 133
        %2477 = vst [vmem:[%s2476] ss:$8 sm:$0xf] %v2202
        %2478 = vst [vmem:[%s2476] ss:$8 sm:$0xf0] %v2202
        %s2479 = scalar_lea.vmem [#allocation2], 197
        %2480 = vst [vmem:[%s2479] ss:$8 sm:$0xf] %v2209
        %2481 = vst [vmem:[%s2479] ss:$8 sm:$0xf0] %v2209
        %s2482 = scalar_lea.vmem [#allocation2], 261
        %2483 = vst [vmem:[%s2482] ss:$8 sm:$0xf] %v2216
        %2484 = vst [vmem:[%s2482] ss:$8 sm:$0xf0] %v2216
        %s2485 = scalar_lea.vmem [#allocation2], 325
        %2486 = vst [vmem:[%s2485] ss:$8 sm:$0xf] %v2223
        %2487 = vst [vmem:[%s2485] ss:$8 sm:$0xf0] %v2223
        %s2488 = scalar_lea.vmem [#allocation2], 389
        %2489 = vst [vmem:[%s2488] ss:$8 sm:$0xf] %v2230
        %2490 = vst [vmem:[%s2488] ss:$8 sm:$0xf0] %v2230
        %s2491 = scalar_lea.vmem [#allocation2], 453
        %2492 = vst [vmem:[%s2491] ss:$8 sm:$0xf] %v2237
        %2493 = vst [vmem:[%s2491] ss:$8 sm:$0xf0] %v2237
        %s2494 = scalar_lea.vmem [#allocation2], 517
        %2495 = vst [vmem:[%s2494] ss:$8 sm:$0xf] %v2244
        %2496 = vst [vmem:[%s2494] ss:$8 sm:$0xf0] %v2244
        %s2497 = scalar_lea.vmem [#allocation2], 581
        %2498 = vst [vmem:[%s2497] ss:$8 sm:$0xf] %v2251
        %2499 = vst [vmem:[%s2497] ss:$8 sm:$0xf0] %v2251
        %s2500 = scalar_lea.vmem [#allocation2], 645
        %2501 = vst [vmem:[%s2500] ss:$8 sm:$0xf] %v2258
        %2502 = vst [vmem:[%s2500] ss:$8 sm:$0xf0] %v2258
        %s2503 = scalar_lea.vmem [#allocation2], 709
        %2504 = vst [vmem:[%s2503] ss:$8 sm:$0xf] %v2265
        %2505 = vst [vmem:[%s2503] ss:$8 sm:$0xf0] %v2265
        %s2506 = scalar_lea.vmem [#allocation2], 773
        %2507 = vst [vmem:[%s2506] ss:$8 sm:$0xf] %v2272
        %2508 = vst [vmem:[%s2506] ss:$8 sm:$0xf0] %v2272
        %s2509 = scalar_lea.vmem [#allocation2], 837
        %2510 = vst [vmem:[%s2509] ss:$8 sm:$0xf] %v2279
        %2511 = vst [vmem:[%s2509] ss:$8 sm:$0xf0] %v2279
        %s2512 = scalar_lea.vmem [#allocation2], 901
        %2513 = vst [vmem:[%s2512] ss:$8 sm:$0xf] %v2286
        %2514 = vst [vmem:[%s2512] ss:$8 sm:$0xf0] %v2286
        %s2515 = scalar_lea.vmem [#allocation2], 965
        %2516 = vst [vmem:[%s2515] ss:$8 sm:$0xf] %v2293
        %2517 = vst [vmem:[%s2515] ss:$8 sm:$0xf0] %v2293
        %s2518 = scalar_lea.vmem [#allocation2], 1029
        %2519 = vst [vmem:[%s2518] ss:$8 sm:$0xf] %v2300
        %2520 = vst [vmem:[%s2518] ss:$8 sm:$0xf0] %v2300
        %s2521 = scalar_lea.vmem [#allocation2], 1093
        %2522 = vst [vmem:[%s2521] ss:$8 sm:$0xf] %v2307
        %2523 = vst [vmem:[%s2521] ss:$8 sm:$0xf0] %v2307
        %s2524 = scalar_lea.vmem [#allocation2], 1157
        %2525 = vst [vmem:[%s2524] ss:$8 sm:$0xf] %v2314
        %2526 = vst [vmem:[%s2524] ss:$8 sm:$0xf0] %v2314
        %s2527 = scalar_lea.vmem [#allocation2], 1221
        %2528 = vst [vmem:[%s2527] ss:$8 sm:$0xf] %v2321
        %2529 = vst [vmem:[%s2527] ss:$8 sm:$0xf0] %v2321
        %s2530 = scalar_lea.vmem [#allocation2], 1285
        %2531 = vst [vmem:[%s2530] ss:$8 sm:$0xf] %v2328
        %2532 = vst [vmem:[%s2530] ss:$8 sm:$0xf0] %v2328
        %s2533 = scalar_lea.vmem [#allocation2], 1349
        %2534 = vst [vmem:[%s2533] ss:$8 sm:$0xf] %v2335
        %2535 = vst [vmem:[%s2533] ss:$8 sm:$0xf0] %v2335
        %s2536 = scalar_lea.vmem [#allocation2], 1413
        %2537 = vst [vmem:[%s2536] ss:$8 sm:$0xf] %v2342
        %2538 = vst [vmem:[%s2536] ss:$8 sm:$0xf0] %v2342
        %s2539 = scalar_lea.vmem [#allocation2], 1477
        %2540 = vst [vmem:[%s2539] ss:$8 sm:$0xf] %v2349
        %2541 = vst [vmem:[%s2539] ss:$8 sm:$0xf0] %v2349
        %s2542 = scalar_lea.vmem [#allocation2], 1541
        %2543 = vst [vmem:[%s2542] ss:$8 sm:$0xf] %v2356
        %2544 = vst [vmem:[%s2542] ss:$8 sm:$0xf0] %v2356
        %s2545 = scalar_lea.vmem [#allocation2], 1605
        %2546 = vst [vmem:[%s2545] ss:$8 sm:$0xf] %v2363
        %2547 = vst [vmem:[%s2545] ss:$8 sm:$0xf0] %v2363
        %s2548 = scalar_lea.vmem [#allocation2], 1669
        %2549 = vst [vmem:[%s2548] ss:$8 sm:$0xf] %v2370
        %2550 = vst [vmem:[%s2548] ss:$8 sm:$0xf0] %v2370
        %s2551 = scalar_lea.vmem [#allocation2], 1733
        %2552 = vst [vmem:[%s2551] ss:$8 sm:$0xf] %v2377
        %2553 = vst [vmem:[%s2551] ss:$8 sm:$0xf0] %v2377
        %s2554 = scalar_lea.vmem [#allocation2], 1797
        %2555 = vst [vmem:[%s2554] ss:$8 sm:$0xf] %v2384
        %2556 = vst [vmem:[%s2554] ss:$8 sm:$0xf0] %v2384
        %s2557 = scalar_lea.vmem [#allocation2], 1861
        %2558 = vst [vmem:[%s2557] ss:$8 sm:$0xf] %v2391
        %2559 = vst [vmem:[%s2557] ss:$8 sm:$0xf0] %v2391
        %s2560 = scalar_lea.vmem [#allocation2], 1925
        %2561 = vst [vmem:[%s2560] ss:$8 sm:$0xf] %v2398
        %2562 = vst [vmem:[%s2560] ss:$8 sm:$0xf0] %v2398
        %s2563 = scalar_lea.vmem [#allocation2], 1989
        %2564 = vst [vmem:[%s2563] ss:$8 sm:$0xf] %v2405
        %2565 = vst [vmem:[%s2563] ss:$8 sm:$0xf0] %v2405
        %s2566 = scalar_lea.vmem [#allocation2], 2053
        %2567 = vst [vmem:[%s2566] ss:$8 sm:$0xf] %v2412
        %2568 = vst [vmem:[%s2566] ss:$8 sm:$0xf0] %v2412
        %s2569 = scalar_lea.vmem [#allocation2], 2117
        %2570 = vst [vmem:[%s2569] ss:$8 sm:$0xf] %v2419
        %2571 = vst [vmem:[%s2569] ss:$8 sm:$0xf0] %v2419
        %s2572 = scalar_lea.vmem [#allocation2], 2181
        %2573 = vst [vmem:[%s2572] ss:$8 sm:$0xf] %v2426
        %2574 = vst [vmem:[%s2572] ss:$8 sm:$0xf0] %v2426
        %s2575 = scalar_lea.vmem [#allocation2], 2245
        %2576 = vst.msk [vmem:[%s2575] ss:$8 sm:$0xf] %vm1122, %v2433
        %2577 = vst.msk [vmem:[%s2575] ss:$8 sm:$0x30] %vm1122, %v2433
        %v2582 = vrot.slane %v392, 1
        %v2583 = vrot.slane %v392, 2
        %v2584 = vrot.slane %v392, 3
        %v2585 = vrot.slane %v393, 4
        %v2586 = vrot.slane %v393, 5
        %v2587 = vrot.slane %v393, 6
        %v2588 = vrot.slane %v393, 7
        %v2589 = vrot.slane %v394, 1
        %v2590 = vrot.slane %v394, 2
        %v2591 = vrot.slane %v394, 3
        %v2592 = vrot.slane %v395, 4
        %v2593 = vrot.slane %v395, 5
        %v2594 = vrot.slane %v395, 6
        %v2595 = vrot.slane %v395, 7
        %v2596 = vsel %vm720, %v392, %v2582
        %v2597 = vsel %vm722, %v2583, %v2584
        %v2598 = vsel %vm724, %v2596, %v2597
        %v2599 = vsel %vm726, %v2585, %v2586
        %v2600 = vsel %vm728, %v2587, %v2588
        %v2601 = vsel %vm730, %v2599, %v2600
        %v2602 = vsel %vm732, %v2598, %v2601
        %v2603 = vsel %vm720, %v394, %v2589
        %v2604 = vsel %vm722, %v2590, %v2591
        %v2605 = vsel %vm724, %v2603, %v2604
        %v2606 = vsel %vm726, %v2592, %v2593
        %v2607 = vsel %vm728, %v2594, %v2595
        %v2608 = vsel %vm730, %v2606, %v2607
        %v2609 = vsel %vm732, %v2605, %v2608
        %s2612 = scalar_lea.vmem [#allocation2], 6
        %2613 = vst [vmem:[%s2612] ss:$8 sm:$0xf] %v2202
        %2614 = vst [vmem:[%s2612] ss:$8 sm:$0xf0] %v2202
        %s2615 = scalar_lea.vmem [#allocation2], 70
        %2616 = vst [vmem:[%s2615] ss:$8 sm:$0xf] %v2209
        %2617 = vst [vmem:[%s2615] ss:$8 sm:$0xf0] %v2209
        %s2618 = scalar_lea.vmem [#allocation2], 134
        %2619 = vst [vmem:[%s2618] ss:$8 sm:$0xf] %v2216
        %2620 = vst [vmem:[%s2618] ss:$8 sm:$0xf0] %v2216
        %s2621 = scalar_lea.vmem [#allocation2], 198
        %2622 = vst [vmem:[%s2621] ss:$8 sm:$0xf] %v2223
        %2623 = vst [vmem:[%s2621] ss:$8 sm:$0xf0] %v2223
        %s2624 = scalar_lea.vmem [#allocation2], 262
        %2625 = vst [vmem:[%s2624] ss:$8 sm:$0xf] %v2230
        %2626 = vst [vmem:[%s2624] ss:$8 sm:$0xf0] %v2230
        %s2627 = scalar_lea.vmem [#allocation2], 326
        %2628 = vst [vmem:[%s2627] ss:$8 sm:$0xf] %v2237
        %2629 = vst [vmem:[%s2627] ss:$8 sm:$0xf0] %v2237
        %s2630 = scalar_lea.vmem [#allocation2], 390
        %2631 = vst [vmem:[%s2630] ss:$8 sm:$0xf] %v2244
        %2632 = vst [vmem:[%s2630] ss:$8 sm:$0xf0] %v2244
        %s2633 = scalar_lea.vmem [#allocation2], 454
        %2634 = vst [vmem:[%s2633] ss:$8 sm:$0xf] %v2251
        %2635 = vst [vmem:[%s2633] ss:$8 sm:$0xf0] %v2251
        %s2636 = scalar_lea.vmem [#allocation2], 518
        %2637 = vst [vmem:[%s2636] ss:$8 sm:$0xf] %v2258
        %2638 = vst [vmem:[%s2636] ss:$8 sm:$0xf0] %v2258
        %s2639 = scalar_lea.vmem [#allocation2], 582
        %2640 = vst [vmem:[%s2639] ss:$8 sm:$0xf] %v2265
        %2641 = vst [vmem:[%s2639] ss:$8 sm:$0xf0] %v2265
        %s2642 = scalar_lea.vmem [#allocation2], 646
        %2643 = vst [vmem:[%s2642] ss:$8 sm:$0xf] %v2272
        %2644 = vst [vmem:[%s2642] ss:$8 sm:$0xf0] %v2272
        %s2645 = scalar_lea.vmem [#allocation2], 710
        %2646 = vst [vmem:[%s2645] ss:$8 sm:$0xf] %v2279
        %2647 = vst [vmem:[%s2645] ss:$8 sm:$0xf0] %v2279
        %s2648 = scalar_lea.vmem [#allocation2], 774
        %2649 = vst [vmem:[%s2648] ss:$8 sm:$0xf] %v2286
        %2650 = vst [vmem:[%s2648] ss:$8 sm:$0xf0] %v2286
        %s2651 = scalar_lea.vmem [#allocation2], 838
        %2652 = vst [vmem:[%s2651] ss:$8 sm:$0xf] %v2293
        %2653 = vst [vmem:[%s2651] ss:$8 sm:$0xf0] %v2293
        %s2654 = scalar_lea.vmem [#allocation2], 902
        %2655 = vst [vmem:[%s2654] ss:$8 sm:$0xf] %v2300
        %2656 = vst [vmem:[%s2654] ss:$8 sm:$0xf0] %v2300
        %s2657 = scalar_lea.vmem [#allocation2], 966
        %2658 = vst [vmem:[%s2657] ss:$8 sm:$0xf] %v2307
        %2659 = vst [vmem:[%s2657] ss:$8 sm:$0xf0] %v2307
        %s2660 = scalar_lea.vmem [#allocation2], 1030
        %2661 = vst [vmem:[%s2660] ss:$8 sm:$0xf] %v2314
        %2662 = vst [vmem:[%s2660] ss:$8 sm:$0xf0] %v2314
        %s2663 = scalar_lea.vmem [#allocation2], 1094
        %2664 = vst [vmem:[%s2663] ss:$8 sm:$0xf] %v2321
        %2665 = vst [vmem:[%s2663] ss:$8 sm:$0xf0] %v2321
        %s2666 = scalar_lea.vmem [#allocation2], 1158
        %2667 = vst [vmem:[%s2666] ss:$8 sm:$0xf] %v2328
        %2668 = vst [vmem:[%s2666] ss:$8 sm:$0xf0] %v2328
        %s2669 = scalar_lea.vmem [#allocation2], 1222
        %2670 = vst [vmem:[%s2669] ss:$8 sm:$0xf] %v2335
        %2671 = vst [vmem:[%s2669] ss:$8 sm:$0xf0] %v2335
        %s2672 = scalar_lea.vmem [#allocation2], 1286
        %2673 = vst [vmem:[%s2672] ss:$8 sm:$0xf] %v2342
        %2674 = vst [vmem:[%s2672] ss:$8 sm:$0xf0] %v2342
        %s2675 = scalar_lea.vmem [#allocation2], 1350
        %2676 = vst [vmem:[%s2675] ss:$8 sm:$0xf] %v2349
        %2677 = vst [vmem:[%s2675] ss:$8 sm:$0xf0] %v2349
        %s2678 = scalar_lea.vmem [#allocation2], 1414
        %2679 = vst [vmem:[%s2678] ss:$8 sm:$0xf] %v2356
        %2680 = vst [vmem:[%s2678] ss:$8 sm:$0xf0] %v2356
        %s2681 = scalar_lea.vmem [#allocation2], 1478
        %2682 = vst [vmem:[%s2681] ss:$8 sm:$0xf] %v2363
        %2683 = vst [vmem:[%s2681] ss:$8 sm:$0xf0] %v2363
        %s2684 = scalar_lea.vmem [#allocation2], 1542
        %2685 = vst [vmem:[%s2684] ss:$8 sm:$0xf] %v2370
        %2686 = vst [vmem:[%s2684] ss:$8 sm:$0xf0] %v2370
        %s2687 = scalar_lea.vmem [#allocation2], 1606
        %2688 = vst [vmem:[%s2687] ss:$8 sm:$0xf] %v2377
        %2689 = vst [vmem:[%s2687] ss:$8 sm:$0xf0] %v2377
        %s2690 = scalar_lea.vmem [#allocation2], 1670
        %2691 = vst [vmem:[%s2690] ss:$8 sm:$0xf] %v2384
        %2692 = vst [vmem:[%s2690] ss:$8 sm:$0xf0] %v2384
        %s2693 = scalar_lea.vmem [#allocation2], 1734
        %2694 = vst [vmem:[%s2693] ss:$8 sm:$0xf] %v2391
        %2695 = vst [vmem:[%s2693] ss:$8 sm:$0xf0] %v2391
        %s2696 = scalar_lea.vmem [#allocation2], 1798
        %2697 = vst [vmem:[%s2696] ss:$8 sm:$0xf] %v2398
        %2698 = vst [vmem:[%s2696] ss:$8 sm:$0xf0] %v2398
        %s2699 = scalar_lea.vmem [#allocation2], 1862
        %2700 = vst [vmem:[%s2699] ss:$8 sm:$0xf] %v2405
        %2701 = vst [vmem:[%s2699] ss:$8 sm:$0xf0] %v2405
        %s2702 = scalar_lea.vmem [#allocation2], 1926
        %2703 = vst [vmem:[%s2702] ss:$8 sm:$0xf] %v2412
        %2704 = vst [vmem:[%s2702] ss:$8 sm:$0xf0] %v2412
        %s2705 = scalar_lea.vmem [#allocation2], 1990
        %2706 = vst [vmem:[%s2705] ss:$8 sm:$0xf] %v2419
        %2707 = vst [vmem:[%s2705] ss:$8 sm:$0xf0] %v2419
        %s2708 = scalar_lea.vmem [#allocation2], 2054
        %2709 = vst [vmem:[%s2708] ss:$8 sm:$0xf] %v2426
        %2710 = vst [vmem:[%s2708] ss:$8 sm:$0xf0] %v2426
        %s2711 = scalar_lea.vmem [#allocation2], 2118
        %2712 = vst [vmem:[%s2711] ss:$8 sm:$0xf] %v2433
        %2713 = vst [vmem:[%s2711] ss:$8 sm:$0xf0] %v2433
        %s2714 = scalar_lea.vmem [#allocation2], 2182
        %2715 = vst [vmem:[%s2714] ss:$8 sm:$0xf] %v2602
        %2716 = vst [vmem:[%s2714] ss:$8 sm:$0xf0] %v2602
        %s2717 = scalar_lea.vmem [#allocation2], 2246
        %2718 = vst.msk [vmem:[%s2717] ss:$8 sm:$0xf] %vm1122, %v2609
        %2719 = vst.msk [vmem:[%s2717] ss:$8 sm:$0x30] %vm1122, %v2609
        %v2720 = vrot.slane %v2202, 1
        %v2721 = vrot.slane %v2209, 1
        %v2722 = vrot.slane %v2216, 1
        %v2723 = vrot.slane %v2223, 1
        %v2724 = vrot.slane %v2230, 1
        %v2725 = vrot.slane %v2237, 1
        %v2726 = vrot.slane %v2244, 1
        %v2727 = vrot.slane %v2251, 1
        %v2728 = vrot.slane %v2258, 1
        %v2729 = vrot.slane %v2265, 1
        %v2730 = vrot.slane %v2272, 1
        %v2731 = vrot.slane %v2279, 1
        %v2732 = vrot.slane %v2286, 1
        %v2733 = vrot.slane %v2293, 1
        %v2734 = vrot.slane %v2300, 1
        %v2735 = vrot.slane %v2307, 1
        %v2736 = vrot.slane %v2314, 1
        %v2737 = vrot.slane %v2321, 1
        %v2738 = vrot.slane %v2328, 1
        %v2739 = vrot.slane %v2335, 1
        %v2740 = vrot.slane %v2342, 1
        %v2741 = vrot.slane %v2349, 1
        %v2742 = vrot.slane %v2356, 1
        %v2743 = vrot.slane %v2363, 1
        %v2744 = vrot.slane %v2370, 1
        %v2745 = vrot.slane %v2377, 1
        %v2746 = vrot.slane %v2384, 1
        %v2747 = vrot.slane %v2391, 1
        %v2748 = vrot.slane %v2398, 1
        %v2749 = vrot.slane %v2405, 1
        %v2750 = vrot.slane %v2412, 1
        %v2751 = vrot.slane %v2419, 1
        %v2752 = vrot.slane %v2426, 1
        %v2753 = vrot.slane %v2433, 1
        %v2754 = vrot.slane %v2602, 1
        %v2755 = vrot.slane %v2609, 1
        %v2756 = vsel %vm1162, %v2720, %v2721
        %v2757 = vsel %vm1162, %v2721, %v2722
        %v2758 = vsel %vm1162, %v2722, %v2723
        %v2759 = vsel %vm1162, %v2723, %v2724
        %v2760 = vsel %vm1162, %v2724, %v2725
        %v2761 = vsel %vm1162, %v2725, %v2726
        %v2762 = vsel %vm1162, %v2726, %v2727
        %v2763 = vsel %vm1162, %v2727, %v2728
        %v2764 = vsel %vm1162, %v2728, %v2729
        %v2765 = vsel %vm1162, %v2729, %v2730
        %v2766 = vsel %vm1162, %v2730, %v2731
        %v2767 = vsel %vm1162, %v2731, %v2732
        %v2768 = vsel %vm1162, %v2732, %v2733
        %v2769 = vsel %vm1162, %v2733, %v2734
        %v2770 = vsel %vm1162, %v2734, %v2735
        %v2771 = vsel %vm1162, %v2735, %v2736
        %v2772 = vsel %vm1162, %v2736, %v2737
        %v2773 = vsel %vm1162, %v2737, %v2738
        %v2774 = vsel %vm1162, %v2738, %v2739
        %v2775 = vsel %vm1162, %v2739, %v2740
        %v2776 = vsel %vm1162, %v2740, %v2741
        %v2777 = vsel %vm1162, %v2741, %v2742
        %v2778 = vsel %vm1162, %v2742, %v2743
        %v2779 = vsel %vm1162, %v2743, %v2744
        %v2780 = vsel %vm1162, %v2744, %v2745
        %v2781 = vsel %vm1162, %v2745, %v2746
        %v2782 = vsel %vm1162, %v2746, %v2747
        %v2783 = vsel %vm1162, %v2747, %v2748
        %v2784 = vsel %vm1162, %v2748, %v2749
        %v2785 = vsel %vm1162, %v2749, %v2750
        %v2786 = vsel %vm1162, %v2750, %v2751
        %v2787 = vsel %vm1162, %v2751, %v2752
        %v2788 = vsel %vm1162, %v2752, %v2753
        %v2789 = vsel %vm1162, %v2753, %v2754
        %v2790 = vsel %vm1162, %v2754, %v2755
        %s2827 = scalar_lea.vmem [#allocation2], 7
        %2828 = vst [vmem:[%s2827] ss:$8 sm:$0xf] %v2756
        %2829 = vst [vmem:[%s2827] ss:$8 sm:$0xf0] %v2756
        %s2830 = scalar_lea.vmem [#allocation2], 71
        %2831 = vst [vmem:[%s2830] ss:$8 sm:$0xf] %v2757
        %2832 = vst [vmem:[%s2830] ss:$8 sm:$0xf0] %v2757
        %s2833 = scalar_lea.vmem [#allocation2], 135
        %2834 = vst [vmem:[%s2833] ss:$8 sm:$0xf] %v2758
        %2835 = vst [vmem:[%s2833] ss:$8 sm:$0xf0] %v2758
        %s2836 = scalar_lea.vmem [#allocation2], 199
        %2837 = vst [vmem:[%s2836] ss:$8 sm:$0xf] %v2759
        %2838 = vst [vmem:[%s2836] ss:$8 sm:$0xf0] %v2759
        %s2839 = scalar_lea.vmem [#allocation2], 263
        %2840 = vst [vmem:[%s2839] ss:$8 sm:$0xf] %v2760
        %2841 = vst [vmem:[%s2839] ss:$8 sm:$0xf0] %v2760
        %s2842 = scalar_lea.vmem [#allocation2], 327
        %2843 = vst [vmem:[%s2842] ss:$8 sm:$0xf] %v2761
        %2844 = vst [vmem:[%s2842] ss:$8 sm:$0xf0] %v2761
        %s2845 = scalar_lea.vmem [#allocation2], 391
        %2846 = vst [vmem:[%s2845] ss:$8 sm:$0xf] %v2762
        %2847 = vst [vmem:[%s2845] ss:$8 sm:$0xf0] %v2762
        %s2848 = scalar_lea.vmem [#allocation2], 455
        %2849 = vst [vmem:[%s2848] ss:$8 sm:$0xf] %v2763
        %2850 = vst [vmem:[%s2848] ss:$8 sm:$0xf0] %v2763
        %s2851 = scalar_lea.vmem [#allocation2], 519
        %2852 = vst [vmem:[%s2851] ss:$8 sm:$0xf] %v2764
        %2853 = vst [vmem:[%s2851] ss:$8 sm:$0xf0] %v2764
        %s2854 = scalar_lea.vmem [#allocation2], 583
        %2855 = vst [vmem:[%s2854] ss:$8 sm:$0xf] %v2765
        %2856 = vst [vmem:[%s2854] ss:$8 sm:$0xf0] %v2765
        %s2857 = scalar_lea.vmem [#allocation2], 647
        %2858 = vst [vmem:[%s2857] ss:$8 sm:$0xf] %v2766
        %2859 = vst [vmem:[%s2857] ss:$8 sm:$0xf0] %v2766
        %s2860 = scalar_lea.vmem [#allocation2], 711
        %2861 = vst [vmem:[%s2860] ss:$8 sm:$0xf] %v2767
        %2862 = vst [vmem:[%s2860] ss:$8 sm:$0xf0] %v2767
        %s2863 = scalar_lea.vmem [#allocation2], 775
        %2864 = vst [vmem:[%s2863] ss:$8 sm:$0xf] %v2768
        %2865 = vst [vmem:[%s2863] ss:$8 sm:$0xf0] %v2768
        %s2866 = scalar_lea.vmem [#allocation2], 839
        %2867 = vst [vmem:[%s2866] ss:$8 sm:$0xf] %v2769
        %2868 = vst [vmem:[%s2866] ss:$8 sm:$0xf0] %v2769
        %s2869 = scalar_lea.vmem [#allocation2], 903
        %2870 = vst [vmem:[%s2869] ss:$8 sm:$0xf] %v2770
        %2871 = vst [vmem:[%s2869] ss:$8 sm:$0xf0] %v2770
        %s2872 = scalar_lea.vmem [#allocation2], 967
        %2873 = vst [vmem:[%s2872] ss:$8 sm:$0xf] %v2771
        %2874 = vst [vmem:[%s2872] ss:$8 sm:$0xf0] %v2771
        %s2875 = scalar_lea.vmem [#allocation2], 1031
        %2876 = vst [vmem:[%s2875] ss:$8 sm:$0xf] %v2772
        %2877 = vst [vmem:[%s2875] ss:$8 sm:$0xf0] %v2772
        %s2878 = scalar_lea.vmem [#allocation2], 1095
        %2879 = vst [vmem:[%s2878] ss:$8 sm:$0xf] %v2773
        %2880 = vst [vmem:[%s2878] ss:$8 sm:$0xf0] %v2773
        %s2881 = scalar_lea.vmem [#allocation2], 1159
        %2882 = vst [vmem:[%s2881] ss:$8 sm:$0xf] %v2774
        %2883 = vst [vmem:[%s2881] ss:$8 sm:$0xf0] %v2774
        %s2884 = scalar_lea.vmem [#allocation2], 1223
        %2885 = vst [vmem:[%s2884] ss:$8 sm:$0xf] %v2775
        %2886 = vst [vmem:[%s2884] ss:$8 sm:$0xf0] %v2775
        %s2887 = scalar_lea.vmem [#allocation2], 1287
        %2888 = vst [vmem:[%s2887] ss:$8 sm:$0xf] %v2776
        %2889 = vst [vmem:[%s2887] ss:$8 sm:$0xf0] %v2776
        %s2890 = scalar_lea.vmem [#allocation2], 1351
        %2891 = vst [vmem:[%s2890] ss:$8 sm:$0xf] %v2777
        %2892 = vst [vmem:[%s2890] ss:$8 sm:$0xf0] %v2777
        %s2893 = scalar_lea.vmem [#allocation2], 1415
        %2894 = vst [vmem:[%s2893] ss:$8 sm:$0xf] %v2778
        %2895 = vst [vmem:[%s2893] ss:$8 sm:$0xf0] %v2778
        %s2896 = scalar_lea.vmem [#allocation2], 1479
        %2897 = vst [vmem:[%s2896] ss:$8 sm:$0xf] %v2779
        %2898 = vst [vmem:[%s2896] ss:$8 sm:$0xf0] %v2779
        %s2899 = scalar_lea.vmem [#allocation2], 1543
        %2900 = vst [vmem:[%s2899] ss:$8 sm:$0xf] %v2780
        %2901 = vst [vmem:[%s2899] ss:$8 sm:$0xf0] %v2780
        %s2902 = scalar_lea.vmem [#allocation2], 1607
        %2903 = vst [vmem:[%s2902] ss:$8 sm:$0xf] %v2781
        %2904 = vst [vmem:[%s2902] ss:$8 sm:$0xf0] %v2781
        %s2905 = scalar_lea.vmem [#allocation2], 1671
        %2906 = vst [vmem:[%s2905] ss:$8 sm:$0xf] %v2782
        %2907 = vst [vmem:[%s2905] ss:$8 sm:$0xf0] %v2782
        %s2908 = scalar_lea.vmem [#allocation2], 1735
        %2909 = vst [vmem:[%s2908] ss:$8 sm:$0xf] %v2783
        %2910 = vst [vmem:[%s2908] ss:$8 sm:$0xf0] %v2783
        %s2911 = scalar_lea.vmem [#allocation2], 1799
        %2912 = vst [vmem:[%s2911] ss:$8 sm:$0xf] %v2784
        %2913 = vst [vmem:[%s2911] ss:$8 sm:$0xf0] %v2784
        %s2914 = scalar_lea.vmem [#allocation2], 1863
        %2915 = vst [vmem:[%s2914] ss:$8 sm:$0xf] %v2785
        %2916 = vst [vmem:[%s2914] ss:$8 sm:$0xf0] %v2785
        %s2917 = scalar_lea.vmem [#allocation2], 1927
        %2918 = vst [vmem:[%s2917] ss:$8 sm:$0xf] %v2786
        %2919 = vst [vmem:[%s2917] ss:$8 sm:$0xf0] %v2786
        %s2920 = scalar_lea.vmem [#allocation2], 1991
        %2921 = vst [vmem:[%s2920] ss:$8 sm:$0xf] %v2787
        %2922 = vst [vmem:[%s2920] ss:$8 sm:$0xf0] %v2787
        %s2923 = scalar_lea.vmem [#allocation2], 2055
        %2924 = vst [vmem:[%s2923] ss:$8 sm:$0xf] %v2788
        %2925 = vst [vmem:[%s2923] ss:$8 sm:$0xf0] %v2788
        %s2926 = scalar_lea.vmem [#allocation2], 2119
        %2927 = vst [vmem:[%s2926] ss:$8 sm:$0xf] %v2789
        %2928 = vst [vmem:[%s2926] ss:$8 sm:$0xf0] %v2789
        %s2929 = scalar_lea.vmem [#allocation2], 2183
        %2930 = vst [vmem:[%s2929] ss:$8 sm:$0xf] %v2790
        %2931 = vst [vmem:[%s2929] ss:$8 sm:$0xf0] %v2790
        %s2932 = scalar_lea.vmem [#allocation2], 2247
        %2933 = vst.msk [vmem:[%s2932] ss:$8 sm:$0xf] %vm1122, %v2755
        %2934 = vst.msk [vmem:[%s2932] ss:$8 sm:$0x30] %vm1122, %v2755
        %v2935 = vrot.slane %v2202, 2
        %v2936 = vrot.slane %v2209, 2
        %v2937 = vrot.slane %v2216, 2
        %v2938 = vrot.slane %v2223, 2
        %v2939 = vrot.slane %v2230, 2
        %v2940 = vrot.slane %v2237, 2
        %v2941 = vrot.slane %v2244, 2
        %v2942 = vrot.slane %v2251, 2
        %v2943 = vrot.slane %v2258, 2
        %v2944 = vrot.slane %v2265, 2
        %v2945 = vrot.slane %v2272, 2
        %v2946 = vrot.slane %v2279, 2
        %v2947 = vrot.slane %v2286, 2
        %v2948 = vrot.slane %v2293, 2
        %v2949 = vrot.slane %v2300, 2
        %v2950 = vrot.slane %v2307, 2
        %v2951 = vrot.slane %v2314, 2
        %v2952 = vrot.slane %v2321, 2
        %v2953 = vrot.slane %v2328, 2
        %v2954 = vrot.slane %v2335, 2
        %v2955 = vrot.slane %v2342, 2
        %v2956 = vrot.slane %v2349, 2
        %v2957 = vrot.slane %v2356, 2
        %v2958 = vrot.slane %v2363, 2
        %v2959 = vrot.slane %v2370, 2
        %v2960 = vrot.slane %v2377, 2
        %v2961 = vrot.slane %v2384, 2
        %v2962 = vrot.slane %v2391, 2
        %v2963 = vrot.slane %v2398, 2
        %v2964 = vrot.slane %v2405, 2
        %v2965 = vrot.slane %v2412, 2
        %v2966 = vrot.slane %v2419, 2
        %v2967 = vrot.slane %v2426, 2
        %v2968 = vrot.slane %v2433, 2
        %v2969 = vrot.slane %v2602, 2
        %v2970 = vrot.slane %v2609, 2
        %v2971 = vsel %vm1378, %v2935, %v2936
        %v2972 = vsel %vm1378, %v2936, %v2937
        %v2973 = vsel %vm1378, %v2937, %v2938
        %v2974 = vsel %vm1378, %v2938, %v2939
        %v2975 = vsel %vm1378, %v2939, %v2940
        %v2976 = vsel %vm1378, %v2940, %v2941
        %v2977 = vsel %vm1378, %v2941, %v2942
        %v2978 = vsel %vm1378, %v2942, %v2943
        %v2979 = vsel %vm1378, %v2943, %v2944
        %v2980 = vsel %vm1378, %v2944, %v2945
        %v2981 = vsel %vm1378, %v2945, %v2946
        %v2982 = vsel %vm1378, %v2946, %v2947
        %v2983 = vsel %vm1378, %v2947, %v2948
        %v2984 = vsel %vm1378, %v2948, %v2949
        %v2985 = vsel %vm1378, %v2949, %v2950
        %v2986 = vsel %vm1378, %v2950, %v2951
        %v2987 = vsel %vm1378, %v2951, %v2952
        %v2988 = vsel %vm1378, %v2952, %v2953
        %v2989 = vsel %vm1378, %v2953, %v2954
        %v2990 = vsel %vm1378, %v2954, %v2955
        %v2991 = vsel %vm1378, %v2955, %v2956
        %v2992 = vsel %vm1378, %v2956, %v2957
        %v2993 = vsel %vm1378, %v2957, %v2958
        %v2994 = vsel %vm1378, %v2958, %v2959
        %v2995 = vsel %vm1378, %v2959, %v2960
        %v2996 = vsel %vm1378, %v2960, %v2961
        %v2997 = vsel %vm1378, %v2961, %v2962
        %v2998 = vsel %vm1378, %v2962, %v2963
        %v2999 = vsel %vm1378, %v2963, %v2964
        %v3000 = vsel %vm1378, %v2964, %v2965
        %v3001 = vsel %vm1378, %v2965, %v2966
        %v3002 = vsel %vm1378, %v2966, %v2967
        %v3003 = vsel %vm1378, %v2967, %v2968
        %v3004 = vsel %vm1378, %v2968, %v2969
        %v3005 = vsel %vm1378, %v2969, %v2970
        %s3042 = scalar_lea.vmem [#allocation2], 2288
        %3043 = vst [vmem:[%s3042] ss:$8 sm:$0xf] %v2971
        %3044 = vst [vmem:[%s3042] ss:$8 sm:$0xf0] %v2971
        %s3045 = scalar_lea.vmem [#allocation2], 2352
        %3046 = vst [vmem:[%s3045] ss:$8 sm:$0xf] %v2972
        %3047 = vst [vmem:[%s3045] ss:$8 sm:$0xf0] %v2972
        %s3048 = scalar_lea.vmem [#allocation2], 2416
        %3049 = vst [vmem:[%s3048] ss:$8 sm:$0xf] %v2973
        %3050 = vst [vmem:[%s3048] ss:$8 sm:$0xf0] %v2973
        %s3051 = scalar_lea.vmem [#allocation2], 2480
        %3052 = vst [vmem:[%s3051] ss:$8 sm:$0xf] %v2974
        %3053 = vst [vmem:[%s3051] ss:$8 sm:$0xf0] %v2974
        %s3054 = scalar_lea.vmem [#allocation2], 2544
        %3055 = vst [vmem:[%s3054] ss:$8 sm:$0xf] %v2975
        %3056 = vst [vmem:[%s3054] ss:$8 sm:$0xf0] %v2975
        %s3057 = scalar_lea.vmem [#allocation2], 2608
        %3058 = vst [vmem:[%s3057] ss:$8 sm:$0xf] %v2976
        %3059 = vst [vmem:[%s3057] ss:$8 sm:$0xf0] %v2976
        %s3060 = scalar_lea.vmem [#allocation2], 2672
        %3061 = vst [vmem:[%s3060] ss:$8 sm:$0xf] %v2977
        %3062 = vst [vmem:[%s3060] ss:$8 sm:$0xf0] %v2977
        %s3063 = scalar_lea.vmem [#allocation2], 2736
        %3064 = vst [vmem:[%s3063] ss:$8 sm:$0xf] %v2978
        %3065 = vst [vmem:[%s3063] ss:$8 sm:$0xf0] %v2978
        %s3066 = scalar_lea.vmem [#allocation2], 2800
        %3067 = vst [vmem:[%s3066] ss:$8 sm:$0xf] %v2979
        %3068 = vst [vmem:[%s3066] ss:$8 sm:$0xf0] %v2979
        %s3069 = scalar_lea.vmem [#allocation2], 2864
        %3070 = vst [vmem:[%s3069] ss:$8 sm:$0xf] %v2980
        %3071 = vst [vmem:[%s3069] ss:$8 sm:$0xf0] %v2980
        %s3072 = scalar_lea.vmem [#allocation2], 2928
        %3073 = vst [vmem:[%s3072] ss:$8 sm:$0xf] %v2981
        %3074 = vst [vmem:[%s3072] ss:$8 sm:$0xf0] %v2981
        %s3075 = scalar_lea.vmem [#allocation2], 2992
        %3076 = vst [vmem:[%s3075] ss:$8 sm:$0xf] %v2982
        %3077 = vst [vmem:[%s3075] ss:$8 sm:$0xf0] %v2982
        %s3078 = scalar_lea.vmem [#allocation2], 3056
        %3079 = vst [vmem:[%s3078] ss:$8 sm:$0xf] %v2983
        %3080 = vst [vmem:[%s3078] ss:$8 sm:$0xf0] %v2983
        %s3081 = scalar_lea.vmem [#allocation2], 3120
        %3082 = vst [vmem:[%s3081] ss:$8 sm:$0xf] %v2984
        %3083 = vst [vmem:[%s3081] ss:$8 sm:$0xf0] %v2984
        %s3084 = scalar_lea.vmem [#allocation2], 3184
        %3085 = vst [vmem:[%s3084] ss:$8 sm:$0xf] %v2985
        %3086 = vst [vmem:[%s3084] ss:$8 sm:$0xf0] %v2985
        %s3087 = scalar_lea.vmem [#allocation2], 3248
        %3088 = vst [vmem:[%s3087] ss:$8 sm:$0xf] %v2986
        %3089 = vst [vmem:[%s3087] ss:$8 sm:$0xf0] %v2986
        %s3090 = scalar_lea.vmem [#allocation2], 3312
        %3091 = vst [vmem:[%s3090] ss:$8 sm:$0xf] %v2987
        %3092 = vst [vmem:[%s3090] ss:$8 sm:$0xf0] %v2987
        %s3093 = scalar_lea.vmem [#allocation2], 3376
        %3094 = vst [vmem:[%s3093] ss:$8 sm:$0xf] %v2988
        %3095 = vst [vmem:[%s3093] ss:$8 sm:$0xf0] %v2988
        %s3096 = scalar_lea.vmem [#allocation2], 3440
        %3097 = vst [vmem:[%s3096] ss:$8 sm:$0xf] %v2989
        %3098 = vst [vmem:[%s3096] ss:$8 sm:$0xf0] %v2989
        %s3099 = scalar_lea.vmem [#allocation2], 3504
        %3100 = vst [vmem:[%s3099] ss:$8 sm:$0xf] %v2990
        %3101 = vst [vmem:[%s3099] ss:$8 sm:$0xf0] %v2990
        %s3102 = scalar_lea.vmem [#allocation2], 3568
        %3103 = vst [vmem:[%s3102] ss:$8 sm:$0xf] %v2991
        %3104 = vst [vmem:[%s3102] ss:$8 sm:$0xf0] %v2991
        %s3105 = scalar_lea.vmem [#allocation2], 3632
        %3106 = vst [vmem:[%s3105] ss:$8 sm:$0xf] %v2992
        %3107 = vst [vmem:[%s3105] ss:$8 sm:$0xf0] %v2992
        %s3108 = scalar_lea.vmem [#allocation2], 3696
        %3109 = vst [vmem:[%s3108] ss:$8 sm:$0xf] %v2993
        %3110 = vst [vmem:[%s3108] ss:$8 sm:$0xf0] %v2993
        %s3111 = scalar_lea.vmem [#allocation2], 3760
        %3112 = vst [vmem:[%s3111] ss:$8 sm:$0xf] %v2994
        %3113 = vst [vmem:[%s3111] ss:$8 sm:$0xf0] %v2994
        %s3114 = scalar_lea.vmem [#allocation2], 3824
        %3115 = vst [vmem:[%s3114] ss:$8 sm:$0xf] %v2995
        %3116 = vst [vmem:[%s3114] ss:$8 sm:$0xf0] %v2995
        %s3117 = scalar_lea.vmem [#allocation2], 3888
        %3118 = vst [vmem:[%s3117] ss:$8 sm:$0xf] %v2996
        %3119 = vst [vmem:[%s3117] ss:$8 sm:$0xf0] %v2996
        %s3120 = scalar_lea.vmem [#allocation2], 3952
        %3121 = vst [vmem:[%s3120] ss:$8 sm:$0xf] %v2997
        %3122 = vst [vmem:[%s3120] ss:$8 sm:$0xf0] %v2997
        %s3123 = scalar_lea.vmem [#allocation2], 4016
        %3124 = vst [vmem:[%s3123] ss:$8 sm:$0xf] %v2998
        %3125 = vst [vmem:[%s3123] ss:$8 sm:$0xf0] %v2998
        %s3126 = scalar_lea.vmem [#allocation2], 4080
        %3127 = vst [vmem:[%s3126] ss:$8 sm:$0xf] %v2999
        %3128 = vst [vmem:[%s3126] ss:$8 sm:$0xf0] %v2999
        %s3129 = scalar_lea.vmem [#allocation2], 4144
        %3130 = vst [vmem:[%s3129] ss:$8 sm:$0xf] %v3000
        %3131 = vst [vmem:[%s3129] ss:$8 sm:$0xf0] %v3000
        %s3132 = scalar_lea.vmem [#allocation2], 4208
        %3133 = vst [vmem:[%s3132] ss:$8 sm:$0xf] %v3001
        %3134 = vst [vmem:[%s3132] ss:$8 sm:$0xf0] %v3001
        %s3135 = scalar_lea.vmem [#allocation2], 4272
        %3136 = vst [vmem:[%s3135] ss:$8 sm:$0xf] %v3002
        %3137 = vst [vmem:[%s3135] ss:$8 sm:$0xf0] %v3002
        %s3138 = scalar_lea.vmem [#allocation2], 4336
        %3139 = vst [vmem:[%s3138] ss:$8 sm:$0xf] %v3003
        %3140 = vst [vmem:[%s3138] ss:$8 sm:$0xf0] %v3003
        %s3141 = scalar_lea.vmem [#allocation2], 4400
        %3142 = vst [vmem:[%s3141] ss:$8 sm:$0xf] %v3004
        %3143 = vst [vmem:[%s3141] ss:$8 sm:$0xf0] %v3004
        %s3144 = scalar_lea.vmem [#allocation2], 4464
        %3145 = vst [vmem:[%s3144] ss:$8 sm:$0xf] %v3005
        %3146 = vst [vmem:[%s3144] ss:$8 sm:$0xf0] %v3005
        %s3147 = scalar_lea.vmem [#allocation2], 4528
        %3148 = vst.msk [vmem:[%s3147] ss:$8 sm:$0xf] %vm1122, %v2970
        %3149 = vst.msk [vmem:[%s3147] ss:$8 sm:$0x30] %vm1122, %v2970
        %v3150 = vld [vmem:[%s1] sm:$0xff]
        %v3151 = vld [vmem:[#allocation2] sm:$0xff]
        %v3152 = vld [vmem:[#allocation2 + $0x8] sm:$0xff]
        %v3153 = vld [vmem:[#allocation2 + $0x10] sm:$0xff]
        %v3154 = vld [vmem:[#allocation2 + $0x18] sm:$0xff]
        %v3155 = vld [vmem:[#allocation2 + $0x20] sm:$0xff]
        %v3156 = vld [vmem:[#allocation2 + $0x28] sm:$0xff]
        %v3157 = vld [vmem:[#allocation2 + $0x30] sm:$0xff]
        %v3158 = vld [vmem:[#allocation2 + $0x38] sm:$0xff]
        %v3159 = vld [vmem:[#allocation2 + $0x40] sm:$0xff]
        %v3160 = vld [vmem:[#allocation2 + $0x48] sm:$0xff]
        %v3161 = vld [vmem:[#allocation2 + $0x50] sm:$0xff]
        %v3162 = vld [vmem:[#allocation2 + $0x58] sm:$0xff]
        %v3163 = vld [vmem:[#allocation2 + $0x60] sm:$0xff]
        %v3164 = vld [vmem:[#allocation2 + $0x68] sm:$0xff]
        %v3165 = vld [vmem:[#allocation2 + $0x70] sm:$0xff]
        %v3166 = vld [vmem:[#allocation2 + $0x78] sm:$0xff]
        %v3167 = vld [vmem:[#allocation2 + $0x90] sm:$0xff]
        %v3168 = vld [vmem:[#allocation2 + $0x98] sm:$0xff]
        %v3169 = vld [vmem:[#allocation2 + $0xa0] sm:$0xff]
        %v3170 = vld [vmem:[#allocation2 + $0xa8] sm:$0xff]
        %v3171 = vld [vmem:[#allocation2 + $0xb0] sm:$0xff]
        %v3172 = vld [vmem:[#allocation2 + $0xb8] sm:$0xff]
        %v3173 = vld [vmem:[#allocation2 + $0xc0] sm:$0xff]
        %v3174 = vld [vmem:[#allocation2 + $0xc8] sm:$0xff]
        %v3175 = vld [vmem:[#allocation2 + $0xd0] sm:$0xff]
        %v3176 = vld [vmem:[#allocation2 + $0xd8] sm:$0xff]
        %v3177 = vld [vmem:[#allocation2 + $0xe0] sm:$0xff]
        %v3178 = vld [vmem:[#allocation2 + $0xe8] sm:$0xff]
        %v3179 = vld [vmem:[#allocation2 + $0xf0] sm:$0xff]
        %v3180 = vld [vmem:[#allocation2 + $0xf8] sm:$0xff]
        %v3181 = vld [vmem:[#allocation2 + $0x100] sm:$0xff]
        %v3182 = vld [vmem:[#allocation2 + $0x108] sm:$0xff]
        %v3183 = vld [vmem:[#allocation2 + $0x120] sm:$0xff]
        %v3184 = vld [vmem:[#allocation2 + $0x128] sm:$0xff]
        %v3185 = vld [vmem:[#allocation2 + $0x130] sm:$0xff]
        %v3186 = vld [vmem:[#allocation2 + $0x138] sm:$0xff]
        %v3187 = vld [vmem:[#allocation2 + $0x140] sm:$0xff]
        %v3188 = vld [vmem:[#allocation2 + $0x148] sm:$0xff]
        %v3189 = vld [vmem:[#allocation2 + $0x150] sm:$0xff]
        %v3190 = vld [vmem:[#allocation2 + $0x158] sm:$0xff]
        %v3191 = vld [vmem:[#allocation2 + $0x160] sm:$0xff]
        %v3192 = vld [vmem:[#allocation2 + $0x168] sm:$0xff]
        %v3193 = vld [vmem:[#allocation2 + $0x170] sm:$0xff]
        %v3194 = vld [vmem:[#allocation2 + $0x178] sm:$0xff]
        %v3195 = vld [vmem:[#allocation2 + $0x180] sm:$0xff]
        %v3196 = vld [vmem:[#allocation2 + $0x188] sm:$0xff]
        %v3197 = vld [vmem:[#allocation2 + $0x190] sm:$0xff]
        %v3198 = vld [vmem:[#allocation2 + $0x198] sm:$0xff]
        %v3199 = vld [vmem:[#allocation2 + $0x1b0] sm:$0xff]
        %v3200 = vld [vmem:[#allocation2 + $0x1b8] sm:$0xff]
        %v3201 = vld [vmem:[#allocation2 + $0x1c0] sm:$0xff]
        %v3202 = vld [vmem:[#allocation2 + $0x1c8] sm:$0xff]
        %v3203 = vld [vmem:[#allocation2 + $0x1d0] sm:$0xff]
        %v3204 = vld [vmem:[#allocation2 + $0x1d8] sm:$0xff]
        %v3205 = vld [vmem:[#allocation2 + $0x1e0] sm:$0xff]
        %v3206 = vld [vmem:[#allocation2 + $0x1e8] sm:$0xff]
        %v3207 = vld [vmem:[#allocation2 + $0x1f0] sm:$0xff]
        %v3208 = vld [vmem:[#allocation2 + $0x1f8] sm:$0xff]
        %v3209 = vld [vmem:[#allocation2 + $0x200] sm:$0xff]
        %v3210 = vld [vmem:[#allocation2 + $0x208] sm:$0xff]
        %v3211 = vld [vmem:[#allocation2 + $0x210] sm:$0xff]
        %v3212 = vld [vmem:[#allocation2 + $0x218] sm:$0xff]
        %v3213 = vld [vmem:[#allocation2 + $0x220] sm:$0xff]
        %v3214 = vld [vmem:[#allocation2 + $0x228] sm:$0xff]
        %v3215 = vld [vmem:[#allocation2 + $0x240] sm:$0xff]
        %v3216 = vld [vmem:[#allocation2 + $0x248] sm:$0xff]
        %v3217 = vld [vmem:[#allocation2 + $0x250] sm:$0xff]
        %v3218 = vld [vmem:[#allocation2 + $0x258] sm:$0xff]
        %v3219 = vld [vmem:[#allocation2 + $0x260] sm:$0xff]
        %v3220 = vld [vmem:[#allocation2 + $0x268] sm:$0xff]
        %v3221 = vld [vmem:[#allocation2 + $0x270] sm:$0xff]
        %v3222 = vld [vmem:[#allocation2 + $0x278] sm:$0xff]
        %v3223 = vld [vmem:[#allocation2 + $0x280] sm:$0xff]
        %v3224 = vld [vmem:[#allocation2 + $0x288] sm:$0xff]
        %v3225 = vld [vmem:[#allocation2 + $0x290] sm:$0xff]
        %v3226 = vld [vmem:[#allocation2 + $0x298] sm:$0xff]
        %v3227 = vld [vmem:[#allocation2 + $0x2a0] sm:$0xff]
        %v3228 = vld [vmem:[#allocation2 + $0x2a8] sm:$0xff]
        %v3229 = vld [vmem:[#allocation2 + $0x2b0] sm:$0xff]
        %v3230 = vld [vmem:[#allocation2 + $0x2b8] sm:$0xff]
        %v3231 = vld [vmem:[#allocation2 + $0x2d0] sm:$0xff]
        %v3232 = vld [vmem:[#allocation2 + $0x2d8] sm:$0xff]
        %v3233 = vld [vmem:[#allocation2 + $0x2e0] sm:$0xff]
        %v3234 = vld [vmem:[#allocation2 + $0x2e8] sm:$0xff]
        %v3235 = vld [vmem:[#allocation2 + $0x2f0] sm:$0xff]
        %v3236 = vld [vmem:[#allocation2 + $0x2f8] sm:$0xff]
        %v3237 = vld [vmem:[#allocation2 + $0x300] sm:$0xff]
        %v3238 = vld [vmem:[#allocation2 + $0x308] sm:$0xff]
        %v3239 = vld [vmem:[#allocation2 + $0x310] sm:$0xff]
        %v3240 = vld [vmem:[#allocation2 + $0x318] sm:$0xff]
        %v3241 = vld [vmem:[#allocation2 + $0x320] sm:$0xff]
        %v3242 = vld [vmem:[#allocation2 + $0x328] sm:$0xff]
        %v3243 = vld [vmem:[#allocation2 + $0x330] sm:$0xff]
        %v3244 = vld [vmem:[#allocation2 + $0x338] sm:$0xff]
        %v3245 = vld [vmem:[#allocation2 + $0x340] sm:$0xff]
        %v3246 = vld [vmem:[#allocation2 + $0x348] sm:$0xff]
        %v3247 = vld [vmem:[#allocation2 + $0x360] sm:$0xff]
        %v3248 = vld [vmem:[#allocation2 + $0x368] sm:$0xff]
        %v3249 = vld [vmem:[#allocation2 + $0x370] sm:$0xff]
        %v3250 = vld [vmem:[#allocation2 + $0x378] sm:$0xff]
        %v3251 = vld [vmem:[#allocation2 + $0x380] sm:$0xff]
        %v3252 = vld [vmem:[#allocation2 + $0x388] sm:$0xff]
        %v3253 = vld [vmem:[#allocation2 + $0x390] sm:$0xff]
        %v3254 = vld [vmem:[#allocation2 + $0x398] sm:$0xff]
        %v3255 = vld [vmem:[#allocation2 + $0x3a0] sm:$0xff]
        %v3256 = vld [vmem:[#allocation2 + $0x3a8] sm:$0xff]
        %v3257 = vld [vmem:[#allocation2 + $0x3b0] sm:$0xff]
        %v3258 = vld [vmem:[#allocation2 + $0x3b8] sm:$0xff]
        %v3259 = vld [vmem:[#allocation2 + $0x3c0] sm:$0xff]
        %v3260 = vld [vmem:[#allocation2 + $0x3c8] sm:$0xff]
        %v3261 = vld [vmem:[#allocation2 + $0x3d0] sm:$0xff]
        %v3262 = vld [vmem:[#allocation2 + $0x3d8] sm:$0xff]
        %v3263 = vld [vmem:[#allocation2 + $0x3f0] sm:$0xff]
        %v3264 = vld [vmem:[#allocation2 + $0x3f8] sm:$0xff]
        %v3265 = vld [vmem:[#allocation2 + $0x400] sm:$0xff]
        %v3266 = vld [vmem:[#allocation2 + $0x408] sm:$0xff]
        %v3267 = vld [vmem:[#allocation2 + $0x410] sm:$0xff]
        %v3268 = vld [vmem:[#allocation2 + $0x418] sm:$0xff]
        %v3269 = vld [vmem:[#allocation2 + $0x420] sm:$0xff]
        %v3270 = vld [vmem:[#allocation2 + $0x428] sm:$0xff]
        %v3271 = vld [vmem:[#allocation2 + $0x430] sm:$0xff]
        %v3272 = vld [vmem:[#allocation2 + $0x438] sm:$0xff]
        %v3273 = vld [vmem:[#allocation2 + $0x440] sm:$0xff]
        %v3274 = vld [vmem:[#allocation2 + $0x448] sm:$0xff]
        %v3275 = vld [vmem:[#allocation2 + $0x450] sm:$0xff]
        %v3276 = vld [vmem:[#allocation2 + $0x458] sm:$0xff]
        %v3277 = vld [vmem:[#allocation2 + $0x460] sm:$0xff]
        %v3278 = vld [vmem:[#allocation2 + $0x468] sm:$0xff]
        %v3279 = vld [vmem:[#allocation2 + $0x480] sm:$0xff]
        %v3280 = vld [vmem:[#allocation2 + $0x488] sm:$0xff]
        %v3281 = vld [vmem:[#allocation2 + $0x490] sm:$0xff]
        %v3282 = vld [vmem:[#allocation2 + $0x498] sm:$0xff]
        %v3283 = vld [vmem:[#allocation2 + $0x4a0] sm:$0xff]
        %v3284 = vld [vmem:[#allocation2 + $0x4a8] sm:$0xff]
        %v3285 = vld [vmem:[#allocation2 + $0x4b0] sm:$0xff]
        %v3286 = vld [vmem:[#allocation2 + $0x4b8] sm:$0xff]
        %v3287 = vld [vmem:[#allocation2 + $0x4c0] sm:$0xff]
        %v3288 = vld [vmem:[#allocation2 + $0x4c8] sm:$0xff]
        %v3289 = vld [vmem:[#allocation2 + $0x4d0] sm:$0xff]
        %v3290 = vld [vmem:[#allocation2 + $0x4d8] sm:$0xff]
        %v3291 = vld [vmem:[#allocation2 + $0x4e0] sm:$0xff]
        %v3292 = vld [vmem:[#allocation2 + $0x4e8] sm:$0xff]
        %v3293 = vld [vmem:[#allocation2 + $0x4f0] sm:$0xff]
        %v3294 = vld [vmem:[#allocation2 + $0x4f8] sm:$0xff]
        %v3295 = vld [vmem:[#allocation2 + $0x510] sm:$0xff]
        %v3296 = vld [vmem:[#allocation2 + $0x518] sm:$0xff]
        %v3297 = vld [vmem:[#allocation2 + $0x520] sm:$0xff]
        %v3298 = vld [vmem:[#allocation2 + $0x528] sm:$0xff]
        %v3299 = vld [vmem:[#allocation2 + $0x530] sm:$0xff]
        %v3300 = vld [vmem:[#allocation2 + $0x538] sm:$0xff]
        %v3301 = vld [vmem:[#allocation2 + $0x540] sm:$0xff]
        %v3302 = vld [vmem:[#allocation2 + $0x548] sm:$0xff]
        %v3303 = vld [vmem:[#allocation2 + $0x550] sm:$0xff]
        %v3304 = vld [vmem:[#allocation2 + $0x558] sm:$0xff]
        %v3305 = vld [vmem:[#allocation2 + $0x560] sm:$0xff]
        %v3306 = vld [vmem:[#allocation2 + $0x568] sm:$0xff]
        %v3307 = vld [vmem:[#allocation2 + $0x570] sm:$0xff]
        %v3308 = vld [vmem:[#allocation2 + $0x578] sm:$0xff]
        %v3309 = vld [vmem:[#allocation2 + $0x580] sm:$0xff]
        %v3310 = vld [vmem:[#allocation2 + $0x588] sm:$0xff]
        %v3311 = vld [vmem:[#allocation2 + $0x5a0] sm:$0xff]
        %v3312 = vld [vmem:[#allocation2 + $0x5a8] sm:$0xff]
        %v3313 = vld [vmem:[#allocation2 + $0x5b0] sm:$0xff]
        %v3314 = vld [vmem:[#allocation2 + $0x5b8] sm:$0xff]
        %v3315 = vld [vmem:[#allocation2 + $0x5c0] sm:$0xff]
        %v3316 = vld [vmem:[#allocation2 + $0x5c8] sm:$0xff]
        %v3317 = vld [vmem:[#allocation2 + $0x5d0] sm:$0xff]
        %v3318 = vld [vmem:[#allocation2 + $0x5d8] sm:$0xff]
        %v3319 = vld [vmem:[#allocation2 + $0x5e0] sm:$0xff]
        %v3320 = vld [vmem:[#allocation2 + $0x5e8] sm:$0xff]
        %v3321 = vld [vmem:[#allocation2 + $0x5f0] sm:$0xff]
        %v3322 = vld [vmem:[#allocation2 + $0x5f8] sm:$0xff]
        %v3323 = vld [vmem:[#allocation2 + $0x600] sm:$0xff]
        %v3324 = vld [vmem:[#allocation2 + $0x608] sm:$0xff]
        %v3325 = vld [vmem:[#allocation2 + $0x610] sm:$0xff]
        %v3326 = vld [vmem:[#allocation2 + $0x618] sm:$0xff]
        %v3327 = vld [vmem:[#allocation2 + $0x630] sm:$0xff]
        %v3328 = vld [vmem:[#allocation2 + $0x638] sm:$0xff]
        %v3329 = vld [vmem:[#allocation2 + $0x640] sm:$0xff]
        %v3330 = vld [vmem:[#allocation2 + $0x648] sm:$0xff]
        %v3331 = vld [vmem:[#allocation2 + $0x650] sm:$0xff]
        %v3332 = vld [vmem:[#allocation2 + $0x658] sm:$0xff]
        %v3333 = vld [vmem:[#allocation2 + $0x660] sm:$0xff]
        %v3334 = vld [vmem:[#allocation2 + $0x668] sm:$0xff]
        %v3335 = vld [vmem:[#allocation2 + $0x670] sm:$0xff]
        %v3336 = vld [vmem:[#allocation2 + $0x678] sm:$0xff]
        %v3337 = vld [vmem:[#allocation2 + $0x680] sm:$0xff]
        %v3338 = vld [vmem:[#allocation2 + $0x688] sm:$0xff]
        %v3339 = vld [vmem:[#allocation2 + $0x690] sm:$0xff]
        %v3340 = vld [vmem:[#allocation2 + $0x698] sm:$0xff]
        %v3341 = vld [vmem:[#allocation2 + $0x6a0] sm:$0xff]
        %v3342 = vld [vmem:[#allocation2 + $0x6a8] sm:$0xff]
        %v3343 = vld [vmem:[#allocation2 + $0x6c0] sm:$0xff]
        %v3344 = vld [vmem:[#allocation2 + $0x6c8] sm:$0xff]
        %v3345 = vld [vmem:[#allocation2 + $0x6d0] sm:$0xff]
        %v3346 = vld [vmem:[#allocation2 + $0x6d8] sm:$0xff]
        %v3347 = vld [vmem:[#allocation2 + $0x6e0] sm:$0xff]
        %v3348 = vld [vmem:[#allocation2 + $0x6e8] sm:$0xff]
        %v3349 = vld [vmem:[#allocation2 + $0x6f0] sm:$0xff]
        %v3350 = vld [vmem:[#allocation2 + $0x6f8] sm:$0xff]
        %v3351 = vld [vmem:[#allocation2 + $0x700] sm:$0xff]
        %v3352 = vld [vmem:[#allocation2 + $0x708] sm:$0xff]
        %v3353 = vld [vmem:[#allocation2 + $0x710] sm:$0xff]
        %v3354 = vld [vmem:[#allocation2 + $0x718] sm:$0xff]
        %v3355 = vld [vmem:[#allocation2 + $0x720] sm:$0xff]
        %v3356 = vld [vmem:[#allocation2 + $0x728] sm:$0xff]
        %v3357 = vld [vmem:[#allocation2 + $0x730] sm:$0xff]
        %v3358 = vld [vmem:[#allocation2 + $0x738] sm:$0xff]
        %v3359 = vld [vmem:[#allocation2 + $0x750] sm:$0xff]
        %v3360 = vld [vmem:[#allocation2 + $0x758] sm:$0xff]
        %v3361 = vld [vmem:[#allocation2 + $0x760] sm:$0xff]
        %v3362 = vld [vmem:[#allocation2 + $0x768] sm:$0xff]
        %v3363 = vld [vmem:[#allocation2 + $0x770] sm:$0xff]
        %v3364 = vld [vmem:[#allocation2 + $0x778] sm:$0xff]
        %v3365 = vld [vmem:[#allocation2 + $0x780] sm:$0xff]
        %v3366 = vld [vmem:[#allocation2 + $0x788] sm:$0xff]
        %v3367 = vld [vmem:[#allocation2 + $0x790] sm:$0xff]
        %v3368 = vld [vmem:[#allocation2 + $0x798] sm:$0xff]
        %v3369 = vld [vmem:[#allocation2 + $0x7a0] sm:$0xff]
        %v3370 = vld [vmem:[#allocation2 + $0x7a8] sm:$0xff]
        %v3371 = vld [vmem:[#allocation2 + $0x7b0] sm:$0xff]
        %v3372 = vld [vmem:[#allocation2 + $0x7b8] sm:$0xff]
        %v3373 = vld [vmem:[#allocation2 + $0x7c0] sm:$0xff]
        %v3374 = vld [vmem:[#allocation2 + $0x7c8] sm:$0xff]
        %v3375 = vld [vmem:[#allocation2 + $0x7e0] sm:$0xff]
        %v3376 = vld [vmem:[#allocation2 + $0x7e8] sm:$0xff]
        %v3377 = vld [vmem:[#allocation2 + $0x7f0] sm:$0xff]
        %v3378 = vld [vmem:[#allocation2 + $0x7f8] sm:$0xff]
        %v3379 = vld [vmem:[#allocation2 + $0x800] sm:$0xff]
        %v3380 = vld [vmem:[#allocation2 + $0x808] sm:$0xff]
        %v3381 = vld [vmem:[#allocation2 + $0x810] sm:$0xff]
        %v3382 = vld [vmem:[#allocation2 + $0x818] sm:$0xff]
        %v3383 = vld [vmem:[#allocation2 + $0x820] sm:$0xff]
        %v3384 = vld [vmem:[#allocation2 + $0x828] sm:$0xff]
        %v3385 = vld [vmem:[#allocation2 + $0x830] sm:$0xff]
        %v3386 = vld [vmem:[#allocation2 + $0x838] sm:$0xff]
        %v3387 = vld [vmem:[#allocation2 + $0x840] sm:$0xff]
        %v3388 = vld [vmem:[#allocation2 + $0x848] sm:$0xff]
        %v3389 = vld [vmem:[#allocation2 + $0x850] sm:$0xff]
        %v3390 = vld [vmem:[#allocation2 + $0x858] sm:$0xff]
        %v3391 = vld [vmem:[#allocation2 + $0x870] sm:$0xff]
        %v3392 = vld [vmem:[#allocation2 + $0x878] sm:$0xff]
        %v3393 = vld [vmem:[#allocation2 + $0x880] sm:$0xff]
        %v3394 = vld [vmem:[#allocation2 + $0x888] sm:$0xff]
        %v3395 = vld [vmem:[#allocation2 + $0x890] sm:$0xff]
        %v3396 = vld [vmem:[#allocation2 + $0x898] sm:$0xff]
        %v3397 = vld [vmem:[#allocation2 + $0x8a0] sm:$0xff]
        %v3398 = vld [vmem:[#allocation2 + $0x8a8] sm:$0xff]
        %v3399 = vld [vmem:[#allocation2 + $0x8b0] sm:$0xff]
        %v3400 = vld [vmem:[#allocation2 + $0x8b8] sm:$0xff]
        %v3401 = vld [vmem:[#allocation2 + $0x8c0] sm:$0xff]
        %v3402 = vld [vmem:[#allocation2 + $0x8c8] sm:$0xff]
        %v3403 = vld [vmem:[#allocation2 + $0x8d0] sm:$0xff]
        %v3404 = vld [vmem:[#allocation2 + $0x8d8] sm:$0xff]
        %v3405 = vld [vmem:[#allocation2 + $0x8e0] sm:$0xff]
        %v3406 = vld [vmem:[#allocation2 + $0x8e8] sm:$0xff]
        %v3407 = vld [vmem:[#allocation2 + $0x8f0] sm:$0x1]
        %v3408 = vld [vmem:[#allocation2 + $0x8f8] sm:$0x1]
        %v3409 = vld [vmem:[#allocation2 + $0x900] sm:$0x1]
        %v3410 = vld [vmem:[#allocation2 + $0x908] sm:$0x1]
        %v3411 = vld [vmem:[#allocation2 + $0x910] sm:$0x1]
        %v3412 = vld [vmem:[#allocation2 + $0x918] sm:$0x1]
        %v3413 = vld [vmem:[#allocation2 + $0x920] sm:$0x1]
        %v3414 = vld [vmem:[#allocation2 + $0x928] sm:$0x1]
        %v3415 = vld [vmem:[#allocation2 + $0x930] sm:$0x1]
        %v3416 = vld [vmem:[#allocation2 + $0x938] sm:$0x1]
        %v3417 = vld [vmem:[#allocation2 + $0x940] sm:$0x1]
        %v3418 = vld [vmem:[#allocation2 + $0x948] sm:$0x1]
        %v3419 = vld [vmem:[#allocation2 + $0x950] sm:$0x1]
        %v3420 = vld [vmem:[#allocation2 + $0x958] sm:$0x1]
        %v3421 = vld [vmem:[#allocation2 + $0x960] sm:$0x1]
        %v3422 = vld [vmem:[#allocation2 + $0x968] sm:$0x1]
        %v3423 = vld [vmem:[#allocation2 + $0x980] sm:$0x1]
        %v3424 = vld [vmem:[#allocation2 + $0x988] sm:$0x1]
        %v3425 = vld [vmem:[#allocation2 + $0x990] sm:$0x1]
        %v3426 = vld [vmem:[#allocation2 + $0x998] sm:$0x1]
        %v3427 = vld [vmem:[#allocation2 + $0x9a0] sm:$0x1]
        %v3428 = vld [vmem:[#allocation2 + $0x9a8] sm:$0x1]
        %v3429 = vld [vmem:[#allocation2 + $0x9b0] sm:$0x1]
        %v3430 = vld [vmem:[#allocation2 + $0x9b8] sm:$0x1]
        %v3431 = vld [vmem:[#allocation2 + $0x9c0] sm:$0x1]
        %v3432 = vld [vmem:[#allocation2 + $0x9c8] sm:$0x1]
        %v3433 = vld [vmem:[#allocation2 + $0x9d0] sm:$0x1]
        %v3434 = vld [vmem:[#allocation2 + $0x9d8] sm:$0x1]
        %v3435 = vld [vmem:[#allocation2 + $0x9e0] sm:$0x1]
        %v3436 = vld [vmem:[#allocation2 + $0x9e8] sm:$0x1]
        %v3437 = vld [vmem:[#allocation2 + $0x9f0] sm:$0x1]
        %v3438 = vld [vmem:[#allocation2 + $0x9f8] sm:$0x1]
        %v3439 = vld [vmem:[#allocation2 + $0xa10] sm:$0x1]
        %v3440 = vld [vmem:[#allocation2 + $0xa18] sm:$0x1]
        %v3441 = vld [vmem:[#allocation2 + $0xa20] sm:$0x1]
        %v3442 = vld [vmem:[#allocation2 + $0xa28] sm:$0x1]
        %v3443 = vld [vmem:[#allocation2 + $0xa30] sm:$0x1]
        %v3444 = vld [vmem:[#allocation2 + $0xa38] sm:$0x1]
        %v3445 = vld [vmem:[#allocation2 + $0xa40] sm:$0x1]
        %v3446 = vld [vmem:[#allocation2 + $0xa48] sm:$0x1]
        %v3447 = vld [vmem:[#allocation2 + $0xa50] sm:$0x1]
        %v3448 = vld [vmem:[#allocation2 + $0xa58] sm:$0x1]
        %v3449 = vld [vmem:[#allocation2 + $0xa60] sm:$0x1]
        %v3450 = vld [vmem:[#allocation2 + $0xa68] sm:$0x1]
        %v3451 = vld [vmem:[#allocation2 + $0xa70] sm:$0x1]
        %v3452 = vld [vmem:[#allocation2 + $0xa78] sm:$0x1]
        %v3453 = vld [vmem:[#allocation2 + $0xa80] sm:$0x1]
        %v3454 = vld [vmem:[#allocation2 + $0xa88] sm:$0x1]
        %v3455 = vld [vmem:[#allocation2 + $0xaa0] sm:$0x1]
        %v3456 = vld [vmem:[#allocation2 + $0xaa8] sm:$0x1]
        %v3457 = vld [vmem:[#allocation2 + $0xab0] sm:$0x1]
        %v3458 = vld [vmem:[#allocation2 + $0xab8] sm:$0x1]
        %v3459 = vld [vmem:[#allocation2 + $0xac0] sm:$0x1]
        %v3460 = vld [vmem:[#allocation2 + $0xac8] sm:$0x1]
        %v3461 = vld [vmem:[#allocation2 + $0xad0] sm:$0x1]
        %v3462 = vld [vmem:[#allocation2 + $0xad8] sm:$0x1]
        %v3463 = vld [vmem:[#allocation2 + $0xae0] sm:$0x1]
        %v3464 = vld [vmem:[#allocation2 + $0xae8] sm:$0x1]
        %v3465 = vld [vmem:[#allocation2 + $0xaf0] sm:$0x1]
        %v3466 = vld [vmem:[#allocation2 + $0xaf8] sm:$0x1]
        %v3467 = vld [vmem:[#allocation2 + $0xb00] sm:$0x1]
        %v3468 = vld [vmem:[#allocation2 + $0xb08] sm:$0x1]
        %v3469 = vld [vmem:[#allocation2 + $0xb10] sm:$0x1]
        %v3470 = vld [vmem:[#allocation2 + $0xb18] sm:$0x1]
        %v3471 = vld [vmem:[#allocation2 + $0xb30] sm:$0x1]
        %v3472 = vld [vmem:[#allocation2 + $0xb38] sm:$0x1]
        %v3473 = vld [vmem:[#allocation2 + $0xb40] sm:$0x1]
        %v3474 = vld [vmem:[#allocation2 + $0xb48] sm:$0x1]
        %v3475 = vld [vmem:[#allocation2 + $0xb50] sm:$0x1]
        %v3476 = vld [vmem:[#allocation2 + $0xb58] sm:$0x1]
        %v3477 = vld [vmem:[#allocation2 + $0xb60] sm:$0x1]
        %v3478 = vld [vmem:[#allocation2 + $0xb68] sm:$0x1]
        %v3479 = vld [vmem:[#allocation2 + $0xb70] sm:$0x1]
        %v3480 = vld [vmem:[#allocation2 + $0xb78] sm:$0x1]
        %v3481 = vld [vmem:[#allocation2 + $0xb80] sm:$0x1]
        %v3482 = vld [vmem:[#allocation2 + $0xb88] sm:$0x1]
        %v3483 = vld [vmem:[#allocation2 + $0xb90] sm:$0x1]
        %v3484 = vld [vmem:[#allocation2 + $0xb98] sm:$0x1]
        %v3485 = vld [vmem:[#allocation2 + $0xba0] sm:$0x1]
        %v3486 = vld [vmem:[#allocation2 + $0xba8] sm:$0x1]
        %v3487 = vld [vmem:[#allocation2 + $0xbc0] sm:$0x1]
        %v3488 = vld [vmem:[#allocation2 + $0xbc8] sm:$0x1]
        %v3489 = vld [vmem:[#allocation2 + $0xbd0] sm:$0x1]
        %v3490 = vld [vmem:[#allocation2 + $0xbd8] sm:$0x1]
        %v3491 = vld [vmem:[#allocation2 + $0xbe0] sm:$0x1]
        %v3492 = vld [vmem:[#allocation2 + $0xbe8] sm:$0x1]
        %v3493 = vld [vmem:[#allocation2 + $0xbf0] sm:$0x1]
        %v3494 = vld [vmem:[#allocation2 + $0xbf8] sm:$0x1]
        %v3495 = vld [vmem:[#allocation2 + $0xc00] sm:$0x1]
        %v3496 = vld [vmem:[#allocation2 + $0xc08] sm:$0x1]
        %v3497 = vld [vmem:[#allocation2 + $0xc10] sm:$0x1]
        %v3498 = vld [vmem:[#allocation2 + $0xc18] sm:$0x1]
        %v3499 = vld [vmem:[#allocation2 + $0xc20] sm:$0x1]
        %v3500 = vld [vmem:[#allocation2 + $0xc28] sm:$0x1]
        %v3501 = vld [vmem:[#allocation2 + $0xc30] sm:$0x1]
        %v3502 = vld [vmem:[#allocation2 + $0xc38] sm:$0x1]
        %v3503 = vld [vmem:[#allocation2 + $0xc50] sm:$0x1]
        %v3504 = vld [vmem:[#allocation2 + $0xc58] sm:$0x1]
        %v3505 = vld [vmem:[#allocation2 + $0xc60] sm:$0x1]
        %v3506 = vld [vmem:[#allocation2 + $0xc68] sm:$0x1]
        %v3507 = vld [vmem:[#allocation2 + $0xc70] sm:$0x1]
        %v3508 = vld [vmem:[#allocation2 + $0xc78] sm:$0x1]
        %v3509 = vld [vmem:[#allocation2 + $0xc80] sm:$0x1]
        %v3510 = vld [vmem:[#allocation2 + $0xc88] sm:$0x1]
        %v3511 = vld [vmem:[#allocation2 + $0xc90] sm:$0x1]
        %v3512 = vld [vmem:[#allocation2 + $0xc98] sm:$0x1]
        %v3513 = vld [vmem:[#allocation2 + $0xca0] sm:$0x1]
        %v3514 = vld [vmem:[#allocation2 + $0xca8] sm:$0x1]
        %v3515 = vld [vmem:[#allocation2 + $0xcb0] sm:$0x1]
        %v3516 = vld [vmem:[#allocation2 + $0xcb8] sm:$0x1]
        %v3517 = vld [vmem:[#allocation2 + $0xcc0] sm:$0x1]
        %v3518 = vld [vmem:[#allocation2 + $0xcc8] sm:$0x1]
        %v3519 = vld [vmem:[#allocation2 + $0xce0] sm:$0x1]
        %v3520 = vld [vmem:[#allocation2 + $0xce8] sm:$0x1]
        %v3521 = vld [vmem:[#allocation2 + $0xcf0] sm:$0x1]
        %v3522 = vld [vmem:[#allocation2 + $0xcf8] sm:$0x1]
        %v3523 = vld [vmem:[#allocation2 + $0xd00] sm:$0x1]
        %v3524 = vld [vmem:[#allocation2 + $0xd08] sm:$0x1]
        %v3525 = vld [vmem:[#allocation2 + $0xd10] sm:$0x1]
        %v3526 = vld [vmem:[#allocation2 + $0xd18] sm:$0x1]
        %v3527 = vld [vmem:[#allocation2 + $0xd20] sm:$0x1]
        %v3528 = vld [vmem:[#allocation2 + $0xd28] sm:$0x1]
        %v3529 = vld [vmem:[#allocation2 + $0xd30] sm:$0x1]
        %v3530 = vld [vmem:[#allocation2 + $0xd38] sm:$0x1]
        %v3531 = vld [vmem:[#allocation2 + $0xd40] sm:$0x1]
        %v3532 = vld [vmem:[#allocation2 + $0xd48] sm:$0x1]
        %v3533 = vld [vmem:[#allocation2 + $0xd50] sm:$0x1]
        %v3534 = vld [vmem:[#allocation2 + $0xd58] sm:$0x1]
        %v3535 = vld [vmem:[#allocation2 + $0xd70] sm:$0x1]
        %v3536 = vld [vmem:[#allocation2 + $0xd78] sm:$0x1]
        %v3537 = vld [vmem:[#allocation2 + $0xd80] sm:$0x1]
        %v3538 = vld [vmem:[#allocation2 + $0xd88] sm:$0x1]
        %v3539 = vld [vmem:[#allocation2 + $0xd90] sm:$0x1]
        %v3540 = vld [vmem:[#allocation2 + $0xd98] sm:$0x1]
        %v3541 = vld [vmem:[#allocation2 + $0xda0] sm:$0x1]
        %v3542 = vld [vmem:[#allocation2 + $0xda8] sm:$0x1]
        %v3543 = vld [vmem:[#allocation2 + $0xdb0] sm:$0x1]
        %v3544 = vld [vmem:[#allocation2 + $0xdb8] sm:$0x1]
        %v3545 = vld [vmem:[#allocation2 + $0xdc0] sm:$0x1]
        %v3546 = vld [vmem:[#allocation2 + $0xdc8] sm:$0x1]
        %v3547 = vld [vmem:[#allocation2 + $0xdd0] sm:$0x1]
        %v3548 = vld [vmem:[#allocation2 + $0xdd8] sm:$0x1]
        %v3549 = vld [vmem:[#allocation2 + $0xde0] sm:$0x1]
        %v3550 = vld [vmem:[#allocation2 + $0xde8] sm:$0x1]
        %v3551 = vld [vmem:[#allocation2 + $0xe00] sm:$0x1]
        %v3552 = vld [vmem:[#allocation2 + $0xe08] sm:$0x1]
        %v3553 = vld [vmem:[#allocation2 + $0xe10] sm:$0x1]
        %v3554 = vld [vmem:[#allocation2 + $0xe18] sm:$0x1]
        %v3555 = vld [vmem:[#allocation2 + $0xe20] sm:$0x1]
        %v3556 = vld [vmem:[#allocation2 + $0xe28] sm:$0x1]
        %v3557 = vld [vmem:[#allocation2 + $0xe30] sm:$0x1]
        %v3558 = vld [vmem:[#allocation2 + $0xe38] sm:$0x1]
        %v3559 = vld [vmem:[#allocation2 + $0xe40] sm:$0x1]
        %v3560 = vld [vmem:[#allocation2 + $0xe48] sm:$0x1]
        %v3561 = vld [vmem:[#allocation2 + $0xe50] sm:$0x1]
        %v3562 = vld [vmem:[#allocation2 + $0xe58] sm:$0x1]
        %v3563 = vld [vmem:[#allocation2 + $0xe60] sm:$0x1]
        %v3564 = vld [vmem:[#allocation2 + $0xe68] sm:$0x1]
        %v3565 = vld [vmem:[#allocation2 + $0xe70] sm:$0x1]
        %v3566 = vld [vmem:[#allocation2 + $0xe78] sm:$0x1]
        %v3567 = vld [vmem:[#allocation2 + $0xe90] sm:$0x1]
        %v3568 = vld [vmem:[#allocation2 + $0xe98] sm:$0x1]
        %v3569 = vld [vmem:[#allocation2 + $0xea0] sm:$0x1]
        %v3570 = vld [vmem:[#allocation2 + $0xea8] sm:$0x1]
        %v3571 = vld [vmem:[#allocation2 + $0xeb0] sm:$0x1]
        %v3572 = vld [vmem:[#allocation2 + $0xeb8] sm:$0x1]
        %v3573 = vld [vmem:[#allocation2 + $0xec0] sm:$0x1]
        %v3574 = vld [vmem:[#allocation2 + $0xec8] sm:$0x1]
        %v3575 = vld [vmem:[#allocation2 + $0xed0] sm:$0x1]
        %v3576 = vld [vmem:[#allocation2 + $0xed8] sm:$0x1]
        %v3577 = vld [vmem:[#allocation2 + $0xee0] sm:$0x1]
        %v3578 = vld [vmem:[#allocation2 + $0xee8] sm:$0x1]
        %v3579 = vld [vmem:[#allocation2 + $0xef0] sm:$0x1]
        %v3580 = vld [vmem:[#allocation2 + $0xef8] sm:$0x1]
        %v3581 = vld [vmem:[#allocation2 + $0xf00] sm:$0x1]
        %v3582 = vld [vmem:[#allocation2 + $0xf08] sm:$0x1]
        %v3583 = vld [vmem:[#allocation2 + $0xf20] sm:$0x1]
        %v3584 = vld [vmem:[#allocation2 + $0xf28] sm:$0x1]
        %v3585 = vld [vmem:[#allocation2 + $0xf30] sm:$0x1]
        %v3586 = vld [vmem:[#allocation2 + $0xf38] sm:$0x1]
        %v3587 = vld [vmem:[#allocation2 + $0xf40] sm:$0x1]
        %v3588 = vld [vmem:[#allocation2 + $0xf48] sm:$0x1]
        %v3589 = vld [vmem:[#allocation2 + $0xf50] sm:$0x1]
        %v3590 = vld [vmem:[#allocation2 + $0xf58] sm:$0x1]
        %v3591 = vld [vmem:[#allocation2 + $0xf60] sm:$0x1]
        %v3592 = vld [vmem:[#allocation2 + $0xf68] sm:$0x1]
        %v3593 = vld [vmem:[#allocation2 + $0xf70] sm:$0x1]
        %v3594 = vld [vmem:[#allocation2 + $0xf78] sm:$0x1]
        %v3595 = vld [vmem:[#allocation2 + $0xf80] sm:$0x1]
        %v3596 = vld [vmem:[#allocation2 + $0xf88] sm:$0x1]
        %v3597 = vld [vmem:[#allocation2 + $0xf90] sm:$0x1]
        %v3598 = vld [vmem:[#allocation2 + $0xf98] sm:$0x1]
        %v3599 = vld [vmem:[#allocation2 + $0xfb0] sm:$0x1]
        %v3600 = vld [vmem:[#allocation2 + $0xfb8] sm:$0x1]
        %v3601 = vld [vmem:[#allocation2 + $0xfc0] sm:$0x1]
        %v3602 = vld [vmem:[#allocation2 + $0xfc8] sm:$0x1]
        %v3603 = vld [vmem:[#allocation2 + $0xfd0] sm:$0x1]
        %v3604 = vld [vmem:[#allocation2 + $0xfd8] sm:$0x1]
        %v3605 = vld [vmem:[#allocation2 + $0xfe0] sm:$0x1]
        %v3606 = vld [vmem:[#allocation2 + $0xfe8] sm:$0x1]
        %v3607 = vld [vmem:[#allocation2 + $0xff0] sm:$0x1]
        %v3608 = vld [vmem:[#allocation2 + $0xff8] sm:$0x1]
        %v3609 = vld [vmem:[#allocation2 + $0x1000] sm:$0x1]
        %v3610 = vld [vmem:[#allocation2 + $0x1008] sm:$0x1]
        %v3611 = vld [vmem:[#allocation2 + $0x1010] sm:$0x1]
        %v3612 = vld [vmem:[#allocation2 + $0x1018] sm:$0x1]
        %v3613 = vld [vmem:[#allocation2 + $0x1020] sm:$0x1]
        %v3614 = vld [vmem:[#allocation2 + $0x1028] sm:$0x1]
        %v3615 = vld [vmem:[#allocation2 + $0x1040] sm:$0x1]
        %v3616 = vld [vmem:[#allocation2 + $0x1048] sm:$0x1]
        %v3617 = vld [vmem:[#allocation2 + $0x1050] sm:$0x1]
        %v3618 = vld [vmem:[#allocation2 + $0x1058] sm:$0x1]
        %v3619 = vld [vmem:[#allocation2 + $0x1060] sm:$0x1]
        %v3620 = vld [vmem:[#allocation2 + $0x1068] sm:$0x1]
        %v3621 = vld [vmem:[#allocation2 + $0x1070] sm:$0x1]
        %v3622 = vld [vmem:[#allocation2 + $0x1078] sm:$0x1]
        %v3623 = vld [vmem:[#allocation2 + $0x1080] sm:$0x1]
        %v3624 = vld [vmem:[#allocation2 + $0x1088] sm:$0x1]
        %v3625 = vld [vmem:[#allocation2 + $0x1090] sm:$0x1]
        %v3626 = vld [vmem:[#allocation2 + $0x1098] sm:$0x1]
        %v3627 = vld [vmem:[#allocation2 + $0x10a0] sm:$0x1]
        %v3628 = vld [vmem:[#allocation2 + $0x10a8] sm:$0x1]
        %v3629 = vld [vmem:[#allocation2 + $0x10b0] sm:$0x1]
        %v3630 = vld [vmem:[#allocation2 + $0x10b8] sm:$0x1]
        %v3631 = vld [vmem:[#allocation2 + $0x10d0] sm:$0x1]
        %v3632 = vld [vmem:[#allocation2 + $0x10d8] sm:$0x1]
        %v3633 = vld [vmem:[#allocation2 + $0x10e0] sm:$0x1]
        %v3634 = vld [vmem:[#allocation2 + $0x10e8] sm:$0x1]
        %v3635 = vld [vmem:[#allocation2 + $0x10f0] sm:$0x1]
        %v3636 = vld [vmem:[#allocation2 + $0x10f8] sm:$0x1]
        %v3637 = vld [vmem:[#allocation2 + $0x1100] sm:$0x1]
        %v3638 = vld [vmem:[#allocation2 + $0x1108] sm:$0x1]
        %v3639 = vld [vmem:[#allocation2 + $0x1110] sm:$0x1]
        %v3640 = vld [vmem:[#allocation2 + $0x1118] sm:$0x1]
        %v3641 = vld [vmem:[#allocation2 + $0x1120] sm:$0x1]
        %v3642 = vld [vmem:[#allocation2 + $0x1128] sm:$0x1]
        %v3643 = vld [vmem:[#allocation2 + $0x1130] sm:$0x1]
        %v3644 = vld [vmem:[#allocation2 + $0x1138] sm:$0x1]
        %v3645 = vld [vmem:[#allocation2 + $0x1140] sm:$0x1]
        %v3646 = vld [vmem:[#allocation2 + $0x1148] sm:$0x1]
        %v3647 = vld [vmem:[#allocation2 + $0x1160] sm:$0x1]
        %v3648 = vld [vmem:[#allocation2 + $0x1168] sm:$0x1]
        %v3649 = vld [vmem:[#allocation2 + $0x1170] sm:$0x1]
        %v3650 = vld [vmem:[#allocation2 + $0x1178] sm:$0x1]
        %v3651 = vld [vmem:[#allocation2 + $0x1180] sm:$0x1]
        %v3652 = vld [vmem:[#allocation2 + $0x1188] sm:$0x1]
        %v3653 = vld [vmem:[#allocation2 + $0x1190] sm:$0x1]
        %v3654 = vld [vmem:[#allocation2 + $0x1198] sm:$0x1]
        %v3655 = vld [vmem:[#allocation2 + $0x11a0] sm:$0x1]
        %v3656 = vld [vmem:[#allocation2 + $0x11a8] sm:$0x1]
        %v3657 = vld [vmem:[#allocation2 + $0x11b0] sm:$0x1]
        %v3658 = vld [vmem:[#allocation2 + $0x11b8] sm:$0x1]
        %v3659 = vld [vmem:[#allocation2 + $0x11c0] sm:$0x1]
        %v3660 = vld [vmem:[#allocation2 + $0x11c8] sm:$0x1]
        %v3661 = vld [vmem:[#allocation2 + $0x11d0] sm:$0x1]
        %v3662 = vld [vmem:[#allocation2 + $0x11d8] sm:$0x1]
        %v3663 = vld [vmem:[%s2] sm:$0xff]
        %3665 = vset.pattern.permute.xlu0 0
        %3666 = vperm.xlu0 %3665, %v3663
        %v3667 = vpop.permute.xlu0 %3666
        %vm3669 = vcmask 72704
        %v3671 = vsel %vm3669, %v3150, 0
        %v3674 = vsel %vm720, %v3407, 0
        %v3677 = vsel %vm720, %v3408, 0
        %v3680 = vsel %vm720, %v3409, 0
        %v3683 = vsel %vm720, %v3410, 0
        %v3686 = vsel %vm720, %v3411, 0
        %v3689 = vsel %vm720, %v3412, 0
        %v3692 = vsel %vm720, %v3413, 0
        %v3695 = vsel %vm720, %v3414, 0
        %v3698 = vsel %vm720, %v3415, 0
        %v3701 = vsel %vm720, %v3416, 0
        %v3704 = vsel %vm720, %v3417, 0
        %v3707 = vsel %vm720, %v3418, 0
        %v3710 = vsel %vm720, %v3419, 0
        %v3713 = vsel %vm720, %v3420, 0
        %v3716 = vsel %vm720, %v3421, 0
        %v3719 = vsel %vm720, %v3422, 0
        %v3722 = vsel %vm720, %v3423, 0
        %v3725 = vsel %vm720, %v3424, 0
        %v3728 = vsel %vm720, %v3425, 0
        %v3731 = vsel %vm720, %v3426, 0
        %v3734 = vsel %vm720, %v3427, 0
        %v3737 = vsel %vm720, %v3428, 0
        %v3740 = vsel %vm720, %v3429, 0
        %v3743 = vsel %vm720, %v3430, 0
        %v3746 = vsel %vm720, %v3431, 0
        %v3749 = vsel %vm720, %v3432, 0
        %v3752 = vsel %vm720, %v3433, 0
        %v3755 = vsel %vm720, %v3434, 0
        %v3758 = vsel %vm720, %v3435, 0
        %v3761 = vsel %vm720, %v3436, 0
        %v3764 = vsel %vm720, %v3437, 0
        %v3767 = vsel %vm720, %v3438, 0
        %v3770 = vsel %vm720, %v3439, 0
        %v3773 = vsel %vm720, %v3440, 0
        %v3776 = vsel %vm720, %v3441, 0
        %v3779 = vsel %vm720, %v3442, 0
        %v3782 = vsel %vm720, %v3443, 0
        %v3785 = vsel %vm720, %v3444, 0
        %v3788 = vsel %vm720, %v3445, 0
        %v3791 = vsel %vm720, %v3446, 0
        %v3794 = vsel %vm720, %v3447, 0
        %v3797 = vsel %vm720, %v3448, 0
        %v3800 = vsel %vm720, %v3449, 0
        %v3803 = vsel %vm720, %v3450, 0
        %v3806 = vsel %vm720, %v3451, 0
        %v3809 = vsel %vm720, %v3452, 0
        %v3812 = vsel %vm720, %v3453, 0
        %v3815 = vsel %vm720, %v3454, 0
        %v3818 = vsel %vm720, %v3455, 0
        %v3821 = vsel %vm720, %v3456, 0
        %v3824 = vsel %vm720, %v3457, 0
        %v3827 = vsel %vm720, %v3458, 0
        %v3830 = vsel %vm720, %v3459, 0
        %v3833 = vsel %vm720, %v3460, 0
        %v3836 = vsel %vm720, %v3461, 0
        %v3839 = vsel %vm720, %v3462, 0
        %v3842 = vsel %vm720, %v3463, 0
        %v3845 = vsel %vm720, %v3464, 0
        %v3848 = vsel %vm720, %v3465, 0
        %v3851 = vsel %vm720, %v3466, 0
        %v3854 = vsel %vm720, %v3467, 0
        %v3857 = vsel %vm720, %v3468, 0
        %v3860 = vsel %vm720, %v3469, 0
        %v3863 = vsel %vm720, %v3470, 0
        %v3866 = vsel %vm720, %v3471, 0
        %v3869 = vsel %vm720, %v3472, 0
        %v3872 = vsel %vm720, %v3473, 0
        %v3875 = vsel %vm720, %v3474, 0
        %v3878 = vsel %vm720, %v3475, 0
        %v3881 = vsel %vm720, %v3476, 0
        %v3884 = vsel %vm720, %v3477, 0
        %v3887 = vsel %vm720, %v3478, 0
        %v3890 = vsel %vm720, %v3479, 0
        %v3893 = vsel %vm720, %v3480, 0
        %v3896 = vsel %vm720, %v3481, 0
        %v3899 = vsel %vm720, %v3482, 0
        %v3902 = vsel %vm720, %v3483, 0
        %v3905 = vsel %vm720, %v3484, 0
        %v3908 = vsel %vm720, %v3485, 0
        %v3911 = vsel %vm720, %v3486, 0
        %v3914 = vsel %vm720, %v3487, 0
        %v3917 = vsel %vm720, %v3488, 0
        %v3920 = vsel %vm720, %v3489, 0
        %v3923 = vsel %vm720, %v3490, 0
        %v3926 = vsel %vm720, %v3491, 0
        %v3929 = vsel %vm720, %v3492, 0
        %v3932 = vsel %vm720, %v3493, 0
        %v3935 = vsel %vm720, %v3494, 0
        %v3938 = vsel %vm720, %v3495, 0
        %v3941 = vsel %vm720, %v3496, 0
        %v3944 = vsel %vm720, %v3497, 0
        %v3947 = vsel %vm720, %v3498, 0
        %v3950 = vsel %vm720, %v3499, 0
        %v3953 = vsel %vm720, %v3500, 0
        %v3956 = vsel %vm720, %v3501, 0
        %v3959 = vsel %vm720, %v3502, 0
        %v3962 = vsel %vm720, %v3503, 0
        %v3965 = vsel %vm720, %v3504, 0
        %v3968 = vsel %vm720, %v3505, 0
        %v3971 = vsel %vm720, %v3506, 0
        %v3974 = vsel %vm720, %v3507, 0
        %v3977 = vsel %vm720, %v3508, 0
        %v3980 = vsel %vm720, %v3509, 0
        %v3983 = vsel %vm720, %v3510, 0
        %v3986 = vsel %vm720, %v3511, 0
        %v3989 = vsel %vm720, %v3512, 0
        %v3992 = vsel %vm720, %v3513, 0
        %v3995 = vsel %vm720, %v3514, 0
        %v3998 = vsel %vm720, %v3515, 0
        %v4001 = vsel %vm720, %v3516, 0
        %v4004 = vsel %vm720, %v3517, 0
        %v4007 = vsel %vm720, %v3518, 0
        %v4010 = vsel %vm720, %v3519, 0
        %v4013 = vsel %vm720, %v3520, 0
        %v4016 = vsel %vm720, %v3521, 0
        %v4019 = vsel %vm720, %v3522, 0
        %v4022 = vsel %vm720, %v3523, 0
        %v4025 = vsel %vm720, %v3524, 0
        %v4028 = vsel %vm720, %v3525, 0
        %v4031 = vsel %vm720, %v3526, 0
        %v4034 = vsel %vm720, %v3527, 0
        %v4037 = vsel %vm720, %v3528, 0
        %v4040 = vsel %vm720, %v3529, 0
        %v4043 = vsel %vm720, %v3530, 0
        %v4046 = vsel %vm720, %v3531, 0
        %v4049 = vsel %vm720, %v3532, 0
        %v4052 = vsel %vm720, %v3533, 0
        %v4055 = vsel %vm720, %v3534, 0
        %v4058 = vsel %vm720, %v3535, 0
        %v4061 = vsel %vm720, %v3536, 0
        %v4064 = vsel %vm720, %v3537, 0
        %v4067 = vsel %vm720, %v3538, 0
        %v4070 = vsel %vm720, %v3539, 0
        %v4073 = vsel %vm720, %v3540, 0
        %v4076 = vsel %vm720, %v3541, 0
        %v4079 = vsel %vm720, %v3542, 0
        %v4082 = vsel %vm720, %v3543, 0
        %v4085 = vsel %vm720, %v3544, 0
        %v4088 = vsel %vm720, %v3545, 0
        %v4091 = vsel %vm720, %v3546, 0
        %v4094 = vsel %vm720, %v3547, 0
        %v4097 = vsel %vm720, %v3548, 0
        %v4100 = vsel %vm720, %v3549, 0
        %v4103 = vsel %vm720, %v3550, 0
        %v4106 = vsel %vm720, %v3551, 0
        %v4109 = vsel %vm720, %v3552, 0
        %v4112 = vsel %vm720, %v3553, 0
        %v4115 = vsel %vm720, %v3554, 0
        %v4118 = vsel %vm720, %v3555, 0
        %v4121 = vsel %vm720, %v3556, 0
        %v4124 = vsel %vm720, %v3557, 0
        %v4127 = vsel %vm720, %v3558, 0
        %v4130 = vsel %vm720, %v3559, 0
        %v4133 = vsel %vm720, %v3560, 0
        %v4136 = vsel %vm720, %v3561, 0
        %v4139 = vsel %vm720, %v3562, 0
        %v4142 = vsel %vm720, %v3563, 0
        %v4145 = vsel %vm720, %v3564, 0
        %v4148 = vsel %vm720, %v3565, 0
        %v4151 = vsel %vm720, %v3566, 0
        %v4154 = vsel %vm720, %v3567, 0
        %v4157 = vsel %vm720, %v3568, 0
        %v4160 = vsel %vm720, %v3569, 0
        %v4163 = vsel %vm720, %v3570, 0
        %v4166 = vsel %vm720, %v3571, 0
        %v4169 = vsel %vm720, %v3572, 0
        %v4172 = vsel %vm720, %v3573, 0
        %v4175 = vsel %vm720, %v3574, 0
        %v4178 = vsel %vm720, %v3575, 0
        %v4181 = vsel %vm720, %v3576, 0
        %v4184 = vsel %vm720, %v3577, 0
        %v4187 = vsel %vm720, %v3578, 0
        %v4190 = vsel %vm720, %v3579, 0
        %v4193 = vsel %vm720, %v3580, 0
        %v4196 = vsel %vm720, %v3581, 0
        %v4199 = vsel %vm720, %v3582, 0
        %v4202 = vsel %vm720, %v3583, 0
        %v4205 = vsel %vm720, %v3584, 0
        %v4208 = vsel %vm720, %v3585, 0
        %v4211 = vsel %vm720, %v3586, 0
        %v4214 = vsel %vm720, %v3587, 0
        %v4217 = vsel %vm720, %v3588, 0
        %v4220 = vsel %vm720, %v3589, 0
        %v4223 = vsel %vm720, %v3590, 0
        %v4226 = vsel %vm720, %v3591, 0
        %v4229 = vsel %vm720, %v3592, 0
        %v4232 = vsel %vm720, %v3593, 0
        %v4235 = vsel %vm720, %v3594, 0
        %v4238 = vsel %vm720, %v3595, 0
        %v4241 = vsel %vm720, %v3596, 0
        %v4244 = vsel %vm720, %v3597, 0
        %v4247 = vsel %vm720, %v3598, 0
        %v4250 = vsel %vm720, %v3599, 0
        %v4253 = vsel %vm720, %v3600, 0
        %v4256 = vsel %vm720, %v3601, 0
        %v4259 = vsel %vm720, %v3602, 0
        %v4262 = vsel %vm720, %v3603, 0
        %v4265 = vsel %vm720, %v3604, 0
        %v4268 = vsel %vm720, %v3605, 0
        %v4271 = vsel %vm720, %v3606, 0
        %v4274 = vsel %vm720, %v3607, 0
        %v4277 = vsel %vm720, %v3608, 0
        %v4280 = vsel %vm720, %v3609, 0
        %v4283 = vsel %vm720, %v3610, 0
        %v4286 = vsel %vm720, %v3611, 0
        %v4289 = vsel %vm720, %v3612, 0
        %v4292 = vsel %vm720, %v3613, 0
        %v4295 = vsel %vm720, %v3614, 0
        %v4298 = vsel %vm720, %v3615, 0
        %v4301 = vsel %vm720, %v3616, 0
        %v4304 = vsel %vm720, %v3617, 0
        %v4307 = vsel %vm720, %v3618, 0
        %v4310 = vsel %vm720, %v3619, 0
        %v4313 = vsel %vm720, %v3620, 0
        %v4316 = vsel %vm720, %v3621, 0
        %v4319 = vsel %vm720, %v3622, 0
        %v4322 = vsel %vm720, %v3623, 0
        %v4325 = vsel %vm720, %v3624, 0
        %v4328 = vsel %vm720, %v3625, 0
        %v4331 = vsel %vm720, %v3626, 0
        %v4334 = vsel %vm720, %v3627, 0
        %v4337 = vsel %vm720, %v3628, 0
        %v4340 = vsel %vm720, %v3629, 0
        %v4343 = vsel %vm720, %v3630, 0
        %v4346 = vsel %vm720, %v3631, 0
        %v4349 = vsel %vm720, %v3632, 0
        %v4352 = vsel %vm720, %v3633, 0
        %v4355 = vsel %vm720, %v3634, 0
        %v4358 = vsel %vm720, %v3635, 0
        %v4361 = vsel %vm720, %v3636, 0
        %v4364 = vsel %vm720, %v3637, 0
        %v4367 = vsel %vm720, %v3638, 0
        %v4370 = vsel %vm720, %v3639, 0
        %v4373 = vsel %vm720, %v3640, 0
        %v4376 = vsel %vm720, %v3641, 0
        %v4379 = vsel %vm720, %v3642, 0
        %v4382 = vsel %vm720, %v3643, 0
        %v4385 = vsel %vm720, %v3644, 0
        %v4388 = vsel %vm720, %v3645, 0
        %v4391 = vsel %vm720, %v3646, 0
        %v4394 = vsel %vm720, %v3647, 0
        %v4397 = vsel %vm720, %v3648, 0
        %v4400 = vsel %vm720, %v3649, 0
        %v4403 = vsel %vm720, %v3650, 0
        %v4406 = vsel %vm720, %v3651, 0
        %v4409 = vsel %vm720, %v3652, 0
        %v4412 = vsel %vm720, %v3653, 0
        %v4415 = vsel %vm720, %v3654, 0
        %v4418 = vsel %vm720, %v3655, 0
        %v4421 = vsel %vm720, %v3656, 0
        %v4424 = vsel %vm720, %v3657, 0
        %v4427 = vsel %vm720, %v3658, 0
        %v4430 = vsel %vm720, %v3659, 0
        %v4433 = vsel %vm720, %v3660, 0
        %v4436 = vsel %vm720, %v3661, 0
        %v4439 = vsel %vm720, %v3662, 0
        %4441 = vmatpush.msra.mxu0 0.0
        %4442 = vmatpush.msra.mxu0 0.0
        %4443 = vmatpush.msra.mxu0 0.0
        %4444 = vmatpush.msra.mxu0 0.0
        %4445 = vmatpush.msra.mxu0 0.0
        %4446 = vmatpush.msra.mxu0 0.0
        %4447 = vmatpush.msra.mxu0 0.0
        %4448 = vmatpush.msra.mxu0 0.0
        %4449 = vmatpush.msra.mxu0 0.0
        %4450 = vmatpush.msra.mxu0 0.0
        %4451 = vmatpush.msra.mxu0 0.0
        %4452 = vmatpush.msra.mxu0 0.0
        %4453 = vmatpush.msra.mxu0 0.0
        %4454 = vmatpush.msra.mxu0 0.0
        %4455 = vmatpush.msra.mxu0 %v3674
        %4456 = vmatpush.msra.mxu0 %v3151
        %4457 = vmatmul.f32.gmra.mxu0 %v3671
        %v4458 = vpop.f32.mrf.mxu0
        %v4459 = vadd.f32 %v3667, %v4458
        %4460 = vdwg.mxu0
        %4461 = vmatpush.msra.mxu0 0.0
        %4462 = vmatpush.msra.mxu0 0.0
        %4463 = vmatpush.msra.mxu0 0.0
        %4464 = vmatpush.msra.mxu0 0.0
        %4465 = vmatpush.msra.mxu0 0.0
        %4466 = vmatpush.msra.mxu0 0.0
        %4467 = vmatpush.msra.mxu0 0.0
        %4468 = vmatpush.msra.mxu0 0.0
        %4469 = vmatpush.msra.mxu0 0.0
        %4470 = vmatpush.msra.mxu0 0.0
        %4471 = vmatpush.msra.mxu0 0.0
        %4472 = vmatpush.msra.mxu0 0.0
        %4473 = vmatpush.msra.mxu0 0.0
        %4474 = vmatpush.msra.mxu0 0.0
        %4475 = vmatpush.msra.mxu0 %v3677
        %4476 = vmatpush.msra.mxu0 %v3152
        %4477 = vmatmul.f32.gmra.mxu0 %v3671
        %v4478 = vpop.f32.mrf.mxu0
        %v4479 = vadd.f32 %v3667, %v4478
        %4480 = vdwg.mxu0
        %4481 = vmatpush.msra.mxu0 0.0
        %4482 = vmatpush.msra.mxu0 0.0
        %4483 = vmatpush.msra.mxu0 0.0
        %4484 = vmatpush.msra.mxu0 0.0
        %4485 = vmatpush.msra.mxu0 0.0
        %4486 = vmatpush.msra.mxu0 0.0
        %4487 = vmatpush.msra.mxu0 0.0
        %4488 = vmatpush.msra.mxu0 0.0
        %4489 = vmatpush.msra.mxu0 0.0
        %4490 = vmatpush.msra.mxu0 0.0
        %4491 = vmatpush.msra.mxu0 0.0
        %4492 = vmatpush.msra.mxu0 0.0
        %4493 = vmatpush.msra.mxu0 0.0
        %4494 = vmatpush.msra.mxu0 0.0
        %4495 = vmatpush.msra.mxu0 %v3680
        %4496 = vmatpush.msra.mxu0 %v3153
        %4497 = vmatmul.f32.gmra.mxu0 %v3671
        %v4498 = vpop.f32.mrf.mxu0
        %v4499 = vadd.f32 %v3667, %v4498
        %4500 = vdwg.mxu0
        %4501 = vmatpush.msra.mxu0 0.0
        %4502 = vmatpush.msra.mxu0 0.0
        %4503 = vmatpush.msra.mxu0 0.0
        %4504 = vmatpush.msra.mxu0 0.0
        %4505 = vmatpush.msra.mxu0 0.0
        %4506 = vmatpush.msra.mxu0 0.0
        %4507 = vmatpush.msra.mxu0 0.0
        %4508 = vmatpush.msra.mxu0 0.0
        %4509 = vmatpush.msra.mxu0 0.0
        %4510 = vmatpush.msra.mxu0 0.0
        %4511 = vmatpush.msra.mxu0 0.0
        %4512 = vmatpush.msra.mxu0 0.0
        %4513 = vmatpush.msra.mxu0 0.0
        %4514 = vmatpush.msra.mxu0 0.0
        %4515 = vmatpush.msra.mxu0 %v3683
        %4516 = vmatpush.msra.mxu0 %v3154
        %4517 = vmatmul.f32.gmra.mxu0 %v3671
        %v4518 = vpop.f32.mrf.mxu0
        %v4519 = vadd.f32 %v3667, %v4518
        %4520 = vdwg.mxu0
        %4521 = vmatpush.msra.mxu0 0.0
        %4522 = vmatpush.msra.mxu0 0.0
        %4523 = vmatpush.msra.mxu0 0.0
        %4524 = vmatpush.msra.mxu0 0.0
        %4525 = vmatpush.msra.mxu0 0.0
        %4526 = vmatpush.msra.mxu0 0.0
        %4527 = vmatpush.msra.mxu0 0.0
        %4528 = vmatpush.msra.mxu0 0.0
        %4529 = vmatpush.msra.mxu0 0.0
        %4530 = vmatpush.msra.mxu0 0.0
        %4531 = vmatpush.msra.mxu0 0.0
        %4532 = vmatpush.msra.mxu0 0.0
        %4533 = vmatpush.msra.mxu0 0.0
        %4534 = vmatpush.msra.mxu0 0.0
        %4535 = vmatpush.msra.mxu0 %v3686
        %4536 = vmatpush.msra.mxu0 %v3155
        %4537 = vmatmul.f32.gmra.mxu0 %v3671
        %v4538 = vpop.f32.mrf.mxu0
        %v4539 = vadd.f32 %v3667, %v4538
        %4540 = vdwg.mxu0
        %4541 = vmatpush.msra.mxu0 0.0
        %4542 = vmatpush.msra.mxu0 0.0
        %4543 = vmatpush.msra.mxu0 0.0
        %4544 = vmatpush.msra.mxu0 0.0
        %4545 = vmatpush.msra.mxu0 0.0
        %4546 = vmatpush.msra.mxu0 0.0
        %4547 = vmatpush.msra.mxu0 0.0
        %4548 = vmatpush.msra.mxu0 0.0
        %4549 = vmatpush.msra.mxu0 0.0
        %4550 = vmatpush.msra.mxu0 0.0
        %4551 = vmatpush.msra.mxu0 0.0
        %4552 = vmatpush.msra.mxu0 0.0
        %4553 = vmatpush.msra.mxu0 0.0
        %4554 = vmatpush.msra.mxu0 0.0
        %4555 = vmatpush.msra.mxu0 %v3689
        %4556 = vmatpush.msra.mxu0 %v3156
        %4557 = vmatmul.f32.gmra.mxu0 %v3671
        %v4558 = vpop.f32.mrf.mxu0
        %v4559 = vadd.f32 %v3667, %v4558
        %4560 = vdwg.mxu0
        %4561 = vmatpush.msra.mxu0 0.0
        %4562 = vmatpush.msra.mxu0 0.0
        %4563 = vmatpush.msra.mxu0 0.0
        %4564 = vmatpush.msra.mxu0 0.0
        %4565 = vmatpush.msra.mxu0 0.0
        %4566 = vmatpush.msra.mxu0 0.0
        %4567 = vmatpush.msra.mxu0 0.0
        %4568 = vmatpush.msra.mxu0 0.0
        %4569 = vmatpush.msra.mxu0 0.0
        %4570 = vmatpush.msra.mxu0 0.0
        %4571 = vmatpush.msra.mxu0 0.0
        %4572 = vmatpush.msra.mxu0 0.0
        %4573 = vmatpush.msra.mxu0 0.0
        %4574 = vmatpush.msra.mxu0 0.0
        %4575 = vmatpush.msra.mxu0 %v3692
        %4576 = vmatpush.msra.mxu0 %v3157
        %4577 = vmatmul.f32.gmra.mxu0 %v3671
        %v4578 = vpop.f32.mrf.mxu0
        %v4579 = vadd.f32 %v3667, %v4578
        %4580 = vdwg.mxu0
        %4581 = vmatpush.msra.mxu0 0.0
        %4582 = vmatpush.msra.mxu0 0.0
        %4583 = vmatpush.msra.mxu0 0.0
        %4584 = vmatpush.msra.mxu0 0.0
        %4585 = vmatpush.msra.mxu0 0.0
        %4586 = vmatpush.msra.mxu0 0.0
        %4587 = vmatpush.msra.mxu0 0.0
        %4588 = vmatpush.msra.mxu0 0.0
        %4589 = vmatpush.msra.mxu0 0.0
        %4590 = vmatpush.msra.mxu0 0.0
        %4591 = vmatpush.msra.mxu0 0.0
        %4592 = vmatpush.msra.mxu0 0.0
        %4593 = vmatpush.msra.mxu0 0.0
        %4594 = vmatpush.msra.mxu0 0.0
        %4595 = vmatpush.msra.mxu0 %v3695
        %4596 = vmatpush.msra.mxu0 %v3158
        %4597 = vmatmul.f32.gmra.mxu0 %v3671
        %v4598 = vpop.f32.mrf.mxu0
        %v4599 = vadd.f32 %v3667, %v4598
        %4600 = vdwg.mxu0
        %4601 = vmatpush.msra.mxu0 0.0
        %4602 = vmatpush.msra.mxu0 0.0
        %4603 = vmatpush.msra.mxu0 0.0
        %4604 = vmatpush.msra.mxu0 0.0
        %4605 = vmatpush.msra.mxu0 0.0
        %4606 = vmatpush.msra.mxu0 0.0
        %4607 = vmatpush.msra.mxu0 0.0
        %4608 = vmatpush.msra.mxu0 0.0
        %4609 = vmatpush.msra.mxu0 0.0
        %4610 = vmatpush.msra.mxu0 0.0
        %4611 = vmatpush.msra.mxu0 0.0
        %4612 = vmatpush.msra.mxu0 0.0
        %4613 = vmatpush.msra.mxu0 0.0
        %4614 = vmatpush.msra.mxu0 0.0
        %4615 = vmatpush.msra.mxu0 %v3698
        %4616 = vmatpush.msra.mxu0 %v3159
        %4617 = vmatmul.f32.gmra.mxu0 %v3671
        %v4618 = vpop.f32.mrf.mxu0
        %v4619 = vadd.f32 %v3667, %v4618
        %4620 = vdwg.mxu0
        %4621 = vmatpush.msra.mxu0 0.0
        %4622 = vmatpush.msra.mxu0 0.0
        %4623 = vmatpush.msra.mxu0 0.0
        %4624 = vmatpush.msra.mxu0 0.0
        %4625 = vmatpush.msra.mxu0 0.0
        %4626 = vmatpush.msra.mxu0 0.0
        %4627 = vmatpush.msra.mxu0 0.0
        %4628 = vmatpush.msra.mxu0 0.0
        %4629 = vmatpush.msra.mxu0 0.0
        %4630 = vmatpush.msra.mxu0 0.0
        %4631 = vmatpush.msra.mxu0 0.0
        %4632 = vmatpush.msra.mxu0 0.0
        %4633 = vmatpush.msra.mxu0 0.0
        %4634 = vmatpush.msra.mxu0 0.0
        %4635 = vmatpush.msra.mxu0 %v3701
        %4636 = vmatpush.msra.mxu0 %v3160
        %4637 = vmatmul.f32.gmra.mxu0 %v3671
        %v4638 = vpop.f32.mrf.mxu0
        %v4639 = vadd.f32 %v3667, %v4638
        %4640 = vdwg.mxu0
        %4641 = vmatpush.msra.mxu0 0.0
        %4642 = vmatpush.msra.mxu0 0.0
        %4643 = vmatpush.msra.mxu0 0.0
        %4644 = vmatpush.msra.mxu0 0.0
        %4645 = vmatpush.msra.mxu0 0.0
        %4646 = vmatpush.msra.mxu0 0.0
        %4647 = vmatpush.msra.mxu0 0.0
        %4648 = vmatpush.msra.mxu0 0.0
        %4649 = vmatpush.msra.mxu0 0.0
        %4650 = vmatpush.msra.mxu0 0.0
        %4651 = vmatpush.msra.mxu0 0.0
        %4652 = vmatpush.msra.mxu0 0.0
        %4653 = vmatpush.msra.mxu0 0.0
        %4654 = vmatpush.msra.mxu0 0.0
        %4655 = vmatpush.msra.mxu0 %v3704
        %4656 = vmatpush.msra.mxu0 %v3161
        %4657 = vmatmul.f32.gmra.mxu0 %v3671
        %v4658 = vpop.f32.mrf.mxu0
        %v4659 = vadd.f32 %v3667, %v4658
        %4660 = vdwg.mxu0
        %4661 = vmatpush.msra.mxu0 0.0
        %4662 = vmatpush.msra.mxu0 0.0
        %4663 = vmatpush.msra.mxu0 0.0
        %4664 = vmatpush.msra.mxu0 0.0
        %4665 = vmatpush.msra.mxu0 0.0
        %4666 = vmatpush.msra.mxu0 0.0
        %4667 = vmatpush.msra.mxu0 0.0
        %4668 = vmatpush.msra.mxu0 0.0
        %4669 = vmatpush.msra.mxu0 0.0
        %4670 = vmatpush.msra.mxu0 0.0
        %4671 = vmatpush.msra.mxu0 0.0
        %4672 = vmatpush.msra.mxu0 0.0
        %4673 = vmatpush.msra.mxu0 0.0
        %4674 = vmatpush.msra.mxu0 0.0
        %4675 = vmatpush.msra.mxu0 %v3707
        %4676 = vmatpush.msra.mxu0 %v3162
        %4677 = vmatmul.f32.gmra.mxu0 %v3671
        %v4678 = vpop.f32.mrf.mxu0
        %v4679 = vadd.f32 %v3667, %v4678
        %4680 = vdwg.mxu0
        %4681 = vmatpush.msra.mxu0 0.0
        %4682 = vmatpush.msra.mxu0 0.0
        %4683 = vmatpush.msra.mxu0 0.0
        %4684 = vmatpush.msra.mxu0 0.0
        %4685 = vmatpush.msra.mxu0 0.0
        %4686 = vmatpush.msra.mxu0 0.0
        %4687 = vmatpush.msra.mxu0 0.0
        %4688 = vmatpush.msra.mxu0 0.0
        %4689 = vmatpush.msra.mxu0 0.0
        %4690 = vmatpush.msra.mxu0 0.0
        %4691 = vmatpush.msra.mxu0 0.0
        %4692 = vmatpush.msra.mxu0 0.0
        %4693 = vmatpush.msra.mxu0 0.0
        %4694 = vmatpush.msra.mxu0 0.0
        %4695 = vmatpush.msra.mxu0 %v3710
        %4696 = vmatpush.msra.mxu0 %v3163
        %4697 = vmatmul.f32.gmra.mxu0 %v3671
        %v4698 = vpop.f32.mrf.mxu0
        %v4699 = vadd.f32 %v3667, %v4698
        %4700 = vdwg.mxu0
        %4701 = vmatpush.msra.mxu0 0.0
        %4702 = vmatpush.msra.mxu0 0.0
        %4703 = vmatpush.msra.mxu0 0.0
        %4704 = vmatpush.msra.mxu0 0.0
        %4705 = vmatpush.msra.mxu0 0.0
        %4706 = vmatpush.msra.mxu0 0.0
        %4707 = vmatpush.msra.mxu0 0.0
        %4708 = vmatpush.msra.mxu0 0.0
        %4709 = vmatpush.msra.mxu0 0.0
        %4710 = vmatpush.msra.mxu0 0.0
        %4711 = vmatpush.msra.mxu0 0.0
        %4712 = vmatpush.msra.mxu0 0.0
        %4713 = vmatpush.msra.mxu0 0.0
        %4714 = vmatpush.msra.mxu0 0.0
        %4715 = vmatpush.msra.mxu0 %v3713
        %4716 = vmatpush.msra.mxu0 %v3164
        %4717 = vmatmul.f32.gmra.mxu0 %v3671
        %v4718 = vpop.f32.mrf.mxu0
        %v4719 = vadd.f32 %v3667, %v4718
        %4720 = vdwg.mxu0
        %4721 = vmatpush.msra.mxu0 0.0
        %4722 = vmatpush.msra.mxu0 0.0
        %4723 = vmatpush.msra.mxu0 0.0
        %4724 = vmatpush.msra.mxu0 0.0
        %4725 = vmatpush.msra.mxu0 0.0
        %4726 = vmatpush.msra.mxu0 0.0
        %4727 = vmatpush.msra.mxu0 0.0
        %4728 = vmatpush.msra.mxu0 0.0
        %4729 = vmatpush.msra.mxu0 0.0
        %4730 = vmatpush.msra.mxu0 0.0
        %4731 = vmatpush.msra.mxu0 0.0
        %4732 = vmatpush.msra.mxu0 0.0
        %4733 = vmatpush.msra.mxu0 0.0
        %4734 = vmatpush.msra.mxu0 0.0
        %4735 = vmatpush.msra.mxu0 %v3716
        %4736 = vmatpush.msra.mxu0 %v3165
        %4737 = vmatmul.f32.gmra.mxu0 %v3671
        %v4738 = vpop.f32.mrf.mxu0
        %v4739 = vadd.f32 %v3667, %v4738
        %4740 = vdwg.mxu0
        %4741 = vmatpush.msra.mxu0 0.0
        %4742 = vmatpush.msra.mxu0 0.0
        %4743 = vmatpush.msra.mxu0 0.0
        %4744 = vmatpush.msra.mxu0 0.0
        %4745 = vmatpush.msra.mxu0 0.0
        %4746 = vmatpush.msra.mxu0 0.0
        %4747 = vmatpush.msra.mxu0 0.0
        %4748 = vmatpush.msra.mxu0 0.0
        %4749 = vmatpush.msra.mxu0 0.0
        %4750 = vmatpush.msra.mxu0 0.0
        %4751 = vmatpush.msra.mxu0 0.0
        %4752 = vmatpush.msra.mxu0 0.0
        %4753 = vmatpush.msra.mxu0 0.0
        %4754 = vmatpush.msra.mxu0 0.0
        %4755 = vmatpush.msra.mxu0 %v3719
        %4756 = vmatpush.msra.mxu0 %v3166
        %4757 = vmatmul.f32.gmra.mxu0 %v3671
        %v4758 = vpop.f32.mrf.mxu0
        %v4759 = vadd.f32 %v3667, %v4758
        %4760 = vdwg.mxu0
        %4761 = vmatpush.msra.mxu0 0.0
        %4762 = vmatpush.msra.mxu0 0.0
        %4763 = vmatpush.msra.mxu0 0.0
        %4764 = vmatpush.msra.mxu0 0.0
        %4765 = vmatpush.msra.mxu0 0.0
        %4766 = vmatpush.msra.mxu0 0.0
        %4767 = vmatpush.msra.mxu0 0.0
        %4768 = vmatpush.msra.mxu0 0.0
        %4769 = vmatpush.msra.mxu0 0.0
        %4770 = vmatpush.msra.mxu0 0.0
        %4771 = vmatpush.msra.mxu0 0.0
        %4772 = vmatpush.msra.mxu0 0.0
        %4773 = vmatpush.msra.mxu0 0.0
        %4774 = vmatpush.msra.mxu0 0.0
        %4775 = vmatpush.msra.mxu0 %v3722
        %4776 = vmatpush.msra.mxu0 %v3167
        %4777 = vmatmul.f32.gmra.mxu0 %v3671
        %v4778 = vpop.f32.mrf.mxu0
        %v4779 = vadd.f32 %v3667, %v4778
        %4780 = vdwg.mxu0
        %4781 = vmatpush.msra.mxu0 0.0
        %4782 = vmatpush.msra.mxu0 0.0
        %4783 = vmatpush.msra.mxu0 0.0
        %4784 = vmatpush.msra.mxu0 0.0
        %4785 = vmatpush.msra.mxu0 0.0
        %4786 = vmatpush.msra.mxu0 0.0
        %4787 = vmatpush.msra.mxu0 0.0
        %4788 = vmatpush.msra.mxu0 0.0
        %4789 = vmatpush.msra.mxu0 0.0
        %4790 = vmatpush.msra.mxu0 0.0
        %4791 = vmatpush.msra.mxu0 0.0
        %4792 = vmatpush.msra.mxu0 0.0
        %4793 = vmatpush.msra.mxu0 0.0
        %4794 = vmatpush.msra.mxu0 0.0
        %4795 = vmatpush.msra.mxu0 %v3725
        %4796 = vmatpush.msra.mxu0 %v3168
        %4797 = vmatmul.f32.gmra.mxu0 %v3671
        %v4798 = vpop.f32.mrf.mxu0
        %v4799 = vadd.f32 %v3667, %v4798
        %4800 = vdwg.mxu0
        %4801 = vmatpush.msra.mxu0 0.0
        %4802 = vmatpush.msra.mxu0 0.0
        %4803 = vmatpush.msra.mxu0 0.0
        %4804 = vmatpush.msra.mxu0 0.0
        %4805 = vmatpush.msra.mxu0 0.0
        %4806 = vmatpush.msra.mxu0 0.0
        %4807 = vmatpush.msra.mxu0 0.0
        %4808 = vmatpush.msra.mxu0 0.0
        %4809 = vmatpush.msra.mxu0 0.0
        %4810 = vmatpush.msra.mxu0 0.0
        %4811 = vmatpush.msra.mxu0 0.0
        %4812 = vmatpush.msra.mxu0 0.0
        %4813 = vmatpush.msra.mxu0 0.0
        %4814 = vmatpush.msra.mxu0 0.0
        %4815 = vmatpush.msra.mxu0 %v3728
        %4816 = vmatpush.msra.mxu0 %v3169
        %4817 = vmatmul.f32.gmra.mxu0 %v3671
        %v4818 = vpop.f32.mrf.mxu0
        %v4819 = vadd.f32 %v3667, %v4818
        %4820 = vdwg.mxu0
        %4821 = vmatpush.msra.mxu0 0.0
        %4822 = vmatpush.msra.mxu0 0.0
        %4823 = vmatpush.msra.mxu0 0.0
        %4824 = vmatpush.msra.mxu0 0.0
        %4825 = vmatpush.msra.mxu0 0.0
        %4826 = vmatpush.msra.mxu0 0.0
        %4827 = vmatpush.msra.mxu0 0.0
        %4828 = vmatpush.msra.mxu0 0.0
        %4829 = vmatpush.msra.mxu0 0.0
        %4830 = vmatpush.msra.mxu0 0.0
        %4831 = vmatpush.msra.mxu0 0.0
        %4832 = vmatpush.msra.mxu0 0.0
        %4833 = vmatpush.msra.mxu0 0.0
        %4834 = vmatpush.msra.mxu0 0.0
        %4835 = vmatpush.msra.mxu0 %v3731
        %4836 = vmatpush.msra.mxu0 %v3170
        %4837 = vmatmul.f32.gmra.mxu0 %v3671
        %v4838 = vpop.f32.mrf.mxu0
        %v4839 = vadd.f32 %v3667, %v4838
        %4840 = vdwg.mxu0
        %4841 = vmatpush.msra.mxu0 0.0
        %4842 = vmatpush.msra.mxu0 0.0
        %4843 = vmatpush.msra.mxu0 0.0
        %4844 = vmatpush.msra.mxu0 0.0
        %4845 = vmatpush.msra.mxu0 0.0
        %4846 = vmatpush.msra.mxu0 0.0
        %4847 = vmatpush.msra.mxu0 0.0
        %4848 = vmatpush.msra.mxu0 0.0
        %4849 = vmatpush.msra.mxu0 0.0
        %4850 = vmatpush.msra.mxu0 0.0
        %4851 = vmatpush.msra.mxu0 0.0
        %4852 = vmatpush.msra.mxu0 0.0
        %4853 = vmatpush.msra.mxu0 0.0
        %4854 = vmatpush.msra.mxu0 0.0
        %4855 = vmatpush.msra.mxu0 %v3734
        %4856 = vmatpush.msra.mxu0 %v3171
        %4857 = vmatmul.f32.gmra.mxu0 %v3671
        %v4858 = vpop.f32.mrf.mxu0
        %v4859 = vadd.f32 %v3667, %v4858
        %4860 = vdwg.mxu0
        %4861 = vmatpush.msra.mxu0 0.0
        %4862 = vmatpush.msra.mxu0 0.0
        %4863 = vmatpush.msra.mxu0 0.0
        %4864 = vmatpush.msra.mxu0 0.0
        %4865 = vmatpush.msra.mxu0 0.0
        %4866 = vmatpush.msra.mxu0 0.0
        %4867 = vmatpush.msra.mxu0 0.0
        %4868 = vmatpush.msra.mxu0 0.0
        %4869 = vmatpush.msra.mxu0 0.0
        %4870 = vmatpush.msra.mxu0 0.0
        %4871 = vmatpush.msra.mxu0 0.0
        %4872 = vmatpush.msra.mxu0 0.0
        %4873 = vmatpush.msra.mxu0 0.0
        %4874 = vmatpush.msra.mxu0 0.0
        %4875 = vmatpush.msra.mxu0 %v3737
        %4876 = vmatpush.msra.mxu0 %v3172
        %4877 = vmatmul.f32.gmra.mxu0 %v3671
        %v4878 = vpop.f32.mrf.mxu0
        %v4879 = vadd.f32 %v3667, %v4878
        %4880 = vdwg.mxu0
        %4881 = vmatpush.msra.mxu0 0.0
        %4882 = vmatpush.msra.mxu0 0.0
        %4883 = vmatpush.msra.mxu0 0.0
        %4884 = vmatpush.msra.mxu0 0.0
        %4885 = vmatpush.msra.mxu0 0.0
        %4886 = vmatpush.msra.mxu0 0.0
        %4887 = vmatpush.msra.mxu0 0.0
        %4888 = vmatpush.msra.mxu0 0.0
        %4889 = vmatpush.msra.mxu0 0.0
        %4890 = vmatpush.msra.mxu0 0.0
        %4891 = vmatpush.msra.mxu0 0.0
        %4892 = vmatpush.msra.mxu0 0.0
        %4893 = vmatpush.msra.mxu0 0.0
        %4894 = vmatpush.msra.mxu0 0.0
        %4895 = vmatpush.msra.mxu0 %v3740
        %4896 = vmatpush.msra.mxu0 %v3173
        %4897 = vmatmul.f32.gmra.mxu0 %v3671
        %v4898 = vpop.f32.mrf.mxu0
        %v4899 = vadd.f32 %v3667, %v4898
        %4900 = vdwg.mxu0
        %4901 = vmatpush.msra.mxu0 0.0
        %4902 = vmatpush.msra.mxu0 0.0
        %4903 = vmatpush.msra.mxu0 0.0
        %4904 = vmatpush.msra.mxu0 0.0
        %4905 = vmatpush.msra.mxu0 0.0
        %4906 = vmatpush.msra.mxu0 0.0
        %4907 = vmatpush.msra.mxu0 0.0
        %4908 = vmatpush.msra.mxu0 0.0
        %4909 = vmatpush.msra.mxu0 0.0
        %4910 = vmatpush.msra.mxu0 0.0
        %4911 = vmatpush.msra.mxu0 0.0
        %4912 = vmatpush.msra.mxu0 0.0
        %4913 = vmatpush.msra.mxu0 0.0
        %4914 = vmatpush.msra.mxu0 0.0
        %4915 = vmatpush.msra.mxu0 %v3743
        %4916 = vmatpush.msra.mxu0 %v3174
        %4917 = vmatmul.f32.gmra.mxu0 %v3671
        %v4918 = vpop.f32.mrf.mxu0
        %v4919 = vadd.f32 %v3667, %v4918
        %4920 = vdwg.mxu0
        %4921 = vmatpush.msra.mxu0 0.0
        %4922 = vmatpush.msra.mxu0 0.0
        %4923 = vmatpush.msra.mxu0 0.0
        %4924 = vmatpush.msra.mxu0 0.0
        %4925 = vmatpush.msra.mxu0 0.0
        %4926 = vmatpush.msra.mxu0 0.0
        %4927 = vmatpush.msra.mxu0 0.0
        %4928 = vmatpush.msra.mxu0 0.0
        %4929 = vmatpush.msra.mxu0 0.0
        %4930 = vmatpush.msra.mxu0 0.0
        %4931 = vmatpush.msra.mxu0 0.0
        %4932 = vmatpush.msra.mxu0 0.0
        %4933 = vmatpush.msra.mxu0 0.0
        %4934 = vmatpush.msra.mxu0 0.0
        %4935 = vmatpush.msra.mxu0 %v3746
        %4936 = vmatpush.msra.mxu0 %v3175
        %4937 = vmatmul.f32.gmra.mxu0 %v3671
        %v4938 = vpop.f32.mrf.mxu0
        %v4939 = vadd.f32 %v3667, %v4938
        %4940 = vdwg.mxu0
        %4941 = vmatpush.msra.mxu0 0.0
        %4942 = vmatpush.msra.mxu0 0.0
        %4943 = vmatpush.msra.mxu0 0.0
        %4944 = vmatpush.msra.mxu0 0.0
        %4945 = vmatpush.msra.mxu0 0.0
        %4946 = vmatpush.msra.mxu0 0.0
        %4947 = vmatpush.msra.mxu0 0.0
        %4948 = vmatpush.msra.mxu0 0.0
        %4949 = vmatpush.msra.mxu0 0.0
        %4950 = vmatpush.msra.mxu0 0.0
        %4951 = vmatpush.msra.mxu0 0.0
        %4952 = vmatpush.msra.mxu0 0.0
        %4953 = vmatpush.msra.mxu0 0.0
        %4954 = vmatpush.msra.mxu0 0.0
        %4955 = vmatpush.msra.mxu0 %v3749
        %4956 = vmatpush.msra.mxu0 %v3176
        %4957 = vmatmul.f32.gmra.mxu0 %v3671
        %v4958 = vpop.f32.mrf.mxu0
        %v4959 = vadd.f32 %v3667, %v4958
        %4960 = vdwg.mxu0
        %4961 = vmatpush.msra.mxu0 0.0
        %4962 = vmatpush.msra.mxu0 0.0
        %4963 = vmatpush.msra.mxu0 0.0
        %4964 = vmatpush.msra.mxu0 0.0
        %4965 = vmatpush.msra.mxu0 0.0
        %4966 = vmatpush.msra.mxu0 0.0
        %4967 = vmatpush.msra.mxu0 0.0
        %4968 = vmatpush.msra.mxu0 0.0
        %4969 = vmatpush.msra.mxu0 0.0
        %4970 = vmatpush.msra.mxu0 0.0
        %4971 = vmatpush.msra.mxu0 0.0
        %4972 = vmatpush.msra.mxu0 0.0
        %4973 = vmatpush.msra.mxu0 0.0
        %4974 = vmatpush.msra.mxu0 0.0
        %4975 = vmatpush.msra.mxu0 %v3752
        %4976 = vmatpush.msra.mxu0 %v3177
        %4977 = vmatmul.f32.gmra.mxu0 %v3671
        %v4978 = vpop.f32.mrf.mxu0
        %v4979 = vadd.f32 %v3667, %v4978
        %4980 = vdwg.mxu0
        %4981 = vmatpush.msra.mxu0 0.0
        %4982 = vmatpush.msra.mxu0 0.0
        %4983 = vmatpush.msra.mxu0 0.0
        %4984 = vmatpush.msra.mxu0 0.0
        %4985 = vmatpush.msra.mxu0 0.0
        %4986 = vmatpush.msra.mxu0 0.0
        %4987 = vmatpush.msra.mxu0 0.0
        %4988 = vmatpush.msra.mxu0 0.0
        %4989 = vmatpush.msra.mxu0 0.0
        %4990 = vmatpush.msra.mxu0 0.0
        %4991 = vmatpush.msra.mxu0 0.0
        %4992 = vmatpush.msra.mxu0 0.0
        %4993 = vmatpush.msra.mxu0 0.0
        %4994 = vmatpush.msra.mxu0 0.0
        %4995 = vmatpush.msra.mxu0 %v3755
        %4996 = vmatpush.msra.mxu0 %v3178
        %4997 = vmatmul.f32.gmra.mxu0 %v3671
        %v4998 = vpop.f32.mrf.mxu0
        %v4999 = vadd.f32 %v3667, %v4998
        %5000 = vdwg.mxu0
        %5001 = vmatpush.msra.mxu0 0.0
        %5002 = vmatpush.msra.mxu0 0.0
        %5003 = vmatpush.msra.mxu0 0.0
        %5004 = vmatpush.msra.mxu0 0.0
        %5005 = vmatpush.msra.mxu0 0.0
        %5006 = vmatpush.msra.mxu0 0.0
        %5007 = vmatpush.msra.mxu0 0.0
        %5008 = vmatpush.msra.mxu0 0.0
        %5009 = vmatpush.msra.mxu0 0.0
        %5010 = vmatpush.msra.mxu0 0.0
        %5011 = vmatpush.msra.mxu0 0.0
        %5012 = vmatpush.msra.mxu0 0.0
        %5013 = vmatpush.msra.mxu0 0.0
        %5014 = vmatpush.msra.mxu0 0.0
        %5015 = vmatpush.msra.mxu0 %v3758
        %5016 = vmatpush.msra.mxu0 %v3179
        %5017 = vmatmul.f32.gmra.mxu0 %v3671
        %v5018 = vpop.f32.mrf.mxu0
        %v5019 = vadd.f32 %v3667, %v5018
        %5020 = vdwg.mxu0
        %5021 = vmatpush.msra.mxu0 0.0
        %5022 = vmatpush.msra.mxu0 0.0
        %5023 = vmatpush.msra.mxu0 0.0
        %5024 = vmatpush.msra.mxu0 0.0
        %5025 = vmatpush.msra.mxu0 0.0
        %5026 = vmatpush.msra.mxu0 0.0
        %5027 = vmatpush.msra.mxu0 0.0
        %5028 = vmatpush.msra.mxu0 0.0
        %5029 = vmatpush.msra.mxu0 0.0
        %5030 = vmatpush.msra.mxu0 0.0
        %5031 = vmatpush.msra.mxu0 0.0
        %5032 = vmatpush.msra.mxu0 0.0
        %5033 = vmatpush.msra.mxu0 0.0
        %5034 = vmatpush.msra.mxu0 0.0
        %5035 = vmatpush.msra.mxu0 %v3761
        %5036 = vmatpush.msra.mxu0 %v3180
        %5037 = vmatmul.f32.gmra.mxu0 %v3671
        %v5038 = vpop.f32.mrf.mxu0
        %v5039 = vadd.f32 %v3667, %v5038
        %5040 = vdwg.mxu0
        %5041 = vmatpush.msra.mxu0 0.0
        %5042 = vmatpush.msra.mxu0 0.0
        %5043 = vmatpush.msra.mxu0 0.0
        %5044 = vmatpush.msra.mxu0 0.0
        %5045 = vmatpush.msra.mxu0 0.0
        %5046 = vmatpush.msra.mxu0 0.0
        %5047 = vmatpush.msra.mxu0 0.0
        %5048 = vmatpush.msra.mxu0 0.0
        %5049 = vmatpush.msra.mxu0 0.0
        %5050 = vmatpush.msra.mxu0 0.0
        %5051 = vmatpush.msra.mxu0 0.0
        %5052 = vmatpush.msra.mxu0 0.0
        %5053 = vmatpush.msra.mxu0 0.0
        %5054 = vmatpush.msra.mxu0 0.0
        %5055 = vmatpush.msra.mxu0 %v3764
        %5056 = vmatpush.msra.mxu0 %v3181
        %5057 = vmatmul.f32.gmra.mxu0 %v3671
        %v5058 = vpop.f32.mrf.mxu0
        %v5059 = vadd.f32 %v3667, %v5058
        %5060 = vdwg.mxu0
        %5061 = vmatpush.msra.mxu0 0.0
        %5062 = vmatpush.msra.mxu0 0.0
        %5063 = vmatpush.msra.mxu0 0.0
        %5064 = vmatpush.msra.mxu0 0.0
        %5065 = vmatpush.msra.mxu0 0.0
        %5066 = vmatpush.msra.mxu0 0.0
        %5067 = vmatpush.msra.mxu0 0.0
        %5068 = vmatpush.msra.mxu0 0.0
        %5069 = vmatpush.msra.mxu0 0.0
        %5070 = vmatpush.msra.mxu0 0.0
        %5071 = vmatpush.msra.mxu0 0.0
        %5072 = vmatpush.msra.mxu0 0.0
        %5073 = vmatpush.msra.mxu0 0.0
        %5074 = vmatpush.msra.mxu0 0.0
        %5075 = vmatpush.msra.mxu0 %v3767
        %5076 = vmatpush.msra.mxu0 %v3182
        %5077 = vmatmul.f32.gmra.mxu0 %v3671
        %v5078 = vpop.f32.mrf.mxu0
        %v5079 = vadd.f32 %v3667, %v5078
        %5080 = vdwg.mxu0
        %5081 = vmatpush.msra.mxu0 0.0
        %5082 = vmatpush.msra.mxu0 0.0
        %5083 = vmatpush.msra.mxu0 0.0
        %5084 = vmatpush.msra.mxu0 0.0
        %5085 = vmatpush.msra.mxu0 0.0
        %5086 = vmatpush.msra.mxu0 0.0
        %5087 = vmatpush.msra.mxu0 0.0
        %5088 = vmatpush.msra.mxu0 0.0
        %5089 = vmatpush.msra.mxu0 0.0
        %5090 = vmatpush.msra.mxu0 0.0
        %5091 = vmatpush.msra.mxu0 0.0
        %5092 = vmatpush.msra.mxu0 0.0
        %5093 = vmatpush.msra.mxu0 0.0
        %5094 = vmatpush.msra.mxu0 0.0
        %5095 = vmatpush.msra.mxu0 %v3770
        %5096 = vmatpush.msra.mxu0 %v3183
        %5097 = vmatmul.f32.gmra.mxu0 %v3671
        %v5098 = vpop.f32.mrf.mxu0
        %v5099 = vadd.f32 %v3667, %v5098
        %5100 = vdwg.mxu0
        %5101 = vmatpush.msra.mxu0 0.0
        %5102 = vmatpush.msra.mxu0 0.0
        %5103 = vmatpush.msra.mxu0 0.0
        %5104 = vmatpush.msra.mxu0 0.0
        %5105 = vmatpush.msra.mxu0 0.0
        %5106 = vmatpush.msra.mxu0 0.0
        %5107 = vmatpush.msra.mxu0 0.0
        %5108 = vmatpush.msra.mxu0 0.0
        %5109 = vmatpush.msra.mxu0 0.0
        %5110 = vmatpush.msra.mxu0 0.0
        %5111 = vmatpush.msra.mxu0 0.0
        %5112 = vmatpush.msra.mxu0 0.0
        %5113 = vmatpush.msra.mxu0 0.0
        %5114 = vmatpush.msra.mxu0 0.0
        %5115 = vmatpush.msra.mxu0 %v3773
        %5116 = vmatpush.msra.mxu0 %v3184
        %5117 = vmatmul.f32.gmra.mxu0 %v3671
        %v5118 = vpop.f32.mrf.mxu0
        %v5119 = vadd.f32 %v3667, %v5118
        %5120 = vdwg.mxu0
        %5121 = vmatpush.msra.mxu0 0.0
        %5122 = vmatpush.msra.mxu0 0.0
        %5123 = vmatpush.msra.mxu0 0.0
        %5124 = vmatpush.msra.mxu0 0.0
        %5125 = vmatpush.msra.mxu0 0.0
        %5126 = vmatpush.msra.mxu0 0.0
        %5127 = vmatpush.msra.mxu0 0.0
        %5128 = vmatpush.msra.mxu0 0.0
        %5129 = vmatpush.msra.mxu0 0.0
        %5130 = vmatpush.msra.mxu0 0.0
        %5131 = vmatpush.msra.mxu0 0.0
        %5132 = vmatpush.msra.mxu0 0.0
        %5133 = vmatpush.msra.mxu0 0.0
        %5134 = vmatpush.msra.mxu0 0.0
        %5135 = vmatpush.msra.mxu0 %v3776
        %5136 = vmatpush.msra.mxu0 %v3185
        %5137 = vmatmul.f32.gmra.mxu0 %v3671
        %v5138 = vpop.f32.mrf.mxu0
        %v5139 = vadd.f32 %v3667, %v5138
        %5140 = vdwg.mxu0
        %5141 = vmatpush.msra.mxu0 0.0
        %5142 = vmatpush.msra.mxu0 0.0
        %5143 = vmatpush.msra.mxu0 0.0
        %5144 = vmatpush.msra.mxu0 0.0
        %5145 = vmatpush.msra.mxu0 0.0
        %5146 = vmatpush.msra.mxu0 0.0
        %5147 = vmatpush.msra.mxu0 0.0
        %5148 = vmatpush.msra.mxu0 0.0
        %5149 = vmatpush.msra.mxu0 0.0
        %5150 = vmatpush.msra.mxu0 0.0
        %5151 = vmatpush.msra.mxu0 0.0
        %5152 = vmatpush.msra.mxu0 0.0
        %5153 = vmatpush.msra.mxu0 0.0
        %5154 = vmatpush.msra.mxu0 0.0
        %5155 = vmatpush.msra.mxu0 %v3779
        %5156 = vmatpush.msra.mxu0 %v3186
        %5157 = vmatmul.f32.gmra.mxu0 %v3671
        %v5158 = vpop.f32.mrf.mxu0
        %v5159 = vadd.f32 %v3667, %v5158
        %5160 = vdwg.mxu0
        %5161 = vmatpush.msra.mxu0 0.0
        %5162 = vmatpush.msra.mxu0 0.0
        %5163 = vmatpush.msra.mxu0 0.0
        %5164 = vmatpush.msra.mxu0 0.0
        %5165 = vmatpush.msra.mxu0 0.0
        %5166 = vmatpush.msra.mxu0 0.0
        %5167 = vmatpush.msra.mxu0 0.0
        %5168 = vmatpush.msra.mxu0 0.0
        %5169 = vmatpush.msra.mxu0 0.0
        %5170 = vmatpush.msra.mxu0 0.0
        %5171 = vmatpush.msra.mxu0 0.0
        %5172 = vmatpush.msra.mxu0 0.0
        %5173 = vmatpush.msra.mxu0 0.0
        %5174 = vmatpush.msra.mxu0 0.0
        %5175 = vmatpush.msra.mxu0 %v3782
        %5176 = vmatpush.msra.mxu0 %v3187
        %5177 = vmatmul.f32.gmra.mxu0 %v3671
        %v5178 = vpop.f32.mrf.mxu0
        %v5179 = vadd.f32 %v3667, %v5178
        %5180 = vdwg.mxu0
        %5181 = vmatpush.msra.mxu0 0.0
        %5182 = vmatpush.msra.mxu0 0.0
        %5183 = vmatpush.msra.mxu0 0.0
        %5184 = vmatpush.msra.mxu0 0.0
        %5185 = vmatpush.msra.mxu0 0.0
        %5186 = vmatpush.msra.mxu0 0.0
        %5187 = vmatpush.msra.mxu0 0.0
        %5188 = vmatpush.msra.mxu0 0.0
        %5189 = vmatpush.msra.mxu0 0.0
        %5190 = vmatpush.msra.mxu0 0.0
        %5191 = vmatpush.msra.mxu0 0.0
        %5192 = vmatpush.msra.mxu0 0.0
        %5193 = vmatpush.msra.mxu0 0.0
        %5194 = vmatpush.msra.mxu0 0.0
        %5195 = vmatpush.msra.mxu0 %v3785
        %5196 = vmatpush.msra.mxu0 %v3188
        %5197 = vmatmul.f32.gmra.mxu0 %v3671
        %v5198 = vpop.f32.mrf.mxu0
        %v5199 = vadd.f32 %v3667, %v5198
        %5200 = vdwg.mxu0
        %5201 = vmatpush.msra.mxu0 0.0
        %5202 = vmatpush.msra.mxu0 0.0
        %5203 = vmatpush.msra.mxu0 0.0
        %5204 = vmatpush.msra.mxu0 0.0
        %5205 = vmatpush.msra.mxu0 0.0
        %5206 = vmatpush.msra.mxu0 0.0
        %5207 = vmatpush.msra.mxu0 0.0
        %5208 = vmatpush.msra.mxu0 0.0
        %5209 = vmatpush.msra.mxu0 0.0
        %5210 = vmatpush.msra.mxu0 0.0
        %5211 = vmatpush.msra.mxu0 0.0
        %5212 = vmatpush.msra.mxu0 0.0
        %5213 = vmatpush.msra.mxu0 0.0
        %5214 = vmatpush.msra.mxu0 0.0
        %5215 = vmatpush.msra.mxu0 %v3788
        %5216 = vmatpush.msra.mxu0 %v3189
        %5217 = vmatmul.f32.gmra.mxu0 %v3671
        %v5218 = vpop.f32.mrf.mxu0
        %v5219 = vadd.f32 %v3667, %v5218
        %5220 = vdwg.mxu0
        %5221 = vmatpush.msra.mxu0 0.0
        %5222 = vmatpush.msra.mxu0 0.0
        %5223 = vmatpush.msra.mxu0 0.0
        %5224 = vmatpush.msra.mxu0 0.0
        %5225 = vmatpush.msra.mxu0 0.0
        %5226 = vmatpush.msra.mxu0 0.0
        %5227 = vmatpush.msra.mxu0 0.0
        %5228 = vmatpush.msra.mxu0 0.0
        %5229 = vmatpush.msra.mxu0 0.0
        %5230 = vmatpush.msra.mxu0 0.0
        %5231 = vmatpush.msra.mxu0 0.0
        %5232 = vmatpush.msra.mxu0 0.0
        %5233 = vmatpush.msra.mxu0 0.0
        %5234 = vmatpush.msra.mxu0 0.0
        %5235 = vmatpush.msra.mxu0 %v3791
        %5236 = vmatpush.msra.mxu0 %v3190
        %5237 = vmatmul.f32.gmra.mxu0 %v3671
        %v5238 = vpop.f32.mrf.mxu0
        %v5239 = vadd.f32 %v3667, %v5238
        %5240 = vdwg.mxu0
        %5241 = vmatpush.msra.mxu0 0.0
        %5242 = vmatpush.msra.mxu0 0.0
        %5243 = vmatpush.msra.mxu0 0.0
        %5244 = vmatpush.msra.mxu0 0.0
        %5245 = vmatpush.msra.mxu0 0.0
        %5246 = vmatpush.msra.mxu0 0.0
        %5247 = vmatpush.msra.mxu0 0.0
        %5248 = vmatpush.msra.mxu0 0.0
        %5249 = vmatpush.msra.mxu0 0.0
        %5250 = vmatpush.msra.mxu0 0.0
        %5251 = vmatpush.msra.mxu0 0.0
        %5252 = vmatpush.msra.mxu0 0.0
        %5253 = vmatpush.msra.mxu0 0.0
        %5254 = vmatpush.msra.mxu0 0.0
        %5255 = vmatpush.msra.mxu0 %v3794
        %5256 = vmatpush.msra.mxu0 %v3191
        %5257 = vmatmul.f32.gmra.mxu0 %v3671
        %v5258 = vpop.f32.mrf.mxu0
        %v5259 = vadd.f32 %v3667, %v5258
        %5260 = vdwg.mxu0
        %5261 = vmatpush.msra.mxu0 0.0
        %5262 = vmatpush.msra.mxu0 0.0
        %5263 = vmatpush.msra.mxu0 0.0
        %5264 = vmatpush.msra.mxu0 0.0
        %5265 = vmatpush.msra.mxu0 0.0
        %5266 = vmatpush.msra.mxu0 0.0
        %5267 = vmatpush.msra.mxu0 0.0
        %5268 = vmatpush.msra.mxu0 0.0
        %5269 = vmatpush.msra.mxu0 0.0
        %5270 = vmatpush.msra.mxu0 0.0
        %5271 = vmatpush.msra.mxu0 0.0
        %5272 = vmatpush.msra.mxu0 0.0
        %5273 = vmatpush.msra.mxu0 0.0
        %5274 = vmatpush.msra.mxu0 0.0
        %5275 = vmatpush.msra.mxu0 %v3797
        %5276 = vmatpush.msra.mxu0 %v3192
        %5277 = vmatmul.f32.gmra.mxu0 %v3671
        %v5278 = vpop.f32.mrf.mxu0
        %v5279 = vadd.f32 %v3667, %v5278
        %5280 = vdwg.mxu0
        %5281 = vmatpush.msra.mxu0 0.0
        %5282 = vmatpush.msra.mxu0 0.0
        %5283 = vmatpush.msra.mxu0 0.0
        %5284 = vmatpush.msra.mxu0 0.0
        %5285 = vmatpush.msra.mxu0 0.0
        %5286 = vmatpush.msra.mxu0 0.0
        %5287 = vmatpush.msra.mxu0 0.0
        %5288 = vmatpush.msra.mxu0 0.0
        %5289 = vmatpush.msra.mxu0 0.0
        %5290 = vmatpush.msra.mxu0 0.0
        %5291 = vmatpush.msra.mxu0 0.0
        %5292 = vmatpush.msra.mxu0 0.0
        %5293 = vmatpush.msra.mxu0 0.0
        %5294 = vmatpush.msra.mxu0 0.0
        %5295 = vmatpush.msra.mxu0 %v3800
        %5296 = vmatpush.msra.mxu0 %v3193
        %5297 = vmatmul.f32.gmra.mxu0 %v3671
        %v5298 = vpop.f32.mrf.mxu0
        %v5299 = vadd.f32 %v3667, %v5298
        %5300 = vdwg.mxu0
        %5301 = vmatpush.msra.mxu0 0.0
        %5302 = vmatpush.msra.mxu0 0.0
        %5303 = vmatpush.msra.mxu0 0.0
        %5304 = vmatpush.msra.mxu0 0.0
        %5305 = vmatpush.msra.mxu0 0.0
        %5306 = vmatpush.msra.mxu0 0.0
        %5307 = vmatpush.msra.mxu0 0.0
        %5308 = vmatpush.msra.mxu0 0.0
        %5309 = vmatpush.msra.mxu0 0.0
        %5310 = vmatpush.msra.mxu0 0.0
        %5311 = vmatpush.msra.mxu0 0.0
        %5312 = vmatpush.msra.mxu0 0.0
        %5313 = vmatpush.msra.mxu0 0.0
        %5314 = vmatpush.msra.mxu0 0.0
        %5315 = vmatpush.msra.mxu0 %v3803
        %5316 = vmatpush.msra.mxu0 %v3194
        %5317 = vmatmul.f32.gmra.mxu0 %v3671
        %v5318 = vpop.f32.mrf.mxu0
        %v5319 = vadd.f32 %v3667, %v5318
        %5320 = vdwg.mxu0
        %5321 = vmatpush.msra.mxu0 0.0
        %5322 = vmatpush.msra.mxu0 0.0
        %5323 = vmatpush.msra.mxu0 0.0
        %5324 = vmatpush.msra.mxu0 0.0
        %5325 = vmatpush.msra.mxu0 0.0
        %5326 = vmatpush.msra.mxu0 0.0
        %5327 = vmatpush.msra.mxu0 0.0
        %5328 = vmatpush.msra.mxu0 0.0
        %5329 = vmatpush.msra.mxu0 0.0
        %5330 = vmatpush.msra.mxu0 0.0
        %5331 = vmatpush.msra.mxu0 0.0
        %5332 = vmatpush.msra.mxu0 0.0
        %5333 = vmatpush.msra.mxu0 0.0
        %5334 = vmatpush.msra.mxu0 0.0
        %5335 = vmatpush.msra.mxu0 %v3806
        %5336 = vmatpush.msra.mxu0 %v3195
        %5337 = vmatmul.f32.gmra.mxu0 %v3671
        %v5338 = vpop.f32.mrf.mxu0
        %v5339 = vadd.f32 %v3667, %v5338
        %5340 = vdwg.mxu0
        %5341 = vmatpush.msra.mxu0 0.0
        %5342 = vmatpush.msra.mxu0 0.0
        %5343 = vmatpush.msra.mxu0 0.0
        %5344 = vmatpush.msra.mxu0 0.0
        %5345 = vmatpush.msra.mxu0 0.0
        %5346 = vmatpush.msra.mxu0 0.0
        %5347 = vmatpush.msra.mxu0 0.0
        %5348 = vmatpush.msra.mxu0 0.0
        %5349 = vmatpush.msra.mxu0 0.0
        %5350 = vmatpush.msra.mxu0 0.0
        %5351 = vmatpush.msra.mxu0 0.0
        %5352 = vmatpush.msra.mxu0 0.0
        %5353 = vmatpush.msra.mxu0 0.0
        %5354 = vmatpush.msra.mxu0 0.0
        %5355 = vmatpush.msra.mxu0 %v3809
        %5356 = vmatpush.msra.mxu0 %v3196
        %5357 = vmatmul.f32.gmra.mxu0 %v3671
        %v5358 = vpop.f32.mrf.mxu0
        %v5359 = vadd.f32 %v3667, %v5358
        %5360 = vdwg.mxu0
        %5361 = vmatpush.msra.mxu0 0.0
        %5362 = vmatpush.msra.mxu0 0.0
        %5363 = vmatpush.msra.mxu0 0.0
        %5364 = vmatpush.msra.mxu0 0.0
        %5365 = vmatpush.msra.mxu0 0.0
        %5366 = vmatpush.msra.mxu0 0.0
        %5367 = vmatpush.msra.mxu0 0.0
        %5368 = vmatpush.msra.mxu0 0.0
        %5369 = vmatpush.msra.mxu0 0.0
        %5370 = vmatpush.msra.mxu0 0.0
        %5371 = vmatpush.msra.mxu0 0.0
        %5372 = vmatpush.msra.mxu0 0.0
        %5373 = vmatpush.msra.mxu0 0.0
        %5374 = vmatpush.msra.mxu0 0.0
        %5375 = vmatpush.msra.mxu0 %v3812
        %5376 = vmatpush.msra.mxu0 %v3197
        %5377 = vmatmul.f32.gmra.mxu0 %v3671
        %v5378 = vpop.f32.mrf.mxu0
        %v5379 = vadd.f32 %v3667, %v5378
        %5380 = vdwg.mxu0
        %5381 = vmatpush.msra.mxu0 0.0
        %5382 = vmatpush.msra.mxu0 0.0
        %5383 = vmatpush.msra.mxu0 0.0
        %5384 = vmatpush.msra.mxu0 0.0
        %5385 = vmatpush.msra.mxu0 0.0
        %5386 = vmatpush.msra.mxu0 0.0
        %5387 = vmatpush.msra.mxu0 0.0
        %5388 = vmatpush.msra.mxu0 0.0
        %5389 = vmatpush.msra.mxu0 0.0
        %5390 = vmatpush.msra.mxu0 0.0
        %5391 = vmatpush.msra.mxu0 0.0
        %5392 = vmatpush.msra.mxu0 0.0
        %5393 = vmatpush.msra.mxu0 0.0
        %5394 = vmatpush.msra.mxu0 0.0
        %5395 = vmatpush.msra.mxu0 %v3815
        %5396 = vmatpush.msra.mxu0 %v3198
        %5397 = vmatmul.f32.gmra.mxu0 %v3671
        %v5398 = vpop.f32.mrf.mxu0
        %v5399 = vadd.f32 %v3667, %v5398
        %5400 = vdwg.mxu0
        %5401 = vmatpush.msra.mxu0 0.0
        %5402 = vmatpush.msra.mxu0 0.0
        %5403 = vmatpush.msra.mxu0 0.0
        %5404 = vmatpush.msra.mxu0 0.0
        %5405 = vmatpush.msra.mxu0 0.0
        %5406 = vmatpush.msra.mxu0 0.0
        %5407 = vmatpush.msra.mxu0 0.0
        %5408 = vmatpush.msra.mxu0 0.0
        %5409 = vmatpush.msra.mxu0 0.0
        %5410 = vmatpush.msra.mxu0 0.0
        %5411 = vmatpush.msra.mxu0 0.0
        %5412 = vmatpush.msra.mxu0 0.0
        %5413 = vmatpush.msra.mxu0 0.0
        %5414 = vmatpush.msra.mxu0 0.0
        %5415 = vmatpush.msra.mxu0 %v3818
        %5416 = vmatpush.msra.mxu0 %v3199
        %5417 = vmatmul.f32.gmra.mxu0 %v3671
        %v5418 = vpop.f32.mrf.mxu0
        %v5419 = vadd.f32 %v3667, %v5418
        %5420 = vdwg.mxu0
        %5421 = vmatpush.msra.mxu0 0.0
        %5422 = vmatpush.msra.mxu0 0.0
        %5423 = vmatpush.msra.mxu0 0.0
        %5424 = vmatpush.msra.mxu0 0.0
        %5425 = vmatpush.msra.mxu0 0.0
        %5426 = vmatpush.msra.mxu0 0.0
        %5427 = vmatpush.msra.mxu0 0.0
        %5428 = vmatpush.msra.mxu0 0.0
        %5429 = vmatpush.msra.mxu0 0.0
        %5430 = vmatpush.msra.mxu0 0.0
        %5431 = vmatpush.msra.mxu0 0.0
        %5432 = vmatpush.msra.mxu0 0.0
        %5433 = vmatpush.msra.mxu0 0.0
        %5434 = vmatpush.msra.mxu0 0.0
        %5435 = vmatpush.msra.mxu0 %v3821
        %5436 = vmatpush.msra.mxu0 %v3200
        %5437 = vmatmul.f32.gmra.mxu0 %v3671
        %v5438 = vpop.f32.mrf.mxu0
        %v5439 = vadd.f32 %v3667, %v5438
        %5440 = vdwg.mxu0
        %5441 = vmatpush.msra.mxu0 0.0
        %5442 = vmatpush.msra.mxu0 0.0
        %5443 = vmatpush.msra.mxu0 0.0
        %5444 = vmatpush.msra.mxu0 0.0
        %5445 = vmatpush.msra.mxu0 0.0
        %5446 = vmatpush.msra.mxu0 0.0
        %5447 = vmatpush.msra.mxu0 0.0
        %5448 = vmatpush.msra.mxu0 0.0
        %5449 = vmatpush.msra.mxu0 0.0
        %5450 = vmatpush.msra.mxu0 0.0
        %5451 = vmatpush.msra.mxu0 0.0
        %5452 = vmatpush.msra.mxu0 0.0
        %5453 = vmatpush.msra.mxu0 0.0
        %5454 = vmatpush.msra.mxu0 0.0
        %5455 = vmatpush.msra.mxu0 %v3824
        %5456 = vmatpush.msra.mxu0 %v3201
        %5457 = vmatmul.f32.gmra.mxu0 %v3671
        %v5458 = vpop.f32.mrf.mxu0
        %v5459 = vadd.f32 %v3667, %v5458
        %5460 = vdwg.mxu0
        %5461 = vmatpush.msra.mxu0 0.0
        %5462 = vmatpush.msra.mxu0 0.0
        %5463 = vmatpush.msra.mxu0 0.0
        %5464 = vmatpush.msra.mxu0 0.0
        %5465 = vmatpush.msra.mxu0 0.0
        %5466 = vmatpush.msra.mxu0 0.0
        %5467 = vmatpush.msra.mxu0 0.0
        %5468 = vmatpush.msra.mxu0 0.0
        %5469 = vmatpush.msra.mxu0 0.0
        %5470 = vmatpush.msra.mxu0 0.0
        %5471 = vmatpush.msra.mxu0 0.0
        %5472 = vmatpush.msra.mxu0 0.0
        %5473 = vmatpush.msra.mxu0 0.0
        %5474 = vmatpush.msra.mxu0 0.0
        %5475 = vmatpush.msra.mxu0 %v3827
        %5476 = vmatpush.msra.mxu0 %v3202
        %5477 = vmatmul.f32.gmra.mxu0 %v3671
        %v5478 = vpop.f32.mrf.mxu0
        %v5479 = vadd.f32 %v3667, %v5478
        %5480 = vdwg.mxu0
        %5481 = vmatpush.msra.mxu0 0.0
        %5482 = vmatpush.msra.mxu0 0.0
        %5483 = vmatpush.msra.mxu0 0.0
        %5484 = vmatpush.msra.mxu0 0.0
        %5485 = vmatpush.msra.mxu0 0.0
        %5486 = vmatpush.msra.mxu0 0.0
        %5487 = vmatpush.msra.mxu0 0.0
        %5488 = vmatpush.msra.mxu0 0.0
        %5489 = vmatpush.msra.mxu0 0.0
        %5490 = vmatpush.msra.mxu0 0.0
        %5491 = vmatpush.msra.mxu0 0.0
        %5492 = vmatpush.msra.mxu0 0.0
        %5493 = vmatpush.msra.mxu0 0.0
        %5494 = vmatpush.msra.mxu0 0.0
        %5495 = vmatpush.msra.mxu0 %v3830
        %5496 = vmatpush.msra.mxu0 %v3203
        %5497 = vmatmul.f32.gmra.mxu0 %v3671
        %v5498 = vpop.f32.mrf.mxu0
        %v5499 = vadd.f32 %v3667, %v5498
        %5500 = vdwg.mxu0
        %5501 = vmatpush.msra.mxu0 0.0
        %5502 = vmatpush.msra.mxu0 0.0
        %5503 = vmatpush.msra.mxu0 0.0
        %5504 = vmatpush.msra.mxu0 0.0
        %5505 = vmatpush.msra.mxu0 0.0
        %5506 = vmatpush.msra.mxu0 0.0
        %5507 = vmatpush.msra.mxu0 0.0
        %5508 = vmatpush.msra.mxu0 0.0
        %5509 = vmatpush.msra.mxu0 0.0
        %5510 = vmatpush.msra.mxu0 0.0
        %5511 = vmatpush.msra.mxu0 0.0
        %5512 = vmatpush.msra.mxu0 0.0
        %5513 = vmatpush.msra.mxu0 0.0
        %5514 = vmatpush.msra.mxu0 0.0
        %5515 = vmatpush.msra.mxu0 %v3833
        %5516 = vmatpush.msra.mxu0 %v3204
        %5517 = vmatmul.f32.gmra.mxu0 %v3671
        %v5518 = vpop.f32.mrf.mxu0
        %v5519 = vadd.f32 %v3667, %v5518
        %5520 = vdwg.mxu0
        %5521 = vmatpush.msra.mxu0 0.0
        %5522 = vmatpush.msra.mxu0 0.0
        %5523 = vmatpush.msra.mxu0 0.0
        %5524 = vmatpush.msra.mxu0 0.0
        %5525 = vmatpush.msra.mxu0 0.0
        %5526 = vmatpush.msra.mxu0 0.0
        %5527 = vmatpush.msra.mxu0 0.0
        %5528 = vmatpush.msra.mxu0 0.0
        %5529 = vmatpush.msra.mxu0 0.0
        %5530 = vmatpush.msra.mxu0 0.0
        %5531 = vmatpush.msra.mxu0 0.0
        %5532 = vmatpush.msra.mxu0 0.0
        %5533 = vmatpush.msra.mxu0 0.0
        %5534 = vmatpush.msra.mxu0 0.0
        %5535 = vmatpush.msra.mxu0 %v3836
        %5536 = vmatpush.msra.mxu0 %v3205
        %5537 = vmatmul.f32.gmra.mxu0 %v3671
        %v5538 = vpop.f32.mrf.mxu0
        %v5539 = vadd.f32 %v3667, %v5538
        %5540 = vdwg.mxu0
        %5541 = vmatpush.msra.mxu0 0.0
        %5542 = vmatpush.msra.mxu0 0.0
        %5543 = vmatpush.msra.mxu0 0.0
        %5544 = vmatpush.msra.mxu0 0.0
        %5545 = vmatpush.msra.mxu0 0.0
        %5546 = vmatpush.msra.mxu0 0.0
        %5547 = vmatpush.msra.mxu0 0.0
        %5548 = vmatpush.msra.mxu0 0.0
        %5549 = vmatpush.msra.mxu0 0.0
        %5550 = vmatpush.msra.mxu0 0.0
        %5551 = vmatpush.msra.mxu0 0.0
        %5552 = vmatpush.msra.mxu0 0.0
        %5553 = vmatpush.msra.mxu0 0.0
        %5554 = vmatpush.msra.mxu0 0.0
        %5555 = vmatpush.msra.mxu0 %v3839
        %5556 = vmatpush.msra.mxu0 %v3206
        %5557 = vmatmul.f32.gmra.mxu0 %v3671
        %v5558 = vpop.f32.mrf.mxu0
        %v5559 = vadd.f32 %v3667, %v5558
        %5560 = vdwg.mxu0
        %5561 = vmatpush.msra.mxu0 0.0
        %5562 = vmatpush.msra.mxu0 0.0
        %5563 = vmatpush.msra.mxu0 0.0
        %5564 = vmatpush.msra.mxu0 0.0
        %5565 = vmatpush.msra.mxu0 0.0
        %5566 = vmatpush.msra.mxu0 0.0
        %5567 = vmatpush.msra.mxu0 0.0
        %5568 = vmatpush.msra.mxu0 0.0
        %5569 = vmatpush.msra.mxu0 0.0
        %5570 = vmatpush.msra.mxu0 0.0
        %5571 = vmatpush.msra.mxu0 0.0
        %5572 = vmatpush.msra.mxu0 0.0
        %5573 = vmatpush.msra.mxu0 0.0
        %5574 = vmatpush.msra.mxu0 0.0
        %5575 = vmatpush.msra.mxu0 %v3842
        %5576 = vmatpush.msra.mxu0 %v3207
        %5577 = vmatmul.f32.gmra.mxu0 %v3671
        %v5578 = vpop.f32.mrf.mxu0
        %v5579 = vadd.f32 %v3667, %v5578
        %5580 = vdwg.mxu0
        %5581 = vmatpush.msra.mxu0 0.0
        %5582 = vmatpush.msra.mxu0 0.0
        %5583 = vmatpush.msra.mxu0 0.0
        %5584 = vmatpush.msra.mxu0 0.0
        %5585 = vmatpush.msra.mxu0 0.0
        %5586 = vmatpush.msra.mxu0 0.0
        %5587 = vmatpush.msra.mxu0 0.0
        %5588 = vmatpush.msra.mxu0 0.0
        %5589 = vmatpush.msra.mxu0 0.0
        %5590 = vmatpush.msra.mxu0 0.0
        %5591 = vmatpush.msra.mxu0 0.0
        %5592 = vmatpush.msra.mxu0 0.0
        %5593 = vmatpush.msra.mxu0 0.0
        %5594 = vmatpush.msra.mxu0 0.0
        %5595 = vmatpush.msra.mxu0 %v3845
        %5596 = vmatpush.msra.mxu0 %v3208
        %5597 = vmatmul.f32.gmra.mxu0 %v3671
        %v5598 = vpop.f32.mrf.mxu0
        %v5599 = vadd.f32 %v3667, %v5598
        %5600 = vdwg.mxu0
        %5601 = vmatpush.msra.mxu0 0.0
        %5602 = vmatpush.msra.mxu0 0.0
        %5603 = vmatpush.msra.mxu0 0.0
        %5604 = vmatpush.msra.mxu0 0.0
        %5605 = vmatpush.msra.mxu0 0.0
        %5606 = vmatpush.msra.mxu0 0.0
        %5607 = vmatpush.msra.mxu0 0.0
        %5608 = vmatpush.msra.mxu0 0.0
        %5609 = vmatpush.msra.mxu0 0.0
        %5610 = vmatpush.msra.mxu0 0.0
        %5611 = vmatpush.msra.mxu0 0.0
        %5612 = vmatpush.msra.mxu0 0.0
        %5613 = vmatpush.msra.mxu0 0.0
        %5614 = vmatpush.msra.mxu0 0.0
        %5615 = vmatpush.msra.mxu0 %v3848
        %5616 = vmatpush.msra.mxu0 %v3209
        %5617 = vmatmul.f32.gmra.mxu0 %v3671
        %v5618 = vpop.f32.mrf.mxu0
        %v5619 = vadd.f32 %v3667, %v5618
        %5620 = vdwg.mxu0
        %5621 = vmatpush.msra.mxu0 0.0
        %5622 = vmatpush.msra.mxu0 0.0
        %5623 = vmatpush.msra.mxu0 0.0
        %5624 = vmatpush.msra.mxu0 0.0
        %5625 = vmatpush.msra.mxu0 0.0
        %5626 = vmatpush.msra.mxu0 0.0
        %5627 = vmatpush.msra.mxu0 0.0
        %5628 = vmatpush.msra.mxu0 0.0
        %5629 = vmatpush.msra.mxu0 0.0
        %5630 = vmatpush.msra.mxu0 0.0
        %5631 = vmatpush.msra.mxu0 0.0
        %5632 = vmatpush.msra.mxu0 0.0
        %5633 = vmatpush.msra.mxu0 0.0
        %5634 = vmatpush.msra.mxu0 0.0
        %5635 = vmatpush.msra.mxu0 %v3851
        %5636 = vmatpush.msra.mxu0 %v3210
        %5637 = vmatmul.f32.gmra.mxu0 %v3671
        %v5638 = vpop.f32.mrf.mxu0
        %v5639 = vadd.f32 %v3667, %v5638
        %5640 = vdwg.mxu0
        %5641 = vmatpush.msra.mxu0 0.0
        %5642 = vmatpush.msra.mxu0 0.0
        %5643 = vmatpush.msra.mxu0 0.0
        %5644 = vmatpush.msra.mxu0 0.0
        %5645 = vmatpush.msra.mxu0 0.0
        %5646 = vmatpush.msra.mxu0 0.0
        %5647 = vmatpush.msra.mxu0 0.0
        %5648 = vmatpush.msra.mxu0 0.0
        %5649 = vmatpush.msra.mxu0 0.0
        %5650 = vmatpush.msra.mxu0 0.0
        %5651 = vmatpush.msra.mxu0 0.0
        %5652 = vmatpush.msra.mxu0 0.0
        %5653 = vmatpush.msra.mxu0 0.0
        %5654 = vmatpush.msra.mxu0 0.0
        %5655 = vmatpush.msra.mxu0 %v3854
        %5656 = vmatpush.msra.mxu0 %v3211
        %5657 = vmatmul.f32.gmra.mxu0 %v3671
        %v5658 = vpop.f32.mrf.mxu0
        %v5659 = vadd.f32 %v3667, %v5658
        %5660 = vdwg.mxu0
        %5661 = vmatpush.msra.mxu0 0.0
        %5662 = vmatpush.msra.mxu0 0.0
        %5663 = vmatpush.msra.mxu0 0.0
        %5664 = vmatpush.msra.mxu0 0.0
        %5665 = vmatpush.msra.mxu0 0.0
        %5666 = vmatpush.msra.mxu0 0.0
        %5667 = vmatpush.msra.mxu0 0.0
        %5668 = vmatpush.msra.mxu0 0.0
        %5669 = vmatpush.msra.mxu0 0.0
        %5670 = vmatpush.msra.mxu0 0.0
        %5671 = vmatpush.msra.mxu0 0.0
        %5672 = vmatpush.msra.mxu0 0.0
        %5673 = vmatpush.msra.mxu0 0.0
        %5674 = vmatpush.msra.mxu0 0.0
        %5675 = vmatpush.msra.mxu0 %v3857
        %5676 = vmatpush.msra.mxu0 %v3212
        %5677 = vmatmul.f32.gmra.mxu0 %v3671
        %v5678 = vpop.f32.mrf.mxu0
        %v5679 = vadd.f32 %v3667, %v5678
        %5680 = vdwg.mxu0
        %5681 = vmatpush.msra.mxu0 0.0
        %5682 = vmatpush.msra.mxu0 0.0
        %5683 = vmatpush.msra.mxu0 0.0
        %5684 = vmatpush.msra.mxu0 0.0
        %5685 = vmatpush.msra.mxu0 0.0
        %5686 = vmatpush.msra.mxu0 0.0
        %5687 = vmatpush.msra.mxu0 0.0
        %5688 = vmatpush.msra.mxu0 0.0
        %5689 = vmatpush.msra.mxu0 0.0
        %5690 = vmatpush.msra.mxu0 0.0
        %5691 = vmatpush.msra.mxu0 0.0
        %5692 = vmatpush.msra.mxu0 0.0
        %5693 = vmatpush.msra.mxu0 0.0
        %5694 = vmatpush.msra.mxu0 0.0
        %5695 = vmatpush.msra.mxu0 %v3860
        %5696 = vmatpush.msra.mxu0 %v3213
        %5697 = vmatmul.f32.gmra.mxu0 %v3671
        %v5698 = vpop.f32.mrf.mxu0
        %v5699 = vadd.f32 %v3667, %v5698
        %5700 = vdwg.mxu0
        %5701 = vmatpush.msra.mxu0 0.0
        %5702 = vmatpush.msra.mxu0 0.0
        %5703 = vmatpush.msra.mxu0 0.0
        %5704 = vmatpush.msra.mxu0 0.0
        %5705 = vmatpush.msra.mxu0 0.0
        %5706 = vmatpush.msra.mxu0 0.0
        %5707 = vmatpush.msra.mxu0 0.0
        %5708 = vmatpush.msra.mxu0 0.0
        %5709 = vmatpush.msra.mxu0 0.0
        %5710 = vmatpush.msra.mxu0 0.0
        %5711 = vmatpush.msra.mxu0 0.0
        %5712 = vmatpush.msra.mxu0 0.0
        %5713 = vmatpush.msra.mxu0 0.0
        %5714 = vmatpush.msra.mxu0 0.0
        %5715 = vmatpush.msra.mxu0 %v3863
        %5716 = vmatpush.msra.mxu0 %v3214
        %5717 = vmatmul.f32.gmra.mxu0 %v3671
        %v5718 = vpop.f32.mrf.mxu0
        %v5719 = vadd.f32 %v3667, %v5718
        %5720 = vdwg.mxu0
        %5721 = vmatpush.msra.mxu0 0.0
        %5722 = vmatpush.msra.mxu0 0.0
        %5723 = vmatpush.msra.mxu0 0.0
        %5724 = vmatpush.msra.mxu0 0.0
        %5725 = vmatpush.msra.mxu0 0.0
        %5726 = vmatpush.msra.mxu0 0.0
        %5727 = vmatpush.msra.mxu0 0.0
        %5728 = vmatpush.msra.mxu0 0.0
        %5729 = vmatpush.msra.mxu0 0.0
        %5730 = vmatpush.msra.mxu0 0.0
        %5731 = vmatpush.msra.mxu0 0.0
        %5732 = vmatpush.msra.mxu0 0.0
        %5733 = vmatpush.msra.mxu0 0.0
        %5734 = vmatpush.msra.mxu0 0.0
        %5735 = vmatpush.msra.mxu0 %v3866
        %5736 = vmatpush.msra.mxu0 %v3215
        %5737 = vmatmul.f32.gmra.mxu0 %v3671
        %v5738 = vpop.f32.mrf.mxu0
        %v5739 = vadd.f32 %v3667, %v5738
        %5740 = vdwg.mxu0
        %5741 = vmatpush.msra.mxu0 0.0
        %5742 = vmatpush.msra.mxu0 0.0
        %5743 = vmatpush.msra.mxu0 0.0
        %5744 = vmatpush.msra.mxu0 0.0
        %5745 = vmatpush.msra.mxu0 0.0
        %5746 = vmatpush.msra.mxu0 0.0
        %5747 = vmatpush.msra.mxu0 0.0
        %5748 = vmatpush.msra.mxu0 0.0
        %5749 = vmatpush.msra.mxu0 0.0
        %5750 = vmatpush.msra.mxu0 0.0
        %5751 = vmatpush.msra.mxu0 0.0
        %5752 = vmatpush.msra.mxu0 0.0
        %5753 = vmatpush.msra.mxu0 0.0
        %5754 = vmatpush.msra.mxu0 0.0
        %5755 = vmatpush.msra.mxu0 %v3869
        %5756 = vmatpush.msra.mxu0 %v3216
        %5757 = vmatmul.f32.gmra.mxu0 %v3671
        %v5758 = vpop.f32.mrf.mxu0
        %v5759 = vadd.f32 %v3667, %v5758
        %5760 = vdwg.mxu0
        %5761 = vmatpush.msra.mxu0 0.0
        %5762 = vmatpush.msra.mxu0 0.0
        %5763 = vmatpush.msra.mxu0 0.0
        %5764 = vmatpush.msra.mxu0 0.0
        %5765 = vmatpush.msra.mxu0 0.0
        %5766 = vmatpush.msra.mxu0 0.0
        %5767 = vmatpush.msra.mxu0 0.0
        %5768 = vmatpush.msra.mxu0 0.0
        %5769 = vmatpush.msra.mxu0 0.0
        %5770 = vmatpush.msra.mxu0 0.0
        %5771 = vmatpush.msra.mxu0 0.0
        %5772 = vmatpush.msra.mxu0 0.0
        %5773 = vmatpush.msra.mxu0 0.0
        %5774 = vmatpush.msra.mxu0 0.0
        %5775 = vmatpush.msra.mxu0 %v3872
        %5776 = vmatpush.msra.mxu0 %v3217
        %5777 = vmatmul.f32.gmra.mxu0 %v3671
        %v5778 = vpop.f32.mrf.mxu0
        %v5779 = vadd.f32 %v3667, %v5778
        %5780 = vdwg.mxu0
        %5781 = vmatpush.msra.mxu0 0.0
        %5782 = vmatpush.msra.mxu0 0.0
        %5783 = vmatpush.msra.mxu0 0.0
        %5784 = vmatpush.msra.mxu0 0.0
        %5785 = vmatpush.msra.mxu0 0.0
        %5786 = vmatpush.msra.mxu0 0.0
        %5787 = vmatpush.msra.mxu0 0.0
        %5788 = vmatpush.msra.mxu0 0.0
        %5789 = vmatpush.msra.mxu0 0.0
        %5790 = vmatpush.msra.mxu0 0.0
        %5791 = vmatpush.msra.mxu0 0.0
        %5792 = vmatpush.msra.mxu0 0.0
        %5793 = vmatpush.msra.mxu0 0.0
        %5794 = vmatpush.msra.mxu0 0.0
        %5795 = vmatpush.msra.mxu0 %v3875
        %5796 = vmatpush.msra.mxu0 %v3218
        %5797 = vmatmul.f32.gmra.mxu0 %v3671
        %v5798 = vpop.f32.mrf.mxu0
        %v5799 = vadd.f32 %v3667, %v5798
        %5800 = vdwg.mxu0
        %5801 = vmatpush.msra.mxu0 0.0
        %5802 = vmatpush.msra.mxu0 0.0
        %5803 = vmatpush.msra.mxu0 0.0
        %5804 = vmatpush.msra.mxu0 0.0
        %5805 = vmatpush.msra.mxu0 0.0
        %5806 = vmatpush.msra.mxu0 0.0
        %5807 = vmatpush.msra.mxu0 0.0
        %5808 = vmatpush.msra.mxu0 0.0
        %5809 = vmatpush.msra.mxu0 0.0
        %5810 = vmatpush.msra.mxu0 0.0
        %5811 = vmatpush.msra.mxu0 0.0
        %5812 = vmatpush.msra.mxu0 0.0
        %5813 = vmatpush.msra.mxu0 0.0
        %5814 = vmatpush.msra.mxu0 0.0
        %5815 = vmatpush.msra.mxu0 %v3878
        %5816 = vmatpush.msra.mxu0 %v3219
        %5817 = vmatmul.f32.gmra.mxu0 %v3671
        %v5818 = vpop.f32.mrf.mxu0
        %v5819 = vadd.f32 %v3667, %v5818
        %5820 = vdwg.mxu0
        %5821 = vmatpush.msra.mxu0 0.0
        %5822 = vmatpush.msra.mxu0 0.0
        %5823 = vmatpush.msra.mxu0 0.0
        %5824 = vmatpush.msra.mxu0 0.0
        %5825 = vmatpush.msra.mxu0 0.0
        %5826 = vmatpush.msra.mxu0 0.0
        %5827 = vmatpush.msra.mxu0 0.0
        %5828 = vmatpush.msra.mxu0 0.0
        %5829 = vmatpush.msra.mxu0 0.0
        %5830 = vmatpush.msra.mxu0 0.0
        %5831 = vmatpush.msra.mxu0 0.0
        %5832 = vmatpush.msra.mxu0 0.0
        %5833 = vmatpush.msra.mxu0 0.0
        %5834 = vmatpush.msra.mxu0 0.0
        %5835 = vmatpush.msra.mxu0 %v3881
        %5836 = vmatpush.msra.mxu0 %v3220
        %5837 = vmatmul.f32.gmra.mxu0 %v3671
        %v5838 = vpop.f32.mrf.mxu0
        %v5839 = vadd.f32 %v3667, %v5838
        %5840 = vdwg.mxu0
        %5841 = vmatpush.msra.mxu0 0.0
        %5842 = vmatpush.msra.mxu0 0.0
        %5843 = vmatpush.msra.mxu0 0.0
        %5844 = vmatpush.msra.mxu0 0.0
        %5845 = vmatpush.msra.mxu0 0.0
        %5846 = vmatpush.msra.mxu0 0.0
        %5847 = vmatpush.msra.mxu0 0.0
        %5848 = vmatpush.msra.mxu0 0.0
        %5849 = vmatpush.msra.mxu0 0.0
        %5850 = vmatpush.msra.mxu0 0.0
        %5851 = vmatpush.msra.mxu0 0.0
        %5852 = vmatpush.msra.mxu0 0.0
        %5853 = vmatpush.msra.mxu0 0.0
        %5854 = vmatpush.msra.mxu0 0.0
        %5855 = vmatpush.msra.mxu0 %v3884
        %5856 = vmatpush.msra.mxu0 %v3221
        %5857 = vmatmul.f32.gmra.mxu0 %v3671
        %v5858 = vpop.f32.mrf.mxu0
        %v5859 = vadd.f32 %v3667, %v5858
        %5860 = vdwg.mxu0
        %5861 = vmatpush.msra.mxu0 0.0
        %5862 = vmatpush.msra.mxu0 0.0
        %5863 = vmatpush.msra.mxu0 0.0
        %5864 = vmatpush.msra.mxu0 0.0
        %5865 = vmatpush.msra.mxu0 0.0
        %5866 = vmatpush.msra.mxu0 0.0
        %5867 = vmatpush.msra.mxu0 0.0
        %5868 = vmatpush.msra.mxu0 0.0
        %5869 = vmatpush.msra.mxu0 0.0
        %5870 = vmatpush.msra.mxu0 0.0
        %5871 = vmatpush.msra.mxu0 0.0
        %5872 = vmatpush.msra.mxu0 0.0
        %5873 = vmatpush.msra.mxu0 0.0
        %5874 = vmatpush.msra.mxu0 0.0
        %5875 = vmatpush.msra.mxu0 %v3887
        %5876 = vmatpush.msra.mxu0 %v3222
        %5877 = vmatmul.f32.gmra.mxu0 %v3671
        %v5878 = vpop.f32.mrf.mxu0
        %v5879 = vadd.f32 %v3667, %v5878
        %5880 = vdwg.mxu0
        %5881 = vmatpush.msra.mxu0 0.0
        %5882 = vmatpush.msra.mxu0 0.0
        %5883 = vmatpush.msra.mxu0 0.0
        %5884 = vmatpush.msra.mxu0 0.0
        %5885 = vmatpush.msra.mxu0 0.0
        %5886 = vmatpush.msra.mxu0 0.0
        %5887 = vmatpush.msra.mxu0 0.0
        %5888 = vmatpush.msra.mxu0 0.0
        %5889 = vmatpush.msra.mxu0 0.0
        %5890 = vmatpush.msra.mxu0 0.0
        %5891 = vmatpush.msra.mxu0 0.0
        %5892 = vmatpush.msra.mxu0 0.0
        %5893 = vmatpush.msra.mxu0 0.0
        %5894 = vmatpush.msra.mxu0 0.0
        %5895 = vmatpush.msra.mxu0 %v3890
        %5896 = vmatpush.msra.mxu0 %v3223
        %5897 = vmatmul.f32.gmra.mxu0 %v3671
        %v5898 = vpop.f32.mrf.mxu0
        %v5899 = vadd.f32 %v3667, %v5898
        %5900 = vdwg.mxu0
        %5901 = vmatpush.msra.mxu0 0.0
        %5902 = vmatpush.msra.mxu0 0.0
        %5903 = vmatpush.msra.mxu0 0.0
        %5904 = vmatpush.msra.mxu0 0.0
        %5905 = vmatpush.msra.mxu0 0.0
        %5906 = vmatpush.msra.mxu0 0.0
        %5907 = vmatpush.msra.mxu0 0.0
        %5908 = vmatpush.msra.mxu0 0.0
        %5909 = vmatpush.msra.mxu0 0.0
        %5910 = vmatpush.msra.mxu0 0.0
        %5911 = vmatpush.msra.mxu0 0.0
        %5912 = vmatpush.msra.mxu0 0.0
        %5913 = vmatpush.msra.mxu0 0.0
        %5914 = vmatpush.msra.mxu0 0.0
        %5915 = vmatpush.msra.mxu0 %v3893
        %5916 = vmatpush.msra.mxu0 %v3224
        %5917 = vmatmul.f32.gmra.mxu0 %v3671
        %v5918 = vpop.f32.mrf.mxu0
        %v5919 = vadd.f32 %v3667, %v5918
        %5920 = vdwg.mxu0
        %5921 = vmatpush.msra.mxu0 0.0
        %5922 = vmatpush.msra.mxu0 0.0
        %5923 = vmatpush.msra.mxu0 0.0
        %5924 = vmatpush.msra.mxu0 0.0
        %5925 = vmatpush.msra.mxu0 0.0
        %5926 = vmatpush.msra.mxu0 0.0
        %5927 = vmatpush.msra.mxu0 0.0
        %5928 = vmatpush.msra.mxu0 0.0
        %5929 = vmatpush.msra.mxu0 0.0
        %5930 = vmatpush.msra.mxu0 0.0
        %5931 = vmatpush.msra.mxu0 0.0
        %5932 = vmatpush.msra.mxu0 0.0
        %5933 = vmatpush.msra.mxu0 0.0
        %5934 = vmatpush.msra.mxu0 0.0
        %5935 = vmatpush.msra.mxu0 %v3896
        %5936 = vmatpush.msra.mxu0 %v3225
        %5937 = vmatmul.f32.gmra.mxu0 %v3671
        %v5938 = vpop.f32.mrf.mxu0
        %v5939 = vadd.f32 %v3667, %v5938
        %5940 = vdwg.mxu0
        %5941 = vmatpush.msra.mxu0 0.0
        %5942 = vmatpush.msra.mxu0 0.0
        %5943 = vmatpush.msra.mxu0 0.0
        %5944 = vmatpush.msra.mxu0 0.0
        %5945 = vmatpush.msra.mxu0 0.0
        %5946 = vmatpush.msra.mxu0 0.0
        %5947 = vmatpush.msra.mxu0 0.0
        %5948 = vmatpush.msra.mxu0 0.0
        %5949 = vmatpush.msra.mxu0 0.0
        %5950 = vmatpush.msra.mxu0 0.0
        %5951 = vmatpush.msra.mxu0 0.0
        %5952 = vmatpush.msra.mxu0 0.0
        %5953 = vmatpush.msra.mxu0 0.0
        %5954 = vmatpush.msra.mxu0 0.0
        %5955 = vmatpush.msra.mxu0 %v3899
        %5956 = vmatpush.msra.mxu0 %v3226
        %5957 = vmatmul.f32.gmra.mxu0 %v3671
        %v5958 = vpop.f32.mrf.mxu0
        %v5959 = vadd.f32 %v3667, %v5958
        %5960 = vdwg.mxu0
        %5961 = vmatpush.msra.mxu0 0.0
        %5962 = vmatpush.msra.mxu0 0.0
        %5963 = vmatpush.msra.mxu0 0.0
        %5964 = vmatpush.msra.mxu0 0.0
        %5965 = vmatpush.msra.mxu0 0.0
        %5966 = vmatpush.msra.mxu0 0.0
        %5967 = vmatpush.msra.mxu0 0.0
        %5968 = vmatpush.msra.mxu0 0.0
        %5969 = vmatpush.msra.mxu0 0.0
        %5970 = vmatpush.msra.mxu0 0.0
        %5971 = vmatpush.msra.mxu0 0.0
        %5972 = vmatpush.msra.mxu0 0.0
        %5973 = vmatpush.msra.mxu0 0.0
        %5974 = vmatpush.msra.mxu0 0.0
        %5975 = vmatpush.msra.mxu0 %v3902
        %5976 = vmatpush.msra.mxu0 %v3227
        %5977 = vmatmul.f32.gmra.mxu0 %v3671
        %v5978 = vpop.f32.mrf.mxu0
        %v5979 = vadd.f32 %v3667, %v5978
        %5980 = vdwg.mxu0
        %5981 = vmatpush.msra.mxu0 0.0
        %5982 = vmatpush.msra.mxu0 0.0
        %5983 = vmatpush.msra.mxu0 0.0
        %5984 = vmatpush.msra.mxu0 0.0
        %5985 = vmatpush.msra.mxu0 0.0
        %5986 = vmatpush.msra.mxu0 0.0
        %5987 = vmatpush.msra.mxu0 0.0
        %5988 = vmatpush.msra.mxu0 0.0
        %5989 = vmatpush.msra.mxu0 0.0
        %5990 = vmatpush.msra.mxu0 0.0
        %5991 = vmatpush.msra.mxu0 0.0
        %5992 = vmatpush.msra.mxu0 0.0
        %5993 = vmatpush.msra.mxu0 0.0
        %5994 = vmatpush.msra.mxu0 0.0
        %5995 = vmatpush.msra.mxu0 %v3905
        %5996 = vmatpush.msra.mxu0 %v3228
        %5997 = vmatmul.f32.gmra.mxu0 %v3671
        %v5998 = vpop.f32.mrf.mxu0
        %v5999 = vadd.f32 %v3667, %v5998
        %6000 = vdwg.mxu0
        %6001 = vmatpush.msra.mxu0 0.0
        %6002 = vmatpush.msra.mxu0 0.0
        %6003 = vmatpush.msra.mxu0 0.0
        %6004 = vmatpush.msra.mxu0 0.0
        %6005 = vmatpush.msra.mxu0 0.0
        %6006 = vmatpush.msra.mxu0 0.0
        %6007 = vmatpush.msra.mxu0 0.0
        %6008 = vmatpush.msra.mxu0 0.0
        %6009 = vmatpush.msra.mxu0 0.0
        %6010 = vmatpush.msra.mxu0 0.0
        %6011 = vmatpush.msra.mxu0 0.0
        %6012 = vmatpush.msra.mxu0 0.0
        %6013 = vmatpush.msra.mxu0 0.0
        %6014 = vmatpush.msra.mxu0 0.0
        %6015 = vmatpush.msra.mxu0 %v3908
        %6016 = vmatpush.msra.mxu0 %v3229
        %6017 = vmatmul.f32.gmra.mxu0 %v3671
        %v6018 = vpop.f32.mrf.mxu0
        %v6019 = vadd.f32 %v3667, %v6018
        %6020 = vdwg.mxu0
        %6021 = vmatpush.msra.mxu0 0.0
        %6022 = vmatpush.msra.mxu0 0.0
        %6023 = vmatpush.msra.mxu0 0.0
        %6024 = vmatpush.msra.mxu0 0.0
        %6025 = vmatpush.msra.mxu0 0.0
        %6026 = vmatpush.msra.mxu0 0.0
        %6027 = vmatpush.msra.mxu0 0.0
        %6028 = vmatpush.msra.mxu0 0.0
        %6029 = vmatpush.msra.mxu0 0.0
        %6030 = vmatpush.msra.mxu0 0.0
        %6031 = vmatpush.msra.mxu0 0.0
        %6032 = vmatpush.msra.mxu0 0.0
        %6033 = vmatpush.msra.mxu0 0.0
        %6034 = vmatpush.msra.mxu0 0.0
        %6035 = vmatpush.msra.mxu0 %v3911
        %6036 = vmatpush.msra.mxu0 %v3230
        %6037 = vmatmul.f32.gmra.mxu0 %v3671
        %v6038 = vpop.f32.mrf.mxu0
        %v6039 = vadd.f32 %v3667, %v6038
        %6040 = vdwg.mxu0
        %6041 = vmatpush.msra.mxu0 0.0
        %6042 = vmatpush.msra.mxu0 0.0
        %6043 = vmatpush.msra.mxu0 0.0
        %6044 = vmatpush.msra.mxu0 0.0
        %6045 = vmatpush.msra.mxu0 0.0
        %6046 = vmatpush.msra.mxu0 0.0
        %6047 = vmatpush.msra.mxu0 0.0
        %6048 = vmatpush.msra.mxu0 0.0
        %6049 = vmatpush.msra.mxu0 0.0
        %6050 = vmatpush.msra.mxu0 0.0
        %6051 = vmatpush.msra.mxu0 0.0
        %6052 = vmatpush.msra.mxu0 0.0
        %6053 = vmatpush.msra.mxu0 0.0
        %6054 = vmatpush.msra.mxu0 0.0
        %6055 = vmatpush.msra.mxu0 %v3914
        %6056 = vmatpush.msra.mxu0 %v3231
        %6057 = vmatmul.f32.gmra.mxu0 %v3671
        %v6058 = vpop.f32.mrf.mxu0
        %v6059 = vadd.f32 %v3667, %v6058
        %6060 = vdwg.mxu0
        %6061 = vmatpush.msra.mxu0 0.0
        %6062 = vmatpush.msra.mxu0 0.0
        %6063 = vmatpush.msra.mxu0 0.0
        %6064 = vmatpush.msra.mxu0 0.0
        %6065 = vmatpush.msra.mxu0 0.0
        %6066 = vmatpush.msra.mxu0 0.0
        %6067 = vmatpush.msra.mxu0 0.0
        %6068 = vmatpush.msra.mxu0 0.0
        %6069 = vmatpush.msra.mxu0 0.0
        %6070 = vmatpush.msra.mxu0 0.0
        %6071 = vmatpush.msra.mxu0 0.0
        %6072 = vmatpush.msra.mxu0 0.0
        %6073 = vmatpush.msra.mxu0 0.0
        %6074 = vmatpush.msra.mxu0 0.0
        %6075 = vmatpush.msra.mxu0 %v3917
        %6076 = vmatpush.msra.mxu0 %v3232
        %6077 = vmatmul.f32.gmra.mxu0 %v3671
        %v6078 = vpop.f32.mrf.mxu0
        %v6079 = vadd.f32 %v3667, %v6078
        %6080 = vdwg.mxu0
        %6081 = vmatpush.msra.mxu0 0.0
        %6082 = vmatpush.msra.mxu0 0.0
        %6083 = vmatpush.msra.mxu0 0.0
        %6084 = vmatpush.msra.mxu0 0.0
        %6085 = vmatpush.msra.mxu0 0.0
        %6086 = vmatpush.msra.mxu0 0.0
        %6087 = vmatpush.msra.mxu0 0.0
        %6088 = vmatpush.msra.mxu0 0.0
        %6089 = vmatpush.msra.mxu0 0.0
        %6090 = vmatpush.msra.mxu0 0.0
        %6091 = vmatpush.msra.mxu0 0.0
        %6092 = vmatpush.msra.mxu0 0.0
        %6093 = vmatpush.msra.mxu0 0.0
        %6094 = vmatpush.msra.mxu0 0.0
        %6095 = vmatpush.msra.mxu0 %v3920
        %6096 = vmatpush.msra.mxu0 %v3233
        %6097 = vmatmul.f32.gmra.mxu0 %v3671
        %v6098 = vpop.f32.mrf.mxu0
        %v6099 = vadd.f32 %v3667, %v6098
        %6100 = vdwg.mxu0
        %6101 = vmatpush.msra.mxu0 0.0
        %6102 = vmatpush.msra.mxu0 0.0
        %6103 = vmatpush.msra.mxu0 0.0
        %6104 = vmatpush.msra.mxu0 0.0
        %6105 = vmatpush.msra.mxu0 0.0
        %6106 = vmatpush.msra.mxu0 0.0
        %6107 = vmatpush.msra.mxu0 0.0
        %6108 = vmatpush.msra.mxu0 0.0
        %6109 = vmatpush.msra.mxu0 0.0
        %6110 = vmatpush.msra.mxu0 0.0
        %6111 = vmatpush.msra.mxu0 0.0
        %6112 = vmatpush.msra.mxu0 0.0
        %6113 = vmatpush.msra.mxu0 0.0
        %6114 = vmatpush.msra.mxu0 0.0
        %6115 = vmatpush.msra.mxu0 %v3923
        %6116 = vmatpush.msra.mxu0 %v3234
        %6117 = vmatmul.f32.gmra.mxu0 %v3671
        %v6118 = vpop.f32.mrf.mxu0
        %v6119 = vadd.f32 %v3667, %v6118
        %6120 = vdwg.mxu0
        %6121 = vmatpush.msra.mxu0 0.0
        %6122 = vmatpush.msra.mxu0 0.0
        %6123 = vmatpush.msra.mxu0 0.0
        %6124 = vmatpush.msra.mxu0 0.0
        %6125 = vmatpush.msra.mxu0 0.0
        %6126 = vmatpush.msra.mxu0 0.0
        %6127 = vmatpush.msra.mxu0 0.0
        %6128 = vmatpush.msra.mxu0 0.0
        %6129 = vmatpush.msra.mxu0 0.0
        %6130 = vmatpush.msra.mxu0 0.0
        %6131 = vmatpush.msra.mxu0 0.0
        %6132 = vmatpush.msra.mxu0 0.0
        %6133 = vmatpush.msra.mxu0 0.0
        %6134 = vmatpush.msra.mxu0 0.0
        %6135 = vmatpush.msra.mxu0 %v3926
        %6136 = vmatpush.msra.mxu0 %v3235
        %6137 = vmatmul.f32.gmra.mxu0 %v3671
        %v6138 = vpop.f32.mrf.mxu0
        %v6139 = vadd.f32 %v3667, %v6138
        %6140 = vdwg.mxu0
        %6141 = vmatpush.msra.mxu0 0.0
        %6142 = vmatpush.msra.mxu0 0.0
        %6143 = vmatpush.msra.mxu0 0.0
        %6144 = vmatpush.msra.mxu0 0.0
        %6145 = vmatpush.msra.mxu0 0.0
        %6146 = vmatpush.msra.mxu0 0.0
        %6147 = vmatpush.msra.mxu0 0.0
        %6148 = vmatpush.msra.mxu0 0.0
        %6149 = vmatpush.msra.mxu0 0.0
        %6150 = vmatpush.msra.mxu0 0.0
        %6151 = vmatpush.msra.mxu0 0.0
        %6152 = vmatpush.msra.mxu0 0.0
        %6153 = vmatpush.msra.mxu0 0.0
        %6154 = vmatpush.msra.mxu0 0.0
        %6155 = vmatpush.msra.mxu0 %v3929
        %6156 = vmatpush.msra.mxu0 %v3236
        %6157 = vmatmul.f32.gmra.mxu0 %v3671
        %v6158 = vpop.f32.mrf.mxu0
        %v6159 = vadd.f32 %v3667, %v6158
        %6160 = vdwg.mxu0
        %6161 = vmatpush.msra.mxu0 0.0
        %6162 = vmatpush.msra.mxu0 0.0
        %6163 = vmatpush.msra.mxu0 0.0
        %6164 = vmatpush.msra.mxu0 0.0
        %6165 = vmatpush.msra.mxu0 0.0
        %6166 = vmatpush.msra.mxu0 0.0
        %6167 = vmatpush.msra.mxu0 0.0
        %6168 = vmatpush.msra.mxu0 0.0
        %6169 = vmatpush.msra.mxu0 0.0
        %6170 = vmatpush.msra.mxu0 0.0
        %6171 = vmatpush.msra.mxu0 0.0
        %6172 = vmatpush.msra.mxu0 0.0
        %6173 = vmatpush.msra.mxu0 0.0
        %6174 = vmatpush.msra.mxu0 0.0
        %6175 = vmatpush.msra.mxu0 %v3932
        %6176 = vmatpush.msra.mxu0 %v3237
        %6177 = vmatmul.f32.gmra.mxu0 %v3671
        %v6178 = vpop.f32.mrf.mxu0
        %v6179 = vadd.f32 %v3667, %v6178
        %6180 = vdwg.mxu0
        %6181 = vmatpush.msra.mxu0 0.0
        %6182 = vmatpush.msra.mxu0 0.0
        %6183 = vmatpush.msra.mxu0 0.0
        %6184 = vmatpush.msra.mxu0 0.0
        %6185 = vmatpush.msra.mxu0 0.0
        %6186 = vmatpush.msra.mxu0 0.0
        %6187 = vmatpush.msra.mxu0 0.0
        %6188 = vmatpush.msra.mxu0 0.0
        %6189 = vmatpush.msra.mxu0 0.0
        %6190 = vmatpush.msra.mxu0 0.0
        %6191 = vmatpush.msra.mxu0 0.0
        %6192 = vmatpush.msra.mxu0 0.0
        %6193 = vmatpush.msra.mxu0 0.0
        %6194 = vmatpush.msra.mxu0 0.0
        %6195 = vmatpush.msra.mxu0 %v3935
        %6196 = vmatpush.msra.mxu0 %v3238
        %6197 = vmatmul.f32.gmra.mxu0 %v3671
        %v6198 = vpop.f32.mrf.mxu0
        %v6199 = vadd.f32 %v3667, %v6198
        %6200 = vdwg.mxu0
        %6201 = vmatpush.msra.mxu0 0.0
        %6202 = vmatpush.msra.mxu0 0.0
        %6203 = vmatpush.msra.mxu0 0.0
        %6204 = vmatpush.msra.mxu0 0.0
        %6205 = vmatpush.msra.mxu0 0.0
        %6206 = vmatpush.msra.mxu0 0.0
        %6207 = vmatpush.msra.mxu0 0.0
        %6208 = vmatpush.msra.mxu0 0.0
        %6209 = vmatpush.msra.mxu0 0.0
        %6210 = vmatpush.msra.mxu0 0.0
        %6211 = vmatpush.msra.mxu0 0.0
        %6212 = vmatpush.msra.mxu0 0.0
        %6213 = vmatpush.msra.mxu0 0.0
        %6214 = vmatpush.msra.mxu0 0.0
        %6215 = vmatpush.msra.mxu0 %v3938
        %6216 = vmatpush.msra.mxu0 %v3239
        %6217 = vmatmul.f32.gmra.mxu0 %v3671
        %v6218 = vpop.f32.mrf.mxu0
        %v6219 = vadd.f32 %v3667, %v6218
        %6220 = vdwg.mxu0
        %6221 = vmatpush.msra.mxu0 0.0
        %6222 = vmatpush.msra.mxu0 0.0
        %6223 = vmatpush.msra.mxu0 0.0
        %6224 = vmatpush.msra.mxu0 0.0
        %6225 = vmatpush.msra.mxu0 0.0
        %6226 = vmatpush.msra.mxu0 0.0
        %6227 = vmatpush.msra.mxu0 0.0
        %6228 = vmatpush.msra.mxu0 0.0
        %6229 = vmatpush.msra.mxu0 0.0
        %6230 = vmatpush.msra.mxu0 0.0
        %6231 = vmatpush.msra.mxu0 0.0
        %6232 = vmatpush.msra.mxu0 0.0
        %6233 = vmatpush.msra.mxu0 0.0
        %6234 = vmatpush.msra.mxu0 0.0
        %6235 = vmatpush.msra.mxu0 %v3941
        %6236 = vmatpush.msra.mxu0 %v3240
        %6237 = vmatmul.f32.gmra.mxu0 %v3671
        %v6238 = vpop.f32.mrf.mxu0
        %v6239 = vadd.f32 %v3667, %v6238
        %6240 = vdwg.mxu0
        %6241 = vmatpush.msra.mxu0 0.0
        %6242 = vmatpush.msra.mxu0 0.0
        %6243 = vmatpush.msra.mxu0 0.0
        %6244 = vmatpush.msra.mxu0 0.0
        %6245 = vmatpush.msra.mxu0 0.0
        %6246 = vmatpush.msra.mxu0 0.0
        %6247 = vmatpush.msra.mxu0 0.0
        %6248 = vmatpush.msra.mxu0 0.0
        %6249 = vmatpush.msra.mxu0 0.0
        %6250 = vmatpush.msra.mxu0 0.0
        %6251 = vmatpush.msra.mxu0 0.0
        %6252 = vmatpush.msra.mxu0 0.0
        %6253 = vmatpush.msra.mxu0 0.0
        %6254 = vmatpush.msra.mxu0 0.0
        %6255 = vmatpush.msra.mxu0 %v3944
        %6256 = vmatpush.msra.mxu0 %v3241
        %6257 = vmatmul.f32.gmra.mxu0 %v3671
        %v6258 = vpop.f32.mrf.mxu0
        %v6259 = vadd.f32 %v3667, %v6258
        %6260 = vdwg.mxu0
        %6261 = vmatpush.msra.mxu0 0.0
        %6262 = vmatpush.msra.mxu0 0.0
        %6263 = vmatpush.msra.mxu0 0.0
        %6264 = vmatpush.msra.mxu0 0.0
        %6265 = vmatpush.msra.mxu0 0.0
        %6266 = vmatpush.msra.mxu0 0.0
        %6267 = vmatpush.msra.mxu0 0.0
        %6268 = vmatpush.msra.mxu0 0.0
        %6269 = vmatpush.msra.mxu0 0.0
        %6270 = vmatpush.msra.mxu0 0.0
        %6271 = vmatpush.msra.mxu0 0.0
        %6272 = vmatpush.msra.mxu0 0.0
        %6273 = vmatpush.msra.mxu0 0.0
        %6274 = vmatpush.msra.mxu0 0.0
        %6275 = vmatpush.msra.mxu0 %v3947
        %6276 = vmatpush.msra.mxu0 %v3242
        %6277 = vmatmul.f32.gmra.mxu0 %v3671
        %v6278 = vpop.f32.mrf.mxu0
        %v6279 = vadd.f32 %v3667, %v6278
        %6280 = vdwg.mxu0
        %6281 = vmatpush.msra.mxu0 0.0
        %6282 = vmatpush.msra.mxu0 0.0
        %6283 = vmatpush.msra.mxu0 0.0
        %6284 = vmatpush.msra.mxu0 0.0
        %6285 = vmatpush.msra.mxu0 0.0
        %6286 = vmatpush.msra.mxu0 0.0
        %6287 = vmatpush.msra.mxu0 0.0
        %6288 = vmatpush.msra.mxu0 0.0
        %6289 = vmatpush.msra.mxu0 0.0
        %6290 = vmatpush.msra.mxu0 0.0
        %6291 = vmatpush.msra.mxu0 0.0
        %6292 = vmatpush.msra.mxu0 0.0
        %6293 = vmatpush.msra.mxu0 0.0
        %6294 = vmatpush.msra.mxu0 0.0
        %6295 = vmatpush.msra.mxu0 %v3950
        %6296 = vmatpush.msra.mxu0 %v3243
        %6297 = vmatmul.f32.gmra.mxu0 %v3671
        %v6298 = vpop.f32.mrf.mxu0
        %v6299 = vadd.f32 %v3667, %v6298
        %6300 = vdwg.mxu0
        %6301 = vmatpush.msra.mxu0 0.0
        %6302 = vmatpush.msra.mxu0 0.0
        %6303 = vmatpush.msra.mxu0 0.0
        %6304 = vmatpush.msra.mxu0 0.0
        %6305 = vmatpush.msra.mxu0 0.0
        %6306 = vmatpush.msra.mxu0 0.0
        %6307 = vmatpush.msra.mxu0 0.0
        %6308 = vmatpush.msra.mxu0 0.0
        %6309 = vmatpush.msra.mxu0 0.0
        %6310 = vmatpush.msra.mxu0 0.0
        %6311 = vmatpush.msra.mxu0 0.0
        %6312 = vmatpush.msra.mxu0 0.0
        %6313 = vmatpush.msra.mxu0 0.0
        %6314 = vmatpush.msra.mxu0 0.0
        %6315 = vmatpush.msra.mxu0 %v3953
        %6316 = vmatpush.msra.mxu0 %v3244
        %6317 = vmatmul.f32.gmra.mxu0 %v3671
        %v6318 = vpop.f32.mrf.mxu0
        %v6319 = vadd.f32 %v3667, %v6318
        %6320 = vdwg.mxu0
        %6321 = vmatpush.msra.mxu0 0.0
        %6322 = vmatpush.msra.mxu0 0.0
        %6323 = vmatpush.msra.mxu0 0.0
        %6324 = vmatpush.msra.mxu0 0.0
        %6325 = vmatpush.msra.mxu0 0.0
        %6326 = vmatpush.msra.mxu0 0.0
        %6327 = vmatpush.msra.mxu0 0.0
        %6328 = vmatpush.msra.mxu0 0.0
        %6329 = vmatpush.msra.mxu0 0.0
        %6330 = vmatpush.msra.mxu0 0.0
        %6331 = vmatpush.msra.mxu0 0.0
        %6332 = vmatpush.msra.mxu0 0.0
        %6333 = vmatpush.msra.mxu0 0.0
        %6334 = vmatpush.msra.mxu0 0.0
        %6335 = vmatpush.msra.mxu0 %v3956
        %6336 = vmatpush.msra.mxu0 %v3245
        %6337 = vmatmul.f32.gmra.mxu0 %v3671
        %v6338 = vpop.f32.mrf.mxu0
        %v6339 = vadd.f32 %v3667, %v6338
        %6340 = vdwg.mxu0
        %6341 = vmatpush.msra.mxu0 0.0
        %6342 = vmatpush.msra.mxu0 0.0
        %6343 = vmatpush.msra.mxu0 0.0
        %6344 = vmatpush.msra.mxu0 0.0
        %6345 = vmatpush.msra.mxu0 0.0
        %6346 = vmatpush.msra.mxu0 0.0
        %6347 = vmatpush.msra.mxu0 0.0
        %6348 = vmatpush.msra.mxu0 0.0
        %6349 = vmatpush.msra.mxu0 0.0
        %6350 = vmatpush.msra.mxu0 0.0
        %6351 = vmatpush.msra.mxu0 0.0
        %6352 = vmatpush.msra.mxu0 0.0
        %6353 = vmatpush.msra.mxu0 0.0
        %6354 = vmatpush.msra.mxu0 0.0
        %6355 = vmatpush.msra.mxu0 %v3959
        %6356 = vmatpush.msra.mxu0 %v3246
        %6357 = vmatmul.f32.gmra.mxu0 %v3671
        %v6358 = vpop.f32.mrf.mxu0
        %v6359 = vadd.f32 %v3667, %v6358
        %6360 = vdwg.mxu0
        %6361 = vmatpush.msra.mxu0 0.0
        %6362 = vmatpush.msra.mxu0 0.0
        %6363 = vmatpush.msra.mxu0 0.0
        %6364 = vmatpush.msra.mxu0 0.0
        %6365 = vmatpush.msra.mxu0 0.0
        %6366 = vmatpush.msra.mxu0 0.0
        %6367 = vmatpush.msra.mxu0 0.0
        %6368 = vmatpush.msra.mxu0 0.0
        %6369 = vmatpush.msra.mxu0 0.0
        %6370 = vmatpush.msra.mxu0 0.0
        %6371 = vmatpush.msra.mxu0 0.0
        %6372 = vmatpush.msra.mxu0 0.0
        %6373 = vmatpush.msra.mxu0 0.0
        %6374 = vmatpush.msra.mxu0 0.0
        %6375 = vmatpush.msra.mxu0 %v3962
        %6376 = vmatpush.msra.mxu0 %v3247
        %6377 = vmatmul.f32.gmra.mxu0 %v3671
        %v6378 = vpop.f32.mrf.mxu0
        %v6379 = vadd.f32 %v3667, %v6378
        %6380 = vdwg.mxu0
        %6381 = vmatpush.msra.mxu0 0.0
        %6382 = vmatpush.msra.mxu0 0.0
        %6383 = vmatpush.msra.mxu0 0.0
        %6384 = vmatpush.msra.mxu0 0.0
        %6385 = vmatpush.msra.mxu0 0.0
        %6386 = vmatpush.msra.mxu0 0.0
        %6387 = vmatpush.msra.mxu0 0.0
        %6388 = vmatpush.msra.mxu0 0.0
        %6389 = vmatpush.msra.mxu0 0.0
        %6390 = vmatpush.msra.mxu0 0.0
        %6391 = vmatpush.msra.mxu0 0.0
        %6392 = vmatpush.msra.mxu0 0.0
        %6393 = vmatpush.msra.mxu0 0.0
        %6394 = vmatpush.msra.mxu0 0.0
        %6395 = vmatpush.msra.mxu0 %v3965
        %6396 = vmatpush.msra.mxu0 %v3248
        %6397 = vmatmul.f32.gmra.mxu0 %v3671
        %v6398 = vpop.f32.mrf.mxu0
        %v6399 = vadd.f32 %v3667, %v6398
        %6400 = vdwg.mxu0
        %6401 = vmatpush.msra.mxu0 0.0
        %6402 = vmatpush.msra.mxu0 0.0
        %6403 = vmatpush.msra.mxu0 0.0
        %6404 = vmatpush.msra.mxu0 0.0
        %6405 = vmatpush.msra.mxu0 0.0
        %6406 = vmatpush.msra.mxu0 0.0
        %6407 = vmatpush.msra.mxu0 0.0
        %6408 = vmatpush.msra.mxu0 0.0
        %6409 = vmatpush.msra.mxu0 0.0
        %6410 = vmatpush.msra.mxu0 0.0
        %6411 = vmatpush.msra.mxu0 0.0
        %6412 = vmatpush.msra.mxu0 0.0
        %6413 = vmatpush.msra.mxu0 0.0
        %6414 = vmatpush.msra.mxu0 0.0
        %6415 = vmatpush.msra.mxu0 %v3968
        %6416 = vmatpush.msra.mxu0 %v3249
        %6417 = vmatmul.f32.gmra.mxu0 %v3671
        %v6418 = vpop.f32.mrf.mxu0
        %v6419 = vadd.f32 %v3667, %v6418
        %6420 = vdwg.mxu0
        %6421 = vmatpush.msra.mxu0 0.0
        %6422 = vmatpush.msra.mxu0 0.0
        %6423 = vmatpush.msra.mxu0 0.0
        %6424 = vmatpush.msra.mxu0 0.0
        %6425 = vmatpush.msra.mxu0 0.0
        %6426 = vmatpush.msra.mxu0 0.0
        %6427 = vmatpush.msra.mxu0 0.0
        %6428 = vmatpush.msra.mxu0 0.0
        %6429 = vmatpush.msra.mxu0 0.0
        %6430 = vmatpush.msra.mxu0 0.0
        %6431 = vmatpush.msra.mxu0 0.0
        %6432 = vmatpush.msra.mxu0 0.0
        %6433 = vmatpush.msra.mxu0 0.0
        %6434 = vmatpush.msra.mxu0 0.0
        %6435 = vmatpush.msra.mxu0 %v3971
        %6436 = vmatpush.msra.mxu0 %v3250
        %6437 = vmatmul.f32.gmra.mxu0 %v3671
        %v6438 = vpop.f32.mrf.mxu0
        %v6439 = vadd.f32 %v3667, %v6438
        %6440 = vdwg.mxu0
        %6441 = vmatpush.msra.mxu0 0.0
        %6442 = vmatpush.msra.mxu0 0.0
        %6443 = vmatpush.msra.mxu0 0.0
        %6444 = vmatpush.msra.mxu0 0.0
        %6445 = vmatpush.msra.mxu0 0.0
        %6446 = vmatpush.msra.mxu0 0.0
        %6447 = vmatpush.msra.mxu0 0.0
        %6448 = vmatpush.msra.mxu0 0.0
        %6449 = vmatpush.msra.mxu0 0.0
        %6450 = vmatpush.msra.mxu0 0.0
        %6451 = vmatpush.msra.mxu0 0.0
        %6452 = vmatpush.msra.mxu0 0.0
        %6453 = vmatpush.msra.mxu0 0.0
        %6454 = vmatpush.msra.mxu0 0.0
        %6455 = vmatpush.msra.mxu0 %v3974
        %6456 = vmatpush.msra.mxu0 %v3251
        %6457 = vmatmul.f32.gmra.mxu0 %v3671
        %v6458 = vpop.f32.mrf.mxu0
        %v6459 = vadd.f32 %v3667, %v6458
        %6460 = vdwg.mxu0
        %6461 = vmatpush.msra.mxu0 0.0
        %6462 = vmatpush.msra.mxu0 0.0
        %6463 = vmatpush.msra.mxu0 0.0
        %6464 = vmatpush.msra.mxu0 0.0
        %6465 = vmatpush.msra.mxu0 0.0
        %6466 = vmatpush.msra.mxu0 0.0
        %6467 = vmatpush.msra.mxu0 0.0
        %6468 = vmatpush.msra.mxu0 0.0
        %6469 = vmatpush.msra.mxu0 0.0
        %6470 = vmatpush.msra.mxu0 0.0
        %6471 = vmatpush.msra.mxu0 0.0
        %6472 = vmatpush.msra.mxu0 0.0
        %6473 = vmatpush.msra.mxu0 0.0
        %6474 = vmatpush.msra.mxu0 0.0
        %6475 = vmatpush.msra.mxu0 %v3977
        %6476 = vmatpush.msra.mxu0 %v3252
        %6477 = vmatmul.f32.gmra.mxu0 %v3671
        %v6478 = vpop.f32.mrf.mxu0
        %v6479 = vadd.f32 %v3667, %v6478
        %6480 = vdwg.mxu0
        %6481 = vmatpush.msra.mxu0 0.0
        %6482 = vmatpush.msra.mxu0 0.0
        %6483 = vmatpush.msra.mxu0 0.0
        %6484 = vmatpush.msra.mxu0 0.0
        %6485 = vmatpush.msra.mxu0 0.0
        %6486 = vmatpush.msra.mxu0 0.0
        %6487 = vmatpush.msra.mxu0 0.0
        %6488 = vmatpush.msra.mxu0 0.0
        %6489 = vmatpush.msra.mxu0 0.0
        %6490 = vmatpush.msra.mxu0 0.0
        %6491 = vmatpush.msra.mxu0 0.0
        %6492 = vmatpush.msra.mxu0 0.0
        %6493 = vmatpush.msra.mxu0 0.0
        %6494 = vmatpush.msra.mxu0 0.0
        %6495 = vmatpush.msra.mxu0 %v3980
        %6496 = vmatpush.msra.mxu0 %v3253
        %6497 = vmatmul.f32.gmra.mxu0 %v3671
        %v6498 = vpop.f32.mrf.mxu0
        %v6499 = vadd.f32 %v3667, %v6498
        %6500 = vdwg.mxu0
        %6501 = vmatpush.msra.mxu0 0.0
        %6502 = vmatpush.msra.mxu0 0.0
        %6503 = vmatpush.msra.mxu0 0.0
        %6504 = vmatpush.msra.mxu0 0.0
        %6505 = vmatpush.msra.mxu0 0.0
        %6506 = vmatpush.msra.mxu0 0.0
        %6507 = vmatpush.msra.mxu0 0.0
        %6508 = vmatpush.msra.mxu0 0.0
        %6509 = vmatpush.msra.mxu0 0.0
        %6510 = vmatpush.msra.mxu0 0.0
        %6511 = vmatpush.msra.mxu0 0.0
        %6512 = vmatpush.msra.mxu0 0.0
        %6513 = vmatpush.msra.mxu0 0.0
        %6514 = vmatpush.msra.mxu0 0.0
        %6515 = vmatpush.msra.mxu0 %v3983
        %6516 = vmatpush.msra.mxu0 %v3254
        %6517 = vmatmul.f32.gmra.mxu0 %v3671
        %v6518 = vpop.f32.mrf.mxu0
        %v6519 = vadd.f32 %v3667, %v6518
        %6520 = vdwg.mxu0
        %6521 = vmatpush.msra.mxu0 0.0
        %6522 = vmatpush.msra.mxu0 0.0
        %6523 = vmatpush.msra.mxu0 0.0
        %6524 = vmatpush.msra.mxu0 0.0
        %6525 = vmatpush.msra.mxu0 0.0
        %6526 = vmatpush.msra.mxu0 0.0
        %6527 = vmatpush.msra.mxu0 0.0
        %6528 = vmatpush.msra.mxu0 0.0
        %6529 = vmatpush.msra.mxu0 0.0
        %6530 = vmatpush.msra.mxu0 0.0
        %6531 = vmatpush.msra.mxu0 0.0
        %6532 = vmatpush.msra.mxu0 0.0
        %6533 = vmatpush.msra.mxu0 0.0
        %6534 = vmatpush.msra.mxu0 0.0
        %6535 = vmatpush.msra.mxu0 %v3986
        %6536 = vmatpush.msra.mxu0 %v3255
        %6537 = vmatmul.f32.gmra.mxu0 %v3671
        %v6538 = vpop.f32.mrf.mxu0
        %v6539 = vadd.f32 %v3667, %v6538
        %6540 = vdwg.mxu0
        %6541 = vmatpush.msra.mxu0 0.0
        %6542 = vmatpush.msra.mxu0 0.0
        %6543 = vmatpush.msra.mxu0 0.0
        %6544 = vmatpush.msra.mxu0 0.0
        %6545 = vmatpush.msra.mxu0 0.0
        %6546 = vmatpush.msra.mxu0 0.0
        %6547 = vmatpush.msra.mxu0 0.0
        %6548 = vmatpush.msra.mxu0 0.0
        %6549 = vmatpush.msra.mxu0 0.0
        %6550 = vmatpush.msra.mxu0 0.0
        %6551 = vmatpush.msra.mxu0 0.0
        %6552 = vmatpush.msra.mxu0 0.0
        %6553 = vmatpush.msra.mxu0 0.0
        %6554 = vmatpush.msra.mxu0 0.0
        %6555 = vmatpush.msra.mxu0 %v3989
        %6556 = vmatpush.msra.mxu0 %v3256
        %6557 = vmatmul.f32.gmra.mxu0 %v3671
        %v6558 = vpop.f32.mrf.mxu0
        %v6559 = vadd.f32 %v3667, %v6558
        %6560 = vdwg.mxu0
        %6561 = vmatpush.msra.mxu0 0.0
        %6562 = vmatpush.msra.mxu0 0.0
        %6563 = vmatpush.msra.mxu0 0.0
        %6564 = vmatpush.msra.mxu0 0.0
        %6565 = vmatpush.msra.mxu0 0.0
        %6566 = vmatpush.msra.mxu0 0.0
        %6567 = vmatpush.msra.mxu0 0.0
        %6568 = vmatpush.msra.mxu0 0.0
        %6569 = vmatpush.msra.mxu0 0.0
        %6570 = vmatpush.msra.mxu0 0.0
        %6571 = vmatpush.msra.mxu0 0.0
        %6572 = vmatpush.msra.mxu0 0.0
        %6573 = vmatpush.msra.mxu0 0.0
        %6574 = vmatpush.msra.mxu0 0.0
        %6575 = vmatpush.msra.mxu0 %v3992
        %6576 = vmatpush.msra.mxu0 %v3257
        %6577 = vmatmul.f32.gmra.mxu0 %v3671
        %v6578 = vpop.f32.mrf.mxu0
        %v6579 = vadd.f32 %v3667, %v6578
        %6580 = vdwg.mxu0
        %6581 = vmatpush.msra.mxu0 0.0
        %6582 = vmatpush.msra.mxu0 0.0
        %6583 = vmatpush.msra.mxu0 0.0
        %6584 = vmatpush.msra.mxu0 0.0
        %6585 = vmatpush.msra.mxu0 0.0
        %6586 = vmatpush.msra.mxu0 0.0
        %6587 = vmatpush.msra.mxu0 0.0
        %6588 = vmatpush.msra.mxu0 0.0
        %6589 = vmatpush.msra.mxu0 0.0
        %6590 = vmatpush.msra.mxu0 0.0
        %6591 = vmatpush.msra.mxu0 0.0
        %6592 = vmatpush.msra.mxu0 0.0
        %6593 = vmatpush.msra.mxu0 0.0
        %6594 = vmatpush.msra.mxu0 0.0
        %6595 = vmatpush.msra.mxu0 %v3995
        %6596 = vmatpush.msra.mxu0 %v3258
        %6597 = vmatmul.f32.gmra.mxu0 %v3671
        %v6598 = vpop.f32.mrf.mxu0
        %v6599 = vadd.f32 %v3667, %v6598
        %6600 = vdwg.mxu0
        %6601 = vmatpush.msra.mxu0 0.0
        %6602 = vmatpush.msra.mxu0 0.0
        %6603 = vmatpush.msra.mxu0 0.0
        %6604 = vmatpush.msra.mxu0 0.0
        %6605 = vmatpush.msra.mxu0 0.0
        %6606 = vmatpush.msra.mxu0 0.0
        %6607 = vmatpush.msra.mxu0 0.0
        %6608 = vmatpush.msra.mxu0 0.0
        %6609 = vmatpush.msra.mxu0 0.0
        %6610 = vmatpush.msra.mxu0 0.0
        %6611 = vmatpush.msra.mxu0 0.0
        %6612 = vmatpush.msra.mxu0 0.0
        %6613 = vmatpush.msra.mxu0 0.0
        %6614 = vmatpush.msra.mxu0 0.0
        %6615 = vmatpush.msra.mxu0 %v3998
        %6616 = vmatpush.msra.mxu0 %v3259
        %6617 = vmatmul.f32.gmra.mxu0 %v3671
        %v6618 = vpop.f32.mrf.mxu0
        %v6619 = vadd.f32 %v3667, %v6618
        %6620 = vdwg.mxu0
        %6621 = vmatpush.msra.mxu0 0.0
        %6622 = vmatpush.msra.mxu0 0.0
        %6623 = vmatpush.msra.mxu0 0.0
        %6624 = vmatpush.msra.mxu0 0.0
        %6625 = vmatpush.msra.mxu0 0.0
        %6626 = vmatpush.msra.mxu0 0.0
        %6627 = vmatpush.msra.mxu0 0.0
        %6628 = vmatpush.msra.mxu0 0.0
        %6629 = vmatpush.msra.mxu0 0.0
        %6630 = vmatpush.msra.mxu0 0.0
        %6631 = vmatpush.msra.mxu0 0.0
        %6632 = vmatpush.msra.mxu0 0.0
        %6633 = vmatpush.msra.mxu0 0.0
        %6634 = vmatpush.msra.mxu0 0.0
        %6635 = vmatpush.msra.mxu0 %v4001
        %6636 = vmatpush.msra.mxu0 %v3260
        %6637 = vmatmul.f32.gmra.mxu0 %v3671
        %v6638 = vpop.f32.mrf.mxu0
        %v6639 = vadd.f32 %v3667, %v6638
        %6640 = vdwg.mxu0
        %6641 = vmatpush.msra.mxu0 0.0
        %6642 = vmatpush.msra.mxu0 0.0
        %6643 = vmatpush.msra.mxu0 0.0
        %6644 = vmatpush.msra.mxu0 0.0
        %6645 = vmatpush.msra.mxu0 0.0
        %6646 = vmatpush.msra.mxu0 0.0
        %6647 = vmatpush.msra.mxu0 0.0
        %6648 = vmatpush.msra.mxu0 0.0
        %6649 = vmatpush.msra.mxu0 0.0
        %6650 = vmatpush.msra.mxu0 0.0
        %6651 = vmatpush.msra.mxu0 0.0
        %6652 = vmatpush.msra.mxu0 0.0
        %6653 = vmatpush.msra.mxu0 0.0
        %6654 = vmatpush.msra.mxu0 0.0
        %6655 = vmatpush.msra.mxu0 %v4004
        %6656 = vmatpush.msra.mxu0 %v3261
        %6657 = vmatmul.f32.gmra.mxu0 %v3671
        %v6658 = vpop.f32.mrf.mxu0
        %v6659 = vadd.f32 %v3667, %v6658
        %6660 = vdwg.mxu0
        %6661 = vmatpush.msra.mxu0 0.0
        %6662 = vmatpush.msra.mxu0 0.0
        %6663 = vmatpush.msra.mxu0 0.0
        %6664 = vmatpush.msra.mxu0 0.0
        %6665 = vmatpush.msra.mxu0 0.0
        %6666 = vmatpush.msra.mxu0 0.0
        %6667 = vmatpush.msra.mxu0 0.0
        %6668 = vmatpush.msra.mxu0 0.0
        %6669 = vmatpush.msra.mxu0 0.0
        %6670 = vmatpush.msra.mxu0 0.0
        %6671 = vmatpush.msra.mxu0 0.0
        %6672 = vmatpush.msra.mxu0 0.0
        %6673 = vmatpush.msra.mxu0 0.0
        %6674 = vmatpush.msra.mxu0 0.0
        %6675 = vmatpush.msra.mxu0 %v4007
        %6676 = vmatpush.msra.mxu0 %v3262
        %6677 = vmatmul.f32.gmra.mxu0 %v3671
        %v6678 = vpop.f32.mrf.mxu0
        %v6679 = vadd.f32 %v3667, %v6678
        %6680 = vdwg.mxu0
        %6681 = vmatpush.msra.mxu0 0.0
        %6682 = vmatpush.msra.mxu0 0.0
        %6683 = vmatpush.msra.mxu0 0.0
        %6684 = vmatpush.msra.mxu0 0.0
        %6685 = vmatpush.msra.mxu0 0.0
        %6686 = vmatpush.msra.mxu0 0.0
        %6687 = vmatpush.msra.mxu0 0.0
        %6688 = vmatpush.msra.mxu0 0.0
        %6689 = vmatpush.msra.mxu0 0.0
        %6690 = vmatpush.msra.mxu0 0.0
        %6691 = vmatpush.msra.mxu0 0.0
        %6692 = vmatpush.msra.mxu0 0.0
        %6693 = vmatpush.msra.mxu0 0.0
        %6694 = vmatpush.msra.mxu0 0.0
        %6695 = vmatpush.msra.mxu0 %v4010
        %6696 = vmatpush.msra.mxu0 %v3263
        %6697 = vmatmul.f32.gmra.mxu0 %v3671
        %v6698 = vpop.f32.mrf.mxu0
        %v6699 = vadd.f32 %v3667, %v6698
        %6700 = vdwg.mxu0
        %6701 = vmatpush.msra.mxu0 0.0
        %6702 = vmatpush.msra.mxu0 0.0
        %6703 = vmatpush.msra.mxu0 0.0
        %6704 = vmatpush.msra.mxu0 0.0
        %6705 = vmatpush.msra.mxu0 0.0
        %6706 = vmatpush.msra.mxu0 0.0
        %6707 = vmatpush.msra.mxu0 0.0
        %6708 = vmatpush.msra.mxu0 0.0
        %6709 = vmatpush.msra.mxu0 0.0
        %6710 = vmatpush.msra.mxu0 0.0
        %6711 = vmatpush.msra.mxu0 0.0
        %6712 = vmatpush.msra.mxu0 0.0
        %6713 = vmatpush.msra.mxu0 0.0
        %6714 = vmatpush.msra.mxu0 0.0
        %6715 = vmatpush.msra.mxu0 %v4013
        %6716 = vmatpush.msra.mxu0 %v3264
        %6717 = vmatmul.f32.gmra.mxu0 %v3671
        %v6718 = vpop.f32.mrf.mxu0
        %v6719 = vadd.f32 %v3667, %v6718
        %6720 = vdwg.mxu0
        %6721 = vmatpush.msra.mxu0 0.0
        %6722 = vmatpush.msra.mxu0 0.0
        %6723 = vmatpush.msra.mxu0 0.0
        %6724 = vmatpush.msra.mxu0 0.0
        %6725 = vmatpush.msra.mxu0 0.0
        %6726 = vmatpush.msra.mxu0 0.0
        %6727 = vmatpush.msra.mxu0 0.0
        %6728 = vmatpush.msra.mxu0 0.0
        %6729 = vmatpush.msra.mxu0 0.0
        %6730 = vmatpush.msra.mxu0 0.0
        %6731 = vmatpush.msra.mxu0 0.0
        %6732 = vmatpush.msra.mxu0 0.0
        %6733 = vmatpush.msra.mxu0 0.0
        %6734 = vmatpush.msra.mxu0 0.0
        %6735 = vmatpush.msra.mxu0 %v4016
        %6736 = vmatpush.msra.mxu0 %v3265
        %6737 = vmatmul.f32.gmra.mxu0 %v3671
        %v6738 = vpop.f32.mrf.mxu0
        %v6739 = vadd.f32 %v3667, %v6738
        %6740 = vdwg.mxu0
        %6741 = vmatpush.msra.mxu0 0.0
        %6742 = vmatpush.msra.mxu0 0.0
        %6743 = vmatpush.msra.mxu0 0.0
        %6744 = vmatpush.msra.mxu0 0.0
        %6745 = vmatpush.msra.mxu0 0.0
        %6746 = vmatpush.msra.mxu0 0.0
        %6747 = vmatpush.msra.mxu0 0.0
        %6748 = vmatpush.msra.mxu0 0.0
        %6749 = vmatpush.msra.mxu0 0.0
        %6750 = vmatpush.msra.mxu0 0.0
        %6751 = vmatpush.msra.mxu0 0.0
        %6752 = vmatpush.msra.mxu0 0.0
        %6753 = vmatpush.msra.mxu0 0.0
        %6754 = vmatpush.msra.mxu0 0.0
        %6755 = vmatpush.msra.mxu0 %v4019
        %6756 = vmatpush.msra.mxu0 %v3266
        %6757 = vmatmul.f32.gmra.mxu0 %v3671
        %v6758 = vpop.f32.mrf.mxu0
        %v6759 = vadd.f32 %v3667, %v6758
        %6760 = vdwg.mxu0
        %6761 = vmatpush.msra.mxu0 0.0
        %6762 = vmatpush.msra.mxu0 0.0
        %6763 = vmatpush.msra.mxu0 0.0
        %6764 = vmatpush.msra.mxu0 0.0
        %6765 = vmatpush.msra.mxu0 0.0
        %6766 = vmatpush.msra.mxu0 0.0
        %6767 = vmatpush.msra.mxu0 0.0
        %6768 = vmatpush.msra.mxu0 0.0
        %6769 = vmatpush.msra.mxu0 0.0
        %6770 = vmatpush.msra.mxu0 0.0
        %6771 = vmatpush.msra.mxu0 0.0
        %6772 = vmatpush.msra.mxu0 0.0
        %6773 = vmatpush.msra.mxu0 0.0
        %6774 = vmatpush.msra.mxu0 0.0
        %6775 = vmatpush.msra.mxu0 %v4022
        %6776 = vmatpush.msra.mxu0 %v3267
        %6777 = vmatmul.f32.gmra.mxu0 %v3671
        %v6778 = vpop.f32.mrf.mxu0
        %v6779 = vadd.f32 %v3667, %v6778
        %6780 = vdwg.mxu0
        %6781 = vmatpush.msra.mxu0 0.0
        %6782 = vmatpush.msra.mxu0 0.0
        %6783 = vmatpush.msra.mxu0 0.0
        %6784 = vmatpush.msra.mxu0 0.0
        %6785 = vmatpush.msra.mxu0 0.0
        %6786 = vmatpush.msra.mxu0 0.0
        %6787 = vmatpush.msra.mxu0 0.0
        %6788 = vmatpush.msra.mxu0 0.0
        %6789 = vmatpush.msra.mxu0 0.0
        %6790 = vmatpush.msra.mxu0 0.0
        %6791 = vmatpush.msra.mxu0 0.0
        %6792 = vmatpush.msra.mxu0 0.0
        %6793 = vmatpush.msra.mxu0 0.0
        %6794 = vmatpush.msra.mxu0 0.0
        %6795 = vmatpush.msra.mxu0 %v4025
        %6796 = vmatpush.msra.mxu0 %v3268
        %6797 = vmatmul.f32.gmra.mxu0 %v3671
        %v6798 = vpop.f32.mrf.mxu0
        %v6799 = vadd.f32 %v3667, %v6798
        %6800 = vdwg.mxu0
        %6801 = vmatpush.msra.mxu0 0.0
        %6802 = vmatpush.msra.mxu0 0.0
        %6803 = vmatpush.msra.mxu0 0.0
        %6804 = vmatpush.msra.mxu0 0.0
        %6805 = vmatpush.msra.mxu0 0.0
        %6806 = vmatpush.msra.mxu0 0.0
        %6807 = vmatpush.msra.mxu0 0.0
        %6808 = vmatpush.msra.mxu0 0.0
        %6809 = vmatpush.msra.mxu0 0.0
        %6810 = vmatpush.msra.mxu0 0.0
        %6811 = vmatpush.msra.mxu0 0.0
        %6812 = vmatpush.msra.mxu0 0.0
        %6813 = vmatpush.msra.mxu0 0.0
        %6814 = vmatpush.msra.mxu0 0.0
        %6815 = vmatpush.msra.mxu0 %v4028
        %6816 = vmatpush.msra.mxu0 %v3269
        %6817 = vmatmul.f32.gmra.mxu0 %v3671
        %v6818 = vpop.f32.mrf.mxu0
        %v6819 = vadd.f32 %v3667, %v6818
        %6820 = vdwg.mxu0
        %6821 = vmatpush.msra.mxu0 0.0
        %6822 = vmatpush.msra.mxu0 0.0
        %6823 = vmatpush.msra.mxu0 0.0
        %6824 = vmatpush.msra.mxu0 0.0
        %6825 = vmatpush.msra.mxu0 0.0
        %6826 = vmatpush.msra.mxu0 0.0
        %6827 = vmatpush.msra.mxu0 0.0
        %6828 = vmatpush.msra.mxu0 0.0
        %6829 = vmatpush.msra.mxu0 0.0
        %6830 = vmatpush.msra.mxu0 0.0
        %6831 = vmatpush.msra.mxu0 0.0
        %6832 = vmatpush.msra.mxu0 0.0
        %6833 = vmatpush.msra.mxu0 0.0
        %6834 = vmatpush.msra.mxu0 0.0
        %6835 = vmatpush.msra.mxu0 %v4031
        %6836 = vmatpush.msra.mxu0 %v3270
        %6837 = vmatmul.f32.gmra.mxu0 %v3671
        %v6838 = vpop.f32.mrf.mxu0
        %v6839 = vadd.f32 %v3667, %v6838
        %6840 = vdwg.mxu0
        %6841 = vmatpush.msra.mxu0 0.0
        %6842 = vmatpush.msra.mxu0 0.0
        %6843 = vmatpush.msra.mxu0 0.0
        %6844 = vmatpush.msra.mxu0 0.0
        %6845 = vmatpush.msra.mxu0 0.0
        %6846 = vmatpush.msra.mxu0 0.0
        %6847 = vmatpush.msra.mxu0 0.0
        %6848 = vmatpush.msra.mxu0 0.0
        %6849 = vmatpush.msra.mxu0 0.0
        %6850 = vmatpush.msra.mxu0 0.0
        %6851 = vmatpush.msra.mxu0 0.0
        %6852 = vmatpush.msra.mxu0 0.0
        %6853 = vmatpush.msra.mxu0 0.0
        %6854 = vmatpush.msra.mxu0 0.0
        %6855 = vmatpush.msra.mxu0 %v4034
        %6856 = vmatpush.msra.mxu0 %v3271
        %6857 = vmatmul.f32.gmra.mxu0 %v3671
        %v6858 = vpop.f32.mrf.mxu0
        %v6859 = vadd.f32 %v3667, %v6858
        %6860 = vdwg.mxu0
        %6861 = vmatpush.msra.mxu0 0.0
        %6862 = vmatpush.msra.mxu0 0.0
        %6863 = vmatpush.msra.mxu0 0.0
        %6864 = vmatpush.msra.mxu0 0.0
        %6865 = vmatpush.msra.mxu0 0.0
        %6866 = vmatpush.msra.mxu0 0.0
        %6867 = vmatpush.msra.mxu0 0.0
        %6868 = vmatpush.msra.mxu0 0.0
        %6869 = vmatpush.msra.mxu0 0.0
        %6870 = vmatpush.msra.mxu0 0.0
        %6871 = vmatpush.msra.mxu0 0.0
        %6872 = vmatpush.msra.mxu0 0.0
        %6873 = vmatpush.msra.mxu0 0.0
        %6874 = vmatpush.msra.mxu0 0.0
        %6875 = vmatpush.msra.mxu0 %v4037
        %6876 = vmatpush.msra.mxu0 %v3272
        %6877 = vmatmul.f32.gmra.mxu0 %v3671
        %v6878 = vpop.f32.mrf.mxu0
        %v6879 = vadd.f32 %v3667, %v6878
        %6880 = vdwg.mxu0
        %6881 = vmatpush.msra.mxu0 0.0
        %6882 = vmatpush.msra.mxu0 0.0
        %6883 = vmatpush.msra.mxu0 0.0
        %6884 = vmatpush.msra.mxu0 0.0
        %6885 = vmatpush.msra.mxu0 0.0
        %6886 = vmatpush.msra.mxu0 0.0
        %6887 = vmatpush.msra.mxu0 0.0
        %6888 = vmatpush.msra.mxu0 0.0
        %6889 = vmatpush.msra.mxu0 0.0
        %6890 = vmatpush.msra.mxu0 0.0
        %6891 = vmatpush.msra.mxu0 0.0
        %6892 = vmatpush.msra.mxu0 0.0
        %6893 = vmatpush.msra.mxu0 0.0
        %6894 = vmatpush.msra.mxu0 0.0
        %6895 = vmatpush.msra.mxu0 %v4040
        %6896 = vmatpush.msra.mxu0 %v3273
        %6897 = vmatmul.f32.gmra.mxu0 %v3671
        %v6898 = vpop.f32.mrf.mxu0
        %v6899 = vadd.f32 %v3667, %v6898
        %6900 = vdwg.mxu0
        %6901 = vmatpush.msra.mxu0 0.0
        %6902 = vmatpush.msra.mxu0 0.0
        %6903 = vmatpush.msra.mxu0 0.0
        %6904 = vmatpush.msra.mxu0 0.0
        %6905 = vmatpush.msra.mxu0 0.0
        %6906 = vmatpush.msra.mxu0 0.0
        %6907 = vmatpush.msra.mxu0 0.0
        %6908 = vmatpush.msra.mxu0 0.0
        %6909 = vmatpush.msra.mxu0 0.0
        %6910 = vmatpush.msra.mxu0 0.0
        %6911 = vmatpush.msra.mxu0 0.0
        %6912 = vmatpush.msra.mxu0 0.0
        %6913 = vmatpush.msra.mxu0 0.0
        %6914 = vmatpush.msra.mxu0 0.0
        %6915 = vmatpush.msra.mxu0 %v4043
        %6916 = vmatpush.msra.mxu0 %v3274
        %6917 = vmatmul.f32.gmra.mxu0 %v3671
        %v6918 = vpop.f32.mrf.mxu0
        %v6919 = vadd.f32 %v3667, %v6918
        %6920 = vdwg.mxu0
        %6921 = vmatpush.msra.mxu0 0.0
        %6922 = vmatpush.msra.mxu0 0.0
        %6923 = vmatpush.msra.mxu0 0.0
        %6924 = vmatpush.msra.mxu0 0.0
        %6925 = vmatpush.msra.mxu0 0.0
        %6926 = vmatpush.msra.mxu0 0.0
        %6927 = vmatpush.msra.mxu0 0.0
        %6928 = vmatpush.msra.mxu0 0.0
        %6929 = vmatpush.msra.mxu0 0.0
        %6930 = vmatpush.msra.mxu0 0.0
        %6931 = vmatpush.msra.mxu0 0.0
        %6932 = vmatpush.msra.mxu0 0.0
        %6933 = vmatpush.msra.mxu0 0.0
        %6934 = vmatpush.msra.mxu0 0.0
        %6935 = vmatpush.msra.mxu0 %v4046
        %6936 = vmatpush.msra.mxu0 %v3275
        %6937 = vmatmul.f32.gmra.mxu0 %v3671
        %v6938 = vpop.f32.mrf.mxu0
        %v6939 = vadd.f32 %v3667, %v6938
        %6940 = vdwg.mxu0
        %6941 = vmatpush.msra.mxu0 0.0
        %6942 = vmatpush.msra.mxu0 0.0
        %6943 = vmatpush.msra.mxu0 0.0
        %6944 = vmatpush.msra.mxu0 0.0
        %6945 = vmatpush.msra.mxu0 0.0
        %6946 = vmatpush.msra.mxu0 0.0
        %6947 = vmatpush.msra.mxu0 0.0
        %6948 = vmatpush.msra.mxu0 0.0
        %6949 = vmatpush.msra.mxu0 0.0
        %6950 = vmatpush.msra.mxu0 0.0
        %6951 = vmatpush.msra.mxu0 0.0
        %6952 = vmatpush.msra.mxu0 0.0
        %6953 = vmatpush.msra.mxu0 0.0
        %6954 = vmatpush.msra.mxu0 0.0
        %6955 = vmatpush.msra.mxu0 %v4049
        %6956 = vmatpush.msra.mxu0 %v3276
        %6957 = vmatmul.f32.gmra.mxu0 %v3671
        %v6958 = vpop.f32.mrf.mxu0
        %v6959 = vadd.f32 %v3667, %v6958
        %6960 = vdwg.mxu0
        %6961 = vmatpush.msra.mxu0 0.0
        %6962 = vmatpush.msra.mxu0 0.0
        %6963 = vmatpush.msra.mxu0 0.0
        %6964 = vmatpush.msra.mxu0 0.0
        %6965 = vmatpush.msra.mxu0 0.0
        %6966 = vmatpush.msra.mxu0 0.0
        %6967 = vmatpush.msra.mxu0 0.0
        %6968 = vmatpush.msra.mxu0 0.0
        %6969 = vmatpush.msra.mxu0 0.0
        %6970 = vmatpush.msra.mxu0 0.0
        %6971 = vmatpush.msra.mxu0 0.0
        %6972 = vmatpush.msra.mxu0 0.0
        %6973 = vmatpush.msra.mxu0 0.0
        %6974 = vmatpush.msra.mxu0 0.0
        %6975 = vmatpush.msra.mxu0 %v4052
        %6976 = vmatpush.msra.mxu0 %v3277
        %6977 = vmatmul.f32.gmra.mxu0 %v3671
        %v6978 = vpop.f32.mrf.mxu0
        %v6979 = vadd.f32 %v3667, %v6978
        %6980 = vdwg.mxu0
        %6981 = vmatpush.msra.mxu0 0.0
        %6982 = vmatpush.msra.mxu0 0.0
        %6983 = vmatpush.msra.mxu0 0.0
        %6984 = vmatpush.msra.mxu0 0.0
        %6985 = vmatpush.msra.mxu0 0.0
        %6986 = vmatpush.msra.mxu0 0.0
        %6987 = vmatpush.msra.mxu0 0.0
        %6988 = vmatpush.msra.mxu0 0.0
        %6989 = vmatpush.msra.mxu0 0.0
        %6990 = vmatpush.msra.mxu0 0.0
        %6991 = vmatpush.msra.mxu0 0.0
        %6992 = vmatpush.msra.mxu0 0.0
        %6993 = vmatpush.msra.mxu0 0.0
        %6994 = vmatpush.msra.mxu0 0.0
        %6995 = vmatpush.msra.mxu0 %v4055
        %6996 = vmatpush.msra.mxu0 %v3278
        %6997 = vmatmul.f32.gmra.mxu0 %v3671
        %v6998 = vpop.f32.mrf.mxu0
        %v6999 = vadd.f32 %v3667, %v6998
        %7000 = vdwg.mxu0
        %7001 = vmatpush.msra.mxu0 0.0
        %7002 = vmatpush.msra.mxu0 0.0
        %7003 = vmatpush.msra.mxu0 0.0
        %7004 = vmatpush.msra.mxu0 0.0
        %7005 = vmatpush.msra.mxu0 0.0
        %7006 = vmatpush.msra.mxu0 0.0
        %7007 = vmatpush.msra.mxu0 0.0
        %7008 = vmatpush.msra.mxu0 0.0
        %7009 = vmatpush.msra.mxu0 0.0
        %7010 = vmatpush.msra.mxu0 0.0
        %7011 = vmatpush.msra.mxu0 0.0
        %7012 = vmatpush.msra.mxu0 0.0
        %7013 = vmatpush.msra.mxu0 0.0
        %7014 = vmatpush.msra.mxu0 0.0
        %7015 = vmatpush.msra.mxu0 %v4058
        %7016 = vmatpush.msra.mxu0 %v3279
        %7017 = vmatmul.f32.gmra.mxu0 %v3671
        %v7018 = vpop.f32.mrf.mxu0
        %v7019 = vadd.f32 %v3667, %v7018
        %7020 = vdwg.mxu0
        %7021 = vmatpush.msra.mxu0 0.0
        %7022 = vmatpush.msra.mxu0 0.0
        %7023 = vmatpush.msra.mxu0 0.0
        %7024 = vmatpush.msra.mxu0 0.0
        %7025 = vmatpush.msra.mxu0 0.0
        %7026 = vmatpush.msra.mxu0 0.0
        %7027 = vmatpush.msra.mxu0 0.0
        %7028 = vmatpush.msra.mxu0 0.0
        %7029 = vmatpush.msra.mxu0 0.0
        %7030 = vmatpush.msra.mxu0 0.0
        %7031 = vmatpush.msra.mxu0 0.0
        %7032 = vmatpush.msra.mxu0 0.0
        %7033 = vmatpush.msra.mxu0 0.0
        %7034 = vmatpush.msra.mxu0 0.0
        %7035 = vmatpush.msra.mxu0 %v4061
        %7036 = vmatpush.msra.mxu0 %v3280
        %7037 = vmatmul.f32.gmra.mxu0 %v3671
        %v7038 = vpop.f32.mrf.mxu0
        %v7039 = vadd.f32 %v3667, %v7038
        %7040 = vdwg.mxu0
        %7041 = vmatpush.msra.mxu0 0.0
        %7042 = vmatpush.msra.mxu0 0.0
        %7043 = vmatpush.msra.mxu0 0.0
        %7044 = vmatpush.msra.mxu0 0.0
        %7045 = vmatpush.msra.mxu0 0.0
        %7046 = vmatpush.msra.mxu0 0.0
        %7047 = vmatpush.msra.mxu0 0.0
        %7048 = vmatpush.msra.mxu0 0.0
        %7049 = vmatpush.msra.mxu0 0.0
        %7050 = vmatpush.msra.mxu0 0.0
        %7051 = vmatpush.msra.mxu0 0.0
        %7052 = vmatpush.msra.mxu0 0.0
        %7053 = vmatpush.msra.mxu0 0.0
        %7054 = vmatpush.msra.mxu0 0.0
        %7055 = vmatpush.msra.mxu0 %v4064
        %7056 = vmatpush.msra.mxu0 %v3281
        %7057 = vmatmul.f32.gmra.mxu0 %v3671
        %v7058 = vpop.f32.mrf.mxu0
        %v7059 = vadd.f32 %v3667, %v7058
        %7060 = vdwg.mxu0
        %7061 = vmatpush.msra.mxu0 0.0
        %7062 = vmatpush.msra.mxu0 0.0
        %7063 = vmatpush.msra.mxu0 0.0
        %7064 = vmatpush.msra.mxu0 0.0
        %7065 = vmatpush.msra.mxu0 0.0
        %7066 = vmatpush.msra.mxu0 0.0
        %7067 = vmatpush.msra.mxu0 0.0
        %7068 = vmatpush.msra.mxu0 0.0
        %7069 = vmatpush.msra.mxu0 0.0
        %7070 = vmatpush.msra.mxu0 0.0
        %7071 = vmatpush.msra.mxu0 0.0
        %7072 = vmatpush.msra.mxu0 0.0
        %7073 = vmatpush.msra.mxu0 0.0
        %7074 = vmatpush.msra.mxu0 0.0
        %7075 = vmatpush.msra.mxu0 %v4067
        %7076 = vmatpush.msra.mxu0 %v3282
        %7077 = vmatmul.f32.gmra.mxu0 %v3671
        %v7078 = vpop.f32.mrf.mxu0
        %v7079 = vadd.f32 %v3667, %v7078
        %7080 = vdwg.mxu0
        %7081 = vmatpush.msra.mxu0 0.0
        %7082 = vmatpush.msra.mxu0 0.0
        %7083 = vmatpush.msra.mxu0 0.0
        %7084 = vmatpush.msra.mxu0 0.0
        %7085 = vmatpush.msra.mxu0 0.0
        %7086 = vmatpush.msra.mxu0 0.0
        %7087 = vmatpush.msra.mxu0 0.0
        %7088 = vmatpush.msra.mxu0 0.0
        %7089 = vmatpush.msra.mxu0 0.0
        %7090 = vmatpush.msra.mxu0 0.0
        %7091 = vmatpush.msra.mxu0 0.0
        %7092 = vmatpush.msra.mxu0 0.0
        %7093 = vmatpush.msra.mxu0 0.0
        %7094 = vmatpush.msra.mxu0 0.0
        %7095 = vmatpush.msra.mxu0 %v4070
        %7096 = vmatpush.msra.mxu0 %v3283
        %7097 = vmatmul.f32.gmra.mxu0 %v3671
        %v7098 = vpop.f32.mrf.mxu0
        %v7099 = vadd.f32 %v3667, %v7098
        %7100 = vdwg.mxu0
        %7101 = vmatpush.msra.mxu0 0.0
        %7102 = vmatpush.msra.mxu0 0.0
        %7103 = vmatpush.msra.mxu0 0.0
        %7104 = vmatpush.msra.mxu0 0.0
        %7105 = vmatpush.msra.mxu0 0.0
        %7106 = vmatpush.msra.mxu0 0.0
        %7107 = vmatpush.msra.mxu0 0.0
        %7108 = vmatpush.msra.mxu0 0.0
        %7109 = vmatpush.msra.mxu0 0.0
        %7110 = vmatpush.msra.mxu0 0.0
        %7111 = vmatpush.msra.mxu0 0.0
        %7112 = vmatpush.msra.mxu0 0.0
        %7113 = vmatpush.msra.mxu0 0.0
        %7114 = vmatpush.msra.mxu0 0.0
        %7115 = vmatpush.msra.mxu0 %v4073
        %7116 = vmatpush.msra.mxu0 %v3284
        %7117 = vmatmul.f32.gmra.mxu0 %v3671
        %v7118 = vpop.f32.mrf.mxu0
        %v7119 = vadd.f32 %v3667, %v7118
        %7120 = vdwg.mxu0
        %7121 = vmatpush.msra.mxu0 0.0
        %7122 = vmatpush.msra.mxu0 0.0
        %7123 = vmatpush.msra.mxu0 0.0
        %7124 = vmatpush.msra.mxu0 0.0
        %7125 = vmatpush.msra.mxu0 0.0
        %7126 = vmatpush.msra.mxu0 0.0
        %7127 = vmatpush.msra.mxu0 0.0
        %7128 = vmatpush.msra.mxu0 0.0
        %7129 = vmatpush.msra.mxu0 0.0
        %7130 = vmatpush.msra.mxu0 0.0
        %7131 = vmatpush.msra.mxu0 0.0
        %7132 = vmatpush.msra.mxu0 0.0
        %7133 = vmatpush.msra.mxu0 0.0
        %7134 = vmatpush.msra.mxu0 0.0
        %7135 = vmatpush.msra.mxu0 %v4076
        %7136 = vmatpush.msra.mxu0 %v3285
        %7137 = vmatmul.f32.gmra.mxu0 %v3671
        %v7138 = vpop.f32.mrf.mxu0
        %v7139 = vadd.f32 %v3667, %v7138
        %7140 = vdwg.mxu0
        %7141 = vmatpush.msra.mxu0 0.0
        %7142 = vmatpush.msra.mxu0 0.0
        %7143 = vmatpush.msra.mxu0 0.0
        %7144 = vmatpush.msra.mxu0 0.0
        %7145 = vmatpush.msra.mxu0 0.0
        %7146 = vmatpush.msra.mxu0 0.0
        %7147 = vmatpush.msra.mxu0 0.0
        %7148 = vmatpush.msra.mxu0 0.0
        %7149 = vmatpush.msra.mxu0 0.0
        %7150 = vmatpush.msra.mxu0 0.0
        %7151 = vmatpush.msra.mxu0 0.0
        %7152 = vmatpush.msra.mxu0 0.0
        %7153 = vmatpush.msra.mxu0 0.0
        %7154 = vmatpush.msra.mxu0 0.0
        %7155 = vmatpush.msra.mxu0 %v4079
        %7156 = vmatpush.msra.mxu0 %v3286
        %7157 = vmatmul.f32.gmra.mxu0 %v3671
        %v7158 = vpop.f32.mrf.mxu0
        %v7159 = vadd.f32 %v3667, %v7158
        %7160 = vdwg.mxu0
        %7161 = vmatpush.msra.mxu0 0.0
        %7162 = vmatpush.msra.mxu0 0.0
        %7163 = vmatpush.msra.mxu0 0.0
        %7164 = vmatpush.msra.mxu0 0.0
        %7165 = vmatpush.msra.mxu0 0.0
        %7166 = vmatpush.msra.mxu0 0.0
        %7167 = vmatpush.msra.mxu0 0.0
        %7168 = vmatpush.msra.mxu0 0.0
        %7169 = vmatpush.msra.mxu0 0.0
        %7170 = vmatpush.msra.mxu0 0.0
        %7171 = vmatpush.msra.mxu0 0.0
        %7172 = vmatpush.msra.mxu0 0.0
        %7173 = vmatpush.msra.mxu0 0.0
        %7174 = vmatpush.msra.mxu0 0.0
        %7175 = vmatpush.msra.mxu0 %v4082
        %7176 = vmatpush.msra.mxu0 %v3287
        %7177 = vmatmul.f32.gmra.mxu0 %v3671
        %v7178 = vpop.f32.mrf.mxu0
        %v7179 = vadd.f32 %v3667, %v7178
        %7180 = vdwg.mxu0
        %7181 = vmatpush.msra.mxu0 0.0
        %7182 = vmatpush.msra.mxu0 0.0
        %7183 = vmatpush.msra.mxu0 0.0
        %7184 = vmatpush.msra.mxu0 0.0
        %7185 = vmatpush.msra.mxu0 0.0
        %7186 = vmatpush.msra.mxu0 0.0
        %7187 = vmatpush.msra.mxu0 0.0
        %7188 = vmatpush.msra.mxu0 0.0
        %7189 = vmatpush.msra.mxu0 0.0
        %7190 = vmatpush.msra.mxu0 0.0
        %7191 = vmatpush.msra.mxu0 0.0
        %7192 = vmatpush.msra.mxu0 0.0
        %7193 = vmatpush.msra.mxu0 0.0
        %7194 = vmatpush.msra.mxu0 0.0
        %7195 = vmatpush.msra.mxu0 %v4085
        %7196 = vmatpush.msra.mxu0 %v3288
        %7197 = vmatmul.f32.gmra.mxu0 %v3671
        %v7198 = vpop.f32.mrf.mxu0
        %v7199 = vadd.f32 %v3667, %v7198
        %7200 = vdwg.mxu0
        %7201 = vmatpush.msra.mxu0 0.0
        %7202 = vmatpush.msra.mxu0 0.0
        %7203 = vmatpush.msra.mxu0 0.0
        %7204 = vmatpush.msra.mxu0 0.0
        %7205 = vmatpush.msra.mxu0 0.0
        %7206 = vmatpush.msra.mxu0 0.0
        %7207 = vmatpush.msra.mxu0 0.0
        %7208 = vmatpush.msra.mxu0 0.0
        %7209 = vmatpush.msra.mxu0 0.0
        %7210 = vmatpush.msra.mxu0 0.0
        %7211 = vmatpush.msra.mxu0 0.0
        %7212 = vmatpush.msra.mxu0 0.0
        %7213 = vmatpush.msra.mxu0 0.0
        %7214 = vmatpush.msra.mxu0 0.0
        %7215 = vmatpush.msra.mxu0 %v4088
        %7216 = vmatpush.msra.mxu0 %v3289
        %7217 = vmatmul.f32.gmra.mxu0 %v3671
        %v7218 = vpop.f32.mrf.mxu0
        %v7219 = vadd.f32 %v3667, %v7218
        %7220 = vdwg.mxu0
        %7221 = vmatpush.msra.mxu0 0.0
        %7222 = vmatpush.msra.mxu0 0.0
        %7223 = vmatpush.msra.mxu0 0.0
        %7224 = vmatpush.msra.mxu0 0.0
        %7225 = vmatpush.msra.mxu0 0.0
        %7226 = vmatpush.msra.mxu0 0.0
        %7227 = vmatpush.msra.mxu0 0.0
        %7228 = vmatpush.msra.mxu0 0.0
        %7229 = vmatpush.msra.mxu0 0.0
        %7230 = vmatpush.msra.mxu0 0.0
        %7231 = vmatpush.msra.mxu0 0.0
        %7232 = vmatpush.msra.mxu0 0.0
        %7233 = vmatpush.msra.mxu0 0.0
        %7234 = vmatpush.msra.mxu0 0.0
        %7235 = vmatpush.msra.mxu0 %v4091
        %7236 = vmatpush.msra.mxu0 %v3290
        %7237 = vmatmul.f32.gmra.mxu0 %v3671
        %v7238 = vpop.f32.mrf.mxu0
        %v7239 = vadd.f32 %v3667, %v7238
        %7240 = vdwg.mxu0
        %7241 = vmatpush.msra.mxu0 0.0
        %7242 = vmatpush.msra.mxu0 0.0
        %7243 = vmatpush.msra.mxu0 0.0
        %7244 = vmatpush.msra.mxu0 0.0
        %7245 = vmatpush.msra.mxu0 0.0
        %7246 = vmatpush.msra.mxu0 0.0
        %7247 = vmatpush.msra.mxu0 0.0
        %7248 = vmatpush.msra.mxu0 0.0
        %7249 = vmatpush.msra.mxu0 0.0
        %7250 = vmatpush.msra.mxu0 0.0
        %7251 = vmatpush.msra.mxu0 0.0
        %7252 = vmatpush.msra.mxu0 0.0
        %7253 = vmatpush.msra.mxu0 0.0
        %7254 = vmatpush.msra.mxu0 0.0
        %7255 = vmatpush.msra.mxu0 %v4094
        %7256 = vmatpush.msra.mxu0 %v3291
        %7257 = vmatmul.f32.gmra.mxu0 %v3671
        %v7258 = vpop.f32.mrf.mxu0
        %v7259 = vadd.f32 %v3667, %v7258
        %7260 = vdwg.mxu0
        %7261 = vmatpush.msra.mxu0 0.0
        %7262 = vmatpush.msra.mxu0 0.0
        %7263 = vmatpush.msra.mxu0 0.0
        %7264 = vmatpush.msra.mxu0 0.0
        %7265 = vmatpush.msra.mxu0 0.0
        %7266 = vmatpush.msra.mxu0 0.0
        %7267 = vmatpush.msra.mxu0 0.0
        %7268 = vmatpush.msra.mxu0 0.0
        %7269 = vmatpush.msra.mxu0 0.0
        %7270 = vmatpush.msra.mxu0 0.0
        %7271 = vmatpush.msra.mxu0 0.0
        %7272 = vmatpush.msra.mxu0 0.0
        %7273 = vmatpush.msra.mxu0 0.0
        %7274 = vmatpush.msra.mxu0 0.0
        %7275 = vmatpush.msra.mxu0 %v4097
        %7276 = vmatpush.msra.mxu0 %v3292
        %7277 = vmatmul.f32.gmra.mxu0 %v3671
        %v7278 = vpop.f32.mrf.mxu0
        %v7279 = vadd.f32 %v3667, %v7278
        %7280 = vdwg.mxu0
        %7281 = vmatpush.msra.mxu0 0.0
        %7282 = vmatpush.msra.mxu0 0.0
        %7283 = vmatpush.msra.mxu0 0.0
        %7284 = vmatpush.msra.mxu0 0.0
        %7285 = vmatpush.msra.mxu0 0.0
        %7286 = vmatpush.msra.mxu0 0.0
        %7287 = vmatpush.msra.mxu0 0.0
        %7288 = vmatpush.msra.mxu0 0.0
        %7289 = vmatpush.msra.mxu0 0.0
        %7290 = vmatpush.msra.mxu0 0.0
        %7291 = vmatpush.msra.mxu0 0.0
        %7292 = vmatpush.msra.mxu0 0.0
        %7293 = vmatpush.msra.mxu0 0.0
        %7294 = vmatpush.msra.mxu0 0.0
        %7295 = vmatpush.msra.mxu0 %v4100
        %7296 = vmatpush.msra.mxu0 %v3293
        %7297 = vmatmul.f32.gmra.mxu0 %v3671
        %v7298 = vpop.f32.mrf.mxu0
        %v7299 = vadd.f32 %v3667, %v7298
        %7300 = vdwg.mxu0
        %7301 = vmatpush.msra.mxu0 0.0
        %7302 = vmatpush.msra.mxu0 0.0
        %7303 = vmatpush.msra.mxu0 0.0
        %7304 = vmatpush.msra.mxu0 0.0
        %7305 = vmatpush.msra.mxu0 0.0
        %7306 = vmatpush.msra.mxu0 0.0
        %7307 = vmatpush.msra.mxu0 0.0
        %7308 = vmatpush.msra.mxu0 0.0
        %7309 = vmatpush.msra.mxu0 0.0
        %7310 = vmatpush.msra.mxu0 0.0
        %7311 = vmatpush.msra.mxu0 0.0
        %7312 = vmatpush.msra.mxu0 0.0
        %7313 = vmatpush.msra.mxu0 0.0
        %7314 = vmatpush.msra.mxu0 0.0
        %7315 = vmatpush.msra.mxu0 %v4103
        %7316 = vmatpush.msra.mxu0 %v3294
        %7317 = vmatmul.f32.gmra.mxu0 %v3671
        %v7318 = vpop.f32.mrf.mxu0
        %v7319 = vadd.f32 %v3667, %v7318
        %7320 = vdwg.mxu0
        %7321 = vmatpush.msra.mxu0 0.0
        %7322 = vmatpush.msra.mxu0 0.0
        %7323 = vmatpush.msra.mxu0 0.0
        %7324 = vmatpush.msra.mxu0 0.0
        %7325 = vmatpush.msra.mxu0 0.0
        %7326 = vmatpush.msra.mxu0 0.0
        %7327 = vmatpush.msra.mxu0 0.0
        %7328 = vmatpush.msra.mxu0 0.0
        %7329 = vmatpush.msra.mxu0 0.0
        %7330 = vmatpush.msra.mxu0 0.0
        %7331 = vmatpush.msra.mxu0 0.0
        %7332 = vmatpush.msra.mxu0 0.0
        %7333 = vmatpush.msra.mxu0 0.0
        %7334 = vmatpush.msra.mxu0 0.0
        %7335 = vmatpush.msra.mxu0 %v4106
        %7336 = vmatpush.msra.mxu0 %v3295
        %7337 = vmatmul.f32.gmra.mxu0 %v3671
        %v7338 = vpop.f32.mrf.mxu0
        %v7339 = vadd.f32 %v3667, %v7338
        %7340 = vdwg.mxu0
        %7341 = vmatpush.msra.mxu0 0.0
        %7342 = vmatpush.msra.mxu0 0.0
        %7343 = vmatpush.msra.mxu0 0.0
        %7344 = vmatpush.msra.mxu0 0.0
        %7345 = vmatpush.msra.mxu0 0.0
        %7346 = vmatpush.msra.mxu0 0.0
        %7347 = vmatpush.msra.mxu0 0.0
        %7348 = vmatpush.msra.mxu0 0.0
        %7349 = vmatpush.msra.mxu0 0.0
        %7350 = vmatpush.msra.mxu0 0.0
        %7351 = vmatpush.msra.mxu0 0.0
        %7352 = vmatpush.msra.mxu0 0.0
        %7353 = vmatpush.msra.mxu0 0.0
        %7354 = vmatpush.msra.mxu0 0.0
        %7355 = vmatpush.msra.mxu0 %v4109
        %7356 = vmatpush.msra.mxu0 %v3296
        %7357 = vmatmul.f32.gmra.mxu0 %v3671
        %v7358 = vpop.f32.mrf.mxu0
        %v7359 = vadd.f32 %v3667, %v7358
        %7360 = vdwg.mxu0
        %7361 = vmatpush.msra.mxu0 0.0
        %7362 = vmatpush.msra.mxu0 0.0
        %7363 = vmatpush.msra.mxu0 0.0
        %7364 = vmatpush.msra.mxu0 0.0
        %7365 = vmatpush.msra.mxu0 0.0
        %7366 = vmatpush.msra.mxu0 0.0
        %7367 = vmatpush.msra.mxu0 0.0
        %7368 = vmatpush.msra.mxu0 0.0
        %7369 = vmatpush.msra.mxu0 0.0
        %7370 = vmatpush.msra.mxu0 0.0
        %7371 = vmatpush.msra.mxu0 0.0
        %7372 = vmatpush.msra.mxu0 0.0
        %7373 = vmatpush.msra.mxu0 0.0
        %7374 = vmatpush.msra.mxu0 0.0
        %7375 = vmatpush.msra.mxu0 %v4112
        %7376 = vmatpush.msra.mxu0 %v3297
        %7377 = vmatmul.f32.gmra.mxu0 %v3671
        %v7378 = vpop.f32.mrf.mxu0
        %v7379 = vadd.f32 %v3667, %v7378
        %7380 = vdwg.mxu0
        %7381 = vmatpush.msra.mxu0 0.0
        %7382 = vmatpush.msra.mxu0 0.0
        %7383 = vmatpush.msra.mxu0 0.0
        %7384 = vmatpush.msra.mxu0 0.0
        %7385 = vmatpush.msra.mxu0 0.0
        %7386 = vmatpush.msra.mxu0 0.0
        %7387 = vmatpush.msra.mxu0 0.0
        %7388 = vmatpush.msra.mxu0 0.0
        %7389 = vmatpush.msra.mxu0 0.0
        %7390 = vmatpush.msra.mxu0 0.0
        %7391 = vmatpush.msra.mxu0 0.0
        %7392 = vmatpush.msra.mxu0 0.0
        %7393 = vmatpush.msra.mxu0 0.0
        %7394 = vmatpush.msra.mxu0 0.0
        %7395 = vmatpush.msra.mxu0 %v4115
        %7396 = vmatpush.msra.mxu0 %v3298
        %7397 = vmatmul.f32.gmra.mxu0 %v3671
        %v7398 = vpop.f32.mrf.mxu0
        %v7399 = vadd.f32 %v3667, %v7398
        %7400 = vdwg.mxu0
        %7401 = vmatpush.msra.mxu0 0.0
        %7402 = vmatpush.msra.mxu0 0.0
        %7403 = vmatpush.msra.mxu0 0.0
        %7404 = vmatpush.msra.mxu0 0.0
        %7405 = vmatpush.msra.mxu0 0.0
        %7406 = vmatpush.msra.mxu0 0.0
        %7407 = vmatpush.msra.mxu0 0.0
        %7408 = vmatpush.msra.mxu0 0.0
        %7409 = vmatpush.msra.mxu0 0.0
        %7410 = vmatpush.msra.mxu0 0.0
        %7411 = vmatpush.msra.mxu0 0.0
        %7412 = vmatpush.msra.mxu0 0.0
        %7413 = vmatpush.msra.mxu0 0.0
        %7414 = vmatpush.msra.mxu0 0.0
        %7415 = vmatpush.msra.mxu0 %v4118
        %7416 = vmatpush.msra.mxu0 %v3299
        %7417 = vmatmul.f32.gmra.mxu0 %v3671
        %v7418 = vpop.f32.mrf.mxu0
        %v7419 = vadd.f32 %v3667, %v7418
        %7420 = vdwg.mxu0
        %7421 = vmatpush.msra.mxu0 0.0
        %7422 = vmatpush.msra.mxu0 0.0
        %7423 = vmatpush.msra.mxu0 0.0
        %7424 = vmatpush.msra.mxu0 0.0
        %7425 = vmatpush.msra.mxu0 0.0
        %7426 = vmatpush.msra.mxu0 0.0
        %7427 = vmatpush.msra.mxu0 0.0
        %7428 = vmatpush.msra.mxu0 0.0
        %7429 = vmatpush.msra.mxu0 0.0
        %7430 = vmatpush.msra.mxu0 0.0
        %7431 = vmatpush.msra.mxu0 0.0
        %7432 = vmatpush.msra.mxu0 0.0
        %7433 = vmatpush.msra.mxu0 0.0
        %7434 = vmatpush.msra.mxu0 0.0
        %7435 = vmatpush.msra.mxu0 %v4121
        %7436 = vmatpush.msra.mxu0 %v3300
        %7437 = vmatmul.f32.gmra.mxu0 %v3671
        %v7438 = vpop.f32.mrf.mxu0
        %v7439 = vadd.f32 %v3667, %v7438
        %7440 = vdwg.mxu0
        %7441 = vmatpush.msra.mxu0 0.0
        %7442 = vmatpush.msra.mxu0 0.0
        %7443 = vmatpush.msra.mxu0 0.0
        %7444 = vmatpush.msra.mxu0 0.0
        %7445 = vmatpush.msra.mxu0 0.0
        %7446 = vmatpush.msra.mxu0 0.0
        %7447 = vmatpush.msra.mxu0 0.0
        %7448 = vmatpush.msra.mxu0 0.0
        %7449 = vmatpush.msra.mxu0 0.0
        %7450 = vmatpush.msra.mxu0 0.0
        %7451 = vmatpush.msra.mxu0 0.0
        %7452 = vmatpush.msra.mxu0 0.0
        %7453 = vmatpush.msra.mxu0 0.0
        %7454 = vmatpush.msra.mxu0 0.0
        %7455 = vmatpush.msra.mxu0 %v4124
        %7456 = vmatpush.msra.mxu0 %v3301
        %7457 = vmatmul.f32.gmra.mxu0 %v3671
        %v7458 = vpop.f32.mrf.mxu0
        %v7459 = vadd.f32 %v3667, %v7458
        %7460 = vdwg.mxu0
        %7461 = vmatpush.msra.mxu0 0.0
        %7462 = vmatpush.msra.mxu0 0.0
        %7463 = vmatpush.msra.mxu0 0.0
        %7464 = vmatpush.msra.mxu0 0.0
        %7465 = vmatpush.msra.mxu0 0.0
        %7466 = vmatpush.msra.mxu0 0.0
        %7467 = vmatpush.msra.mxu0 0.0
        %7468 = vmatpush.msra.mxu0 0.0
        %7469 = vmatpush.msra.mxu0 0.0
        %7470 = vmatpush.msra.mxu0 0.0
        %7471 = vmatpush.msra.mxu0 0.0
        %7472 = vmatpush.msra.mxu0 0.0
        %7473 = vmatpush.msra.mxu0 0.0
        %7474 = vmatpush.msra.mxu0 0.0
        %7475 = vmatpush.msra.mxu0 %v4127
        %7476 = vmatpush.msra.mxu0 %v3302
        %7477 = vmatmul.f32.gmra.mxu0 %v3671
        %v7478 = vpop.f32.mrf.mxu0
        %v7479 = vadd.f32 %v3667, %v7478
        %7480 = vdwg.mxu0
        %7481 = vmatpush.msra.mxu0 0.0
        %7482 = vmatpush.msra.mxu0 0.0
        %7483 = vmatpush.msra.mxu0 0.0
        %7484 = vmatpush.msra.mxu0 0.0
        %7485 = vmatpush.msra.mxu0 0.0
        %7486 = vmatpush.msra.mxu0 0.0
        %7487 = vmatpush.msra.mxu0 0.0
        %7488 = vmatpush.msra.mxu0 0.0
        %7489 = vmatpush.msra.mxu0 0.0
        %7490 = vmatpush.msra.mxu0 0.0
        %7491 = vmatpush.msra.mxu0 0.0
        %7492 = vmatpush.msra.mxu0 0.0
        %7493 = vmatpush.msra.mxu0 0.0
        %7494 = vmatpush.msra.mxu0 0.0
        %7495 = vmatpush.msra.mxu0 %v4130
        %7496 = vmatpush.msra.mxu0 %v3303
        %7497 = vmatmul.f32.gmra.mxu0 %v3671
        %v7498 = vpop.f32.mrf.mxu0
        %v7499 = vadd.f32 %v3667, %v7498
        %7500 = vdwg.mxu0
        %7501 = vmatpush.msra.mxu0 0.0
        %7502 = vmatpush.msra.mxu0 0.0
        %7503 = vmatpush.msra.mxu0 0.0
        %7504 = vmatpush.msra.mxu0 0.0
        %7505 = vmatpush.msra.mxu0 0.0
        %7506 = vmatpush.msra.mxu0 0.0
        %7507 = vmatpush.msra.mxu0 0.0
        %7508 = vmatpush.msra.mxu0 0.0
        %7509 = vmatpush.msra.mxu0 0.0
        %7510 = vmatpush.msra.mxu0 0.0
        %7511 = vmatpush.msra.mxu0 0.0
        %7512 = vmatpush.msra.mxu0 0.0
        %7513 = vmatpush.msra.mxu0 0.0
        %7514 = vmatpush.msra.mxu0 0.0
        %7515 = vmatpush.msra.mxu0 %v4133
        %7516 = vmatpush.msra.mxu0 %v3304
        %7517 = vmatmul.f32.gmra.mxu0 %v3671
        %v7518 = vpop.f32.mrf.mxu0
        %v7519 = vadd.f32 %v3667, %v7518
        %7520 = vdwg.mxu0
        %7521 = vmatpush.msra.mxu0 0.0
        %7522 = vmatpush.msra.mxu0 0.0
        %7523 = vmatpush.msra.mxu0 0.0
        %7524 = vmatpush.msra.mxu0 0.0
        %7525 = vmatpush.msra.mxu0 0.0
        %7526 = vmatpush.msra.mxu0 0.0
        %7527 = vmatpush.msra.mxu0 0.0
        %7528 = vmatpush.msra.mxu0 0.0
        %7529 = vmatpush.msra.mxu0 0.0
        %7530 = vmatpush.msra.mxu0 0.0
        %7531 = vmatpush.msra.mxu0 0.0
        %7532 = vmatpush.msra.mxu0 0.0
        %7533 = vmatpush.msra.mxu0 0.0
        %7534 = vmatpush.msra.mxu0 0.0
        %7535 = vmatpush.msra.mxu0 %v4136
        %7536 = vmatpush.msra.mxu0 %v3305
        %7537 = vmatmul.f32.gmra.mxu0 %v3671
        %v7538 = vpop.f32.mrf.mxu0
        %v7539 = vadd.f32 %v3667, %v7538
        %7540 = vdwg.mxu0
        %7541 = vmatpush.msra.mxu0 0.0
        %7542 = vmatpush.msra.mxu0 0.0
        %7543 = vmatpush.msra.mxu0 0.0
        %7544 = vmatpush.msra.mxu0 0.0
        %7545 = vmatpush.msra.mxu0 0.0
        %7546 = vmatpush.msra.mxu0 0.0
        %7547 = vmatpush.msra.mxu0 0.0
        %7548 = vmatpush.msra.mxu0 0.0
        %7549 = vmatpush.msra.mxu0 0.0
        %7550 = vmatpush.msra.mxu0 0.0
        %7551 = vmatpush.msra.mxu0 0.0
        %7552 = vmatpush.msra.mxu0 0.0
        %7553 = vmatpush.msra.mxu0 0.0
        %7554 = vmatpush.msra.mxu0 0.0
        %7555 = vmatpush.msra.mxu0 %v4139
        %7556 = vmatpush.msra.mxu0 %v3306
        %7557 = vmatmul.f32.gmra.mxu0 %v3671
        %v7558 = vpop.f32.mrf.mxu0
        %v7559 = vadd.f32 %v3667, %v7558
        %7560 = vdwg.mxu0
        %7561 = vmatpush.msra.mxu0 0.0
        %7562 = vmatpush.msra.mxu0 0.0
        %7563 = vmatpush.msra.mxu0 0.0
        %7564 = vmatpush.msra.mxu0 0.0
        %7565 = vmatpush.msra.mxu0 0.0
        %7566 = vmatpush.msra.mxu0 0.0
        %7567 = vmatpush.msra.mxu0 0.0
        %7568 = vmatpush.msra.mxu0 0.0
        %7569 = vmatpush.msra.mxu0 0.0
        %7570 = vmatpush.msra.mxu0 0.0
        %7571 = vmatpush.msra.mxu0 0.0
        %7572 = vmatpush.msra.mxu0 0.0
        %7573 = vmatpush.msra.mxu0 0.0
        %7574 = vmatpush.msra.mxu0 0.0
        %7575 = vmatpush.msra.mxu0 %v4142
        %7576 = vmatpush.msra.mxu0 %v3307
        %7577 = vmatmul.f32.gmra.mxu0 %v3671
        %v7578 = vpop.f32.mrf.mxu0
        %v7579 = vadd.f32 %v3667, %v7578
        %7580 = vdwg.mxu0
        %7581 = vmatpush.msra.mxu0 0.0
        %7582 = vmatpush.msra.mxu0 0.0
        %7583 = vmatpush.msra.mxu0 0.0
        %7584 = vmatpush.msra.mxu0 0.0
        %7585 = vmatpush.msra.mxu0 0.0
        %7586 = vmatpush.msra.mxu0 0.0
        %7587 = vmatpush.msra.mxu0 0.0
        %7588 = vmatpush.msra.mxu0 0.0
        %7589 = vmatpush.msra.mxu0 0.0
        %7590 = vmatpush.msra.mxu0 0.0
        %7591 = vmatpush.msra.mxu0 0.0
        %7592 = vmatpush.msra.mxu0 0.0
        %7593 = vmatpush.msra.mxu0 0.0
        %7594 = vmatpush.msra.mxu0 0.0
        %7595 = vmatpush.msra.mxu0 %v4145
        %7596 = vmatpush.msra.mxu0 %v3308
        %7597 = vmatmul.f32.gmra.mxu0 %v3671
        %v7598 = vpop.f32.mrf.mxu0
        %v7599 = vadd.f32 %v3667, %v7598
        %7600 = vdwg.mxu0
        %7601 = vmatpush.msra.mxu0 0.0
        %7602 = vmatpush.msra.mxu0 0.0
        %7603 = vmatpush.msra.mxu0 0.0
        %7604 = vmatpush.msra.mxu0 0.0
        %7605 = vmatpush.msra.mxu0 0.0
        %7606 = vmatpush.msra.mxu0 0.0
        %7607 = vmatpush.msra.mxu0 0.0
        %7608 = vmatpush.msra.mxu0 0.0
        %7609 = vmatpush.msra.mxu0 0.0
        %7610 = vmatpush.msra.mxu0 0.0
        %7611 = vmatpush.msra.mxu0 0.0
        %7612 = vmatpush.msra.mxu0 0.0
        %7613 = vmatpush.msra.mxu0 0.0
        %7614 = vmatpush.msra.mxu0 0.0
        %7615 = vmatpush.msra.mxu0 %v4148
        %7616 = vmatpush.msra.mxu0 %v3309
        %7617 = vmatmul.f32.gmra.mxu0 %v3671
        %v7618 = vpop.f32.mrf.mxu0
        %v7619 = vadd.f32 %v3667, %v7618
        %7620 = vdwg.mxu0
        %7621 = vmatpush.msra.mxu0 0.0
        %7622 = vmatpush.msra.mxu0 0.0
        %7623 = vmatpush.msra.mxu0 0.0
        %7624 = vmatpush.msra.mxu0 0.0
        %7625 = vmatpush.msra.mxu0 0.0
        %7626 = vmatpush.msra.mxu0 0.0
        %7627 = vmatpush.msra.mxu0 0.0
        %7628 = vmatpush.msra.mxu0 0.0
        %7629 = vmatpush.msra.mxu0 0.0
        %7630 = vmatpush.msra.mxu0 0.0
        %7631 = vmatpush.msra.mxu0 0.0
        %7632 = vmatpush.msra.mxu0 0.0
        %7633 = vmatpush.msra.mxu0 0.0
        %7634 = vmatpush.msra.mxu0 0.0
        %7635 = vmatpush.msra.mxu0 %v4151
        %7636 = vmatpush.msra.mxu0 %v3310
        %7637 = vmatmul.f32.gmra.mxu0 %v3671
        %v7638 = vpop.f32.mrf.mxu0
        %v7639 = vadd.f32 %v3667, %v7638
        %7640 = vdwg.mxu0
        %7641 = vmatpush.msra.mxu0 0.0
        %7642 = vmatpush.msra.mxu0 0.0
        %7643 = vmatpush.msra.mxu0 0.0
        %7644 = vmatpush.msra.mxu0 0.0
        %7645 = vmatpush.msra.mxu0 0.0
        %7646 = vmatpush.msra.mxu0 0.0
        %7647 = vmatpush.msra.mxu0 0.0
        %7648 = vmatpush.msra.mxu0 0.0
        %7649 = vmatpush.msra.mxu0 0.0
        %7650 = vmatpush.msra.mxu0 0.0
        %7651 = vmatpush.msra.mxu0 0.0
        %7652 = vmatpush.msra.mxu0 0.0
        %7653 = vmatpush.msra.mxu0 0.0
        %7654 = vmatpush.msra.mxu0 0.0
        %7655 = vmatpush.msra.mxu0 %v4154
        %7656 = vmatpush.msra.mxu0 %v3311
        %7657 = vmatmul.f32.gmra.mxu0 %v3671
        %v7658 = vpop.f32.mrf.mxu0
        %v7659 = vadd.f32 %v3667, %v7658
        %7660 = vdwg.mxu0
        %7661 = vmatpush.msra.mxu0 0.0
        %7662 = vmatpush.msra.mxu0 0.0
        %7663 = vmatpush.msra.mxu0 0.0
        %7664 = vmatpush.msra.mxu0 0.0
        %7665 = vmatpush.msra.mxu0 0.0
        %7666 = vmatpush.msra.mxu0 0.0
        %7667 = vmatpush.msra.mxu0 0.0
        %7668 = vmatpush.msra.mxu0 0.0
        %7669 = vmatpush.msra.mxu0 0.0
        %7670 = vmatpush.msra.mxu0 0.0
        %7671 = vmatpush.msra.mxu0 0.0
        %7672 = vmatpush.msra.mxu0 0.0
        %7673 = vmatpush.msra.mxu0 0.0
        %7674 = vmatpush.msra.mxu0 0.0
        %7675 = vmatpush.msra.mxu0 %v4157
        %7676 = vmatpush.msra.mxu0 %v3312
        %7677 = vmatmul.f32.gmra.mxu0 %v3671
        %v7678 = vpop.f32.mrf.mxu0
        %v7679 = vadd.f32 %v3667, %v7678
        %7680 = vdwg.mxu0
        %7681 = vmatpush.msra.mxu0 0.0
        %7682 = vmatpush.msra.mxu0 0.0
        %7683 = vmatpush.msra.mxu0 0.0
        %7684 = vmatpush.msra.mxu0 0.0
        %7685 = vmatpush.msra.mxu0 0.0
        %7686 = vmatpush.msra.mxu0 0.0
        %7687 = vmatpush.msra.mxu0 0.0
        %7688 = vmatpush.msra.mxu0 0.0
        %7689 = vmatpush.msra.mxu0 0.0
        %7690 = vmatpush.msra.mxu0 0.0
        %7691 = vmatpush.msra.mxu0 0.0
        %7692 = vmatpush.msra.mxu0 0.0
        %7693 = vmatpush.msra.mxu0 0.0
        %7694 = vmatpush.msra.mxu0 0.0
        %7695 = vmatpush.msra.mxu0 %v4160
        %7696 = vmatpush.msra.mxu0 %v3313
        %7697 = vmatmul.f32.gmra.mxu0 %v3671
        %v7698 = vpop.f32.mrf.mxu0
        %v7699 = vadd.f32 %v3667, %v7698
        %7700 = vdwg.mxu0
        %7701 = vmatpush.msra.mxu0 0.0
        %7702 = vmatpush.msra.mxu0 0.0
        %7703 = vmatpush.msra.mxu0 0.0
        %7704 = vmatpush.msra.mxu0 0.0
        %7705 = vmatpush.msra.mxu0 0.0
        %7706 = vmatpush.msra.mxu0 0.0
        %7707 = vmatpush.msra.mxu0 0.0
        %7708 = vmatpush.msra.mxu0 0.0
        %7709 = vmatpush.msra.mxu0 0.0
        %7710 = vmatpush.msra.mxu0 0.0
        %7711 = vmatpush.msra.mxu0 0.0
        %7712 = vmatpush.msra.mxu0 0.0
        %7713 = vmatpush.msra.mxu0 0.0
        %7714 = vmatpush.msra.mxu0 0.0
        %7715 = vmatpush.msra.mxu0 %v4163
        %7716 = vmatpush.msra.mxu0 %v3314
        %7717 = vmatmul.f32.gmra.mxu0 %v3671
        %v7718 = vpop.f32.mrf.mxu0
        %v7719 = vadd.f32 %v3667, %v7718
        %7720 = vdwg.mxu0
        %7721 = vmatpush.msra.mxu0 0.0
        %7722 = vmatpush.msra.mxu0 0.0
        %7723 = vmatpush.msra.mxu0 0.0
        %7724 = vmatpush.msra.mxu0 0.0
        %7725 = vmatpush.msra.mxu0 0.0
        %7726 = vmatpush.msra.mxu0 0.0
        %7727 = vmatpush.msra.mxu0 0.0
        %7728 = vmatpush.msra.mxu0 0.0
        %7729 = vmatpush.msra.mxu0 0.0
        %7730 = vmatpush.msra.mxu0 0.0
        %7731 = vmatpush.msra.mxu0 0.0
        %7732 = vmatpush.msra.mxu0 0.0
        %7733 = vmatpush.msra.mxu0 0.0
        %7734 = vmatpush.msra.mxu0 0.0
        %7735 = vmatpush.msra.mxu0 %v4166
        %7736 = vmatpush.msra.mxu0 %v3315
        %7737 = vmatmul.f32.gmra.mxu0 %v3671
        %v7738 = vpop.f32.mrf.mxu0
        %v7739 = vadd.f32 %v3667, %v7738
        %7740 = vdwg.mxu0
        %7741 = vmatpush.msra.mxu0 0.0
        %7742 = vmatpush.msra.mxu0 0.0
        %7743 = vmatpush.msra.mxu0 0.0
        %7744 = vmatpush.msra.mxu0 0.0
        %7745 = vmatpush.msra.mxu0 0.0
        %7746 = vmatpush.msra.mxu0 0.0
        %7747 = vmatpush.msra.mxu0 0.0
        %7748 = vmatpush.msra.mxu0 0.0
        %7749 = vmatpush.msra.mxu0 0.0
        %7750 = vmatpush.msra.mxu0 0.0
        %7751 = vmatpush.msra.mxu0 0.0
        %7752 = vmatpush.msra.mxu0 0.0
        %7753 = vmatpush.msra.mxu0 0.0
        %7754 = vmatpush.msra.mxu0 0.0
        %7755 = vmatpush.msra.mxu0 %v4169
        %7756 = vmatpush.msra.mxu0 %v3316
        %7757 = vmatmul.f32.gmra.mxu0 %v3671
        %v7758 = vpop.f32.mrf.mxu0
        %v7759 = vadd.f32 %v3667, %v7758
        %7760 = vdwg.mxu0
        %7761 = vmatpush.msra.mxu0 0.0
        %7762 = vmatpush.msra.mxu0 0.0
        %7763 = vmatpush.msra.mxu0 0.0
        %7764 = vmatpush.msra.mxu0 0.0
        %7765 = vmatpush.msra.mxu0 0.0
        %7766 = vmatpush.msra.mxu0 0.0
        %7767 = vmatpush.msra.mxu0 0.0
        %7768 = vmatpush.msra.mxu0 0.0
        %7769 = vmatpush.msra.mxu0 0.0
        %7770 = vmatpush.msra.mxu0 0.0
        %7771 = vmatpush.msra.mxu0 0.0
        %7772 = vmatpush.msra.mxu0 0.0
        %7773 = vmatpush.msra.mxu0 0.0
        %7774 = vmatpush.msra.mxu0 0.0
        %7775 = vmatpush.msra.mxu0 %v4172
        %7776 = vmatpush.msra.mxu0 %v3317
        %7777 = vmatmul.f32.gmra.mxu0 %v3671
        %v7778 = vpop.f32.mrf.mxu0
        %v7779 = vadd.f32 %v3667, %v7778
        %7780 = vdwg.mxu0
        %7781 = vmatpush.msra.mxu0 0.0
        %7782 = vmatpush.msra.mxu0 0.0
        %7783 = vmatpush.msra.mxu0 0.0
        %7784 = vmatpush.msra.mxu0 0.0
        %7785 = vmatpush.msra.mxu0 0.0
        %7786 = vmatpush.msra.mxu0 0.0
        %7787 = vmatpush.msra.mxu0 0.0
        %7788 = vmatpush.msra.mxu0 0.0
        %7789 = vmatpush.msra.mxu0 0.0
        %7790 = vmatpush.msra.mxu0 0.0
        %7791 = vmatpush.msra.mxu0 0.0
        %7792 = vmatpush.msra.mxu0 0.0
        %7793 = vmatpush.msra.mxu0 0.0
        %7794 = vmatpush.msra.mxu0 0.0
        %7795 = vmatpush.msra.mxu0 %v4175
        %7796 = vmatpush.msra.mxu0 %v3318
        %7797 = vmatmul.f32.gmra.mxu0 %v3671
        %v7798 = vpop.f32.mrf.mxu0
        %v7799 = vadd.f32 %v3667, %v7798
        %7800 = vdwg.mxu0
        %7801 = vmatpush.msra.mxu0 0.0
        %7802 = vmatpush.msra.mxu0 0.0
        %7803 = vmatpush.msra.mxu0 0.0
        %7804 = vmatpush.msra.mxu0 0.0
        %7805 = vmatpush.msra.mxu0 0.0
        %7806 = vmatpush.msra.mxu0 0.0
        %7807 = vmatpush.msra.mxu0 0.0
        %7808 = vmatpush.msra.mxu0 0.0
        %7809 = vmatpush.msra.mxu0 0.0
        %7810 = vmatpush.msra.mxu0 0.0
        %7811 = vmatpush.msra.mxu0 0.0
        %7812 = vmatpush.msra.mxu0 0.0
        %7813 = vmatpush.msra.mxu0 0.0
        %7814 = vmatpush.msra.mxu0 0.0
        %7815 = vmatpush.msra.mxu0 %v4178
        %7816 = vmatpush.msra.mxu0 %v3319
        %7817 = vmatmul.f32.gmra.mxu0 %v3671
        %v7818 = vpop.f32.mrf.mxu0
        %v7819 = vadd.f32 %v3667, %v7818
        %7820 = vdwg.mxu0
        %7821 = vmatpush.msra.mxu0 0.0
        %7822 = vmatpush.msra.mxu0 0.0
        %7823 = vmatpush.msra.mxu0 0.0
        %7824 = vmatpush.msra.mxu0 0.0
        %7825 = vmatpush.msra.mxu0 0.0
        %7826 = vmatpush.msra.mxu0 0.0
        %7827 = vmatpush.msra.mxu0 0.0
        %7828 = vmatpush.msra.mxu0 0.0
        %7829 = vmatpush.msra.mxu0 0.0
        %7830 = vmatpush.msra.mxu0 0.0
        %7831 = vmatpush.msra.mxu0 0.0
        %7832 = vmatpush.msra.mxu0 0.0
        %7833 = vmatpush.msra.mxu0 0.0
        %7834 = vmatpush.msra.mxu0 0.0
        %7835 = vmatpush.msra.mxu0 %v4181
        %7836 = vmatpush.msra.mxu0 %v3320
        %7837 = vmatmul.f32.gmra.mxu0 %v3671
        %v7838 = vpop.f32.mrf.mxu0
        %v7839 = vadd.f32 %v3667, %v7838
        %7840 = vdwg.mxu0
        %7841 = vmatpush.msra.mxu0 0.0
        %7842 = vmatpush.msra.mxu0 0.0
        %7843 = vmatpush.msra.mxu0 0.0
        %7844 = vmatpush.msra.mxu0 0.0
        %7845 = vmatpush.msra.mxu0 0.0
        %7846 = vmatpush.msra.mxu0 0.0
        %7847 = vmatpush.msra.mxu0 0.0
        %7848 = vmatpush.msra.mxu0 0.0
        %7849 = vmatpush.msra.mxu0 0.0
        %7850 = vmatpush.msra.mxu0 0.0
        %7851 = vmatpush.msra.mxu0 0.0
        %7852 = vmatpush.msra.mxu0 0.0
        %7853 = vmatpush.msra.mxu0 0.0
        %7854 = vmatpush.msra.mxu0 0.0
        %7855 = vmatpush.msra.mxu0 %v4184
        %7856 = vmatpush.msra.mxu0 %v3321
        %7857 = vmatmul.f32.gmra.mxu0 %v3671
        %v7858 = vpop.f32.mrf.mxu0
        %v7859 = vadd.f32 %v3667, %v7858
        %7860 = vdwg.mxu0
        %7861 = vmatpush.msra.mxu0 0.0
        %7862 = vmatpush.msra.mxu0 0.0
        %7863 = vmatpush.msra.mxu0 0.0
        %7864 = vmatpush.msra.mxu0 0.0
        %7865 = vmatpush.msra.mxu0 0.0
        %7866 = vmatpush.msra.mxu0 0.0
        %7867 = vmatpush.msra.mxu0 0.0
        %7868 = vmatpush.msra.mxu0 0.0
        %7869 = vmatpush.msra.mxu0 0.0
        %7870 = vmatpush.msra.mxu0 0.0
        %7871 = vmatpush.msra.mxu0 0.0
        %7872 = vmatpush.msra.mxu0 0.0
        %7873 = vmatpush.msra.mxu0 0.0
        %7874 = vmatpush.msra.mxu0 0.0
        %7875 = vmatpush.msra.mxu0 %v4187
        %7876 = vmatpush.msra.mxu0 %v3322
        %7877 = vmatmul.f32.gmra.mxu0 %v3671
        %v7878 = vpop.f32.mrf.mxu0
        %v7879 = vadd.f32 %v3667, %v7878
        %7880 = vdwg.mxu0
        %7881 = vmatpush.msra.mxu0 0.0
        %7882 = vmatpush.msra.mxu0 0.0
        %7883 = vmatpush.msra.mxu0 0.0
        %7884 = vmatpush.msra.mxu0 0.0
        %7885 = vmatpush.msra.mxu0 0.0
        %7886 = vmatpush.msra.mxu0 0.0
        %7887 = vmatpush.msra.mxu0 0.0
        %7888 = vmatpush.msra.mxu0 0.0
        %7889 = vmatpush.msra.mxu0 0.0
        %7890 = vmatpush.msra.mxu0 0.0
        %7891 = vmatpush.msra.mxu0 0.0
        %7892 = vmatpush.msra.mxu0 0.0
        %7893 = vmatpush.msra.mxu0 0.0
        %7894 = vmatpush.msra.mxu0 0.0
        %7895 = vmatpush.msra.mxu0 %v4190
        %7896 = vmatpush.msra.mxu0 %v3323
        %7897 = vmatmul.f32.gmra.mxu0 %v3671
        %v7898 = vpop.f32.mrf.mxu0
        %v7899 = vadd.f32 %v3667, %v7898
        %7900 = vdwg.mxu0
        %7901 = vmatpush.msra.mxu0 0.0
        %7902 = vmatpush.msra.mxu0 0.0
        %7903 = vmatpush.msra.mxu0 0.0
        %7904 = vmatpush.msra.mxu0 0.0
        %7905 = vmatpush.msra.mxu0 0.0
        %7906 = vmatpush.msra.mxu0 0.0
        %7907 = vmatpush.msra.mxu0 0.0
        %7908 = vmatpush.msra.mxu0 0.0
        %7909 = vmatpush.msra.mxu0 0.0
        %7910 = vmatpush.msra.mxu0 0.0
        %7911 = vmatpush.msra.mxu0 0.0
        %7912 = vmatpush.msra.mxu0 0.0
        %7913 = vmatpush.msra.mxu0 0.0
        %7914 = vmatpush.msra.mxu0 0.0
        %7915 = vmatpush.msra.mxu0 %v4193
        %7916 = vmatpush.msra.mxu0 %v3324
        %7917 = vmatmul.f32.gmra.mxu0 %v3671
        %v7918 = vpop.f32.mrf.mxu0
        %v7919 = vadd.f32 %v3667, %v7918
        %7920 = vdwg.mxu0
        %7921 = vmatpush.msra.mxu0 0.0
        %7922 = vmatpush.msra.mxu0 0.0
        %7923 = vmatpush.msra.mxu0 0.0
        %7924 = vmatpush.msra.mxu0 0.0
        %7925 = vmatpush.msra.mxu0 0.0
        %7926 = vmatpush.msra.mxu0 0.0
        %7927 = vmatpush.msra.mxu0 0.0
        %7928 = vmatpush.msra.mxu0 0.0
        %7929 = vmatpush.msra.mxu0 0.0
        %7930 = vmatpush.msra.mxu0 0.0
        %7931 = vmatpush.msra.mxu0 0.0
        %7932 = vmatpush.msra.mxu0 0.0
        %7933 = vmatpush.msra.mxu0 0.0
        %7934 = vmatpush.msra.mxu0 0.0
        %7935 = vmatpush.msra.mxu0 %v4196
        %7936 = vmatpush.msra.mxu0 %v3325
        %7937 = vmatmul.f32.gmra.mxu0 %v3671
        %v7938 = vpop.f32.mrf.mxu0
        %v7939 = vadd.f32 %v3667, %v7938
        %7940 = vdwg.mxu0
        %7941 = vmatpush.msra.mxu0 0.0
        %7942 = vmatpush.msra.mxu0 0.0
        %7943 = vmatpush.msra.mxu0 0.0
        %7944 = vmatpush.msra.mxu0 0.0
        %7945 = vmatpush.msra.mxu0 0.0
        %7946 = vmatpush.msra.mxu0 0.0
        %7947 = vmatpush.msra.mxu0 0.0
        %7948 = vmatpush.msra.mxu0 0.0
        %7949 = vmatpush.msra.mxu0 0.0
        %7950 = vmatpush.msra.mxu0 0.0
        %7951 = vmatpush.msra.mxu0 0.0
        %7952 = vmatpush.msra.mxu0 0.0
        %7953 = vmatpush.msra.mxu0 0.0
        %7954 = vmatpush.msra.mxu0 0.0
        %7955 = vmatpush.msra.mxu0 %v4199
        %7956 = vmatpush.msra.mxu0 %v3326
        %7957 = vmatmul.f32.gmra.mxu0 %v3671
        %v7958 = vpop.f32.mrf.mxu0
        %v7959 = vadd.f32 %v3667, %v7958
        %7960 = vdwg.mxu0
        %7961 = vmatpush.msra.mxu0 0.0
        %7962 = vmatpush.msra.mxu0 0.0
        %7963 = vmatpush.msra.mxu0 0.0
        %7964 = vmatpush.msra.mxu0 0.0
        %7965 = vmatpush.msra.mxu0 0.0
        %7966 = vmatpush.msra.mxu0 0.0
        %7967 = vmatpush.msra.mxu0 0.0
        %7968 = vmatpush.msra.mxu0 0.0
        %7969 = vmatpush.msra.mxu0 0.0
        %7970 = vmatpush.msra.mxu0 0.0
        %7971 = vmatpush.msra.mxu0 0.0
        %7972 = vmatpush.msra.mxu0 0.0
        %7973 = vmatpush.msra.mxu0 0.0
        %7974 = vmatpush.msra.mxu0 0.0
        %7975 = vmatpush.msra.mxu0 %v4202
        %7976 = vmatpush.msra.mxu0 %v3327
        %7977 = vmatmul.f32.gmra.mxu0 %v3671
        %v7978 = vpop.f32.mrf.mxu0
        %v7979 = vadd.f32 %v3667, %v7978
        %7980 = vdwg.mxu0
        %7981 = vmatpush.msra.mxu0 0.0
        %7982 = vmatpush.msra.mxu0 0.0
        %7983 = vmatpush.msra.mxu0 0.0
        %7984 = vmatpush.msra.mxu0 0.0
        %7985 = vmatpush.msra.mxu0 0.0
        %7986 = vmatpush.msra.mxu0 0.0
        %7987 = vmatpush.msra.mxu0 0.0
        %7988 = vmatpush.msra.mxu0 0.0
        %7989 = vmatpush.msra.mxu0 0.0
        %7990 = vmatpush.msra.mxu0 0.0
        %7991 = vmatpush.msra.mxu0 0.0
        %7992 = vmatpush.msra.mxu0 0.0
        %7993 = vmatpush.msra.mxu0 0.0
        %7994 = vmatpush.msra.mxu0 0.0
        %7995 = vmatpush.msra.mxu0 %v4205
        %7996 = vmatpush.msra.mxu0 %v3328
        %7997 = vmatmul.f32.gmra.mxu0 %v3671
        %v7998 = vpop.f32.mrf.mxu0
        %v7999 = vadd.f32 %v3667, %v7998
        %8000 = vdwg.mxu0
        %8001 = vmatpush.msra.mxu0 0.0
        %8002 = vmatpush.msra.mxu0 0.0
        %8003 = vmatpush.msra.mxu0 0.0
        %8004 = vmatpush.msra.mxu0 0.0
        %8005 = vmatpush.msra.mxu0 0.0
        %8006 = vmatpush.msra.mxu0 0.0
        %8007 = vmatpush.msra.mxu0 0.0
        %8008 = vmatpush.msra.mxu0 0.0
        %8009 = vmatpush.msra.mxu0 0.0
        %8010 = vmatpush.msra.mxu0 0.0
        %8011 = vmatpush.msra.mxu0 0.0
        %8012 = vmatpush.msra.mxu0 0.0
        %8013 = vmatpush.msra.mxu0 0.0
        %8014 = vmatpush.msra.mxu0 0.0
        %8015 = vmatpush.msra.mxu0 %v4208
        %8016 = vmatpush.msra.mxu0 %v3329
        %8017 = vmatmul.f32.gmra.mxu0 %v3671
        %v8018 = vpop.f32.mrf.mxu0
        %v8019 = vadd.f32 %v3667, %v8018
        %8020 = vdwg.mxu0
        %8021 = vmatpush.msra.mxu0 0.0
        %8022 = vmatpush.msra.mxu0 0.0
        %8023 = vmatpush.msra.mxu0 0.0
        %8024 = vmatpush.msra.mxu0 0.0
        %8025 = vmatpush.msra.mxu0 0.0
        %8026 = vmatpush.msra.mxu0 0.0
        %8027 = vmatpush.msra.mxu0 0.0
        %8028 = vmatpush.msra.mxu0 0.0
        %8029 = vmatpush.msra.mxu0 0.0
        %8030 = vmatpush.msra.mxu0 0.0
        %8031 = vmatpush.msra.mxu0 0.0
        %8032 = vmatpush.msra.mxu0 0.0
        %8033 = vmatpush.msra.mxu0 0.0
        %8034 = vmatpush.msra.mxu0 0.0
        %8035 = vmatpush.msra.mxu0 %v4211
        %8036 = vmatpush.msra.mxu0 %v3330
        %8037 = vmatmul.f32.gmra.mxu0 %v3671
        %v8038 = vpop.f32.mrf.mxu0
        %v8039 = vadd.f32 %v3667, %v8038
        %8040 = vdwg.mxu0
        %8041 = vmatpush.msra.mxu0 0.0
        %8042 = vmatpush.msra.mxu0 0.0
        %8043 = vmatpush.msra.mxu0 0.0
        %8044 = vmatpush.msra.mxu0 0.0
        %8045 = vmatpush.msra.mxu0 0.0
        %8046 = vmatpush.msra.mxu0 0.0
        %8047 = vmatpush.msra.mxu0 0.0
        %8048 = vmatpush.msra.mxu0 0.0
        %8049 = vmatpush.msra.mxu0 0.0
        %8050 = vmatpush.msra.mxu0 0.0
        %8051 = vmatpush.msra.mxu0 0.0
        %8052 = vmatpush.msra.mxu0 0.0
        %8053 = vmatpush.msra.mxu0 0.0
        %8054 = vmatpush.msra.mxu0 0.0
        %8055 = vmatpush.msra.mxu0 %v4214
        %8056 = vmatpush.msra.mxu0 %v3331
        %8057 = vmatmul.f32.gmra.mxu0 %v3671
        %v8058 = vpop.f32.mrf.mxu0
        %v8059 = vadd.f32 %v3667, %v8058
        %8060 = vdwg.mxu0
        %8061 = vmatpush.msra.mxu0 0.0
        %8062 = vmatpush.msra.mxu0 0.0
        %8063 = vmatpush.msra.mxu0 0.0
        %8064 = vmatpush.msra.mxu0 0.0
        %8065 = vmatpush.msra.mxu0 0.0
        %8066 = vmatpush.msra.mxu0 0.0
        %8067 = vmatpush.msra.mxu0 0.0
        %8068 = vmatpush.msra.mxu0 0.0
        %8069 = vmatpush.msra.mxu0 0.0
        %8070 = vmatpush.msra.mxu0 0.0
        %8071 = vmatpush.msra.mxu0 0.0
        %8072 = vmatpush.msra.mxu0 0.0
        %8073 = vmatpush.msra.mxu0 0.0
        %8074 = vmatpush.msra.mxu0 0.0
        %8075 = vmatpush.msra.mxu0 %v4217
        %8076 = vmatpush.msra.mxu0 %v3332
        %8077 = vmatmul.f32.gmra.mxu0 %v3671
        %v8078 = vpop.f32.mrf.mxu0
        %v8079 = vadd.f32 %v3667, %v8078
        %8080 = vdwg.mxu0
        %8081 = vmatpush.msra.mxu0 0.0
        %8082 = vmatpush.msra.mxu0 0.0
        %8083 = vmatpush.msra.mxu0 0.0
        %8084 = vmatpush.msra.mxu0 0.0
        %8085 = vmatpush.msra.mxu0 0.0
        %8086 = vmatpush.msra.mxu0 0.0
        %8087 = vmatpush.msra.mxu0 0.0
        %8088 = vmatpush.msra.mxu0 0.0
        %8089 = vmatpush.msra.mxu0 0.0
        %8090 = vmatpush.msra.mxu0 0.0
        %8091 = vmatpush.msra.mxu0 0.0
        %8092 = vmatpush.msra.mxu0 0.0
        %8093 = vmatpush.msra.mxu0 0.0
        %8094 = vmatpush.msra.mxu0 0.0
        %8095 = vmatpush.msra.mxu0 %v4220
        %8096 = vmatpush.msra.mxu0 %v3333
        %8097 = vmatmul.f32.gmra.mxu0 %v3671
        %v8098 = vpop.f32.mrf.mxu0
        %v8099 = vadd.f32 %v3667, %v8098
        %8100 = vdwg.mxu0
        %8101 = vmatpush.msra.mxu0 0.0
        %8102 = vmatpush.msra.mxu0 0.0
        %8103 = vmatpush.msra.mxu0 0.0
        %8104 = vmatpush.msra.mxu0 0.0
        %8105 = vmatpush.msra.mxu0 0.0
        %8106 = vmatpush.msra.mxu0 0.0
        %8107 = vmatpush.msra.mxu0 0.0
        %8108 = vmatpush.msra.mxu0 0.0
        %8109 = vmatpush.msra.mxu0 0.0
        %8110 = vmatpush.msra.mxu0 0.0
        %8111 = vmatpush.msra.mxu0 0.0
        %8112 = vmatpush.msra.mxu0 0.0
        %8113 = vmatpush.msra.mxu0 0.0
        %8114 = vmatpush.msra.mxu0 0.0
        %8115 = vmatpush.msra.mxu0 %v4223
        %8116 = vmatpush.msra.mxu0 %v3334
        %8117 = vmatmul.f32.gmra.mxu0 %v3671
        %v8118 = vpop.f32.mrf.mxu0
        %v8119 = vadd.f32 %v3667, %v8118
        %8120 = vdwg.mxu0
        %8121 = vmatpush.msra.mxu0 0.0
        %8122 = vmatpush.msra.mxu0 0.0
        %8123 = vmatpush.msra.mxu0 0.0
        %8124 = vmatpush.msra.mxu0 0.0
        %8125 = vmatpush.msra.mxu0 0.0
        %8126 = vmatpush.msra.mxu0 0.0
        %8127 = vmatpush.msra.mxu0 0.0
        %8128 = vmatpush.msra.mxu0 0.0
        %8129 = vmatpush.msra.mxu0 0.0
        %8130 = vmatpush.msra.mxu0 0.0
        %8131 = vmatpush.msra.mxu0 0.0
        %8132 = vmatpush.msra.mxu0 0.0
        %8133 = vmatpush.msra.mxu0 0.0
        %8134 = vmatpush.msra.mxu0 0.0
        %8135 = vmatpush.msra.mxu0 %v4226
        %8136 = vmatpush.msra.mxu0 %v3335
        %8137 = vmatmul.f32.gmra.mxu0 %v3671
        %v8138 = vpop.f32.mrf.mxu0
        %v8139 = vadd.f32 %v3667, %v8138
        %8140 = vdwg.mxu0
        %8141 = vmatpush.msra.mxu0 0.0
        %8142 = vmatpush.msra.mxu0 0.0
        %8143 = vmatpush.msra.mxu0 0.0
        %8144 = vmatpush.msra.mxu0 0.0
        %8145 = vmatpush.msra.mxu0 0.0
        %8146 = vmatpush.msra.mxu0 0.0
        %8147 = vmatpush.msra.mxu0 0.0
        %8148 = vmatpush.msra.mxu0 0.0
        %8149 = vmatpush.msra.mxu0 0.0
        %8150 = vmatpush.msra.mxu0 0.0
        %8151 = vmatpush.msra.mxu0 0.0
        %8152 = vmatpush.msra.mxu0 0.0
        %8153 = vmatpush.msra.mxu0 0.0
        %8154 = vmatpush.msra.mxu0 0.0
        %8155 = vmatpush.msra.mxu0 %v4229
        %8156 = vmatpush.msra.mxu0 %v3336
        %8157 = vmatmul.f32.gmra.mxu0 %v3671
        %v8158 = vpop.f32.mrf.mxu0
        %v8159 = vadd.f32 %v3667, %v8158
        %8160 = vdwg.mxu0
        %8161 = vmatpush.msra.mxu0 0.0
        %8162 = vmatpush.msra.mxu0 0.0
        %8163 = vmatpush.msra.mxu0 0.0
        %8164 = vmatpush.msra.mxu0 0.0
        %8165 = vmatpush.msra.mxu0 0.0
        %8166 = vmatpush.msra.mxu0 0.0
        %8167 = vmatpush.msra.mxu0 0.0
        %8168 = vmatpush.msra.mxu0 0.0
        %8169 = vmatpush.msra.mxu0 0.0
        %8170 = vmatpush.msra.mxu0 0.0
        %8171 = vmatpush.msra.mxu0 0.0
        %8172 = vmatpush.msra.mxu0 0.0
        %8173 = vmatpush.msra.mxu0 0.0
        %8174 = vmatpush.msra.mxu0 0.0
        %8175 = vmatpush.msra.mxu0 %v4232
        %8176 = vmatpush.msra.mxu0 %v3337
        %8177 = vmatmul.f32.gmra.mxu0 %v3671
        %v8178 = vpop.f32.mrf.mxu0
        %v8179 = vadd.f32 %v3667, %v8178
        %8180 = vdwg.mxu0
        %8181 = vmatpush.msra.mxu0 0.0
        %8182 = vmatpush.msra.mxu0 0.0
        %8183 = vmatpush.msra.mxu0 0.0
        %8184 = vmatpush.msra.mxu0 0.0
        %8185 = vmatpush.msra.mxu0 0.0
        %8186 = vmatpush.msra.mxu0 0.0
        %8187 = vmatpush.msra.mxu0 0.0
        %8188 = vmatpush.msra.mxu0 0.0
        %8189 = vmatpush.msra.mxu0 0.0
        %8190 = vmatpush.msra.mxu0 0.0
        %8191 = vmatpush.msra.mxu0 0.0
        %8192 = vmatpush.msra.mxu0 0.0
        %8193 = vmatpush.msra.mxu0 0.0
        %8194 = vmatpush.msra.mxu0 0.0
        %8195 = vmatpush.msra.mxu0 %v4235
        %8196 = vmatpush.msra.mxu0 %v3338
        %8197 = vmatmul.f32.gmra.mxu0 %v3671
        %v8198 = vpop.f32.mrf.mxu0
        %v8199 = vadd.f32 %v3667, %v8198
        %8200 = vdwg.mxu0
        %8201 = vmatpush.msra.mxu0 0.0
        %8202 = vmatpush.msra.mxu0 0.0
        %8203 = vmatpush.msra.mxu0 0.0
        %8204 = vmatpush.msra.mxu0 0.0
        %8205 = vmatpush.msra.mxu0 0.0
        %8206 = vmatpush.msra.mxu0 0.0
        %8207 = vmatpush.msra.mxu0 0.0
        %8208 = vmatpush.msra.mxu0 0.0
        %8209 = vmatpush.msra.mxu0 0.0
        %8210 = vmatpush.msra.mxu0 0.0
        %8211 = vmatpush.msra.mxu0 0.0
        %8212 = vmatpush.msra.mxu0 0.0
        %8213 = vmatpush.msra.mxu0 0.0
        %8214 = vmatpush.msra.mxu0 0.0
        %8215 = vmatpush.msra.mxu0 %v4238
        %8216 = vmatpush.msra.mxu0 %v3339
        %8217 = vmatmul.f32.gmra.mxu0 %v3671
        %v8218 = vpop.f32.mrf.mxu0
        %v8219 = vadd.f32 %v3667, %v8218
        %8220 = vdwg.mxu0
        %8221 = vmatpush.msra.mxu0 0.0
        %8222 = vmatpush.msra.mxu0 0.0
        %8223 = vmatpush.msra.mxu0 0.0
        %8224 = vmatpush.msra.mxu0 0.0
        %8225 = vmatpush.msra.mxu0 0.0
        %8226 = vmatpush.msra.mxu0 0.0
        %8227 = vmatpush.msra.mxu0 0.0
        %8228 = vmatpush.msra.mxu0 0.0
        %8229 = vmatpush.msra.mxu0 0.0
        %8230 = vmatpush.msra.mxu0 0.0
        %8231 = vmatpush.msra.mxu0 0.0
        %8232 = vmatpush.msra.mxu0 0.0
        %8233 = vmatpush.msra.mxu0 0.0
        %8234 = vmatpush.msra.mxu0 0.0
        %8235 = vmatpush.msra.mxu0 %v4241
        %8236 = vmatpush.msra.mxu0 %v3340
        %8237 = vmatmul.f32.gmra.mxu0 %v3671
        %v8238 = vpop.f32.mrf.mxu0
        %v8239 = vadd.f32 %v3667, %v8238
        %8240 = vdwg.mxu0
        %8241 = vmatpush.msra.mxu0 0.0
        %8242 = vmatpush.msra.mxu0 0.0
        %8243 = vmatpush.msra.mxu0 0.0
        %8244 = vmatpush.msra.mxu0 0.0
        %8245 = vmatpush.msra.mxu0 0.0
        %8246 = vmatpush.msra.mxu0 0.0
        %8247 = vmatpush.msra.mxu0 0.0
        %8248 = vmatpush.msra.mxu0 0.0
        %8249 = vmatpush.msra.mxu0 0.0
        %8250 = vmatpush.msra.mxu0 0.0
        %8251 = vmatpush.msra.mxu0 0.0
        %8252 = vmatpush.msra.mxu0 0.0
        %8253 = vmatpush.msra.mxu0 0.0
        %8254 = vmatpush.msra.mxu0 0.0
        %8255 = vmatpush.msra.mxu0 %v4244
        %8256 = vmatpush.msra.mxu0 %v3341
        %8257 = vmatmul.f32.gmra.mxu0 %v3671
        %v8258 = vpop.f32.mrf.mxu0
        %v8259 = vadd.f32 %v3667, %v8258
        %8260 = vdwg.mxu0
        %8261 = vmatpush.msra.mxu0 0.0
        %8262 = vmatpush.msra.mxu0 0.0
        %8263 = vmatpush.msra.mxu0 0.0
        %8264 = vmatpush.msra.mxu0 0.0
        %8265 = vmatpush.msra.mxu0 0.0
        %8266 = vmatpush.msra.mxu0 0.0
        %8267 = vmatpush.msra.mxu0 0.0
        %8268 = vmatpush.msra.mxu0 0.0
        %8269 = vmatpush.msra.mxu0 0.0
        %8270 = vmatpush.msra.mxu0 0.0
        %8271 = vmatpush.msra.mxu0 0.0
        %8272 = vmatpush.msra.mxu0 0.0
        %8273 = vmatpush.msra.mxu0 0.0
        %8274 = vmatpush.msra.mxu0 0.0
        %8275 = vmatpush.msra.mxu0 %v4247
        %8276 = vmatpush.msra.mxu0 %v3342
        %8277 = vmatmul.f32.gmra.mxu0 %v3671
        %v8278 = vpop.f32.mrf.mxu0
        %v8279 = vadd.f32 %v3667, %v8278
        %8280 = vdwg.mxu0
        %8281 = vmatpush.msra.mxu0 0.0
        %8282 = vmatpush.msra.mxu0 0.0
        %8283 = vmatpush.msra.mxu0 0.0
        %8284 = vmatpush.msra.mxu0 0.0
        %8285 = vmatpush.msra.mxu0 0.0
        %8286 = vmatpush.msra.mxu0 0.0
        %8287 = vmatpush.msra.mxu0 0.0
        %8288 = vmatpush.msra.mxu0 0.0
        %8289 = vmatpush.msra.mxu0 0.0
        %8290 = vmatpush.msra.mxu0 0.0
        %8291 = vmatpush.msra.mxu0 0.0
        %8292 = vmatpush.msra.mxu0 0.0
        %8293 = vmatpush.msra.mxu0 0.0
        %8294 = vmatpush.msra.mxu0 0.0
        %8295 = vmatpush.msra.mxu0 %v4250
        %8296 = vmatpush.msra.mxu0 %v3343
        %8297 = vmatmul.f32.gmra.mxu0 %v3671
        %v8298 = vpop.f32.mrf.mxu0
        %v8299 = vadd.f32 %v3667, %v8298
        %8300 = vdwg.mxu0
        %8301 = vmatpush.msra.mxu0 0.0
        %8302 = vmatpush.msra.mxu0 0.0
        %8303 = vmatpush.msra.mxu0 0.0
        %8304 = vmatpush.msra.mxu0 0.0
        %8305 = vmatpush.msra.mxu0 0.0
        %8306 = vmatpush.msra.mxu0 0.0
        %8307 = vmatpush.msra.mxu0 0.0
        %8308 = vmatpush.msra.mxu0 0.0
        %8309 = vmatpush.msra.mxu0 0.0
        %8310 = vmatpush.msra.mxu0 0.0
        %8311 = vmatpush.msra.mxu0 0.0
        %8312 = vmatpush.msra.mxu0 0.0
        %8313 = vmatpush.msra.mxu0 0.0
        %8314 = vmatpush.msra.mxu0 0.0
        %8315 = vmatpush.msra.mxu0 %v4253
        %8316 = vmatpush.msra.mxu0 %v3344
        %8317 = vmatmul.f32.gmra.mxu0 %v3671
        %v8318 = vpop.f32.mrf.mxu0
        %v8319 = vadd.f32 %v3667, %v8318
        %8320 = vdwg.mxu0
        %8321 = vmatpush.msra.mxu0 0.0
        %8322 = vmatpush.msra.mxu0 0.0
        %8323 = vmatpush.msra.mxu0 0.0
        %8324 = vmatpush.msra.mxu0 0.0
        %8325 = vmatpush.msra.mxu0 0.0
        %8326 = vmatpush.msra.mxu0 0.0
        %8327 = vmatpush.msra.mxu0 0.0
        %8328 = vmatpush.msra.mxu0 0.0
        %8329 = vmatpush.msra.mxu0 0.0
        %8330 = vmatpush.msra.mxu0 0.0
        %8331 = vmatpush.msra.mxu0 0.0
        %8332 = vmatpush.msra.mxu0 0.0
        %8333 = vmatpush.msra.mxu0 0.0
        %8334 = vmatpush.msra.mxu0 0.0
        %8335 = vmatpush.msra.mxu0 %v4256
        %8336 = vmatpush.msra.mxu0 %v3345
        %8337 = vmatmul.f32.gmra.mxu0 %v3671
        %v8338 = vpop.f32.mrf.mxu0
        %v8339 = vadd.f32 %v3667, %v8338
        %8340 = vdwg.mxu0
        %8341 = vmatpush.msra.mxu0 0.0
        %8342 = vmatpush.msra.mxu0 0.0
        %8343 = vmatpush.msra.mxu0 0.0
        %8344 = vmatpush.msra.mxu0 0.0
        %8345 = vmatpush.msra.mxu0 0.0
        %8346 = vmatpush.msra.mxu0 0.0
        %8347 = vmatpush.msra.mxu0 0.0
        %8348 = vmatpush.msra.mxu0 0.0
        %8349 = vmatpush.msra.mxu0 0.0
        %8350 = vmatpush.msra.mxu0 0.0
        %8351 = vmatpush.msra.mxu0 0.0
        %8352 = vmatpush.msra.mxu0 0.0
        %8353 = vmatpush.msra.mxu0 0.0
        %8354 = vmatpush.msra.mxu0 0.0
        %8355 = vmatpush.msra.mxu0 %v4259
        %8356 = vmatpush.msra.mxu0 %v3346
        %8357 = vmatmul.f32.gmra.mxu0 %v3671
        %v8358 = vpop.f32.mrf.mxu0
        %v8359 = vadd.f32 %v3667, %v8358
        %8360 = vdwg.mxu0
        %8361 = vmatpush.msra.mxu0 0.0
        %8362 = vmatpush.msra.mxu0 0.0
        %8363 = vmatpush.msra.mxu0 0.0
        %8364 = vmatpush.msra.mxu0 0.0
        %8365 = vmatpush.msra.mxu0 0.0
        %8366 = vmatpush.msra.mxu0 0.0
        %8367 = vmatpush.msra.mxu0 0.0
        %8368 = vmatpush.msra.mxu0 0.0
        %8369 = vmatpush.msra.mxu0 0.0
        %8370 = vmatpush.msra.mxu0 0.0
        %8371 = vmatpush.msra.mxu0 0.0
        %8372 = vmatpush.msra.mxu0 0.0
        %8373 = vmatpush.msra.mxu0 0.0
        %8374 = vmatpush.msra.mxu0 0.0
        %8375 = vmatpush.msra.mxu0 %v4262
        %8376 = vmatpush.msra.mxu0 %v3347
        %8377 = vmatmul.f32.gmra.mxu0 %v3671
        %v8378 = vpop.f32.mrf.mxu0
        %v8379 = vadd.f32 %v3667, %v8378
        %8380 = vdwg.mxu0
        %8381 = vmatpush.msra.mxu0 0.0
        %8382 = vmatpush.msra.mxu0 0.0
        %8383 = vmatpush.msra.mxu0 0.0
        %8384 = vmatpush.msra.mxu0 0.0
        %8385 = vmatpush.msra.mxu0 0.0
        %8386 = vmatpush.msra.mxu0 0.0
        %8387 = vmatpush.msra.mxu0 0.0
        %8388 = vmatpush.msra.mxu0 0.0
        %8389 = vmatpush.msra.mxu0 0.0
        %8390 = vmatpush.msra.mxu0 0.0
        %8391 = vmatpush.msra.mxu0 0.0
        %8392 = vmatpush.msra.mxu0 0.0
        %8393 = vmatpush.msra.mxu0 0.0
        %8394 = vmatpush.msra.mxu0 0.0
        %8395 = vmatpush.msra.mxu0 %v4265
        %8396 = vmatpush.msra.mxu0 %v3348
        %8397 = vmatmul.f32.gmra.mxu0 %v3671
        %v8398 = vpop.f32.mrf.mxu0
        %v8399 = vadd.f32 %v3667, %v8398
        %8400 = vdwg.mxu0
        %8401 = vmatpush.msra.mxu0 0.0
        %8402 = vmatpush.msra.mxu0 0.0
        %8403 = vmatpush.msra.mxu0 0.0
        %8404 = vmatpush.msra.mxu0 0.0
        %8405 = vmatpush.msra.mxu0 0.0
        %8406 = vmatpush.msra.mxu0 0.0
        %8407 = vmatpush.msra.mxu0 0.0
        %8408 = vmatpush.msra.mxu0 0.0
        %8409 = vmatpush.msra.mxu0 0.0
        %8410 = vmatpush.msra.mxu0 0.0
        %8411 = vmatpush.msra.mxu0 0.0
        %8412 = vmatpush.msra.mxu0 0.0
        %8413 = vmatpush.msra.mxu0 0.0
        %8414 = vmatpush.msra.mxu0 0.0
        %8415 = vmatpush.msra.mxu0 %v4268
        %8416 = vmatpush.msra.mxu0 %v3349
        %8417 = vmatmul.f32.gmra.mxu0 %v3671
        %v8418 = vpop.f32.mrf.mxu0
        %v8419 = vadd.f32 %v3667, %v8418
        %8420 = vdwg.mxu0
        %8421 = vmatpush.msra.mxu0 0.0
        %8422 = vmatpush.msra.mxu0 0.0
        %8423 = vmatpush.msra.mxu0 0.0
        %8424 = vmatpush.msra.mxu0 0.0
        %8425 = vmatpush.msra.mxu0 0.0
        %8426 = vmatpush.msra.mxu0 0.0
        %8427 = vmatpush.msra.mxu0 0.0
        %8428 = vmatpush.msra.mxu0 0.0
        %8429 = vmatpush.msra.mxu0 0.0
        %8430 = vmatpush.msra.mxu0 0.0
        %8431 = vmatpush.msra.mxu0 0.0
        %8432 = vmatpush.msra.mxu0 0.0
        %8433 = vmatpush.msra.mxu0 0.0
        %8434 = vmatpush.msra.mxu0 0.0
        %8435 = vmatpush.msra.mxu0 %v4271
        %8436 = vmatpush.msra.mxu0 %v3350
        %8437 = vmatmul.f32.gmra.mxu0 %v3671
        %v8438 = vpop.f32.mrf.mxu0
        %v8439 = vadd.f32 %v3667, %v8438
        %8440 = vdwg.mxu0
        %8441 = vmatpush.msra.mxu0 0.0
        %8442 = vmatpush.msra.mxu0 0.0
        %8443 = vmatpush.msra.mxu0 0.0
        %8444 = vmatpush.msra.mxu0 0.0
        %8445 = vmatpush.msra.mxu0 0.0
        %8446 = vmatpush.msra.mxu0 0.0
        %8447 = vmatpush.msra.mxu0 0.0
        %8448 = vmatpush.msra.mxu0 0.0
        %8449 = vmatpush.msra.mxu0 0.0
        %8450 = vmatpush.msra.mxu0 0.0
        %8451 = vmatpush.msra.mxu0 0.0
        %8452 = vmatpush.msra.mxu0 0.0
        %8453 = vmatpush.msra.mxu0 0.0
        %8454 = vmatpush.msra.mxu0 0.0
        %8455 = vmatpush.msra.mxu0 %v4274
        %8456 = vmatpush.msra.mxu0 %v3351
        %8457 = vmatmul.f32.gmra.mxu0 %v3671
        %v8458 = vpop.f32.mrf.mxu0
        %v8459 = vadd.f32 %v3667, %v8458
        %8460 = vdwg.mxu0
        %8461 = vmatpush.msra.mxu0 0.0
        %8462 = vmatpush.msra.mxu0 0.0
        %8463 = vmatpush.msra.mxu0 0.0
        %8464 = vmatpush.msra.mxu0 0.0
        %8465 = vmatpush.msra.mxu0 0.0
        %8466 = vmatpush.msra.mxu0 0.0
        %8467 = vmatpush.msra.mxu0 0.0
        %8468 = vmatpush.msra.mxu0 0.0
        %8469 = vmatpush.msra.mxu0 0.0
        %8470 = vmatpush.msra.mxu0 0.0
        %8471 = vmatpush.msra.mxu0 0.0
        %8472 = vmatpush.msra.mxu0 0.0
        %8473 = vmatpush.msra.mxu0 0.0
        %8474 = vmatpush.msra.mxu0 0.0
        %8475 = vmatpush.msra.mxu0 %v4277
        %8476 = vmatpush.msra.mxu0 %v3352
        %8477 = vmatmul.f32.gmra.mxu0 %v3671
        %v8478 = vpop.f32.mrf.mxu0
        %v8479 = vadd.f32 %v3667, %v8478
        %8480 = vdwg.mxu0
        %8481 = vmatpush.msra.mxu0 0.0
        %8482 = vmatpush.msra.mxu0 0.0
        %8483 = vmatpush.msra.mxu0 0.0
        %8484 = vmatpush.msra.mxu0 0.0
        %8485 = vmatpush.msra.mxu0 0.0
        %8486 = vmatpush.msra.mxu0 0.0
        %8487 = vmatpush.msra.mxu0 0.0
        %8488 = vmatpush.msra.mxu0 0.0
        %8489 = vmatpush.msra.mxu0 0.0
        %8490 = vmatpush.msra.mxu0 0.0
        %8491 = vmatpush.msra.mxu0 0.0
        %8492 = vmatpush.msra.mxu0 0.0
        %8493 = vmatpush.msra.mxu0 0.0
        %8494 = vmatpush.msra.mxu0 0.0
        %8495 = vmatpush.msra.mxu0 %v4280
        %8496 = vmatpush.msra.mxu0 %v3353
        %8497 = vmatmul.f32.gmra.mxu0 %v3671
        %v8498 = vpop.f32.mrf.mxu0
        %v8499 = vadd.f32 %v3667, %v8498
        %8500 = vdwg.mxu0
        %8501 = vmatpush.msra.mxu0 0.0
        %8502 = vmatpush.msra.mxu0 0.0
        %8503 = vmatpush.msra.mxu0 0.0
        %8504 = vmatpush.msra.mxu0 0.0
        %8505 = vmatpush.msra.mxu0 0.0
        %8506 = vmatpush.msra.mxu0 0.0
        %8507 = vmatpush.msra.mxu0 0.0
        %8508 = vmatpush.msra.mxu0 0.0
        %8509 = vmatpush.msra.mxu0 0.0
        %8510 = vmatpush.msra.mxu0 0.0
        %8511 = vmatpush.msra.mxu0 0.0
        %8512 = vmatpush.msra.mxu0 0.0
        %8513 = vmatpush.msra.mxu0 0.0
        %8514 = vmatpush.msra.mxu0 0.0
        %8515 = vmatpush.msra.mxu0 %v4283
        %8516 = vmatpush.msra.mxu0 %v3354
        %8517 = vmatmul.f32.gmra.mxu0 %v3671
        %v8518 = vpop.f32.mrf.mxu0
        %v8519 = vadd.f32 %v3667, %v8518
        %8520 = vdwg.mxu0
        %8521 = vmatpush.msra.mxu0 0.0
        %8522 = vmatpush.msra.mxu0 0.0
        %8523 = vmatpush.msra.mxu0 0.0
        %8524 = vmatpush.msra.mxu0 0.0
        %8525 = vmatpush.msra.mxu0 0.0
        %8526 = vmatpush.msra.mxu0 0.0
        %8527 = vmatpush.msra.mxu0 0.0
        %8528 = vmatpush.msra.mxu0 0.0
        %8529 = vmatpush.msra.mxu0 0.0
        %8530 = vmatpush.msra.mxu0 0.0
        %8531 = vmatpush.msra.mxu0 0.0
        %8532 = vmatpush.msra.mxu0 0.0
        %8533 = vmatpush.msra.mxu0 0.0
        %8534 = vmatpush.msra.mxu0 0.0
        %8535 = vmatpush.msra.mxu0 %v4286
        %8536 = vmatpush.msra.mxu0 %v3355
        %8537 = vmatmul.f32.gmra.mxu0 %v3671
        %v8538 = vpop.f32.mrf.mxu0
        %v8539 = vadd.f32 %v3667, %v8538
        %8540 = vdwg.mxu0
        %8541 = vmatpush.msra.mxu0 0.0
        %8542 = vmatpush.msra.mxu0 0.0
        %8543 = vmatpush.msra.mxu0 0.0
        %8544 = vmatpush.msra.mxu0 0.0
        %8545 = vmatpush.msra.mxu0 0.0
        %8546 = vmatpush.msra.mxu0 0.0
        %8547 = vmatpush.msra.mxu0 0.0
        %8548 = vmatpush.msra.mxu0 0.0
        %8549 = vmatpush.msra.mxu0 0.0
        %8550 = vmatpush.msra.mxu0 0.0
        %8551 = vmatpush.msra.mxu0 0.0
        %8552 = vmatpush.msra.mxu0 0.0
        %8553 = vmatpush.msra.mxu0 0.0
        %8554 = vmatpush.msra.mxu0 0.0
        %8555 = vmatpush.msra.mxu0 %v4289
        %8556 = vmatpush.msra.mxu0 %v3356
        %8557 = vmatmul.f32.gmra.mxu0 %v3671
        %v8558 = vpop.f32.mrf.mxu0
        %v8559 = vadd.f32 %v3667, %v8558
        %8560 = vdwg.mxu0
        %8561 = vmatpush.msra.mxu0 0.0
        %8562 = vmatpush.msra.mxu0 0.0
        %8563 = vmatpush.msra.mxu0 0.0
        %8564 = vmatpush.msra.mxu0 0.0
        %8565 = vmatpush.msra.mxu0 0.0
        %8566 = vmatpush.msra.mxu0 0.0
        %8567 = vmatpush.msra.mxu0 0.0
        %8568 = vmatpush.msra.mxu0 0.0
        %8569 = vmatpush.msra.mxu0 0.0
        %8570 = vmatpush.msra.mxu0 0.0
        %8571 = vmatpush.msra.mxu0 0.0
        %8572 = vmatpush.msra.mxu0 0.0
        %8573 = vmatpush.msra.mxu0 0.0
        %8574 = vmatpush.msra.mxu0 0.0
        %8575 = vmatpush.msra.mxu0 %v4292
        %8576 = vmatpush.msra.mxu0 %v3357
        %8577 = vmatmul.f32.gmra.mxu0 %v3671
        %v8578 = vpop.f32.mrf.mxu0
        %v8579 = vadd.f32 %v3667, %v8578
        %8580 = vdwg.mxu0
        %8581 = vmatpush.msra.mxu0 0.0
        %8582 = vmatpush.msra.mxu0 0.0
        %8583 = vmatpush.msra.mxu0 0.0
        %8584 = vmatpush.msra.mxu0 0.0
        %8585 = vmatpush.msra.mxu0 0.0
        %8586 = vmatpush.msra.mxu0 0.0
        %8587 = vmatpush.msra.mxu0 0.0
        %8588 = vmatpush.msra.mxu0 0.0
        %8589 = vmatpush.msra.mxu0 0.0
        %8590 = vmatpush.msra.mxu0 0.0
        %8591 = vmatpush.msra.mxu0 0.0
        %8592 = vmatpush.msra.mxu0 0.0
        %8593 = vmatpush.msra.mxu0 0.0
        %8594 = vmatpush.msra.mxu0 0.0
        %8595 = vmatpush.msra.mxu0 %v4295
        %8596 = vmatpush.msra.mxu0 %v3358
        %8597 = vmatmul.f32.gmra.mxu0 %v3671
        %v8598 = vpop.f32.mrf.mxu0
        %v8599 = vadd.f32 %v3667, %v8598
        %8600 = vdwg.mxu0
        %8601 = vmatpush.msra.mxu0 0.0
        %8602 = vmatpush.msra.mxu0 0.0
        %8603 = vmatpush.msra.mxu0 0.0
        %8604 = vmatpush.msra.mxu0 0.0
        %8605 = vmatpush.msra.mxu0 0.0
        %8606 = vmatpush.msra.mxu0 0.0
        %8607 = vmatpush.msra.mxu0 0.0
        %8608 = vmatpush.msra.mxu0 0.0
        %8609 = vmatpush.msra.mxu0 0.0
        %8610 = vmatpush.msra.mxu0 0.0
        %8611 = vmatpush.msra.mxu0 0.0
        %8612 = vmatpush.msra.mxu0 0.0
        %8613 = vmatpush.msra.mxu0 0.0
        %8614 = vmatpush.msra.mxu0 0.0
        %8615 = vmatpush.msra.mxu0 %v4298
        %8616 = vmatpush.msra.mxu0 %v3359
        %8617 = vmatmul.f32.gmra.mxu0 %v3671
        %v8618 = vpop.f32.mrf.mxu0
        %v8619 = vadd.f32 %v3667, %v8618
        %8620 = vdwg.mxu0
        %8621 = vmatpush.msra.mxu0 0.0
        %8622 = vmatpush.msra.mxu0 0.0
        %8623 = vmatpush.msra.mxu0 0.0
        %8624 = vmatpush.msra.mxu0 0.0
        %8625 = vmatpush.msra.mxu0 0.0
        %8626 = vmatpush.msra.mxu0 0.0
        %8627 = vmatpush.msra.mxu0 0.0
        %8628 = vmatpush.msra.mxu0 0.0
        %8629 = vmatpush.msra.mxu0 0.0
        %8630 = vmatpush.msra.mxu0 0.0
        %8631 = vmatpush.msra.mxu0 0.0
        %8632 = vmatpush.msra.mxu0 0.0
        %8633 = vmatpush.msra.mxu0 0.0
        %8634 = vmatpush.msra.mxu0 0.0
        %8635 = vmatpush.msra.mxu0 %v4301
        %8636 = vmatpush.msra.mxu0 %v3360
        %8637 = vmatmul.f32.gmra.mxu0 %v3671
        %v8638 = vpop.f32.mrf.mxu0
        %v8639 = vadd.f32 %v3667, %v8638
        %8640 = vdwg.mxu0
        %8641 = vmatpush.msra.mxu0 0.0
        %8642 = vmatpush.msra.mxu0 0.0
        %8643 = vmatpush.msra.mxu0 0.0
        %8644 = vmatpush.msra.mxu0 0.0
        %8645 = vmatpush.msra.mxu0 0.0
        %8646 = vmatpush.msra.mxu0 0.0
        %8647 = vmatpush.msra.mxu0 0.0
        %8648 = vmatpush.msra.mxu0 0.0
        %8649 = vmatpush.msra.mxu0 0.0
        %8650 = vmatpush.msra.mxu0 0.0
        %8651 = vmatpush.msra.mxu0 0.0
        %8652 = vmatpush.msra.mxu0 0.0
        %8653 = vmatpush.msra.mxu0 0.0
        %8654 = vmatpush.msra.mxu0 0.0
        %8655 = vmatpush.msra.mxu0 %v4304
        %8656 = vmatpush.msra.mxu0 %v3361
        %8657 = vmatmul.f32.gmra.mxu0 %v3671
        %v8658 = vpop.f32.mrf.mxu0
        %v8659 = vadd.f32 %v3667, %v8658
        %8660 = vdwg.mxu0
        %8661 = vmatpush.msra.mxu0 0.0
        %8662 = vmatpush.msra.mxu0 0.0
        %8663 = vmatpush.msra.mxu0 0.0
        %8664 = vmatpush.msra.mxu0 0.0
        %8665 = vmatpush.msra.mxu0 0.0
        %8666 = vmatpush.msra.mxu0 0.0
        %8667 = vmatpush.msra.mxu0 0.0
        %8668 = vmatpush.msra.mxu0 0.0
        %8669 = vmatpush.msra.mxu0 0.0
        %8670 = vmatpush.msra.mxu0 0.0
        %8671 = vmatpush.msra.mxu0 0.0
        %8672 = vmatpush.msra.mxu0 0.0
        %8673 = vmatpush.msra.mxu0 0.0
        %8674 = vmatpush.msra.mxu0 0.0
        %8675 = vmatpush.msra.mxu0 %v4307
        %8676 = vmatpush.msra.mxu0 %v3362
        %8677 = vmatmul.f32.gmra.mxu0 %v3671
        %v8678 = vpop.f32.mrf.mxu0
        %v8679 = vadd.f32 %v3667, %v8678
        %8680 = vdwg.mxu0
        %8681 = vmatpush.msra.mxu0 0.0
        %8682 = vmatpush.msra.mxu0 0.0
        %8683 = vmatpush.msra.mxu0 0.0
        %8684 = vmatpush.msra.mxu0 0.0
        %8685 = vmatpush.msra.mxu0 0.0
        %8686 = vmatpush.msra.mxu0 0.0
        %8687 = vmatpush.msra.mxu0 0.0
        %8688 = vmatpush.msra.mxu0 0.0
        %8689 = vmatpush.msra.mxu0 0.0
        %8690 = vmatpush.msra.mxu0 0.0
        %8691 = vmatpush.msra.mxu0 0.0
        %8692 = vmatpush.msra.mxu0 0.0
        %8693 = vmatpush.msra.mxu0 0.0
        %8694 = vmatpush.msra.mxu0 0.0
        %8695 = vmatpush.msra.mxu0 %v4310
        %8696 = vmatpush.msra.mxu0 %v3363
        %8697 = vmatmul.f32.gmra.mxu0 %v3671
        %v8698 = vpop.f32.mrf.mxu0
        %v8699 = vadd.f32 %v3667, %v8698
        %8700 = vdwg.mxu0
        %8701 = vmatpush.msra.mxu0 0.0
        %8702 = vmatpush.msra.mxu0 0.0
        %8703 = vmatpush.msra.mxu0 0.0
        %8704 = vmatpush.msra.mxu0 0.0
        %8705 = vmatpush.msra.mxu0 0.0
        %8706 = vmatpush.msra.mxu0 0.0
        %8707 = vmatpush.msra.mxu0 0.0
        %8708 = vmatpush.msra.mxu0 0.0
        %8709 = vmatpush.msra.mxu0 0.0
        %8710 = vmatpush.msra.mxu0 0.0
        %8711 = vmatpush.msra.mxu0 0.0
        %8712 = vmatpush.msra.mxu0 0.0
        %8713 = vmatpush.msra.mxu0 0.0
        %8714 = vmatpush.msra.mxu0 0.0
        %8715 = vmatpush.msra.mxu0 %v4313
        %8716 = vmatpush.msra.mxu0 %v3364
        %8717 = vmatmul.f32.gmra.mxu0 %v3671
        %v8718 = vpop.f32.mrf.mxu0
        %v8719 = vadd.f32 %v3667, %v8718
        %8720 = vdwg.mxu0
        %8721 = vmatpush.msra.mxu0 0.0
        %8722 = vmatpush.msra.mxu0 0.0
        %8723 = vmatpush.msra.mxu0 0.0
        %8724 = vmatpush.msra.mxu0 0.0
        %8725 = vmatpush.msra.mxu0 0.0
        %8726 = vmatpush.msra.mxu0 0.0
        %8727 = vmatpush.msra.mxu0 0.0
        %8728 = vmatpush.msra.mxu0 0.0
        %8729 = vmatpush.msra.mxu0 0.0
        %8730 = vmatpush.msra.mxu0 0.0
        %8731 = vmatpush.msra.mxu0 0.0
        %8732 = vmatpush.msra.mxu0 0.0
        %8733 = vmatpush.msra.mxu0 0.0
        %8734 = vmatpush.msra.mxu0 0.0
        %8735 = vmatpush.msra.mxu0 %v4316
        %8736 = vmatpush.msra.mxu0 %v3365
        %8737 = vmatmul.f32.gmra.mxu0 %v3671
        %v8738 = vpop.f32.mrf.mxu0
        %v8739 = vadd.f32 %v3667, %v8738
        %8740 = vdwg.mxu0
        %8741 = vmatpush.msra.mxu0 0.0
        %8742 = vmatpush.msra.mxu0 0.0
        %8743 = vmatpush.msra.mxu0 0.0
        %8744 = vmatpush.msra.mxu0 0.0
        %8745 = vmatpush.msra.mxu0 0.0
        %8746 = vmatpush.msra.mxu0 0.0
        %8747 = vmatpush.msra.mxu0 0.0
        %8748 = vmatpush.msra.mxu0 0.0
        %8749 = vmatpush.msra.mxu0 0.0
        %8750 = vmatpush.msra.mxu0 0.0
        %8751 = vmatpush.msra.mxu0 0.0
        %8752 = vmatpush.msra.mxu0 0.0
        %8753 = vmatpush.msra.mxu0 0.0
        %8754 = vmatpush.msra.mxu0 0.0
        %8755 = vmatpush.msra.mxu0 %v4319
        %8756 = vmatpush.msra.mxu0 %v3366
        %8757 = vmatmul.f32.gmra.mxu0 %v3671
        %v8758 = vpop.f32.mrf.mxu0
        %v8759 = vadd.f32 %v3667, %v8758
        %8760 = vdwg.mxu0
        %8761 = vmatpush.msra.mxu0 0.0
        %8762 = vmatpush.msra.mxu0 0.0
        %8763 = vmatpush.msra.mxu0 0.0
        %8764 = vmatpush.msra.mxu0 0.0
        %8765 = vmatpush.msra.mxu0 0.0
        %8766 = vmatpush.msra.mxu0 0.0
        %8767 = vmatpush.msra.mxu0 0.0
        %8768 = vmatpush.msra.mxu0 0.0
        %8769 = vmatpush.msra.mxu0 0.0
        %8770 = vmatpush.msra.mxu0 0.0
        %8771 = vmatpush.msra.mxu0 0.0
        %8772 = vmatpush.msra.mxu0 0.0
        %8773 = vmatpush.msra.mxu0 0.0
        %8774 = vmatpush.msra.mxu0 0.0
        %8775 = vmatpush.msra.mxu0 %v4322
        %8776 = vmatpush.msra.mxu0 %v3367
        %8777 = vmatmul.f32.gmra.mxu0 %v3671
        %v8778 = vpop.f32.mrf.mxu0
        %v8779 = vadd.f32 %v3667, %v8778
        %8780 = vdwg.mxu0
        %8781 = vmatpush.msra.mxu0 0.0
        %8782 = vmatpush.msra.mxu0 0.0
        %8783 = vmatpush.msra.mxu0 0.0
        %8784 = vmatpush.msra.mxu0 0.0
        %8785 = vmatpush.msra.mxu0 0.0
        %8786 = vmatpush.msra.mxu0 0.0
        %8787 = vmatpush.msra.mxu0 0.0
        %8788 = vmatpush.msra.mxu0 0.0
        %8789 = vmatpush.msra.mxu0 0.0
        %8790 = vmatpush.msra.mxu0 0.0
        %8791 = vmatpush.msra.mxu0 0.0
        %8792 = vmatpush.msra.mxu0 0.0
        %8793 = vmatpush.msra.mxu0 0.0
        %8794 = vmatpush.msra.mxu0 0.0
        %8795 = vmatpush.msra.mxu0 %v4325
        %8796 = vmatpush.msra.mxu0 %v3368
        %8797 = vmatmul.f32.gmra.mxu0 %v3671
        %v8798 = vpop.f32.mrf.mxu0
        %v8799 = vadd.f32 %v3667, %v8798
        %8800 = vdwg.mxu0
        %8801 = vmatpush.msra.mxu0 0.0
        %8802 = vmatpush.msra.mxu0 0.0
        %8803 = vmatpush.msra.mxu0 0.0
        %8804 = vmatpush.msra.mxu0 0.0
        %8805 = vmatpush.msra.mxu0 0.0
        %8806 = vmatpush.msra.mxu0 0.0
        %8807 = vmatpush.msra.mxu0 0.0
        %8808 = vmatpush.msra.mxu0 0.0
        %8809 = vmatpush.msra.mxu0 0.0
        %8810 = vmatpush.msra.mxu0 0.0
        %8811 = vmatpush.msra.mxu0 0.0
        %8812 = vmatpush.msra.mxu0 0.0
        %8813 = vmatpush.msra.mxu0 0.0
        %8814 = vmatpush.msra.mxu0 0.0
        %8815 = vmatpush.msra.mxu0 %v4328
        %8816 = vmatpush.msra.mxu0 %v3369
        %8817 = vmatmul.f32.gmra.mxu0 %v3671
        %v8818 = vpop.f32.mrf.mxu0
        %v8819 = vadd.f32 %v3667, %v8818
        %8820 = vdwg.mxu0
        %8821 = vmatpush.msra.mxu0 0.0
        %8822 = vmatpush.msra.mxu0 0.0
        %8823 = vmatpush.msra.mxu0 0.0
        %8824 = vmatpush.msra.mxu0 0.0
        %8825 = vmatpush.msra.mxu0 0.0
        %8826 = vmatpush.msra.mxu0 0.0
        %8827 = vmatpush.msra.mxu0 0.0
        %8828 = vmatpush.msra.mxu0 0.0
        %8829 = vmatpush.msra.mxu0 0.0
        %8830 = vmatpush.msra.mxu0 0.0
        %8831 = vmatpush.msra.mxu0 0.0
        %8832 = vmatpush.msra.mxu0 0.0
        %8833 = vmatpush.msra.mxu0 0.0
        %8834 = vmatpush.msra.mxu0 0.0
        %8835 = vmatpush.msra.mxu0 %v4331
        %8836 = vmatpush.msra.mxu0 %v3370
        %8837 = vmatmul.f32.gmra.mxu0 %v3671
        %v8838 = vpop.f32.mrf.mxu0
        %v8839 = vadd.f32 %v3667, %v8838
        %8840 = vdwg.mxu0
        %8841 = vmatpush.msra.mxu0 0.0
        %8842 = vmatpush.msra.mxu0 0.0
        %8843 = vmatpush.msra.mxu0 0.0
        %8844 = vmatpush.msra.mxu0 0.0
        %8845 = vmatpush.msra.mxu0 0.0
        %8846 = vmatpush.msra.mxu0 0.0
        %8847 = vmatpush.msra.mxu0 0.0
        %8848 = vmatpush.msra.mxu0 0.0
        %8849 = vmatpush.msra.mxu0 0.0
        %8850 = vmatpush.msra.mxu0 0.0
        %8851 = vmatpush.msra.mxu0 0.0
        %8852 = vmatpush.msra.mxu0 0.0
        %8853 = vmatpush.msra.mxu0 0.0
        %8854 = vmatpush.msra.mxu0 0.0
        %8855 = vmatpush.msra.mxu0 %v4334
        %8856 = vmatpush.msra.mxu0 %v3371
        %8857 = vmatmul.f32.gmra.mxu0 %v3671
        %v8858 = vpop.f32.mrf.mxu0
        %v8859 = vadd.f32 %v3667, %v8858
        %8860 = vdwg.mxu0
        %8861 = vmatpush.msra.mxu0 0.0
        %8862 = vmatpush.msra.mxu0 0.0
        %8863 = vmatpush.msra.mxu0 0.0
        %8864 = vmatpush.msra.mxu0 0.0
        %8865 = vmatpush.msra.mxu0 0.0
        %8866 = vmatpush.msra.mxu0 0.0
        %8867 = vmatpush.msra.mxu0 0.0
        %8868 = vmatpush.msra.mxu0 0.0
        %8869 = vmatpush.msra.mxu0 0.0
        %8870 = vmatpush.msra.mxu0 0.0
        %8871 = vmatpush.msra.mxu0 0.0
        %8872 = vmatpush.msra.mxu0 0.0
        %8873 = vmatpush.msra.mxu0 0.0
        %8874 = vmatpush.msra.mxu0 0.0
        %8875 = vmatpush.msra.mxu0 %v4337
        %8876 = vmatpush.msra.mxu0 %v3372
        %8877 = vmatmul.f32.gmra.mxu0 %v3671
        %v8878 = vpop.f32.mrf.mxu0
        %v8879 = vadd.f32 %v3667, %v8878
        %8880 = vdwg.mxu0
        %8881 = vmatpush.msra.mxu0 0.0
        %8882 = vmatpush.msra.mxu0 0.0
        %8883 = vmatpush.msra.mxu0 0.0
        %8884 = vmatpush.msra.mxu0 0.0
        %8885 = vmatpush.msra.mxu0 0.0
        %8886 = vmatpush.msra.mxu0 0.0
        %8887 = vmatpush.msra.mxu0 0.0
        %8888 = vmatpush.msra.mxu0 0.0
        %8889 = vmatpush.msra.mxu0 0.0
        %8890 = vmatpush.msra.mxu0 0.0
        %8891 = vmatpush.msra.mxu0 0.0
        %8892 = vmatpush.msra.mxu0 0.0
        %8893 = vmatpush.msra.mxu0 0.0
        %8894 = vmatpush.msra.mxu0 0.0
        %8895 = vmatpush.msra.mxu0 %v4340
        %8896 = vmatpush.msra.mxu0 %v3373
        %8897 = vmatmul.f32.gmra.mxu0 %v3671
        %v8898 = vpop.f32.mrf.mxu0
        %v8899 = vadd.f32 %v3667, %v8898
        %8900 = vdwg.mxu0
        %8901 = vmatpush.msra.mxu0 0.0
        %8902 = vmatpush.msra.mxu0 0.0
        %8903 = vmatpush.msra.mxu0 0.0
        %8904 = vmatpush.msra.mxu0 0.0
        %8905 = vmatpush.msra.mxu0 0.0
        %8906 = vmatpush.msra.mxu0 0.0
        %8907 = vmatpush.msra.mxu0 0.0
        %8908 = vmatpush.msra.mxu0 0.0
        %8909 = vmatpush.msra.mxu0 0.0
        %8910 = vmatpush.msra.mxu0 0.0
        %8911 = vmatpush.msra.mxu0 0.0
        %8912 = vmatpush.msra.mxu0 0.0
        %8913 = vmatpush.msra.mxu0 0.0
        %8914 = vmatpush.msra.mxu0 0.0
        %8915 = vmatpush.msra.mxu0 %v4343
        %8916 = vmatpush.msra.mxu0 %v3374
        %8917 = vmatmul.f32.gmra.mxu0 %v3671
        %v8918 = vpop.f32.mrf.mxu0
        %v8919 = vadd.f32 %v3667, %v8918
        %8920 = vdwg.mxu0
        %8921 = vmatpush.msra.mxu0 0.0
        %8922 = vmatpush.msra.mxu0 0.0
        %8923 = vmatpush.msra.mxu0 0.0
        %8924 = vmatpush.msra.mxu0 0.0
        %8925 = vmatpush.msra.mxu0 0.0
        %8926 = vmatpush.msra.mxu0 0.0
        %8927 = vmatpush.msra.mxu0 0.0
        %8928 = vmatpush.msra.mxu0 0.0
        %8929 = vmatpush.msra.mxu0 0.0
        %8930 = vmatpush.msra.mxu0 0.0
        %8931 = vmatpush.msra.mxu0 0.0
        %8932 = vmatpush.msra.mxu0 0.0
        %8933 = vmatpush.msra.mxu0 0.0
        %8934 = vmatpush.msra.mxu0 0.0
        %8935 = vmatpush.msra.mxu0 %v4346
        %8936 = vmatpush.msra.mxu0 %v3375
        %8937 = vmatmul.f32.gmra.mxu0 %v3671
        %v8938 = vpop.f32.mrf.mxu0
        %v8939 = vadd.f32 %v3667, %v8938
        %8940 = vdwg.mxu0
        %8941 = vmatpush.msra.mxu0 0.0
        %8942 = vmatpush.msra.mxu0 0.0
        %8943 = vmatpush.msra.mxu0 0.0
        %8944 = vmatpush.msra.mxu0 0.0
        %8945 = vmatpush.msra.mxu0 0.0
        %8946 = vmatpush.msra.mxu0 0.0
        %8947 = vmatpush.msra.mxu0 0.0
        %8948 = vmatpush.msra.mxu0 0.0
        %8949 = vmatpush.msra.mxu0 0.0
        %8950 = vmatpush.msra.mxu0 0.0
        %8951 = vmatpush.msra.mxu0 0.0
        %8952 = vmatpush.msra.mxu0 0.0
        %8953 = vmatpush.msra.mxu0 0.0
        %8954 = vmatpush.msra.mxu0 0.0
        %8955 = vmatpush.msra.mxu0 %v4349
        %8956 = vmatpush.msra.mxu0 %v3376
        %8957 = vmatmul.f32.gmra.mxu0 %v3671
        %v8958 = vpop.f32.mrf.mxu0
        %v8959 = vadd.f32 %v3667, %v8958
        %8960 = vdwg.mxu0
        %8961 = vmatpush.msra.mxu0 0.0
        %8962 = vmatpush.msra.mxu0 0.0
        %8963 = vmatpush.msra.mxu0 0.0
        %8964 = vmatpush.msra.mxu0 0.0
        %8965 = vmatpush.msra.mxu0 0.0
        %8966 = vmatpush.msra.mxu0 0.0
        %8967 = vmatpush.msra.mxu0 0.0
        %8968 = vmatpush.msra.mxu0 0.0
        %8969 = vmatpush.msra.mxu0 0.0
        %8970 = vmatpush.msra.mxu0 0.0
        %8971 = vmatpush.msra.mxu0 0.0
        %8972 = vmatpush.msra.mxu0 0.0
        %8973 = vmatpush.msra.mxu0 0.0
        %8974 = vmatpush.msra.mxu0 0.0
        %8975 = vmatpush.msra.mxu0 %v4352
        %8976 = vmatpush.msra.mxu0 %v3377
        %8977 = vmatmul.f32.gmra.mxu0 %v3671
        %v8978 = vpop.f32.mrf.mxu0
        %v8979 = vadd.f32 %v3667, %v8978
        %8980 = vdwg.mxu0
        %8981 = vmatpush.msra.mxu0 0.0
        %8982 = vmatpush.msra.mxu0 0.0
        %8983 = vmatpush.msra.mxu0 0.0
        %8984 = vmatpush.msra.mxu0 0.0
        %8985 = vmatpush.msra.mxu0 0.0
        %8986 = vmatpush.msra.mxu0 0.0
        %8987 = vmatpush.msra.mxu0 0.0
        %8988 = vmatpush.msra.mxu0 0.0
        %8989 = vmatpush.msra.mxu0 0.0
        %8990 = vmatpush.msra.mxu0 0.0
        %8991 = vmatpush.msra.mxu0 0.0
        %8992 = vmatpush.msra.mxu0 0.0
        %8993 = vmatpush.msra.mxu0 0.0
        %8994 = vmatpush.msra.mxu0 0.0
        %8995 = vmatpush.msra.mxu0 %v4355
        %8996 = vmatpush.msra.mxu0 %v3378
        %8997 = vmatmul.f32.gmra.mxu0 %v3671
        %v8998 = vpop.f32.mrf.mxu0
        %v8999 = vadd.f32 %v3667, %v8998
        %9000 = vdwg.mxu0
        %9001 = vmatpush.msra.mxu0 0.0
        %9002 = vmatpush.msra.mxu0 0.0
        %9003 = vmatpush.msra.mxu0 0.0
        %9004 = vmatpush.msra.mxu0 0.0
        %9005 = vmatpush.msra.mxu0 0.0
        %9006 = vmatpush.msra.mxu0 0.0
        %9007 = vmatpush.msra.mxu0 0.0
        %9008 = vmatpush.msra.mxu0 0.0
        %9009 = vmatpush.msra.mxu0 0.0
        %9010 = vmatpush.msra.mxu0 0.0
        %9011 = vmatpush.msra.mxu0 0.0
        %9012 = vmatpush.msra.mxu0 0.0
        %9013 = vmatpush.msra.mxu0 0.0
        %9014 = vmatpush.msra.mxu0 0.0
        %9015 = vmatpush.msra.mxu0 %v4358
        %9016 = vmatpush.msra.mxu0 %v3379
        %9017 = vmatmul.f32.gmra.mxu0 %v3671
        %v9018 = vpop.f32.mrf.mxu0
        %v9019 = vadd.f32 %v3667, %v9018
        %9020 = vdwg.mxu0
        %9021 = vmatpush.msra.mxu0 0.0
        %9022 = vmatpush.msra.mxu0 0.0
        %9023 = vmatpush.msra.mxu0 0.0
        %9024 = vmatpush.msra.mxu0 0.0
        %9025 = vmatpush.msra.mxu0 0.0
        %9026 = vmatpush.msra.mxu0 0.0
        %9027 = vmatpush.msra.mxu0 0.0
        %9028 = vmatpush.msra.mxu0 0.0
        %9029 = vmatpush.msra.mxu0 0.0
        %9030 = vmatpush.msra.mxu0 0.0
        %9031 = vmatpush.msra.mxu0 0.0
        %9032 = vmatpush.msra.mxu0 0.0
        %9033 = vmatpush.msra.mxu0 0.0
        %9034 = vmatpush.msra.mxu0 0.0
        %9035 = vmatpush.msra.mxu0 %v4361
        %9036 = vmatpush.msra.mxu0 %v3380
        %9037 = vmatmul.f32.gmra.mxu0 %v3671
        %v9038 = vpop.f32.mrf.mxu0
        %v9039 = vadd.f32 %v3667, %v9038
        %9040 = vdwg.mxu0
        %9041 = vmatpush.msra.mxu0 0.0
        %9042 = vmatpush.msra.mxu0 0.0
        %9043 = vmatpush.msra.mxu0 0.0
        %9044 = vmatpush.msra.mxu0 0.0
        %9045 = vmatpush.msra.mxu0 0.0
        %9046 = vmatpush.msra.mxu0 0.0
        %9047 = vmatpush.msra.mxu0 0.0
        %9048 = vmatpush.msra.mxu0 0.0
        %9049 = vmatpush.msra.mxu0 0.0
        %9050 = vmatpush.msra.mxu0 0.0
        %9051 = vmatpush.msra.mxu0 0.0
        %9052 = vmatpush.msra.mxu0 0.0
        %9053 = vmatpush.msra.mxu0 0.0
        %9054 = vmatpush.msra.mxu0 0.0
        %9055 = vmatpush.msra.mxu0 %v4364
        %9056 = vmatpush.msra.mxu0 %v3381
        %9057 = vmatmul.f32.gmra.mxu0 %v3671
        %v9058 = vpop.f32.mrf.mxu0
        %v9059 = vadd.f32 %v3667, %v9058
        %9060 = vdwg.mxu0
        %9061 = vmatpush.msra.mxu0 0.0
        %9062 = vmatpush.msra.mxu0 0.0
        %9063 = vmatpush.msra.mxu0 0.0
        %9064 = vmatpush.msra.mxu0 0.0
        %9065 = vmatpush.msra.mxu0 0.0
        %9066 = vmatpush.msra.mxu0 0.0
        %9067 = vmatpush.msra.mxu0 0.0
        %9068 = vmatpush.msra.mxu0 0.0
        %9069 = vmatpush.msra.mxu0 0.0
        %9070 = vmatpush.msra.mxu0 0.0
        %9071 = vmatpush.msra.mxu0 0.0
        %9072 = vmatpush.msra.mxu0 0.0
        %9073 = vmatpush.msra.mxu0 0.0
        %9074 = vmatpush.msra.mxu0 0.0
        %9075 = vmatpush.msra.mxu0 %v4367
        %9076 = vmatpush.msra.mxu0 %v3382
        %9077 = vmatmul.f32.gmra.mxu0 %v3671
        %v9078 = vpop.f32.mrf.mxu0
        %v9079 = vadd.f32 %v3667, %v9078
        %9080 = vdwg.mxu0
        %9081 = vmatpush.msra.mxu0 0.0
        %9082 = vmatpush.msra.mxu0 0.0
        %9083 = vmatpush.msra.mxu0 0.0
        %9084 = vmatpush.msra.mxu0 0.0
        %9085 = vmatpush.msra.mxu0 0.0
        %9086 = vmatpush.msra.mxu0 0.0
        %9087 = vmatpush.msra.mxu0 0.0
        %9088 = vmatpush.msra.mxu0 0.0
        %9089 = vmatpush.msra.mxu0 0.0
        %9090 = vmatpush.msra.mxu0 0.0
        %9091 = vmatpush.msra.mxu0 0.0
        %9092 = vmatpush.msra.mxu0 0.0
        %9093 = vmatpush.msra.mxu0 0.0
        %9094 = vmatpush.msra.mxu0 0.0
        %9095 = vmatpush.msra.mxu0 %v4370
        %9096 = vmatpush.msra.mxu0 %v3383
        %9097 = vmatmul.f32.gmra.mxu0 %v3671
        %v9098 = vpop.f32.mrf.mxu0
        %v9099 = vadd.f32 %v3667, %v9098
        %9100 = vdwg.mxu0
        %9101 = vmatpush.msra.mxu0 0.0
        %9102 = vmatpush.msra.mxu0 0.0
        %9103 = vmatpush.msra.mxu0 0.0
        %9104 = vmatpush.msra.mxu0 0.0
        %9105 = vmatpush.msra.mxu0 0.0
        %9106 = vmatpush.msra.mxu0 0.0
        %9107 = vmatpush.msra.mxu0 0.0
        %9108 = vmatpush.msra.mxu0 0.0
        %9109 = vmatpush.msra.mxu0 0.0
        %9110 = vmatpush.msra.mxu0 0.0
        %9111 = vmatpush.msra.mxu0 0.0
        %9112 = vmatpush.msra.mxu0 0.0
        %9113 = vmatpush.msra.mxu0 0.0
        %9114 = vmatpush.msra.mxu0 0.0
        %9115 = vmatpush.msra.mxu0 %v4373
        %9116 = vmatpush.msra.mxu0 %v3384
        %9117 = vmatmul.f32.gmra.mxu0 %v3671
        %v9118 = vpop.f32.mrf.mxu0
        %v9119 = vadd.f32 %v3667, %v9118
        %9120 = vdwg.mxu0
        %9121 = vmatpush.msra.mxu0 0.0
        %9122 = vmatpush.msra.mxu0 0.0
        %9123 = vmatpush.msra.mxu0 0.0
        %9124 = vmatpush.msra.mxu0 0.0
        %9125 = vmatpush.msra.mxu0 0.0
        %9126 = vmatpush.msra.mxu0 0.0
        %9127 = vmatpush.msra.mxu0 0.0
        %9128 = vmatpush.msra.mxu0 0.0
        %9129 = vmatpush.msra.mxu0 0.0
        %9130 = vmatpush.msra.mxu0 0.0
        %9131 = vmatpush.msra.mxu0 0.0
        %9132 = vmatpush.msra.mxu0 0.0
        %9133 = vmatpush.msra.mxu0 0.0
        %9134 = vmatpush.msra.mxu0 0.0
        %9135 = vmatpush.msra.mxu0 %v4376
        %9136 = vmatpush.msra.mxu0 %v3385
        %9137 = vmatmul.f32.gmra.mxu0 %v3671
        %v9138 = vpop.f32.mrf.mxu0
        %v9139 = vadd.f32 %v3667, %v9138
        %9140 = vdwg.mxu0
        %9141 = vmatpush.msra.mxu0 0.0
        %9142 = vmatpush.msra.mxu0 0.0
        %9143 = vmatpush.msra.mxu0 0.0
        %9144 = vmatpush.msra.mxu0 0.0
        %9145 = vmatpush.msra.mxu0 0.0
        %9146 = vmatpush.msra.mxu0 0.0
        %9147 = vmatpush.msra.mxu0 0.0
        %9148 = vmatpush.msra.mxu0 0.0
        %9149 = vmatpush.msra.mxu0 0.0
        %9150 = vmatpush.msra.mxu0 0.0
        %9151 = vmatpush.msra.mxu0 0.0
        %9152 = vmatpush.msra.mxu0 0.0
        %9153 = vmatpush.msra.mxu0 0.0
        %9154 = vmatpush.msra.mxu0 0.0
        %9155 = vmatpush.msra.mxu0 %v4379
        %9156 = vmatpush.msra.mxu0 %v3386
        %9157 = vmatmul.f32.gmra.mxu0 %v3671
        %v9158 = vpop.f32.mrf.mxu0
        %v9159 = vadd.f32 %v3667, %v9158
        %9160 = vdwg.mxu0
        %9161 = vmatpush.msra.mxu0 0.0
        %9162 = vmatpush.msra.mxu0 0.0
        %9163 = vmatpush.msra.mxu0 0.0
        %9164 = vmatpush.msra.mxu0 0.0
        %9165 = vmatpush.msra.mxu0 0.0
        %9166 = vmatpush.msra.mxu0 0.0
        %9167 = vmatpush.msra.mxu0 0.0
        %9168 = vmatpush.msra.mxu0 0.0
        %9169 = vmatpush.msra.mxu0 0.0
        %9170 = vmatpush.msra.mxu0 0.0
        %9171 = vmatpush.msra.mxu0 0.0
        %9172 = vmatpush.msra.mxu0 0.0
        %9173 = vmatpush.msra.mxu0 0.0
        %9174 = vmatpush.msra.mxu0 0.0
        %9175 = vmatpush.msra.mxu0 %v4382
        %9176 = vmatpush.msra.mxu0 %v3387
        %9177 = vmatmul.f32.gmra.mxu0 %v3671
        %v9178 = vpop.f32.mrf.mxu0
        %v9179 = vadd.f32 %v3667, %v9178
        %9180 = vdwg.mxu0
        %9181 = vmatpush.msra.mxu0 0.0
        %9182 = vmatpush.msra.mxu0 0.0
        %9183 = vmatpush.msra.mxu0 0.0
        %9184 = vmatpush.msra.mxu0 0.0
        %9185 = vmatpush.msra.mxu0 0.0
        %9186 = vmatpush.msra.mxu0 0.0
        %9187 = vmatpush.msra.mxu0 0.0
        %9188 = vmatpush.msra.mxu0 0.0
        %9189 = vmatpush.msra.mxu0 0.0
        %9190 = vmatpush.msra.mxu0 0.0
        %9191 = vmatpush.msra.mxu0 0.0
        %9192 = vmatpush.msra.mxu0 0.0
        %9193 = vmatpush.msra.mxu0 0.0
        %9194 = vmatpush.msra.mxu0 0.0
        %9195 = vmatpush.msra.mxu0 %v4385
        %9196 = vmatpush.msra.mxu0 %v3388
        %9197 = vmatmul.f32.gmra.mxu0 %v3671
        %v9198 = vpop.f32.mrf.mxu0
        %v9199 = vadd.f32 %v3667, %v9198
        %9200 = vdwg.mxu0
        %9201 = vmatpush.msra.mxu0 0.0
        %9202 = vmatpush.msra.mxu0 0.0
        %9203 = vmatpush.msra.mxu0 0.0
        %9204 = vmatpush.msra.mxu0 0.0
        %9205 = vmatpush.msra.mxu0 0.0
        %9206 = vmatpush.msra.mxu0 0.0
        %9207 = vmatpush.msra.mxu0 0.0
        %9208 = vmatpush.msra.mxu0 0.0
        %9209 = vmatpush.msra.mxu0 0.0
        %9210 = vmatpush.msra.mxu0 0.0
        %9211 = vmatpush.msra.mxu0 0.0
        %9212 = vmatpush.msra.mxu0 0.0
        %9213 = vmatpush.msra.mxu0 0.0
        %9214 = vmatpush.msra.mxu0 0.0
        %9215 = vmatpush.msra.mxu0 %v4388
        %9216 = vmatpush.msra.mxu0 %v3389
        %9217 = vmatmul.f32.gmra.mxu0 %v3671
        %v9218 = vpop.f32.mrf.mxu0
        %v9219 = vadd.f32 %v3667, %v9218
        %9220 = vdwg.mxu0
        %9221 = vmatpush.msra.mxu0 0.0
        %9222 = vmatpush.msra.mxu0 0.0
        %9223 = vmatpush.msra.mxu0 0.0
        %9224 = vmatpush.msra.mxu0 0.0
        %9225 = vmatpush.msra.mxu0 0.0
        %9226 = vmatpush.msra.mxu0 0.0
        %9227 = vmatpush.msra.mxu0 0.0
        %9228 = vmatpush.msra.mxu0 0.0
        %9229 = vmatpush.msra.mxu0 0.0
        %9230 = vmatpush.msra.mxu0 0.0
        %9231 = vmatpush.msra.mxu0 0.0
        %9232 = vmatpush.msra.mxu0 0.0
        %9233 = vmatpush.msra.mxu0 0.0
        %9234 = vmatpush.msra.mxu0 0.0
        %9235 = vmatpush.msra.mxu0 %v4391
        %9236 = vmatpush.msra.mxu0 %v3390
        %9237 = vmatmul.f32.gmra.mxu0 %v3671
        %v9238 = vpop.f32.mrf.mxu0
        %v9239 = vadd.f32 %v3667, %v9238
        %9240 = vdwg.mxu0
        %9241 = vmatpush.msra.mxu0 0.0
        %9242 = vmatpush.msra.mxu0 0.0
        %9243 = vmatpush.msra.mxu0 0.0
        %9244 = vmatpush.msra.mxu0 0.0
        %9245 = vmatpush.msra.mxu0 0.0
        %9246 = vmatpush.msra.mxu0 0.0
        %9247 = vmatpush.msra.mxu0 0.0
        %9248 = vmatpush.msra.mxu0 0.0
        %9249 = vmatpush.msra.mxu0 0.0
        %9250 = vmatpush.msra.mxu0 0.0
        %9251 = vmatpush.msra.mxu0 0.0
        %9252 = vmatpush.msra.mxu0 0.0
        %9253 = vmatpush.msra.mxu0 0.0
        %9254 = vmatpush.msra.mxu0 0.0
        %9255 = vmatpush.msra.mxu0 %v4394
        %9256 = vmatpush.msra.mxu0 %v3391
        %9257 = vmatmul.f32.gmra.mxu0 %v3671
        %v9258 = vpop.f32.mrf.mxu0
        %v9259 = vadd.f32 %v3667, %v9258
        %9260 = vdwg.mxu0
        %9261 = vmatpush.msra.mxu0 0.0
        %9262 = vmatpush.msra.mxu0 0.0
        %9263 = vmatpush.msra.mxu0 0.0
        %9264 = vmatpush.msra.mxu0 0.0
        %9265 = vmatpush.msra.mxu0 0.0
        %9266 = vmatpush.msra.mxu0 0.0
        %9267 = vmatpush.msra.mxu0 0.0
        %9268 = vmatpush.msra.mxu0 0.0
        %9269 = vmatpush.msra.mxu0 0.0
        %9270 = vmatpush.msra.mxu0 0.0
        %9271 = vmatpush.msra.mxu0 0.0
        %9272 = vmatpush.msra.mxu0 0.0
        %9273 = vmatpush.msra.mxu0 0.0
        %9274 = vmatpush.msra.mxu0 0.0
        %9275 = vmatpush.msra.mxu0 %v4397
        %9276 = vmatpush.msra.mxu0 %v3392
        %9277 = vmatmul.f32.gmra.mxu0 %v3671
        %v9278 = vpop.f32.mrf.mxu0
        %v9279 = vadd.f32 %v3667, %v9278
        %9280 = vdwg.mxu0
        %9281 = vmatpush.msra.mxu0 0.0
        %9282 = vmatpush.msra.mxu0 0.0
        %9283 = vmatpush.msra.mxu0 0.0
        %9284 = vmatpush.msra.mxu0 0.0
        %9285 = vmatpush.msra.mxu0 0.0
        %9286 = vmatpush.msra.mxu0 0.0
        %9287 = vmatpush.msra.mxu0 0.0
        %9288 = vmatpush.msra.mxu0 0.0
        %9289 = vmatpush.msra.mxu0 0.0
        %9290 = vmatpush.msra.mxu0 0.0
        %9291 = vmatpush.msra.mxu0 0.0
        %9292 = vmatpush.msra.mxu0 0.0
        %9293 = vmatpush.msra.mxu0 0.0
        %9294 = vmatpush.msra.mxu0 0.0
        %9295 = vmatpush.msra.mxu0 %v4400
        %9296 = vmatpush.msra.mxu0 %v3393
        %9297 = vmatmul.f32.gmra.mxu0 %v3671
        %v9298 = vpop.f32.mrf.mxu0
        %v9299 = vadd.f32 %v3667, %v9298
        %9300 = vdwg.mxu0
        %9301 = vmatpush.msra.mxu0 0.0
        %9302 = vmatpush.msra.mxu0 0.0
        %9303 = vmatpush.msra.mxu0 0.0
        %9304 = vmatpush.msra.mxu0 0.0
        %9305 = vmatpush.msra.mxu0 0.0
        %9306 = vmatpush.msra.mxu0 0.0
        %9307 = vmatpush.msra.mxu0 0.0
        %9308 = vmatpush.msra.mxu0 0.0
        %9309 = vmatpush.msra.mxu0 0.0
        %9310 = vmatpush.msra.mxu0 0.0
        %9311 = vmatpush.msra.mxu0 0.0
        %9312 = vmatpush.msra.mxu0 0.0
        %9313 = vmatpush.msra.mxu0 0.0
        %9314 = vmatpush.msra.mxu0 0.0
        %9315 = vmatpush.msra.mxu0 %v4403
        %9316 = vmatpush.msra.mxu0 %v3394
        %9317 = vmatmul.f32.gmra.mxu0 %v3671
        %v9318 = vpop.f32.mrf.mxu0
        %v9319 = vadd.f32 %v3667, %v9318
        %9320 = vdwg.mxu0
        %9321 = vmatpush.msra.mxu0 0.0
        %9322 = vmatpush.msra.mxu0 0.0
        %9323 = vmatpush.msra.mxu0 0.0
        %9324 = vmatpush.msra.mxu0 0.0
        %9325 = vmatpush.msra.mxu0 0.0
        %9326 = vmatpush.msra.mxu0 0.0
        %9327 = vmatpush.msra.mxu0 0.0
        %9328 = vmatpush.msra.mxu0 0.0
        %9329 = vmatpush.msra.mxu0 0.0
        %9330 = vmatpush.msra.mxu0 0.0
        %9331 = vmatpush.msra.mxu0 0.0
        %9332 = vmatpush.msra.mxu0 0.0
        %9333 = vmatpush.msra.mxu0 0.0
        %9334 = vmatpush.msra.mxu0 0.0
        %9335 = vmatpush.msra.mxu0 %v4406
        %9336 = vmatpush.msra.mxu0 %v3395
        %9337 = vmatmul.f32.gmra.mxu0 %v3671
        %v9338 = vpop.f32.mrf.mxu0
        %v9339 = vadd.f32 %v3667, %v9338
        %9340 = vdwg.mxu0
        %9341 = vmatpush.msra.mxu0 0.0
        %9342 = vmatpush.msra.mxu0 0.0
        %9343 = vmatpush.msra.mxu0 0.0
        %9344 = vmatpush.msra.mxu0 0.0
        %9345 = vmatpush.msra.mxu0 0.0
        %9346 = vmatpush.msra.mxu0 0.0
        %9347 = vmatpush.msra.mxu0 0.0
        %9348 = vmatpush.msra.mxu0 0.0
        %9349 = vmatpush.msra.mxu0 0.0
        %9350 = vmatpush.msra.mxu0 0.0
        %9351 = vmatpush.msra.mxu0 0.0
        %9352 = vmatpush.msra.mxu0 0.0
        %9353 = vmatpush.msra.mxu0 0.0
        %9354 = vmatpush.msra.mxu0 0.0
        %9355 = vmatpush.msra.mxu0 %v4409
        %9356 = vmatpush.msra.mxu0 %v3396
        %9357 = vmatmul.f32.gmra.mxu0 %v3671
        %v9358 = vpop.f32.mrf.mxu0
        %v9359 = vadd.f32 %v3667, %v9358
        %9360 = vdwg.mxu0
        %9361 = vmatpush.msra.mxu0 0.0
        %9362 = vmatpush.msra.mxu0 0.0
        %9363 = vmatpush.msra.mxu0 0.0
        %9364 = vmatpush.msra.mxu0 0.0
        %9365 = vmatpush.msra.mxu0 0.0
        %9366 = vmatpush.msra.mxu0 0.0
        %9367 = vmatpush.msra.mxu0 0.0
        %9368 = vmatpush.msra.mxu0 0.0
        %9369 = vmatpush.msra.mxu0 0.0
        %9370 = vmatpush.msra.mxu0 0.0
        %9371 = vmatpush.msra.mxu0 0.0
        %9372 = vmatpush.msra.mxu0 0.0
        %9373 = vmatpush.msra.mxu0 0.0
        %9374 = vmatpush.msra.mxu0 0.0
        %9375 = vmatpush.msra.mxu0 %v4412
        %9376 = vmatpush.msra.mxu0 %v3397
        %9377 = vmatmul.f32.gmra.mxu0 %v3671
        %v9378 = vpop.f32.mrf.mxu0
        %v9379 = vadd.f32 %v3667, %v9378
        %9380 = vdwg.mxu0
        %9381 = vmatpush.msra.mxu0 0.0
        %9382 = vmatpush.msra.mxu0 0.0
        %9383 = vmatpush.msra.mxu0 0.0
        %9384 = vmatpush.msra.mxu0 0.0
        %9385 = vmatpush.msra.mxu0 0.0
        %9386 = vmatpush.msra.mxu0 0.0
        %9387 = vmatpush.msra.mxu0 0.0
        %9388 = vmatpush.msra.mxu0 0.0
        %9389 = vmatpush.msra.mxu0 0.0
        %9390 = vmatpush.msra.mxu0 0.0
        %9391 = vmatpush.msra.mxu0 0.0
        %9392 = vmatpush.msra.mxu0 0.0
        %9393 = vmatpush.msra.mxu0 0.0
        %9394 = vmatpush.msra.mxu0 0.0
        %9395 = vmatpush.msra.mxu0 %v4415
        %9396 = vmatpush.msra.mxu0 %v3398
        %9397 = vmatmul.f32.gmra.mxu0 %v3671
        %v9398 = vpop.f32.mrf.mxu0
        %v9399 = vadd.f32 %v3667, %v9398
        %9400 = vdwg.mxu0
        %9401 = vmatpush.msra.mxu0 0.0
        %9402 = vmatpush.msra.mxu0 0.0
        %9403 = vmatpush.msra.mxu0 0.0
        %9404 = vmatpush.msra.mxu0 0.0
        %9405 = vmatpush.msra.mxu0 0.0
        %9406 = vmatpush.msra.mxu0 0.0
        %9407 = vmatpush.msra.mxu0 0.0
        %9408 = vmatpush.msra.mxu0 0.0
        %9409 = vmatpush.msra.mxu0 0.0
        %9410 = vmatpush.msra.mxu0 0.0
        %9411 = vmatpush.msra.mxu0 0.0
        %9412 = vmatpush.msra.mxu0 0.0
        %9413 = vmatpush.msra.mxu0 0.0
        %9414 = vmatpush.msra.mxu0 0.0
        %9415 = vmatpush.msra.mxu0 %v4418
        %9416 = vmatpush.msra.mxu0 %v3399
        %9417 = vmatmul.f32.gmra.mxu0 %v3671
        %v9418 = vpop.f32.mrf.mxu0
        %v9419 = vadd.f32 %v3667, %v9418
        %9420 = vdwg.mxu0
        %9421 = vmatpush.msra.mxu0 0.0
        %9422 = vmatpush.msra.mxu0 0.0
        %9423 = vmatpush.msra.mxu0 0.0
        %9424 = vmatpush.msra.mxu0 0.0
        %9425 = vmatpush.msra.mxu0 0.0
        %9426 = vmatpush.msra.mxu0 0.0
        %9427 = vmatpush.msra.mxu0 0.0
        %9428 = vmatpush.msra.mxu0 0.0
        %9429 = vmatpush.msra.mxu0 0.0
        %9430 = vmatpush.msra.mxu0 0.0
        %9431 = vmatpush.msra.mxu0 0.0
        %9432 = vmatpush.msra.mxu0 0.0
        %9433 = vmatpush.msra.mxu0 0.0
        %9434 = vmatpush.msra.mxu0 0.0
        %9435 = vmatpush.msra.mxu0 %v4421
        %9436 = vmatpush.msra.mxu0 %v3400
        %9437 = vmatmul.f32.gmra.mxu0 %v3671
        %v9438 = vpop.f32.mrf.mxu0
        %v9439 = vadd.f32 %v3667, %v9438
        %9440 = vdwg.mxu0
        %9441 = vmatpush.msra.mxu0 0.0
        %9442 = vmatpush.msra.mxu0 0.0
        %9443 = vmatpush.msra.mxu0 0.0
        %9444 = vmatpush.msra.mxu0 0.0
        %9445 = vmatpush.msra.mxu0 0.0
        %9446 = vmatpush.msra.mxu0 0.0
        %9447 = vmatpush.msra.mxu0 0.0
        %9448 = vmatpush.msra.mxu0 0.0
        %9449 = vmatpush.msra.mxu0 0.0
        %9450 = vmatpush.msra.mxu0 0.0
        %9451 = vmatpush.msra.mxu0 0.0
        %9452 = vmatpush.msra.mxu0 0.0
        %9453 = vmatpush.msra.mxu0 0.0
        %9454 = vmatpush.msra.mxu0 0.0
        %9455 = vmatpush.msra.mxu0 %v4424
        %9456 = vmatpush.msra.mxu0 %v3401
        %9457 = vmatmul.f32.gmra.mxu0 %v3671
        %v9458 = vpop.f32.mrf.mxu0
        %v9459 = vadd.f32 %v3667, %v9458
        %9460 = vdwg.mxu0
        %9461 = vmatpush.msra.mxu0 0.0
        %9462 = vmatpush.msra.mxu0 0.0
        %9463 = vmatpush.msra.mxu0 0.0
        %9464 = vmatpush.msra.mxu0 0.0
        %9465 = vmatpush.msra.mxu0 0.0
        %9466 = vmatpush.msra.mxu0 0.0
        %9467 = vmatpush.msra.mxu0 0.0
        %9468 = vmatpush.msra.mxu0 0.0
        %9469 = vmatpush.msra.mxu0 0.0
        %9470 = vmatpush.msra.mxu0 0.0
        %9471 = vmatpush.msra.mxu0 0.0
        %9472 = vmatpush.msra.mxu0 0.0
        %9473 = vmatpush.msra.mxu0 0.0
        %9474 = vmatpush.msra.mxu0 0.0
        %9475 = vmatpush.msra.mxu0 %v4427
        %9476 = vmatpush.msra.mxu0 %v3402
        %9477 = vmatmul.f32.gmra.mxu0 %v3671
        %v9478 = vpop.f32.mrf.mxu0
        %v9479 = vadd.f32 %v3667, %v9478
        %9480 = vdwg.mxu0
        %9481 = vmatpush.msra.mxu0 0.0
        %9482 = vmatpush.msra.mxu0 0.0
        %9483 = vmatpush.msra.mxu0 0.0
        %9484 = vmatpush.msra.mxu0 0.0
        %9485 = vmatpush.msra.mxu0 0.0
        %9486 = vmatpush.msra.mxu0 0.0
        %9487 = vmatpush.msra.mxu0 0.0
        %9488 = vmatpush.msra.mxu0 0.0
        %9489 = vmatpush.msra.mxu0 0.0
        %9490 = vmatpush.msra.mxu0 0.0
        %9491 = vmatpush.msra.mxu0 0.0
        %9492 = vmatpush.msra.mxu0 0.0
        %9493 = vmatpush.msra.mxu0 0.0
        %9494 = vmatpush.msra.mxu0 0.0
        %9495 = vmatpush.msra.mxu0 %v4430
        %9496 = vmatpush.msra.mxu0 %v3403
        %9497 = vmatmul.f32.gmra.mxu0 %v3671
        %v9498 = vpop.f32.mrf.mxu0
        %v9499 = vadd.f32 %v3667, %v9498
        %9500 = vdwg.mxu0
        %9501 = vmatpush.msra.mxu0 0.0
        %9502 = vmatpush.msra.mxu0 0.0
        %9503 = vmatpush.msra.mxu0 0.0
        %9504 = vmatpush.msra.mxu0 0.0
        %9505 = vmatpush.msra.mxu0 0.0
        %9506 = vmatpush.msra.mxu0 0.0
        %9507 = vmatpush.msra.mxu0 0.0
        %9508 = vmatpush.msra.mxu0 0.0
        %9509 = vmatpush.msra.mxu0 0.0
        %9510 = vmatpush.msra.mxu0 0.0
        %9511 = vmatpush.msra.mxu0 0.0
        %9512 = vmatpush.msra.mxu0 0.0
        %9513 = vmatpush.msra.mxu0 0.0
        %9514 = vmatpush.msra.mxu0 0.0
        %9515 = vmatpush.msra.mxu0 %v4433
        %9516 = vmatpush.msra.mxu0 %v3404
        %9517 = vmatmul.f32.gmra.mxu0 %v3671
        %v9518 = vpop.f32.mrf.mxu0
        %v9519 = vadd.f32 %v3667, %v9518
        %9520 = vdwg.mxu0
        %9521 = vmatpush.msra.mxu0 0.0
        %9522 = vmatpush.msra.mxu0 0.0
        %9523 = vmatpush.msra.mxu0 0.0
        %9524 = vmatpush.msra.mxu0 0.0
        %9525 = vmatpush.msra.mxu0 0.0
        %9526 = vmatpush.msra.mxu0 0.0
        %9527 = vmatpush.msra.mxu0 0.0
        %9528 = vmatpush.msra.mxu0 0.0
        %9529 = vmatpush.msra.mxu0 0.0
        %9530 = vmatpush.msra.mxu0 0.0
        %9531 = vmatpush.msra.mxu0 0.0
        %9532 = vmatpush.msra.mxu0 0.0
        %9533 = vmatpush.msra.mxu0 0.0
        %9534 = vmatpush.msra.mxu0 0.0
        %9535 = vmatpush.msra.mxu0 %v4436
        %9536 = vmatpush.msra.mxu0 %v3405
        %9537 = vmatmul.f32.gmra.mxu0 %v3671
        %v9538 = vpop.f32.mrf.mxu0
        %v9539 = vadd.f32 %v3667, %v9538
        %9540 = vdwg.mxu0
        %9541 = vmatpush.msra.mxu0 0.0
        %9542 = vmatpush.msra.mxu0 0.0
        %9543 = vmatpush.msra.mxu0 0.0
        %9544 = vmatpush.msra.mxu0 0.0
        %9545 = vmatpush.msra.mxu0 0.0
        %9546 = vmatpush.msra.mxu0 0.0
        %9547 = vmatpush.msra.mxu0 0.0
        %9548 = vmatpush.msra.mxu0 0.0
        %9549 = vmatpush.msra.mxu0 0.0
        %9550 = vmatpush.msra.mxu0 0.0
        %9551 = vmatpush.msra.mxu0 0.0
        %9552 = vmatpush.msra.mxu0 0.0
        %9553 = vmatpush.msra.mxu0 0.0
        %9554 = vmatpush.msra.mxu0 0.0
        %9555 = vmatpush.msra.mxu0 %v4439
        %9556 = vmatpush.msra.mxu0 %v3406
        %9557 = vmatmul.f32.gmra.mxu0 %v3671
        %v9558 = vpop.f32.mrf.mxu0
        %v9559 = vadd.f32 %v3667, %v9558
        %9560 = vdwg.mxu0
        %v9561 = vmax.f32 %v4459, 0.0
        %v9562 = vmax.f32 %v4479, 0.0
        %v9563 = vmax.f32 %v4499, 0.0
        %v9564 = vmax.f32 %v4519, 0.0
        %v9565 = vmax.f32 %v4539, 0.0
        %v9566 = vmax.f32 %v4559, 0.0
        %v9567 = vmax.f32 %v4579, 0.0
        %v9568 = vmax.f32 %v4599, 0.0
        %v9569 = vmax.f32 %v4619, 0.0
        %v9570 = vmax.f32 %v4639, 0.0
        %v9571 = vmax.f32 %v4659, 0.0
        %v9572 = vmax.f32 %v4679, 0.0
        %v9573 = vmax.f32 %v4699, 0.0
        %v9574 = vmax.f32 %v4719, 0.0
        %v9575 = vmax.f32 %v4739, 0.0
        %v9576 = vmax.f32 %v4759, 0.0
        %v9577 = vmax.f32 %v4779, 0.0
        %v9578 = vmax.f32 %v4799, 0.0
        %v9579 = vmax.f32 %v4819, 0.0
        %v9580 = vmax.f32 %v4839, 0.0
        %v9581 = vmax.f32 %v4859, 0.0
        %v9582 = vmax.f32 %v4879, 0.0
        %v9583 = vmax.f32 %v4899, 0.0
        %v9584 = vmax.f32 %v4919, 0.0
        %v9585 = vmax.f32 %v4939, 0.0
        %v9586 = vmax.f32 %v4959, 0.0
        %v9587 = vmax.f32 %v4979, 0.0
        %v9588 = vmax.f32 %v4999, 0.0
        %v9589 = vmax.f32 %v5019, 0.0
        %v9590 = vmax.f32 %v5039, 0.0
        %v9591 = vmax.f32 %v5059, 0.0
        %v9592 = vmax.f32 %v5079, 0.0
        %v9593 = vmax.f32 %v5099, 0.0
        %v9594 = vmax.f32 %v5119, 0.0
        %v9595 = vmax.f32 %v5139, 0.0
        %v9596 = vmax.f32 %v5159, 0.0
        %v9597 = vmax.f32 %v5179, 0.0
        %v9598 = vmax.f32 %v5199, 0.0
        %v9599 = vmax.f32 %v5219, 0.0
        %v9600 = vmax.f32 %v5239, 0.0
        %v9601 = vmax.f32 %v5259, 0.0
        %v9602 = vmax.f32 %v5279, 0.0
        %v9603 = vmax.f32 %v5299, 0.0
        %v9604 = vmax.f32 %v5319, 0.0
        %v9605 = vmax.f32 %v5339, 0.0
        %v9606 = vmax.f32 %v5359, 0.0
        %v9607 = vmax.f32 %v5379, 0.0
        %v9608 = vmax.f32 %v5399, 0.0
        %v9609 = vmax.f32 %v5419, 0.0
        %v9610 = vmax.f32 %v5439, 0.0
        %v9611 = vmax.f32 %v5459, 0.0
        %v9612 = vmax.f32 %v5479, 0.0
        %v9613 = vmax.f32 %v5499, 0.0
        %v9614 = vmax.f32 %v5519, 0.0
        %v9615 = vmax.f32 %v5539, 0.0
        %v9616 = vmax.f32 %v5559, 0.0
        %v9617 = vmax.f32 %v5579, 0.0
        %v9618 = vmax.f32 %v5599, 0.0
        %v9619 = vmax.f32 %v5619, 0.0
        %v9620 = vmax.f32 %v5639, 0.0
        %v9621 = vmax.f32 %v5659, 0.0
        %v9622 = vmax.f32 %v5679, 0.0
        %v9623 = vmax.f32 %v5699, 0.0
        %v9624 = vmax.f32 %v5719, 0.0
        %v9625 = vmax.f32 %v5739, 0.0
        %v9626 = vmax.f32 %v5759, 0.0
        %v9627 = vmax.f32 %v5779, 0.0
        %v9628 = vmax.f32 %v5799, 0.0
        %v9629 = vmax.f32 %v5819, 0.0
        %v9630 = vmax.f32 %v5839, 0.0
        %v9631 = vmax.f32 %v5859, 0.0
        %v9632 = vmax.f32 %v5879, 0.0
        %v9633 = vmax.f32 %v5899, 0.0
        %v9634 = vmax.f32 %v5919, 0.0
        %v9635 = vmax.f32 %v5939, 0.0
        %v9636 = vmax.f32 %v5959, 0.0
        %v9637 = vmax.f32 %v5979, 0.0
        %v9638 = vmax.f32 %v5999, 0.0
        %v9639 = vmax.f32 %v6019, 0.0
        %v9640 = vmax.f32 %v6039, 0.0
        %v9641 = vmax.f32 %v6059, 0.0
        %v9642 = vmax.f32 %v6079, 0.0
        %v9643 = vmax.f32 %v6099, 0.0
        %v9644 = vmax.f32 %v6119, 0.0
        %v9645 = vmax.f32 %v6139, 0.0
        %v9646 = vmax.f32 %v6159, 0.0
        %v9647 = vmax.f32 %v6179, 0.0
        %v9648 = vmax.f32 %v6199, 0.0
        %v9649 = vmax.f32 %v6219, 0.0
        %v9650 = vmax.f32 %v6239, 0.0
        %v9651 = vmax.f32 %v6259, 0.0
        %v9652 = vmax.f32 %v6279, 0.0
        %v9653 = vmax.f32 %v6299, 0.0
        %v9654 = vmax.f32 %v6319, 0.0
        %v9655 = vmax.f32 %v6339, 0.0
        %v9656 = vmax.f32 %v6359, 0.0
        %v9657 = vmax.f32 %v6379, 0.0
        %v9658 = vmax.f32 %v6399, 0.0
        %v9659 = vmax.f32 %v6419, 0.0
        %v9660 = vmax.f32 %v6439, 0.0
        %v9661 = vmax.f32 %v6459, 0.0
        %v9662 = vmax.f32 %v6479, 0.0
        %v9663 = vmax.f32 %v6499, 0.0
        %v9664 = vmax.f32 %v6519, 0.0
        %v9665 = vmax.f32 %v6539, 0.0
        %v9666 = vmax.f32 %v6559, 0.0
        %v9667 = vmax.f32 %v6579, 0.0
        %v9668 = vmax.f32 %v6599, 0.0
        %v9669 = vmax.f32 %v6619, 0.0
        %v9670 = vmax.f32 %v6639, 0.0
        %v9671 = vmax.f32 %v6659, 0.0
        %v9672 = vmax.f32 %v6679, 0.0
        %v9673 = vmax.f32 %v6699, 0.0
        %v9674 = vmax.f32 %v6719, 0.0
        %v9675 = vmax.f32 %v6739, 0.0
        %v9676 = vmax.f32 %v6759, 0.0
        %v9677 = vmax.f32 %v6779, 0.0
        %v9678 = vmax.f32 %v6799, 0.0
        %v9679 = vmax.f32 %v6819, 0.0
        %v9680 = vmax.f32 %v6839, 0.0
        %v9681 = vmax.f32 %v6859, 0.0
        %v9682 = vmax.f32 %v6879, 0.0
        %v9683 = vmax.f32 %v6899, 0.0
        %v9684 = vmax.f32 %v6919, 0.0
        %v9685 = vmax.f32 %v6939, 0.0
        %v9686 = vmax.f32 %v6959, 0.0
        %v9687 = vmax.f32 %v6979, 0.0
        %v9688 = vmax.f32 %v6999, 0.0
        %v9689 = vmax.f32 %v7019, 0.0
        %v9690 = vmax.f32 %v7039, 0.0
        %v9691 = vmax.f32 %v7059, 0.0
        %v9692 = vmax.f32 %v7079, 0.0
        %v9693 = vmax.f32 %v7099, 0.0
        %v9694 = vmax.f32 %v7119, 0.0
        %v9695 = vmax.f32 %v7139, 0.0
        %v9696 = vmax.f32 %v7159, 0.0
        %v9697 = vmax.f32 %v7179, 0.0
        %v9698 = vmax.f32 %v7199, 0.0
        %v9699 = vmax.f32 %v7219, 0.0
        %v9700 = vmax.f32 %v7239, 0.0
        %v9701 = vmax.f32 %v7259, 0.0
        %v9702 = vmax.f32 %v7279, 0.0
        %v9703 = vmax.f32 %v7299, 0.0
        %v9704 = vmax.f32 %v7319, 0.0
        %v9705 = vmax.f32 %v7339, 0.0
        %v9706 = vmax.f32 %v7359, 0.0
        %v9707 = vmax.f32 %v7379, 0.0
        %v9708 = vmax.f32 %v7399, 0.0
        %v9709 = vmax.f32 %v7419, 0.0
        %v9710 = vmax.f32 %v7439, 0.0
        %v9711 = vmax.f32 %v7459, 0.0
        %v9712 = vmax.f32 %v7479, 0.0
        %v9713 = vmax.f32 %v7499, 0.0
        %v9714 = vmax.f32 %v7519, 0.0
        %v9715 = vmax.f32 %v7539, 0.0
        %v9716 = vmax.f32 %v7559, 0.0
        %v9717 = vmax.f32 %v7579, 0.0
        %v9718 = vmax.f32 %v7599, 0.0
        %v9719 = vmax.f32 %v7619, 0.0
        %v9720 = vmax.f32 %v7639, 0.0
        %v9721 = vmax.f32 %v7659, 0.0
        %v9722 = vmax.f32 %v7679, 0.0
        %v9723 = vmax.f32 %v7699, 0.0
        %v9724 = vmax.f32 %v7719, 0.0
        %v9725 = vmax.f32 %v7739, 0.0
        %v9726 = vmax.f32 %v7759, 0.0
        %v9727 = vmax.f32 %v7779, 0.0
        %v9728 = vmax.f32 %v7799, 0.0
        %v9729 = vmax.f32 %v7819, 0.0
        %v9730 = vmax.f32 %v7839, 0.0
        %v9731 = vmax.f32 %v7859, 0.0
        %v9732 = vmax.f32 %v7879, 0.0
        %v9733 = vmax.f32 %v7899, 0.0
        %v9734 = vmax.f32 %v7919, 0.0
        %v9735 = vmax.f32 %v7939, 0.0
        %v9736 = vmax.f32 %v7959, 0.0
        %v9737 = vmax.f32 %v7979, 0.0
        %v9738 = vmax.f32 %v7999, 0.0
        %v9739 = vmax.f32 %v8019, 0.0
        %v9740 = vmax.f32 %v8039, 0.0
        %v9741 = vmax.f32 %v8059, 0.0
        %v9742 = vmax.f32 %v8079, 0.0
        %v9743 = vmax.f32 %v8099, 0.0
        %v9744 = vmax.f32 %v8119, 0.0
        %v9745 = vmax.f32 %v8139, 0.0
        %v9746 = vmax.f32 %v8159, 0.0
        %v9747 = vmax.f32 %v8179, 0.0
        %v9748 = vmax.f32 %v8199, 0.0
        %v9749 = vmax.f32 %v8219, 0.0
        %v9750 = vmax.f32 %v8239, 0.0
        %v9751 = vmax.f32 %v8259, 0.0
        %v9752 = vmax.f32 %v8279, 0.0
        %v9753 = vmax.f32 %v8299, 0.0
        %v9754 = vmax.f32 %v8319, 0.0
        %v9755 = vmax.f32 %v8339, 0.0
        %v9756 = vmax.f32 %v8359, 0.0
        %v9757 = vmax.f32 %v8379, 0.0
        %v9758 = vmax.f32 %v8399, 0.0
        %v9759 = vmax.f32 %v8419, 0.0
        %v9760 = vmax.f32 %v8439, 0.0
        %v9761 = vmax.f32 %v8459, 0.0
        %v9762 = vmax.f32 %v8479, 0.0
        %v9763 = vmax.f32 %v8499, 0.0
        %v9764 = vmax.f32 %v8519, 0.0
        %v9765 = vmax.f32 %v8539, 0.0
        %v9766 = vmax.f32 %v8559, 0.0
        %v9767 = vmax.f32 %v8579, 0.0
        %v9768 = vmax.f32 %v8599, 0.0
        %v9769 = vmax.f32 %v8619, 0.0
        %v9770 = vmax.f32 %v8639, 0.0
        %v9771 = vmax.f32 %v8659, 0.0
        %v9772 = vmax.f32 %v8679, 0.0
        %v9773 = vmax.f32 %v8699, 0.0
        %v9774 = vmax.f32 %v8719, 0.0
        %v9775 = vmax.f32 %v8739, 0.0
        %v9776 = vmax.f32 %v8759, 0.0
        %v9777 = vmax.f32 %v8779, 0.0
        %v9778 = vmax.f32 %v8799, 0.0
        %v9779 = vmax.f32 %v8819, 0.0
        %v9780 = vmax.f32 %v8839, 0.0
        %v9781 = vmax.f32 %v8859, 0.0
        %v9782 = vmax.f32 %v8879, 0.0
        %v9783 = vmax.f32 %v8899, 0.0
        %v9784 = vmax.f32 %v8919, 0.0
        %v9785 = vmax.f32 %v8939, 0.0
        %v9786 = vmax.f32 %v8959, 0.0
        %v9787 = vmax.f32 %v8979, 0.0
        %v9788 = vmax.f32 %v8999, 0.0
        %v9789 = vmax.f32 %v9019, 0.0
        %v9790 = vmax.f32 %v9039, 0.0
        %v9791 = vmax.f32 %v9059, 0.0
        %v9792 = vmax.f32 %v9079, 0.0
        %v9793 = vmax.f32 %v9099, 0.0
        %v9794 = vmax.f32 %v9119, 0.0
        %v9795 = vmax.f32 %v9139, 0.0
        %v9796 = vmax.f32 %v9159, 0.0
        %v9797 = vmax.f32 %v9179, 0.0
        %v9798 = vmax.f32 %v9199, 0.0
        %v9799 = vmax.f32 %v9219, 0.0
        %v9800 = vmax.f32 %v9239, 0.0
        %v9801 = vmax.f32 %v9259, 0.0
        %v9802 = vmax.f32 %v9279, 0.0
        %v9803 = vmax.f32 %v9299, 0.0
        %v9804 = vmax.f32 %v9319, 0.0
        %v9805 = vmax.f32 %v9339, 0.0
        %v9806 = vmax.f32 %v9359, 0.0
        %v9807 = vmax.f32 %v9379, 0.0
        %v9808 = vmax.f32 %v9399, 0.0
        %v9809 = vmax.f32 %v9419, 0.0
        %v9810 = vmax.f32 %v9439, 0.0
        %v9811 = vmax.f32 %v9459, 0.0
        %v9812 = vmax.f32 %v9479, 0.0
        %v9813 = vmax.f32 %v9499, 0.0
        %v9814 = vmax.f32 %v9519, 0.0
        %v9815 = vmax.f32 %v9539, 0.0
        %v9816 = vmax.f32 %v9559, 0.0
        %v9817 = vadd.f32 %v9561, %v9577
        %v9818 = vadd.f32 %v9562, %v9578
        %v9819 = vadd.f32 %v9563, %v9579
        %v9820 = vadd.f32 %v9564, %v9580
        %v9821 = vadd.f32 %v9565, %v9581
        %v9822 = vadd.f32 %v9566, %v9582
        %v9823 = vadd.f32 %v9567, %v9583
        %v9824 = vadd.f32 %v9568, %v9584
        %v9825 = vadd.f32 %v9569, %v9585
        %v9826 = vadd.f32 %v9570, %v9586
        %v9827 = vadd.f32 %v9571, %v9587
        %v9828 = vadd.f32 %v9572, %v9588
        %v9829 = vadd.f32 %v9573, %v9589
        %v9830 = vadd.f32 %v9574, %v9590
        %v9831 = vadd.f32 %v9575, %v9591
        %v9832 = vadd.f32 %v9576, %v9592
        %v9833 = vadd.f32 %v9817, %v9593
        %v9834 = vadd.f32 %v9818, %v9594
        %v9835 = vadd.f32 %v9819, %v9595
        %v9836 = vadd.f32 %v9820, %v9596
        %v9837 = vadd.f32 %v9821, %v9597
        %v9838 = vadd.f32 %v9822, %v9598
        %v9839 = vadd.f32 %v9823, %v9599
        %v9840 = vadd.f32 %v9824, %v9600
        %v9841 = vadd.f32 %v9825, %v9601
        %v9842 = vadd.f32 %v9826, %v9602
        %v9843 = vadd.f32 %v9827, %v9603
        %v9844 = vadd.f32 %v9828, %v9604
        %v9845 = vadd.f32 %v9829, %v9605
        %v9846 = vadd.f32 %v9830, %v9606
        %v9847 = vadd.f32 %v9831, %v9607
        %v9848 = vadd.f32 %v9832, %v9608
        %v9849 = vadd.f32 %v9833, %v9609
        %v9850 = vadd.f32 %v9834, %v9610
        %v9851 = vadd.f32 %v9835, %v9611
        %v9852 = vadd.f32 %v9836, %v9612
        %v9853 = vadd.f32 %v9837, %v9613
        %v9854 = vadd.f32 %v9838, %v9614
        %v9855 = vadd.f32 %v9839, %v9615
        %v9856 = vadd.f32 %v9840, %v9616
        %v9857 = vadd.f32 %v9841, %v9617
        %v9858 = vadd.f32 %v9842, %v9618
        %v9859 = vadd.f32 %v9843, %v9619
        %v9860 = vadd.f32 %v9844, %v9620
        %v9861 = vadd.f32 %v9845, %v9621
        %v9862 = vadd.f32 %v9846, %v9622
        %v9863 = vadd.f32 %v9847, %v9623
        %v9864 = vadd.f32 %v9848, %v9624
        %v9865 = vadd.f32 %v9849, %v9625
        %v9866 = vadd.f32 %v9850, %v9626
        %v9867 = vadd.f32 %v9851, %v9627
        %v9868 = vadd.f32 %v9852, %v9628
        %v9869 = vadd.f32 %v9853, %v9629
        %v9870 = vadd.f32 %v9854, %v9630
        %v9871 = vadd.f32 %v9855, %v9631
        %v9872 = vadd.f32 %v9856, %v9632
        %v9873 = vadd.f32 %v9857, %v9633
        %v9874 = vadd.f32 %v9858, %v9634
        %v9875 = vadd.f32 %v9859, %v9635
        %v9876 = vadd.f32 %v9860, %v9636
        %v9877 = vadd.f32 %v9861, %v9637
        %v9878 = vadd.f32 %v9862, %v9638
        %v9879 = vadd.f32 %v9863, %v9639
        %v9880 = vadd.f32 %v9864, %v9640
        %v9881 = vadd.f32 %v9865, %v9641
        %v9882 = vadd.f32 %v9866, %v9642
        %v9883 = vadd.f32 %v9867, %v9643
        %v9884 = vadd.f32 %v9868, %v9644
        %v9885 = vadd.f32 %v9869, %v9645
        %v9886 = vadd.f32 %v9870, %v9646
        %v9887 = vadd.f32 %v9871, %v9647
        %v9888 = vadd.f32 %v9872, %v9648
        %v9889 = vadd.f32 %v9873, %v9649
        %v9890 = vadd.f32 %v9874, %v9650
        %v9891 = vadd.f32 %v9875, %v9651
        %v9892 = vadd.f32 %v9876, %v9652
        %v9893 = vadd.f32 %v9877, %v9653
        %v9894 = vadd.f32 %v9878, %v9654
        %v9895 = vadd.f32 %v9879, %v9655
        %v9896 = vadd.f32 %v9880, %v9656
        %v9897 = vadd.f32 %v9881, %v9657
        %v9898 = vadd.f32 %v9882, %v9658
        %v9899 = vadd.f32 %v9883, %v9659
        %v9900 = vadd.f32 %v9884, %v9660
        %v9901 = vadd.f32 %v9885, %v9661
        %v9902 = vadd.f32 %v9886, %v9662
        %v9903 = vadd.f32 %v9887, %v9663
        %v9904 = vadd.f32 %v9888, %v9664
        %v9905 = vadd.f32 %v9889, %v9665
        %v9906 = vadd.f32 %v9890, %v9666
        %v9907 = vadd.f32 %v9891, %v9667
        %v9908 = vadd.f32 %v9892, %v9668
        %v9909 = vadd.f32 %v9893, %v9669
        %v9910 = vadd.f32 %v9894, %v9670
        %v9911 = vadd.f32 %v9895, %v9671
        %v9912 = vadd.f32 %v9896, %v9672
        %v9913 = vadd.f32 %v9897, %v9673
        %v9914 = vadd.f32 %v9898, %v9674
        %v9915 = vadd.f32 %v9899, %v9675
        %v9916 = vadd.f32 %v9900, %v9676
        %v9917 = vadd.f32 %v9901, %v9677
        %v9918 = vadd.f32 %v9902, %v9678
        %v9919 = vadd.f32 %v9903, %v9679
        %v9920 = vadd.f32 %v9904, %v9680
        %v9921 = vadd.f32 %v9905, %v9681
        %v9922 = vadd.f32 %v9906, %v9682
        %v9923 = vadd.f32 %v9907, %v9683
        %v9924 = vadd.f32 %v9908, %v9684
        %v9925 = vadd.f32 %v9909, %v9685
        %v9926 = vadd.f32 %v9910, %v9686
        %v9927 = vadd.f32 %v9911, %v9687
        %v9928 = vadd.f32 %v9912, %v9688
        %v9929 = vadd.f32 %v9913, %v9689
        %v9930 = vadd.f32 %v9914, %v9690
        %v9931 = vadd.f32 %v9915, %v9691
        %v9932 = vadd.f32 %v9916, %v9692
        %v9933 = vadd.f32 %v9917, %v9693
        %v9934 = vadd.f32 %v9918, %v9694
        %v9935 = vadd.f32 %v9919, %v9695
        %v9936 = vadd.f32 %v9920, %v9696
        %v9937 = vadd.f32 %v9921, %v9697
        %v9938 = vadd.f32 %v9922, %v9698
        %v9939 = vadd.f32 %v9923, %v9699
        %v9940 = vadd.f32 %v9924, %v9700
        %v9941 = vadd.f32 %v9925, %v9701
        %v9942 = vadd.f32 %v9926, %v9702
        %v9943 = vadd.f32 %v9927, %v9703
        %v9944 = vadd.f32 %v9928, %v9704
        %v9945 = vadd.f32 %v9929, %v9705
        %v9946 = vadd.f32 %v9930, %v9706
        %v9947 = vadd.f32 %v9931, %v9707
        %v9948 = vadd.f32 %v9932, %v9708
        %v9949 = vadd.f32 %v9933, %v9709
        %v9950 = vadd.f32 %v9934, %v9710
        %v9951 = vadd.f32 %v9935, %v9711
        %v9952 = vadd.f32 %v9936, %v9712
        %v9953 = vadd.f32 %v9937, %v9713
        %v9954 = vadd.f32 %v9938, %v9714
        %v9955 = vadd.f32 %v9939, %v9715
        %v9956 = vadd.f32 %v9940, %v9716
        %v9957 = vadd.f32 %v9941, %v9717
        %v9958 = vadd.f32 %v9942, %v9718
        %v9959 = vadd.f32 %v9943, %v9719
        %v9960 = vadd.f32 %v9944, %v9720
        %v9961 = vadd.f32 %v9945, %v9721
        %v9962 = vadd.f32 %v9946, %v9722
        %v9963 = vadd.f32 %v9947, %v9723
        %v9964 = vadd.f32 %v9948, %v9724
        %v9965 = vadd.f32 %v9949, %v9725
        %v9966 = vadd.f32 %v9950, %v9726
        %v9967 = vadd.f32 %v9951, %v9727
        %v9968 = vadd.f32 %v9952, %v9728
        %v9969 = vadd.f32 %v9953, %v9729
        %v9970 = vadd.f32 %v9954, %v9730
        %v9971 = vadd.f32 %v9955, %v9731
        %v9972 = vadd.f32 %v9956, %v9732
        %v9973 = vadd.f32 %v9957, %v9733
        %v9974 = vadd.f32 %v9958, %v9734
        %v9975 = vadd.f32 %v9959, %v9735
        %v9976 = vadd.f32 %v9960, %v9736
        %v9977 = vadd.f32 %v9961, %v9737
        %v9978 = vadd.f32 %v9962, %v9738
        %v9979 = vadd.f32 %v9963, %v9739
        %v9980 = vadd.f32 %v9964, %v9740
        %v9981 = vadd.f32 %v9965, %v9741
        %v9982 = vadd.f32 %v9966, %v9742
        %v9983 = vadd.f32 %v9967, %v9743
        %v9984 = vadd.f32 %v9968, %v9744
        %v9985 = vadd.f32 %v9969, %v9745
        %v9986 = vadd.f32 %v9970, %v9746
        %v9987 = vadd.f32 %v9971, %v9747
        %v9988 = vadd.f32 %v9972, %v9748
        %v9989 = vadd.f32 %v9973, %v9749
        %v9990 = vadd.f32 %v9974, %v9750
        %v9991 = vadd.f32 %v9975, %v9751
        %v9992 = vadd.f32 %v9976, %v9752
        %v9993 = vadd.f32 %v9977, %v9753
        %v9994 = vadd.f32 %v9978, %v9754
        %v9995 = vadd.f32 %v9979, %v9755
        %v9996 = vadd.f32 %v9980, %v9756
        %v9997 = vadd.f32 %v9981, %v9757
        %v9998 = vadd.f32 %v9982, %v9758
        %v9999 = vadd.f32 %v9983, %v9759
        %v10000 = vadd.f32 %v9984, %v9760
        %v10001 = vadd.f32 %v9985, %v9761
        %v10002 = vadd.f32 %v9986, %v9762
        %v10003 = vadd.f32 %v9987, %v9763
        %v10004 = vadd.f32 %v9988, %v9764
        %v10005 = vadd.f32 %v9989, %v9765
        %v10006 = vadd.f32 %v9990, %v9766
        %v10007 = vadd.f32 %v9991, %v9767
        %v10008 = vadd.f32 %v9992, %v9768
        %v10009 = vadd.f32 %v9993, %v9769
        %v10010 = vadd.f32 %v9994, %v9770
        %v10011 = vadd.f32 %v9995, %v9771
        %v10012 = vadd.f32 %v9996, %v9772
        %v10013 = vadd.f32 %v9997, %v9773
        %v10014 = vadd.f32 %v9998, %v9774
        %v10015 = vadd.f32 %v9999, %v9775
        %v10016 = vadd.f32 %v10000, %v9776
        %v10017 = vadd.f32 %v10001, %v9777
        %v10018 = vadd.f32 %v10002, %v9778
        %v10019 = vadd.f32 %v10003, %v9779
        %v10020 = vadd.f32 %v10004, %v9780
        %v10021 = vadd.f32 %v10005, %v9781
        %v10022 = vadd.f32 %v10006, %v9782
        %v10023 = vadd.f32 %v10007, %v9783
        %v10024 = vadd.f32 %v10008, %v9784
        %v10025 = vadd.f32 %v10009, %v9785
        %v10026 = vadd.f32 %v10010, %v9786
        %v10027 = vadd.f32 %v10011, %v9787
        %v10028 = vadd.f32 %v10012, %v9788
        %v10029 = vadd.f32 %v10013, %v9789
        %v10030 = vadd.f32 %v10014, %v9790
        %v10031 = vadd.f32 %v10015, %v9791
        %v10032 = vadd.f32 %v10016, %v9792
        %v10033 = vadd.f32 %v10017, %v9793
        %v10034 = vadd.f32 %v10018, %v9794
        %v10035 = vadd.f32 %v10019, %v9795
        %v10036 = vadd.f32 %v10020, %v9796
        %v10037 = vadd.f32 %v10021, %v9797
        %v10038 = vadd.f32 %v10022, %v9798
        %v10039 = vadd.f32 %v10023, %v9799
        %v10040 = vadd.f32 %v10024, %v9800
        %v10041 = vadd.f32 %v10025, %v9801
        %v10042 = vadd.f32 %v10026, %v9802
        %v10043 = vadd.f32 %v10027, %v9803
        %v10044 = vadd.f32 %v10028, %v9804
        %v10045 = vadd.f32 %v10029, %v9805
        %v10046 = vadd.f32 %v10030, %v9806
        %v10047 = vadd.f32 %v10031, %v9807
        %v10048 = vadd.f32 %v10032, %v9808
        %v10049 = vadd.f32 %v10033, %v9809
        %v10050 = vadd.f32 %v10034, %v9810
        %v10051 = vadd.f32 %v10035, %v9811
        %v10052 = vadd.f32 %v10036, %v9812
        %v10053 = vadd.f32 %v10037, %v9813
        %v10054 = vadd.f32 %v10038, %v9814
        %v10055 = vadd.f32 %v10039, %v9815
        %v10056 = vadd.f32 %v10040, %v9816
        %v10057 = vadd.f32 %v10041, %v10042
        %v10058 = vadd.f32 %v10057, %v10043
        %v10059 = vadd.f32 %v10058, %v10044
        %v10060 = vadd.f32 %v10059, %v10045
        %v10061 = vadd.f32 %v10060, %v10046
        %v10062 = vadd.f32 %v10061, %v10047
        %v10063 = vadd.f32 %v10062, %v10048
        %v10064 = vadd.f32 %v10063, %v10049
        %v10065 = vadd.f32 %v10064, %v10050
        %v10066 = vadd.f32 %v10065, %v10051
        %v10067 = vadd.f32 %v10066, %v10052
        %v10068 = vadd.f32 %v10067, %v10053
        %v10069 = vadd.f32 %v10068, %v10054
        %v10070 = vadd.f32 %v10069, %v10055
        %v10071 = vadd.f32 %v10070, %v10056
        %v10072 = vmul.f32 %v10071, 0.00390625
        %v10073 = vld [vmem:[%s3] sm:$0xff]
        %v10074 = vld [vmem:[%s3 + $0x8] sm:$0xff]
        %v10075 = vld [vmem:[%s3 + $0x10] sm:$0xff]
        %v10076 = vld [vmem:[%s3 + $0x18] sm:$0xff]
        %v10077 = vld [vmem:[%s4] sm:$0xff]
        %v10078 = vld [vmem:[%s4 + $0x8] sm:$0xff]
        %v10079 = vld [vmem:[%s4 + $0x10] sm:$0xff]
        %v10080 = vld [vmem:[%s4 + $0x18] sm:$0xff]
        %10082 = vset.pattern.permute.xlu0 0
        %10083 = vperm.xlu0 %10082, %v10077
        %v10084 = vpop.permute.xlu0 %10083
        %10087 = vset.pattern.permute.xlu0 0
        %10088 = vperm.xlu0 %10087, %v10078
        %v10089 = vpop.permute.xlu0 %10088
        %10092 = vset.pattern.permute.xlu0 0
        %10093 = vperm.xlu0 %10092, %v10079
        %v10094 = vpop.permute.xlu0 %10093
        %10097 = vset.pattern.permute.xlu0 0
        %10098 = vperm.xlu0 %10097, %v10080
        %v10099 = vpop.permute.xlu0 %10098
        %vm10101 = vcmask 64512
        %v10103 = vsel %vm10101, %v10073, 0
        %v10106 = vsel %vm10101, %v10074, 0
        %v10109 = vsel %vm10101, %v10075, 0
        %v10112 = vsel %vm10101, %v10076, 0
        %10114 = vmatpush.msra.mxu0 0.0
        %10115 = vmatpush.msra.mxu0 0.0
        %10116 = vmatpush.msra.mxu0 0.0
        %10117 = vmatpush.msra.mxu0 0.0
        %10118 = vmatpush.msra.mxu0 0.0
        %10119 = vmatpush.msra.mxu0 0.0
        %10120 = vmatpush.msra.mxu0 0.0
        %10121 = vmatpush.msra.mxu0 0.0
        %10122 = vmatpush.msra.mxu0 0.0
        %10123 = vmatpush.msra.mxu0 0.0
        %10124 = vmatpush.msra.mxu0 0.0
        %10125 = vmatpush.msra.mxu0 0.0
        %10126 = vmatpush.msra.mxu0 0.0
        %10127 = vmatpush.msra.mxu0 0.0
        %10128 = vmatpush.msra.mxu0 0.0
        %10129 = vmatpush.msra.mxu0 %v10072
        %10130 = vmatmul.f32.gmra.mxu0 %v10103
        %v10131 = vpop.f32.mrf.mxu0
        %v10132 = vadd.f32 %v10084, %v10131
        %10133 = vmatmul.f32.gmra.mxu0 %v10106
        %v10134 = vpop.f32.mrf.mxu0
        %v10135 = vadd.f32 %v10089, %v10134
        %10136 = vmatmul.f32.gmra.mxu0 %v10109
        %v10137 = vpop.f32.mrf.mxu0
        %v10138 = vadd.f32 %v10094, %v10137
        %10139 = vmatmul.f32.gmra.mxu0 %v10112
        %v10140 = vpop.f32.mrf.mxu0
        %v10141 = vadd.f32 %v10099, %v10140
        %10142 = vdwg.mxu0
        %v10143 = vld [vmem:[%s5] sm:$0xf]
        %v10144 = vld [vmem:[%s6] sm:$0xf]
        %10146 = vset.pattern.permute.xlu0 0
        %10147 = vperm.xlu0 %10146, %v10144
        %v10148 = vpop.permute.xlu0 %10147
        %vm10150 = vcmask 261120
        %v10152 = vsel %vm10150, %v10143, 0
        %10154 = vmatpush.msra.mxu0 0.0
        %10155 = vmatpush.msra.mxu0 0.0
        %10156 = vmatpush.msra.mxu0 0.0
        %10157 = vmatpush.msra.mxu0 0.0
        %10158 = vmatpush.msra.mxu0 0.0
        %10159 = vmatpush.msra.mxu0 0.0
        %10160 = vmatpush.msra.mxu0 0.0
        %10161 = vmatpush.msra.mxu0 0.0
        %10162 = vmatpush.msra.mxu0 0.0
        %10163 = vmatpush.msra.mxu0 0.0
        %10164 = vmatpush.msra.mxu0 0.0
        %10165 = vmatpush.msra.mxu0 0.0
        %10166 = vmatpush.msra.mxu0 %v10141
        %10167 = vmatpush.msra.mxu0 %v10138
        %10168 = vmatpush.msra.mxu0 %v10135
        %10169 = vmatpush.msra.mxu0 %v10132
        %10170 = vmatmul.f32.gmra.mxu0 %v10152
        %v10171 = vpop.f32.mrf.mxu0
        %v10172 = vadd.f32 %v10148, %v10171
        %10173 = vdwg.mxu0
        %10174 = vst [vmem:[%s269] sm:$0xf] %v10172
        %s10175 = sand.u32 %s181, 1
        %s10176 = scalar_lea.sflag [#allocation4], %s10175
        %s10177 = sand.u32 %s181, 1
        %s10178 = smul.addr %s10177, 4
        %s10179 = scalar_lea.vmem [#allocation3], %s10178
        // Predicated region
        $region49: #{cnn_forward.1} parent=47 // pred_check
          %p10180 = pneg %p191
        $region50: #{cnn_forward.1} parent=47 // pred_check_branch
          %10182 = sbr.rel (%p10180) target = $region52
        $region51: #{cnn_forward.1} parent=47 // pred_region
          %10184 = vsyncadd %s10176, 0
          %s10185 = smul.addr %s21, 4
          %s10186 = scalar_lea.hbm %s7, %s10185
          %s10188 = sshll.u32 %s10179, 4
          %s10189 = int_to_ptr.vmem [resolvable:$true] %s10188
          %s10190 = sshll.u32 %s10186, 4
          %s10191 = int_to_ptr.hbm [resolvable:$true] %s10190
          %10193 = dma.vmem_to_hbm [thread:$0]  %s10189, 64, %s10191, %s10176
        $region52: #{cnn_forward.1} parent=47 // pred_fallthru
          _
      $region48: #{cnn_forward.1} parent=5 // pred_fallthru
        _
      %p10194 = scmp.le.s32.totalorder 2, %s16
      // Predicated region
      $region53: #{cnn_forward.1} parent=5 // pred_check
        %p10195 = pneg %p10194
      $region54: #{cnn_forward.1} parent=5 // pred_check_branch
        %10197 = sbr.rel (%p10195) target = $region56
      $region55: #{cnn_forward.1} parent=5 // pred_region
        %s10198 = ssub.s32 %s16, 2
        // Predicated region
        $region57: #{cnn_forward.1} parent=55 // pred_check
          %p10199 = pneg %p197
        $region58: #{cnn_forward.1} parent=55 // pred_check_branch
          %10201 = sbr.rel (%p10199) target = $region60
        $region59: #{cnn_forward.1} parent=55 // pred_region
          %s10202 = sand.u32 %s182, 1
          %s10203 = scalar_lea.sflag [#allocation4], %s10202
          %s10204 = sand.u32 %s182, 1
          %s10205 = smul.addr %s10204, 4
          %s10206 = scalar_lea.vmem [#allocation3], %s10205
          %10208 = dma.done %s10203, 64
        $region60: #{cnn_forward.1} parent=55 // pred_fallthru
          _
      $region56: #{cnn_forward.1} parent=5 // pred_fallthru
        _
    $region6: #{cnn_forward.1} parent=1 // loop_footer
      %s20 = sadd.s32 1, %s16
    $region7: #{cnn_forward.1} parent=1 // loop_footer_branch
      %15 = sbr.rel target = $region3
    $region8: #{cnn_forward.1} parent=1 // loop_exit
      _
    %10209 = vsyncpa [#allocation4], 1
    %s10210 = scalar_lea.sflag [#allocation4], 1
    %10211 = vsyncpa %s10210, 1

</llo_original>
